<compile_context>
chip_gen: v7x
topology: tpu7x:2x2x1
jax: 0.10.0
libtpu: 0.0.40
codegen_flags: <defaults>
</compile_context>

<pallas_src>
import math

import jax
import jax.numpy as jnp
from jax.experimental import pallas as pl
from jax.experimental.pallas import tpu as pltpu


def bilstm_proj_kernel(x_ref, wx_ref, whh_ref, b_ref, wp_ref, hc0_ref, out_ref,
                       xin_ref, hall_ref):
    TN, K, D = x_ref.shape
    H = D                       # hid_dim == enc_dim for this module
    mxu_dtype = wx_ref.dtype    # weights arrive pre-cast (bf16 default, f32 for checks)
    f32 = jnp.float32

    # ---- hoisted input projection: ONE MXU matmul for both directions ---------
    # (TN, K, D) -> (TN*K, D): K == 8, so merging the leading dims keeps every
    # (8, 128) VMEM tile intact (no relayout).
    x2 = x_ref[...].astype(mxu_dtype).reshape(TN * K, D)
    xin_ref[...] = (jnp.dot(x2, wx_ref[...], preferred_element_type=f32)
                    + b_ref[...]).reshape(TN, K, 8 * H)

    whh = whh_ref[...]                                            # (2H, 8H) block-diag
    # The module ties the initial state across directions and batch
    # (hidden_init.repeat(2, B*S, 1) / cell_init.repeat(2, B*S, 1)).
    h0 = jnp.broadcast_to(hc0_ref[0:1, :].astype(f32), (TN, H))
    c0 = jnp.broadcast_to(hc0_ref[1:2, :].astype(f32), (TN, H))
    h_f, c_f = h0, c0
    h_b, c_b = h0, c0

    # ---- fused fwd(t) / bwd(K-1-t) recurrence ---------------------------------
    # K is static and small (seg_len = 8); the per-step state (4 x (TN, H) vregs)
    # plus the per-step scratch writes keep live ranges bounded even unrolled.
    for t in range(K):
        h_cat = jnp.concatenate([h_f, h_b], axis=-1).astype(mxu_dtype)   # (TN, 2H)
        rec = jnp.dot(h_cat, whh, preferred_element_type=f32)            # (TN, 8H)
        g_fwd = rec[:, 0:4 * H] + xin_ref[:, t, 0:4 * H]
        g_bwd = rec[:, 4 * H:8 * H] + xin_ref[:, K - 1 - t, 4 * H:8 * H]

        # PyTorch gate order: i, f, g, o (slices are vreg-aligned for H = 128).
        i_f = jax.nn.sigmoid(g_fwd[:, 0:H])
        f_f = jax.nn.sigmoid(g_fwd[:, H:2 * H])
        gg_f = jnp.tanh(g_fwd[:, 2 * H:3 * H])
        o_f = jax.nn.sigmoid(g_fwd[:, 3 * H:4 * H])
        c_f = f_f * c_f + i_f * gg_f
        h_f = o_f * jnp.tanh(c_f)

        i_b = jax.nn.sigmoid(g_bwd[:, 0:H])
        f_b = jax.nn.sigmoid(g_bwd[:, H:2 * H])
        gg_b = jnp.tanh(g_bwd[:, 2 * H:3 * H])
        o_b = jax.nn.sigmoid(g_bwd[:, 3 * H:4 * H])
        c_b = f_b * c_b + i_b * gg_b
        h_b = o_b * jnp.tanh(c_b)

        # Park hidden states in VMEM scratch; the bwd state computed at step t
        # belongs to output time K-1-t (PyTorch bidirectional semantics).
        hall_ref[:, t, 0:H] = h_f
        hall_ref[:, K - 1 - t, H:2 * H] = h_b

    # ---- final projection: one (TN*K, 2H) x (2H, D) matmul --------------------
    h_all = hall_ref[...].astype(mxu_dtype).reshape(TN * K, 2 * H)
    out = jnp.dot(h_all, wp_ref[...], preferred_element_type=f32)
    out_ref[...] = out.reshape(TN, K, D).astype(out_ref.dtype)


def _pick_tile_n(N):
    """Largest tile leaving >= 2 grid steps (v7x megacore) with 8-row alignment."""
    if N % 2 == 0 and (N // 2) % 8 == 0:
        return N // 2
    return N


def _replicated(shape):
    nd = len(shape)
    return pl.BlockSpec(shape, lambda i, _nd=nd: (0,) * _nd)


def bilstm_proj(x, params, *, tile_n=None, mxu_dtype=jnp.bfloat16,
                vmem_limit_bytes=32 * 1024 * 1024):
    """x: (N, K, D) float32 -> (N, K, D).

    mxu_dtype: operand dtype for the MXU matmuls (bf16 recommended on v6e/v7x;
    pass jnp.float32 for tight numerical checks).  All gate / state math is f32.
    """
    N, K, D = x.shape
    H = D
    if tile_n is None:
        tile_n = _pick_tile_n(N)
    assert N % tile_n == 0
    f32 = jnp.float32

    # Both directions' input weights fused into one (D, 8H) matrix; biases folded.
    wx = jnp.concatenate(
        [params["W_ih_f"].T, params["W_ih_b"].T], axis=1).astype(mxu_dtype)   # (D, 8H)
    b = jnp.concatenate(
        [params["b_ih_f"] + params["b_hh_f"],
         params["b_ih_b"] + params["b_hh_b"]], axis=0).astype(f32)[None, :]   # (1, 8H)

    whh_f_t = params["W_hh_f"].T.astype(mxu_dtype)                            # (H, 4H)
    whh_b_t = params["W_hh_b"].T.astype(mxu_dtype)
    z = jnp.zeros((H, 4 * H), mxu_dtype)
    # Block-diagonal recurrent weight: [h_f | h_b] @ whh -> [fwd gates | bwd gates].
    whh = jnp.concatenate(
        [jnp.concatenate([whh_f_t, z], axis=1),
         jnp.concatenate([z, whh_b_t], axis=1)], axis=0)                      # (2H, 8H)

    wp = params["W_proj"].T.astype(mxu_dtype)                                 # (2H, D)
    hc0 = jnp.stack([params["hidden_init"], params["cell_init"]], axis=0).astype(f32)

    grid_spec = pltpu.PrefetchScalarGridSpec(
        num_scalar_prefetch=0,
        grid=(N // tile_n,),
        in_specs=[
            pl.BlockSpec((tile_n, K, D), lambda i: (i, 0, 0)),
            _replicated((D, 8 * H)),       # fused input weights (both directions)
            _replicated((2 * H, 8 * H)),   # block-diag recurrent weight
            _replicated((1, 8 * H)),       # fused combined biases
            _replicated((2 * H, D)),       # projection weight (transposed)
            _replicated((2, D)),           # [hidden_init; cell_init]
        ],
        out_specs=pl.BlockSpec((tile_n, K, D), lambda i: (i, 0, 0)),
        scratch_shapes=[
            pltpu.VMEM((tile_n, K, 8 * H), f32),   # input projection (+bias), fwd|bwd
            pltpu.VMEM((tile_n, K, 2 * H), f32),   # [h_fwd | h_bwd] per output time
        ],
    )
    return pl.pallas_call(
        bilstm_proj_kernel,
        out_shape=jax.ShapeDtypeStruct((N, K, D), x.dtype),
        grid_spec=grid_spec,
        compiler_params=pltpu.CompilerParams(
            dimension_semantics=("parallel",),
            vmem_limit_bytes=vmem_limit_bytes),
    )(x, wx, whh, b, wp, hc0)


def bilstm_proj_ref(x, params):
    """Pure-JAX reference of the PyTorch forward (for correctness check)."""
    N, K, D = x.shape
    H = D
    h0 = jnp.broadcast_to(params["hidden_init"][None, :], (N, H))
    c0 = jnp.broadcast_to(params["cell_init"][None, :], (N, H))

    def run(direction_ts, w_ih, w_hh, b_ih, b_hh):
        h, c = h0, c0
        outs = [None] * K
        for t in direction_ts:
            g = x[:, t, :] @ w_ih.T + h @ w_hh.T + b_ih + b_hh
            i = jax.nn.sigmoid(g[:, :H])
            f = jax.nn.sigmoid(g[:, H:2 * H])
            gg = jnp.tanh(g[:, 2 * H:3 * H])
            o = jax.nn.sigmoid(g[:, 3 * H:])
            c = f * c + i * gg
            h = o * jnp.tanh(c)
            outs[t] = h
        return jnp.stack(outs, axis=1)

    fwd = run(range(K), params["W_ih_f"], params["W_hh_f"],
              params["b_ih_f"], params["b_hh_f"])
    bwd = run(range(K - 1, -1, -1), params["W_ih_b"], params["W_hh_b"],
              params["b_ih_b"], params["b_hh_b"])
    rnn_out = jnp.concatenate([fwd, bwd], axis=-1)
    return rnn_out @ params["W_proj"].T


def make_params(key, enc_dim):
    D = enc_dim
    std = 1.0 / math.sqrt(D)
    ks = jax.random.split(key, 12)
    u = lambda k, s: jax.random.uniform(k, s, jnp.float32, -std, std)
    return {
        "W_ih_f": u(ks[0], (4 * D, D)),
        "W_hh_f": u(ks[1], (4 * D, D)),
        "b_ih_f": u(ks[2], (4 * D,)),
        "b_hh_f": u(ks[3], (4 * D,)),
        "W_ih_b": u(ks[4], (4 * D, D)),
        "W_hh_b": u(ks[5], (4 * D, D)),
        "b_ih_b": u(ks[6], (4 * D,)),
        "b_hh_b": u(ks[7], (4 * D,)),
        "W_proj": u(ks[8], (D, 2 * D)),                               # Linear(2D -> D, no bias)
        "hidden_init": jax.random.uniform(ks[9], (D,), jnp.float32),  # torch.rand
        "cell_init": jax.random.uniform(ks[10], (D,), jnp.float32),   # torch.rand
    }


if __name__ == "__main__":
    enc_dim = 128     # D (paper's setting; D == 128 lanes -> lane-dense blocks)
    B, S, K = 2, 8, 8
    N = B * S         # batch of intra-segments: [B*S, K, D]

    key = jax.random.PRNGKey(0)
    kp, kx = jax.random.split(key)
    params = make_params(kp, enc_dim)
    x = jax.random.normal(kx, (N, K, enc_dim), jnp.float32)

    ref = bilstm_proj_ref(x, params)

    # f32 MXU path: tight check against the pure-JAX reference.
    out_f32 = jax.block_until_ready(bilstm_proj(x, params, mxu_dtype=jnp.float32))
    assert out_f32.shape == (N, K, enc_dim)
    assert jnp.allclose(out_f32, ref, atol=1e-3, rtol=1e-3), "f32 kernel mismatch"

    # bf16-operand / f32-accumulate path (perf default on v6e/v7x): looser check.
    out_bf16 = jax.block_until_ready(bilstm_proj(x, params, mxu_dtype=jnp.bfloat16))
    rel_err = jnp.linalg.norm(out_bf16 - ref) / jnp.linalg.norm(ref)
    assert float(rel_err) < 5e-2, f"bf16 kernel rel err too high: {float(rel_err)}"

    print("KERNEL_OK")
</pallas_src>

<mosaic_0001>
module attributes {stable_mosaic.version = 11 : i64} {
  func.func @bilstm_proj_kernel(%arg0: i32, %arg1: memref<8x8x128xf32, #tpu.memory_space<vmem>>, %arg2: memref<128x1024xf32, #tpu.memory_space<vmem>>, %arg3: memref<256x1024xf32, #tpu.memory_space<vmem>>, %arg4: memref<1x1024xf32, #tpu.memory_space<vmem>>, %arg5: memref<256x128xf32, #tpu.memory_space<vmem>>, %arg6: memref<2x128xf32, #tpu.memory_space<vmem>>, %arg7: memref<8x8x128xf32, #tpu.memory_space<vmem>>, %arg8: memref<8x8x1024xf32, #tpu.memory_space<vmem>>, %arg9: memref<8x8x256xf32, #tpu.memory_space<vmem>>) attributes {dimension_semantics = [#tpu.dimension_semantics<parallel>], iteration_bounds = array<i64: 2>, scalar_prefetch = 0 : i64, scratch_operands = 2 : i64, tpu.core_type = #tpu.core_type<tc>, window_params = [{transform_indices = @transform_0, window_bounds = array<i64: 8, 8, 128>}, {pipeline_mode = #tpu.pipeline_mode<synchronous>, transform_indices = @transform_1, window_bounds = array<i64: 128, 1024>}, {pipeline_mode = #tpu.pipeline_mode<synchronous>, transform_indices = @transform_2, window_bounds = array<i64: 256, 1024>}, {pipeline_mode = #tpu.pipeline_mode<synchronous>, transform_indices = @transform_3, window_bounds = array<i64: 1, 1024>}, {pipeline_mode = #tpu.pipeline_mode<synchronous>, transform_indices = @transform_4, window_bounds = array<i64: 256, 128>}, {pipeline_mode = #tpu.pipeline_mode<synchronous>, transform_indices = @transform_5, window_bounds = array<i64: 2, 128>}, {transform_indices = @transform_6, window_bounds = array<i64: 8, 8, 128>}]} {
    %c0 = arith.constant 0 : index
    %c0_0 = arith.constant 0 : index
    %c0_1 = arith.constant 0 : index
    %0 = vector.load %arg1[%c0, %c0_0, %c0_1] : memref<8x8x128xf32, #tpu.memory_space<vmem>>, vector<8x8x128xf32>
    %1 = vector.shape_cast %0 : vector<8x8x128xf32> to vector<64x128xf32>
    %c0_2 = arith.constant 0 : index
    %c0_3 = arith.constant 0 : index
    %2 = vector.load %arg2[%c0_2, %c0_3] : memref<128x1024xf32, #tpu.memory_space<vmem>>, vector<128x1024xf32>
    %cst = arith.constant dense<0.000000e+00> : vector<64x1024xf32>
    %3 = tpu.matmul %1, %2, %cst {dimension_numbers = #tpu.dot_dimension_numbers<[1], [0], [0], [1], [0, 0, 1, 1], [], []>} : vector<64x128xf32>, vector<128x1024xf32>, vector<64x1024xf32> -> vector<64x1024xf32>
    %c0_4 = arith.constant 0 : index
    %c0_5 = arith.constant 0 : index
    %4 = vector.load %arg4[%c0_4, %c0_5] : memref<1x1024xf32, #tpu.memory_space<vmem>>, vector<1x1024xf32>
    %5 = vector.broadcast %4 : vector<1x1024xf32> to vector<64x1024xf32>
    %6 = arith.addf %3, %5 : vector<64x1024xf32>
    %7 = vector.shape_cast %6 : vector<64x1024xf32> to vector<8x8x1024xf32>
    %c0_6 = arith.constant 0 : index
    %c0_7 = arith.constant 0 : index
    %c0_8 = arith.constant 0 : index
    %8 = vector.load %arg8[%c0_6, %c0_7, %c0_8] : memref<8x8x1024xf32, #tpu.memory_space<vmem>>, vector<8x8x1024xf32>
    tpu.vector_store %arg8[%c0_6, %c0_7, %c0_8], %7 {strides = array<i32>} : memref<8x8x1024xf32, #tpu.memory_space<vmem>>, vector<8x8x1024xf32>,
    %c0_9 = arith.constant 0 : index
    %c0_10 = arith.constant 0 : index
    %9 = vector.load %arg3[%c0_9, %c0_10] : memref<256x1024xf32, #tpu.memory_space<vmem>>, vector<256x1024xf32>
    %c0_11 = arith.constant 0 : index
    %c0_12 = arith.constant 0 : index
    %10 = vector.load %arg6[%c0_11, %c0_12] : memref<2x128xf32, #tpu.memory_space<vmem>>, vector<1x128xf32>
    %11 = vector.shape_cast %10 : vector<1x128xf32> to vector<1x128xf32>
    %12 = vector.broadcast %11 : vector<1x128xf32> to vector<8x128xf32>
    %c1 = arith.constant 1 : index
    %c0_13 = arith.constant 0 : index
    %13 = vector.load %arg6[%c1, %c0_13] : memref<2x128xf32, #tpu.memory_space<vmem>>, vector<1x128xf32>
    %14 = vector.shape_cast %13 : vector<1x128xf32> to vector<1x128xf32>
    %15 = vector.broadcast %14 : vector<1x128xf32> to vector<8x128xf32>
    %16 = tpu.concatenate %12, %12 in 1 : vector<8x128xf32>, vector<8x128xf32> -> vector<8x256xf32>
    %cst_14 = arith.constant dense<0.000000e+00> : vector<8x1024xf32>
    %17 = tpu.matmul %16, %9, %cst_14 {dimension_numbers = #tpu.dot_dimension_numbers<[1], [0], [0], [1], [0, 0, 1, 1], [], []>} : vector<8x256xf32>, vector<256x1024xf32>, vector<8x1024xf32> -> vector<8x1024xf32>
    %18 = vector.extract_strided_slice %17 {offsets = [0, 0], sizes = [8, 512], strides = [1, 1]} : vector<8x1024xf32> to vector<8x512xf32>
    %c0_15 = arith.constant 0 : index
    %c0_16 = arith.constant 0 : index
    %c0_17 = arith.constant 0 : index
    %19 = vector.load %arg8[%c0_15, %c0_16, %c0_17] : memref<8x8x1024xf32, #tpu.memory_space<vmem>>, vector<8x1x512xf32>
    %20 = vector.shape_cast %19 : vector<8x1x512xf32> to vector<8x512xf32>
    %21 = arith.addf %18, %20 : vector<8x512xf32>
    %22 = vector.extract_strided_slice %17 {offsets = [0, 512], sizes = [8, 512], strides = [1, 1]} : vector<8x1024xf32> to vector<8x512xf32>
    %c0_18 = arith.constant 0 : index
    %c7 = arith.constant 7 : index
    %c512 = arith.constant 512 : index
    %23 = vector.load %arg8[%c0_18, %c7, %c512] : memref<8x8x1024xf32, #tpu.memory_space<vmem>>, vector<8x1x512xf32>
    %24 = vector.shape_cast %23 : vector<8x1x512xf32> to vector<8x512xf32>
    %25 = arith.addf %22, %24 : vector<8x512xf32>
    %26 = vector.extract_strided_slice %21 {offsets = [0, 0], sizes = [8, 128], strides = [1, 1]} : vector<8x512xf32> to vector<8x128xf32>
    %27 = arith.negf %26 : vector<8x128xf32>
    %28 = math.exp %27 : vector<8x128xf32>
    %cst_19 = arith.constant 1.000000e+00 : f32
    %29 = vector.broadcast %cst_19 : f32 to vector<8x128xf32>
    %30 = arith.addf %29, %28 : vector<8x128xf32>
    %31 = arith.divf %29, %30 : vector<8x128xf32>
    %32 = vector.extract_strided_slice %21 {offsets = [0, 128], sizes = [8, 128], strides = [1, 1]} : vector<8x512xf32> to vector<8x128xf32>
    %33 = arith.negf %32 : vector<8x128xf32>
    %34 = math.exp %33 : vector<8x128xf32>
    %cst_20 = arith.constant 1.000000e+00 : f32
    %35 = vector.broadcast %cst_20 : f32 to vector<8x128xf32>
    %36 = arith.addf %35, %34 : vector<8x128xf32>
    %37 = arith.divf %35, %36 : vector<8x128xf32>
    %38 = vector.extract_strided_slice %21 {offsets = [0, 256], sizes = [8, 128], strides = [1, 1]} : vector<8x512xf32> to vector<8x128xf32>
    %39 = math.tanh %38 : vector<8x128xf32>
    %40 = vector.extract_strided_slice %21 {offsets = [0, 384], sizes = [8, 128], strides = [1, 1]} : vector<8x512xf32> to vector<8x128xf32>
    %41 = arith.negf %40 : vector<8x128xf32>
    %42 = math.exp %41 : vector<8x128xf32>
    %cst_21 = arith.constant 1.000000e+00 : f32
    %43 = vector.broadcast %cst_21 : f32 to vector<8x128xf32>
    %44 = arith.addf %43, %42 : vector<8x128xf32>
    %45 = arith.divf %43, %44 : vector<8x128xf32>
    %46 = arith.mulf %37, %15 : vector<8x128xf32>
    %47 = arith.mulf %31, %39 : vector<8x128xf32>
    %48 = arith.addf %46, %47 : vector<8x128xf32>
    %49 = math.tanh %48 : vector<8x128xf32>
    %50 = arith.mulf %45, %49 : vector<8x128xf32>
    %51 = vector.extract_strided_slice %25 {offsets = [0, 0], sizes = [8, 128], strides = [1, 1]} : vector<8x512xf32> to vector<8x128xf32>
    %52 = arith.negf %51 : vector<8x128xf32>
    %53 = math.exp %52 : vector<8x128xf32>
    %cst_22 = arith.constant 1.000000e+00 : f32
    %54 = vector.broadcast %cst_22 : f32 to vector<8x128xf32>
    %55 = arith.addf %54, %53 : vector<8x128xf32>
    %56 = arith.divf %54, %55 : vector<8x128xf32>
    %57 = vector.extract_strided_slice %25 {offsets = [0, 128], sizes = [8, 128], strides = [1, 1]} : vector<8x512xf32> to vector<8x128xf32>
    %58 = arith.negf %57 : vector<8x128xf32>
    %59 = math.exp %58 : vector<8x128xf32>
    %cst_23 = arith.constant 1.000000e+00 : f32
    %60 = vector.broadcast %cst_23 : f32 to vector<8x128xf32>
    %61 = arith.addf %60, %59 : vector<8x128xf32>
    %62 = arith.divf %60, %61 : vector<8x128xf32>
    %63 = vector.extract_strided_slice %25 {offsets = [0, 256], sizes = [8, 128], strides = [1, 1]} : vector<8x512xf32> to vector<8x128xf32>
    %64 = math.tanh %63 : vector<8x128xf32>
    %65 = vector.extract_strided_slice %25 {offsets = [0, 384], sizes = [8, 128], strides = [1, 1]} : vector<8x512xf32> to vector<8x128xf32>
    %66 = arith.negf %65 : vector<8x128xf32>
    %67 = math.exp %66 : vector<8x128xf32>
    %cst_24 = arith.constant 1.000000e+00 : f32
    %68 = vector.broadcast %cst_24 : f32 to vector<8x128xf32>
    %69 = arith.addf %68, %67 : vector<8x128xf32>
    %70 = arith.divf %68, %69 : vector<8x128xf32>
    %71 = arith.mulf %62, %15 : vector<8x128xf32>
    %72 = arith.mulf %56, %64 : vector<8x128xf32>
    %73 = arith.addf %71, %72 : vector<8x128xf32>
    %74 = math.tanh %73 : vector<8x128xf32>
    %75 = arith.mulf %70, %74 : vector<8x128xf32>
    %c0_25 = arith.constant 0 : index
    %c0_26 = arith.constant 0 : index
    %c0_27 = arith.constant 0 : index
    %76 = vector.load %arg9[%c0_25, %c0_26, %c0_27] : memref<8x8x256xf32, #tpu.memory_space<vmem>>, vector<8x1x128xf32>
    %77 = vector.shape_cast %76 : vector<8x1x128xf32> to vector<8x128xf32>
    %78 = vector.shape_cast %50 : vector<8x128xf32> to vector<8x1x128xf32>
    tpu.vector_store %arg9[%c0_25, %c0_26, %c0_27], %78 {strides = array<i32>} : memref<8x8x256xf32, #tpu.memory_space<vmem>>, vector<8x1x128xf32>,
    %c0_28 = arith.constant 0 : index
    %c7_29 = arith.constant 7 : index
    %c128 = arith.constant 128 : index
    %79 = vector.load %arg9[%c0_28, %c7_29, %c128] : memref<8x8x256xf32, #tpu.memory_space<vmem>>, vector<8x1x128xf32>
    %80 = vector.shape_cast %79 : vector<8x1x128xf32> to vector<8x128xf32>
    %81 = vector.shape_cast %75 : vector<8x128xf32> to vector<8x1x128xf32>
    tpu.vector_store %arg9[%c0_28, %c7_29, %c128], %81 {strides = array<i32>} : memref<8x8x256xf32, #tpu.memory_space<vmem>>, vector<8x1x128xf32>,
    %82 = tpu.concatenate %50, %75 in 1 : vector<8x128xf32>, vector<8x128xf32> -> vector<8x256xf32>
    %cst_30 = arith.constant dense<0.000000e+00> : vector<8x1024xf32>
    %83 = tpu.matmul %82, %9, %cst_30 {dimension_numbers = #tpu.dot_dimension_numbers<[1], [0], [0], [1], [0, 0, 1, 1], [], []>} : vector<8x256xf32>, vector<256x1024xf32>, vector<8x1024xf32> -> vector<8x1024xf32>
    %84 = vector.extract_strided_slice %83 {offsets = [0, 0], sizes = [8, 512], strides = [1, 1]} : vector<8x1024xf32> to vector<8x512xf32>
    %c0_31 = arith.constant 0 : index
    %c1_32 = arith.constant 1 : index
    %c0_33 = arith.constant 0 : index
    %85 = vector.load %arg8[%c0_31, %c1_32, %c0_33] : memref<8x8x1024xf32, #tpu.memory_space<vmem>>, vector<8x1x512xf32>
    %86 = vector.shape_cast %85 : vector<8x1x512xf32> to vector<8x512xf32>
    %87 = arith.addf %84, %86 : vector<8x512xf32>
    %88 = vector.extract_strided_slice %83 {offsets = [0, 512], sizes = [8, 512], strides = [1, 1]} : vector<8x1024xf32> to vector<8x512xf32>
    %c0_34 = arith.constant 0 : index
    %c6 = arith.constant 6 : index
    %c512_35 = arith.constant 512 : index
    %89 = vector.load %arg8[%c0_34, %c6, %c512_35] : memref<8x8x1024xf32, #tpu.memory_space<vmem>>, vector<8x1x512xf32>
    %90 = vector.shape_cast %89 : vector<8x1x512xf32> to vector<8x512xf32>
    %91 = arith.addf %88, %90 : vector<8x512xf32>
    %92 = vector.extract_strided_slice %87 {offsets = [0, 0], sizes = [8, 128], strides = [1, 1]} : vector<8x512xf32> to vector<8x128xf32>
    %93 = arith.negf %92 : vector<8x128xf32>
    %94 = math.exp %93 : vector<8x128xf32>
    %cst_36 = arith.constant 1.000000e+00 : f32
    %95 = vector.broadcast %cst_36 : f32 to vector<8x128xf32>
    %96 = arith.addf %95, %94 : vector<8x128xf32>
    %97 = arith.divf %95, %96 : vector<8x128xf32>
    %98 = vector.extract_strided_slice %87 {offsets = [0, 128], sizes = [8, 128], strides = [1, 1]} : vector<8x512xf32> to vector<8x128xf32>
    %99 = arith.negf %98 : vector<8x128xf32>
    %100 = math.exp %99 : vector<8x128xf32>
    %cst_37 = arith.constant 1.000000e+00 : f32
    %101 = vector.broadcast %cst_37 : f32 to vector<8x128xf32>
    %102 = arith.addf %101, %100 : vector<8x128xf32>
    %103 = arith.divf %101, %102 : vector<8x128xf32>
    %104 = vector.extract_strided_slice %87 {offsets = [0, 256], sizes = [8, 128], strides = [1, 1]} : vector<8x512xf32> to vector<8x128xf32>
    %105 = math.tanh %104 : vector<8x128xf32>
    %106 = vector.extract_strided_slice %87 {offsets = [0, 384], sizes = [8, 128], strides = [1, 1]} : vector<8x512xf32> to vector<8x128xf32>
    %107 = arith.negf %106 : vector<8x128xf32>
    %108 = math.exp %107 : vector<8x128xf32>
    %cst_38 = arith.constant 1.000000e+00 : f32
    %109 = vector.broadcast %cst_38 : f32 to vector<8x128xf32>
    %110 = arith.addf %109, %108 : vector<8x128xf32>
    %111 = arith.divf %109, %110 : vector<8x128xf32>
    %112 = arith.mulf %103, %48 : vector<8x128xf32>
    %113 = arith.mulf %97, %105 : vector<8x128xf32>
    %114 = arith.addf %112, %113 : vector<8x128xf32>
    %115 = math.tanh %114 : vector<8x128xf32>
    %116 = arith.mulf %111, %115 : vector<8x128xf32>
    %117 = vector.extract_strided_slice %91 {offsets = [0, 0], sizes = [8, 128], strides = [1, 1]} : vector<8x512xf32> to vector<8x128xf32>
    %118 = arith.negf %117 : vector<8x128xf32>
    %119 = math.exp %118 : vector<8x128xf32>
    %cst_39 = arith.constant 1.000000e+00 : f32
    %120 = vector.broadcast %cst_39 : f32 to vector<8x128xf32>
    %121 = arith.addf %120, %119 : vector<8x128xf32>
    %122 = arith.divf %120, %121 : vector<8x128xf32>
    %123 = vector.extract_strided_slice %91 {offsets = [0, 128], sizes = [8, 128], strides = [1, 1]} : vector<8x512xf32> to vector<8x128xf32>
    %124 = arith.negf %123 : vector<8x128xf32>
    %125 = math.exp %124 : vector<8x128xf32>
    %cst_40 = arith.constant 1.000000e+00 : f32
    %126 = vector.broadcast %cst_40 : f32 to vector<8x128xf32>
    %127 = arith.addf %126, %125 : vector<8x128xf32>
    %128 = arith.divf %126, %127 : vector<8x128xf32>
    %129 = vector.extract_strided_slice %91 {offsets = [0, 256], sizes = [8, 128], strides = [1, 1]} : vector<8x512xf32> to vector<8x128xf32>
    %130 = math.tanh %129 : vector<8x128xf32>
    %131 = vector.extract_strided_slice %91 {offsets = [0, 384], sizes = [8, 128], strides = [1, 1]} : vector<8x512xf32> to vector<8x128xf32>
    %132 = arith.negf %131 : vector<8x128xf32>
    %133 = math.exp %132 : vector<8x128xf32>
    %cst_41 = arith.constant 1.000000e+00 : f32
    %134 = vector.broadcast %cst_41 : f32 to vector<8x128xf32>
    %135 = arith.addf %134, %133 : vector<8x128xf32>
    %136 = arith.divf %134, %135 : vector<8x128xf32>
    %137 = arith.mulf %128, %73 : vector<8x128xf32>
    %138 = arith.mulf %122, %130 : vector<8x128xf32>
    %139 = arith.addf %137, %138 : vector<8x128xf32>
    %140 = math.tanh %139 : vector<8x128xf32>
    %141 = arith.mulf %136, %140 : vector<8x128xf32>
    %c0_42 = arith.constant 0 : index
    %c1_43 = arith.constant 1 : index
    %c0_44 = arith.constant 0 : index
    %142 = vector.load %arg9[%c0_42, %c1_43, %c0_44] : memref<8x8x256xf32, #tpu.memory_space<vmem>>, vector<8x1x128xf32>
    %143 = vector.shape_cast %142 : vector<8x1x128xf32> to vector<8x128xf32>
    %144 = vector.shape_cast %116 : vector<8x128xf32> to vector<8x1x128xf32>
    tpu.vector_store %arg9[%c0_42, %c1_43, %c0_44], %144 {strides = array<i32>} : memref<8x8x256xf32, #tpu.memory_space<vmem>>, vector<8x1x128xf32>,
    %c0_45 = arith.constant 0 : index
    %c6_46 = arith.constant 6 : index
    %c128_47 = arith.constant 128 : index
    %145 = vector.load %arg9[%c0_45, %c6_46, %c128_47] : memref<8x8x256xf32, #tpu.memory_space<vmem>>, vector<8x1x128xf32>
    %146 = vector.shape_cast %145 : vector<8x1x128xf32> to vector<8x128xf32>
    %147 = vector.shape_cast %141 : vector<8x128xf32> to vector<8x1x128xf32>
    tpu.vector_store %arg9[%c0_45, %c6_46, %c128_47], %147 {strides = array<i32>} : memref<8x8x256xf32, #tpu.memory_space<vmem>>, vector<8x1x128xf32>,
    %148 = tpu.concatenate %116, %141 in 1 : vector<8x128xf32>, vector<8x128xf32> -> vector<8x256xf32>
    %cst_48 = arith.constant dense<0.000000e+00> : vector<8x1024xf32>
    %149 = tpu.matmul %148, %9, %cst_48 {dimension_numbers = #tpu.dot_dimension_numbers<[1], [0], [0], [1], [0, 0, 1, 1], [], []>} : vector<8x256xf32>, vector<256x1024xf32>, vector<8x1024xf32> -> vector<8x1024xf32>
    %150 = vector.extract_strided_slice %149 {offsets = [0, 0], sizes = [8, 512], strides = [1, 1]} : vector<8x1024xf32> to vector<8x512xf32>
    %c0_49 = arith.constant 0 : index
    %c2 = arith.constant 2 : index
    %c0_50 = arith.constant 0 : index
    %151 = vector.load %arg8[%c0_49, %c2, %c0_50] : memref<8x8x1024xf32, #tpu.memory_space<vmem>>, vector<8x1x512xf32>
    %152 = vector.shape_cast %151 : vector<8x1x512xf32> to vector<8x512xf32>
    %153 = arith.addf %150, %152 : vector<8x512xf32>
    %154 = vector.extract_strided_slice %149 {offsets = [0, 512], sizes = [8, 512], strides = [1, 1]} : vector<8x1024xf32> to vector<8x512xf32>
    %c0_51 = arith.constant 0 : index
    %c5 = arith.constant 5 : index
    %c512_52 = arith.constant 512 : index
    %155 = vector.load %arg8[%c0_51, %c5, %c512_52] : memref<8x8x1024xf32, #tpu.memory_space<vmem>>, vector<8x1x512xf32>
    %156 = vector.shape_cast %155 : vector<8x1x512xf32> to vector<8x512xf32>
    %157 = arith.addf %154, %156 : vector<8x512xf32>
    %158 = vector.extract_strided_slice %153 {offsets = [0, 0], sizes = [8, 128], strides = [1, 1]} : vector<8x512xf32> to vector<8x128xf32>
    %159 = arith.negf %158 : vector<8x128xf32>
    %160 = math.exp %159 : vector<8x128xf32>
    %cst_53 = arith.constant 1.000000e+00 : f32
    %161 = vector.broadcast %cst_53 : f32 to vector<8x128xf32>
    %162 = arith.addf %161, %160 : vector<8x128xf32>
    %163 = arith.divf %161, %162 : vector<8x128xf32>
    %164 = vector.extract_strided_slice %153 {offsets = [0, 128], sizes = [8, 128], strides = [1, 1]} : vector<8x512xf32> to vector<8x128xf32>
    %165 = arith.negf %164 : vector<8x128xf32>
    %166 = math.exp %165 : vector<8x128xf32>
    %cst_54 = arith.constant 1.000000e+00 : f32
    %167 = vector.broadcast %cst_54 : f32 to vector<8x128xf32>
    %168 = arith.addf %167, %166 : vector<8x128xf32>
    %169 = arith.divf %167, %168 : vector<8x128xf32>
    %170 = vector.extract_strided_slice %153 {offsets = [0, 256], sizes = [8, 128], strides = [1, 1]} : vector<8x512xf32> to vector<8x128xf32>
    %171 = math.tanh %170 : vector<8x128xf32>
    %172 = vector.extract_strided_slice %153 {offsets = [0, 384], sizes = [8, 128], strides = [1, 1]} : vector<8x512xf32> to vector<8x128xf32>
    %173 = arith.negf %172 : vector<8x128xf32>
    %174 = math.exp %173 : vector<8x128xf32>
    %cst_55 = arith.constant 1.000000e+00 : f32
    %175 = vector.broadcast %cst_55 : f32 to vector<8x128xf32>
    %176 = arith.addf %175, %174 : vector<8x128xf32>
    %177 = arith.divf %175, %176 : vector<8x128xf32>
    %178 = arith.mulf %169, %114 : vector<8x128xf32>
    %179 = arith.mulf %163, %171 : vector<8x128xf32>
    %180 = arith.addf %178, %179 : vector<8x128xf32>
    %181 = math.tanh %180 : vector<8x128xf32>
    %182 = arith.mulf %177, %181 : vector<8x128xf32>
    %183 = vector.extract_strided_slice %157 {offsets = [0, 0], sizes = [8, 128], strides = [1, 1]} : vector<8x512xf32> to vector<8x128xf32>
    %184 = arith.negf %183 : vector<8x128xf32>
    %185 = math.exp %184 : vector<8x128xf32>
    %cst_56 = arith.constant 1.000000e+00 : f32
    %186 = vector.broadcast %cst_56 : f32 to vector<8x128xf32>
    %187 = arith.addf %186, %185 : vector<8x128xf32>
    %188 = arith.divf %186, %187 : vector<8x128xf32>
    %189 = vector.extract_strided_slice %157 {offsets = [0, 128], sizes = [8, 128], strides = [1, 1]} : vector<8x512xf32> to vector<8x128xf32>
    %190 = arith.negf %189 : vector<8x128xf32>
    %191 = math.exp %190 : vector<8x128xf32>
    %cst_57 = arith.constant 1.000000e+00 : f32
    %192 = vector.broadcast %cst_57 : f32 to vector<8x128xf32>
    %193 = arith.addf %192, %191 : vector<8x128xf32>
    %194 = arith.divf %192, %193 : vector<8x128xf32>
    %195 = vector.extract_strided_slice %157 {offsets = [0, 256], sizes = [8, 128], strides = [1, 1]} : vector<8x512xf32> to vector<8x128xf32>
    %196 = math.tanh %195 : vector<8x128xf32>
    %197 = vector.extract_strided_slice %157 {offsets = [0, 384], sizes = [8, 128], strides = [1, 1]} : vector<8x512xf32> to vector<8x128xf32>
    %198 = arith.negf %197 : vector<8x128xf32>
    %199 = math.exp %198 : vector<8x128xf32>
    %cst_58 = arith.constant 1.000000e+00 : f32
    %200 = vector.broadcast %cst_58 : f32 to vector<8x128xf32>
    %201 = arith.addf %200, %199 : vector<8x128xf32>
    %202 = arith.divf %200, %201 : vector<8x128xf32>
    %203 = arith.mulf %194, %139 : vector<8x128xf32>
    %204 = arith.mulf %188, %196 : vector<8x128xf32>
    %205 = arith.addf %203, %204 : vector<8x128xf32>
    %206 = math.tanh %205 : vector<8x128xf32>
    %207 = arith.mulf %202, %206 : vector<8x128xf32>
    %c0_59 = arith.constant 0 : index
    %c2_60 = arith.constant 2 : index
    %c0_61 = arith.constant 0 : index
    %208 = vector.load %arg9[%c0_59, %c2_60, %c0_61] : memref<8x8x256xf32, #tpu.memory_space<vmem>>, vector<8x1x128xf32>
    %209 = vector.shape_cast %208 : vector<8x1x128xf32> to vector<8x128xf32>
    %210 = vector.shape_cast %182 : vector<8x128xf32> to vector<8x1x128xf32>
    tpu.vector_store %arg9[%c0_59, %c2_60, %c0_61], %210 {strides = array<i32>} : memref<8x8x256xf32, #tpu.memory_space<vmem>>, vector<8x1x128xf32>,
    %c0_62 = arith.constant 0 : index
    %c5_63 = arith.constant 5 : index
    %c128_64 = arith.constant 128 : index
    %211 = vector.load %arg9[%c0_62, %c5_63, %c128_64] : memref<8x8x256xf32, #tpu.memory_space<vmem>>, vector<8x1x128xf32>
    %212 = vector.shape_cast %211 : vector<8x1x128xf32> to vector<8x128xf32>
    %213 = vector.shape_cast %207 : vector<8x128xf32> to vector<8x1x128xf32>
    tpu.vector_store %arg9[%c0_62, %c5_63, %c128_64], %213 {strides = array<i32>} : memref<8x8x256xf32, #tpu.memory_space<vmem>>, vector<8x1x128xf32>,
    %214 = tpu.concatenate %182, %207 in 1 : vector<8x128xf32>, vector<8x128xf32> -> vector<8x256xf32>
    %cst_65 = arith.constant dense<0.000000e+00> : vector<8x1024xf32>
    %215 = tpu.matmul %214, %9, %cst_65 {dimension_numbers = #tpu.dot_dimension_numbers<[1], [0], [0], [1], [0, 0, 1, 1], [], []>} : vector<8x256xf32>, vector<256x1024xf32>, vector<8x1024xf32> -> vector<8x1024xf32>
    %216 = vector.extract_strided_slice %215 {offsets = [0, 0], sizes = [8, 512], strides = [1, 1]} : vector<8x1024xf32> to vector<8x512xf32>
    %c0_66 = arith.constant 0 : index
    %c3 = arith.constant 3 : index
    %c0_67 = arith.constant 0 : index
    %217 = vector.load %arg8[%c0_66, %c3, %c0_67] : memref<8x8x1024xf32, #tpu.memory_space<vmem>>, vector<8x1x512xf32>
    %218 = vector.shape_cast %217 : vector<8x1x512xf32> to vector<8x512xf32>
    %219 = arith.addf %216, %218 : vector<8x512xf32>
    %220 = vector.extract_strided_slice %215 {offsets = [0, 512], sizes = [8, 512], strides = [1, 1]} : vector<8x1024xf32> to vector<8x512xf32>
    %c0_68 = arith.constant 0 : index
    %c4 = arith.constant 4 : index
    %c512_69 = arith.constant 512 : index
    %221 = vector.load %arg8[%c0_68, %c4, %c512_69] : memref<8x8x1024xf32, #tpu.memory_space<vmem>>, vector<8x1x512xf32>
    %222 = vector.shape_cast %221 : vector<8x1x512xf32> to vector<8x512xf32>
    %223 = arith.addf %220, %222 : vector<8x512xf32>
    %224 = vector.extract_strided_slice %219 {offsets = [0, 0], sizes = [8, 128], strides = [1, 1]} : vector<8x512xf32> to vector<8x128xf32>
    %225 = arith.negf %224 : vector<8x128xf32>
    %226 = math.exp %225 : vector<8x128xf32>
    %cst_70 = arith.constant 1.000000e+00 : f32
    %227 = vector.broadcast %cst_70 : f32 to vector<8x128xf32>
    %228 = arith.addf %227, %226 : vector<8x128xf32>
    %229 = arith.divf %227, %228 : vector<8x128xf32>
    %230 = vector.extract_strided_slice %219 {offsets = [0, 128], sizes = [8, 128], strides = [1, 1]} : vector<8x512xf32> to vector<8x128xf32>
    %231 = arith.negf %230 : vector<8x128xf32>
    %232 = math.exp %231 : vector<8x128xf32>
    %cst_71 = arith.constant 1.000000e+00 : f32
    %233 = vector.broadcast %cst_71 : f32 to vector<8x128xf32>
    %234 = arith.addf %233, %232 : vector<8x128xf32>
    %235 = arith.divf %233, %234 : vector<8x128xf32>
    %236 = vector.extract_strided_slice %219 {offsets = [0, 256], sizes = [8, 128], strides = [1, 1]} : vector<8x512xf32> to vector<8x128xf32>
    %237 = math.tanh %236 : vector<8x128xf32>
    %238 = vector.extract_strided_slice %219 {offsets = [0, 384], sizes = [8, 128], strides = [1, 1]} : vector<8x512xf32> to vector<8x128xf32>
    %239 = arith.negf %238 : vector<8x128xf32>
    %240 = math.exp %239 : vector<8x128xf32>
    %cst_72 = arith.constant 1.000000e+00 : f32
    %241 = vector.broadcast %cst_72 : f32 to vector<8x128xf32>
    %242 = arith.addf %241, %240 : vector<8x128xf32>
    %243 = arith.divf %241, %242 : vector<8x128xf32>
    %244 = arith.mulf %235, %180 : vector<8x128xf32>
    %245 = arith.mulf %229, %237 : vector<8x128xf32>
    %246 = arith.addf %244, %245 : vector<8x128xf32>
    %247 = math.tanh %246 : vector<8x128xf32>
    %248 = arith.mulf %243, %247 : vector<8x128xf32>
    %249 = vector.extract_strided_slice %223 {offsets = [0, 0], sizes = [8, 128], strides = [1, 1]} : vector<8x512xf32> to vector<8x128xf32>
    %250 = arith.negf %249 : vector<8x128xf32>
    %251 = math.exp %250 : vector<8x128xf32>
    %cst_73 = arith.constant 1.000000e+00 : f32
    %252 = vector.broadcast %cst_73 : f32 to vector<8x128xf32>
    %253 = arith.addf %252, %251 : vector<8x128xf32>
    %254 = arith.divf %252, %253 : vector<8x128xf32>
    %255 = vector.extract_strided_slice %223 {offsets = [0, 128], sizes = [8, 128], strides = [1, 1]} : vector<8x512xf32> to vector<8x128xf32>
    %256 = arith.negf %255 : vector<8x128xf32>
    %257 = math.exp %256 : vector<8x128xf32>
    %cst_74 = arith.constant 1.000000e+00 : f32
    %258 = vector.broadcast %cst_74 : f32 to vector<8x128xf32>
    %259 = arith.addf %258, %257 : vector<8x128xf32>
    %260 = arith.divf %258, %259 : vector<8x128xf32>
    %261 = vector.extract_strided_slice %223 {offsets = [0, 256], sizes = [8, 128], strides = [1, 1]} : vector<8x512xf32> to vector<8x128xf32>
    %262 = math.tanh %261 : vector<8x128xf32>
    %263 = vector.extract_strided_slice %223 {offsets = [0, 384], sizes = [8, 128], strides = [1, 1]} : vector<8x512xf32> to vector<8x128xf32>
    %264 = arith.negf %263 : vector<8x128xf32>
    %265 = math.exp %264 : vector<8x128xf32>
    %cst_75 = arith.constant 1.000000e+00 : f32
    %266 = vector.broadcast %cst_75 : f32 to vector<8x128xf32>
    %267 = arith.addf %266, %265 : vector<8x128xf32>
    %268 = arith.divf %266, %267 : vector<8x128xf32>
    %269 = arith.mulf %260, %205 : vector<8x128xf32>
    %270 = arith.mulf %254, %262 : vector<8x128xf32>
    %271 = arith.addf %269, %270 : vector<8x128xf32>
    %272 = math.tanh %271 : vector<8x128xf32>
    %273 = arith.mulf %268, %272 : vector<8x128xf32>
    %c0_76 = arith.constant 0 : index
    %c3_77 = arith.constant 3 : index
    %c0_78 = arith.constant 0 : index
    %274 = vector.load %arg9[%c0_76, %c3_77, %c0_78] : memref<8x8x256xf32, #tpu.memory_space<vmem>>, vector<8x1x128xf32>
    %275 = vector.shape_cast %274 : vector<8x1x128xf32> to vector<8x128xf32>
    %276 = vector.shape_cast %248 : vector<8x128xf32> to vector<8x1x128xf32>
    tpu.vector_store %arg9[%c0_76, %c3_77, %c0_78], %276 {strides = array<i32>} : memref<8x8x256xf32, #tpu.memory_space<vmem>>, vector<8x1x128xf32>,
    %c0_79 = arith.constant 0 : index
    %c4_80 = arith.constant 4 : index
    %c128_81 = arith.constant 128 : index
    %277 = vector.load %arg9[%c0_79, %c4_80, %c128_81] : memref<8x8x256xf32, #tpu.memory_space<vmem>>, vector<8x1x128xf32>
    %278 = vector.shape_cast %277 : vector<8x1x128xf32> to vector<8x128xf32>
    %279 = vector.shape_cast %273 : vector<8x128xf32> to vector<8x1x128xf32>
    tpu.vector_store %arg9[%c0_79, %c4_80, %c128_81], %279 {strides = array<i32>} : memref<8x8x256xf32, #tpu.memory_space<vmem>>, vector<8x1x128xf32>,
    %280 = tpu.concatenate %248, %273 in 1 : vector<8x128xf32>, vector<8x128xf32> -> vector<8x256xf32>
    %cst_82 = arith.constant dense<0.000000e+00> : vector<8x1024xf32>
    %281 = tpu.matmul %280, %9, %cst_82 {dimension_numbers = #tpu.dot_dimension_numbers<[1], [0], [0], [1], [0, 0, 1, 1], [], []>} : vector<8x256xf32>, vector<256x1024xf32>, vector<8x1024xf32> -> vector<8x1024xf32>
    %282 = vector.extract_strided_slice %281 {offsets = [0, 0], sizes = [8, 512], strides = [1, 1]} : vector<8x1024xf32> to vector<8x512xf32>
    %c0_83 = arith.constant 0 : index
    %c4_84 = arith.constant 4 : index
    %c0_85 = arith.constant 0 : index
    %283 = vector.load %arg8[%c0_83, %c4_84, %c0_85] : memref<8x8x1024xf32, #tpu.memory_space<vmem>>, vector<8x1x512xf32>
    %284 = vector.shape_cast %283 : vector<8x1x512xf32> to vector<8x512xf32>
    %285 = arith.addf %282, %284 : vector<8x512xf32>
    %286 = vector.extract_strided_slice %281 {offsets = [0, 512], sizes = [8, 512], strides = [1, 1]} : vector<8x1024xf32> to vector<8x512xf32>
    %c0_86 = arith.constant 0 : index
    %c3_87 = arith.constant 3 : index
    %c512_88 = arith.constant 512 : index
    %287 = vector.load %arg8[%c0_86, %c3_87, %c512_88] : memref<8x8x1024xf32, #tpu.memory_space<vmem>>, vector<8x1x512xf32>
    %288 = vector.shape_cast %287 : vector<8x1x512xf32> to vector<8x512xf32>
    %289 = arith.addf %286, %288 : vector<8x512xf32>
    %290 = vector.extract_strided_slice %285 {offsets = [0, 0], sizes = [8, 128], strides = [1, 1]} : vector<8x512xf32> to vector<8x128xf32>
    %291 = arith.negf %290 : vector<8x128xf32>
    %292 = math.exp %291 : vector<8x128xf32>
    %cst_89 = arith.constant 1.000000e+00 : f32
    %293 = vector.broadcast %cst_89 : f32 to vector<8x128xf32>
    %294 = arith.addf %293, %292 : vector<8x128xf32>
    %295 = arith.divf %293, %294 : vector<8x128xf32>
    %296 = vector.extract_strided_slice %285 {offsets = [0, 128], sizes = [8, 128], strides = [1, 1]} : vector<8x512xf32> to vector<8x128xf32>
    %297 = arith.negf %296 : vector<8x128xf32>
    %298 = math.exp %297 : vector<8x128xf32>
    %cst_90 = arith.constant 1.000000e+00 : f32
    %299 = vector.broadcast %cst_90 : f32 to vector<8x128xf32>
    %300 = arith.addf %299, %298 : vector<8x128xf32>
    %301 = arith.divf %299, %300 : vector<8x128xf32>
    %302 = vector.extract_strided_slice %285 {offsets = [0, 256], sizes = [8, 128], strides = [1, 1]} : vector<8x512xf32> to vector<8x128xf32>
    %303 = math.tanh %302 : vector<8x128xf32>
    %304 = vector.extract_strided_slice %285 {offsets = [0, 384], sizes = [8, 128], strides = [1, 1]} : vector<8x512xf32> to vector<8x128xf32>
    %305 = arith.negf %304 : vector<8x128xf32>
    %306 = math.exp %305 : vector<8x128xf32>
    %cst_91 = arith.constant 1.000000e+00 : f32
    %307 = vector.broadcast %cst_91 : f32 to vector<8x128xf32>
    %308 = arith.addf %307, %306 : vector<8x128xf32>
    %309 = arith.divf %307, %308 : vector<8x128xf32>
    %310 = arith.mulf %301, %246 : vector<8x128xf32>
    %311 = arith.mulf %295, %303 : vector<8x128xf32>
    %312 = arith.addf %310, %311 : vector<8x128xf32>
    %313 = math.tanh %312 : vector<8x128xf32>
    %314 = arith.mulf %309, %313 : vector<8x128xf32>
    %315 = vector.extract_strided_slice %289 {offsets = [0, 0], sizes = [8, 128], strides = [1, 1]} : vector<8x512xf32> to vector<8x128xf32>
    %316 = arith.negf %315 : vector<8x128xf32>
    %317 = math.exp %316 : vector<8x128xf32>
    %cst_92 = arith.constant 1.000000e+00 : f32
    %318 = vector.broadcast %cst_92 : f32 to vector<8x128xf32>
    %319 = arith.addf %318, %317 : vector<8x128xf32>
    %320 = arith.divf %318, %319 : vector<8x128xf32>
    %321 = vector.extract_strided_slice %289 {offsets = [0, 128], sizes = [8, 128], strides = [1, 1]} : vector<8x512xf32> to vector<8x128xf32>
    %322 = arith.negf %321 : vector<8x128xf32>
    %323 = math.exp %322 : vector<8x128xf32>
    %cst_93 = arith.constant 1.000000e+00 : f32
    %324 = vector.broadcast %cst_93 : f32 to vector<8x128xf32>
    %325 = arith.addf %324, %323 : vector<8x128xf32>
    %326 = arith.divf %324, %325 : vector<8x128xf32>
    %327 = vector.extract_strided_slice %289 {offsets = [0, 256], sizes = [8, 128], strides = [1, 1]} : vector<8x512xf32> to vector<8x128xf32>
    %328 = math.tanh %327 : vector<8x128xf32>
    %329 = vector.extract_strided_slice %289 {offsets = [0, 384], sizes = [8, 128], strides = [1, 1]} : vector<8x512xf32> to vector<8x128xf32>
    %330 = arith.negf %329 : vector<8x128xf32>
    %331 = math.exp %330 : vector<8x128xf32>
    %cst_94 = arith.constant 1.000000e+00 : f32
    %332 = vector.broadcast %cst_94 : f32 to vector<8x128xf32>
    %333 = arith.addf %332, %331 : vector<8x128xf32>
    %334 = arith.divf %332, %333 : vector<8x128xf32>
    %335 = arith.mulf %326, %271 : vector<8x128xf32>
    %336 = arith.mulf %320, %328 : vector<8x128xf32>
    %337 = arith.addf %335, %336 : vector<8x128xf32>
    %338 = math.tanh %337 : vector<8x128xf32>
    %339 = arith.mulf %334, %338 : vector<8x128xf32>
    %c0_95 = arith.constant 0 : index
    %c4_96 = arith.constant 4 : index
    %c0_97 = arith.constant 0 : index
    %340 = vector.load %arg9[%c0_95, %c4_96, %c0_97] : memref<8x8x256xf32, #tpu.memory_space<vmem>>, vector<8x1x128xf32>
    %341 = vector.shape_cast %340 : vector<8x1x128xf32> to vector<8x128xf32>
    %342 = vector.shape_cast %314 : vector<8x128xf32> to vector<8x1x128xf32>
    tpu.vector_store %arg9[%c0_95, %c4_96, %c0_97], %342 {strides = array<i32>} : memref<8x8x256xf32, #tpu.memory_space<vmem>>, vector<8x1x128xf32>,
    %c0_98 = arith.constant 0 : index
    %c3_99 = arith.constant 3 : index
    %c128_100 = arith.constant 128 : index
    %343 = vector.load %arg9[%c0_98, %c3_99, %c128_100] : memref<8x8x256xf32, #tpu.memory_space<vmem>>, vector<8x1x128xf32>
    %344 = vector.shape_cast %343 : vector<8x1x128xf32> to vector<8x128xf32>
    %345 = vector.shape_cast %339 : vector<8x128xf32> to vector<8x1x128xf32>
    tpu.vector_store %arg9[%c0_98, %c3_99, %c128_100], %345 {strides = array<i32>} : memref<8x8x256xf32, #tpu.memory_space<vmem>>, vector<8x1x128xf32>,
    %346 = tpu.concatenate %314, %339 in 1 : vector<8x128xf32>, vector<8x128xf32> -> vector<8x256xf32>
    %cst_101 = arith.constant dense<0.000000e+00> : vector<8x1024xf32>
    %347 = tpu.matmul %346, %9, %cst_101 {dimension_numbers = #tpu.dot_dimension_numbers<[1], [0], [0], [1], [0, 0, 1, 1], [], []>} : vector<8x256xf32>, vector<256x1024xf32>, vector<8x1024xf32> -> vector<8x1024xf32>
    %348 = vector.extract_strided_slice %347 {offsets = [0, 0], sizes = [8, 512], strides = [1, 1]} : vector<8x1024xf32> to vector<8x512xf32>
    %c0_102 = arith.constant 0 : index
    %c5_103 = arith.constant 5 : index
    %c0_104 = arith.constant 0 : index
    %349 = vector.load %arg8[%c0_102, %c5_103, %c0_104] : memref<8x8x1024xf32, #tpu.memory_space<vmem>>, vector<8x1x512xf32>
    %350 = vector.shape_cast %349 : vector<8x1x512xf32> to vector<8x512xf32>
    %351 = arith.addf %348, %350 : vector<8x512xf32>
    %352 = vector.extract_strided_slice %347 {offsets = [0, 512], sizes = [8, 512], strides = [1, 1]} : vector<8x1024xf32> to vector<8x512xf32>
    %c0_105 = arith.constant 0 : index
    %c2_106 = arith.constant 2 : index
    %c512_107 = arith.constant 512 : index
    %353 = vector.load %arg8[%c0_105, %c2_106, %c512_107] : memref<8x8x1024xf32, #tpu.memory_space<vmem>>, vector<8x1x512xf32>
    %354 = vector.shape_cast %353 : vector<8x1x512xf32> to vector<8x512xf32>
    %355 = arith.addf %352, %354 : vector<8x512xf32>
    %356 = vector.extract_strided_slice %351 {offsets = [0, 0], sizes = [8, 128], strides = [1, 1]} : vector<8x512xf32> to vector<8x128xf32>
    %357 = arith.negf %356 : vector<8x128xf32>
    %358 = math.exp %357 : vector<8x128xf32>
    %cst_108 = arith.constant 1.000000e+00 : f32
    %359 = vector.broadcast %cst_108 : f32 to vector<8x128xf32>
    %360 = arith.addf %359, %358 : vector<8x128xf32>
    %361 = arith.divf %359, %360 : vector<8x128xf32>
    %362 = vector.extract_strided_slice %351 {offsets = [0, 128], sizes = [8, 128], strides = [1, 1]} : vector<8x512xf32> to vector<8x128xf32>
    %363 = arith.negf %362 : vector<8x128xf32>
    %364 = math.exp %363 : vector<8x128xf32>
    %cst_109 = arith.constant 1.000000e+00 : f32
    %365 = vector.broadcast %cst_109 : f32 to vector<8x128xf32>
    %366 = arith.addf %365, %364 : vector<8x128xf32>
    %367 = arith.divf %365, %366 : vector<8x128xf32>
    %368 = vector.extract_strided_slice %351 {offsets = [0, 256], sizes = [8, 128], strides = [1, 1]} : vector<8x512xf32> to vector<8x128xf32>
    %369 = math.tanh %368 : vector<8x128xf32>
    %370 = vector.extract_strided_slice %351 {offsets = [0, 384], sizes = [8, 128], strides = [1, 1]} : vector<8x512xf32> to vector<8x128xf32>
    %371 = arith.negf %370 : vector<8x128xf32>
    %372 = math.exp %371 : vector<8x128xf32>
    %cst_110 = arith.constant 1.000000e+00 : f32
    %373 = vector.broadcast %cst_110 : f32 to vector<8x128xf32>
    %374 = arith.addf %373, %372 : vector<8x128xf32>
    %375 = arith.divf %373, %374 : vector<8x128xf32>
    %376 = arith.mulf %367, %312 : vector<8x128xf32>
    %377 = arith.mulf %361, %369 : vector<8x128xf32>
    %378 = arith.addf %376, %377 : vector<8x128xf32>
    %379 = math.tanh %378 : vector<8x128xf32>
    %380 = arith.mulf %375, %379 : vector<8x128xf32>
    %381 = vector.extract_strided_slice %355 {offsets = [0, 0], sizes = [8, 128], strides = [1, 1]} : vector<8x512xf32> to vector<8x128xf32>
    %382 = arith.negf %381 : vector<8x128xf32>
    %383 = math.exp %382 : vector<8x128xf32>
    %cst_111 = arith.constant 1.000000e+00 : f32
    %384 = vector.broadcast %cst_111 : f32 to vector<8x128xf32>
    %385 = arith.addf %384, %383 : vector<8x128xf32>
    %386 = arith.divf %384, %385 : vector<8x128xf32>
    %387 = vector.extract_strided_slice %355 {offsets = [0, 128], sizes = [8, 128], strides = [1, 1]} : vector<8x512xf32> to vector<8x128xf32>
    %388 = arith.negf %387 : vector<8x128xf32>
    %389 = math.exp %388 : vector<8x128xf32>
    %cst_112 = arith.constant 1.000000e+00 : f32
    %390 = vector.broadcast %cst_112 : f32 to vector<8x128xf32>
    %391 = arith.addf %390, %389 : vector<8x128xf32>
    %392 = arith.divf %390, %391 : vector<8x128xf32>
    %393 = vector.extract_strided_slice %355 {offsets = [0, 256], sizes = [8, 128], strides = [1, 1]} : vector<8x512xf32> to vector<8x128xf32>
    %394 = math.tanh %393 : vector<8x128xf32>
    %395 = vector.extract_strided_slice %355 {offsets = [0, 384], sizes = [8, 128], strides = [1, 1]} : vector<8x512xf32> to vector<8x128xf32>
    %396 = arith.negf %395 : vector<8x128xf32>
    %397 = math.exp %396 : vector<8x128xf32>
    %cst_113 = arith.constant 1.000000e+00 : f32
    %398 = vector.broadcast %cst_113 : f32 to vector<8x128xf32>
    %399 = arith.addf %398, %397 : vector<8x128xf32>
    %400 = arith.divf %398, %399 : vector<8x128xf32>
    %401 = arith.mulf %392, %337 : vector<8x128xf32>
    %402 = arith.mulf %386, %394 : vector<8x128xf32>
    %403 = arith.addf %401, %402 : vector<8x128xf32>
    %404 = math.tanh %403 : vector<8x128xf32>
    %405 = arith.mulf %400, %404 : vector<8x128xf32>
    %c0_114 = arith.constant 0 : index
    %c5_115 = arith.constant 5 : index
    %c0_116 = arith.constant 0 : index
    %406 = vector.load %arg9[%c0_114, %c5_115, %c0_116] : memref<8x8x256xf32, #tpu.memory_space<vmem>>, vector<8x1x128xf32>
    %407 = vector.shape_cast %406 : vector<8x1x128xf32> to vector<8x128xf32>
    %408 = vector.shape_cast %380 : vector<8x128xf32> to vector<8x1x128xf32>
    tpu.vector_store %arg9[%c0_114, %c5_115, %c0_116], %408 {strides = array<i32>} : memref<8x8x256xf32, #tpu.memory_space<vmem>>, vector<8x1x128xf32>,
    %c0_117 = arith.constant 0 : index
    %c2_118 = arith.constant 2 : index
    %c128_119 = arith.constant 128 : index
    %409 = vector.load %arg9[%c0_117, %c2_118, %c128_119] : memref<8x8x256xf32, #tpu.memory_space<vmem>>, vector<8x1x128xf32>
    %410 = vector.shape_cast %409 : vector<8x1x128xf32> to vector<8x128xf32>
    %411 = vector.shape_cast %405 : vector<8x128xf32> to vector<8x1x128xf32>
    tpu.vector_store %arg9[%c0_117, %c2_118, %c128_119], %411 {strides = array<i32>} : memref<8x8x256xf32, #tpu.memory_space<vmem>>, vector<8x1x128xf32>,
    %412 = tpu.concatenate %380, %405 in 1 : vector<8x128xf32>, vector<8x128xf32> -> vector<8x256xf32>
    %cst_120 = arith.constant dense<0.000000e+00> : vector<8x1024xf32>
    %413 = tpu.matmul %412, %9, %cst_120 {dimension_numbers = #tpu.dot_dimension_numbers<[1], [0], [0], [1], [0, 0, 1, 1], [], []>} : vector<8x256xf32>, vector<256x1024xf32>, vector<8x1024xf32> -> vector<8x1024xf32>
    %414 = vector.extract_strided_slice %413 {offsets = [0, 0], sizes = [8, 512], strides = [1, 1]} : vector<8x1024xf32> to vector<8x512xf32>
    %c0_121 = arith.constant 0 : index
    %c6_122 = arith.constant 6 : index
    %c0_123 = arith.constant 0 : index
    %415 = vector.load %arg8[%c0_121, %c6_122, %c0_123] : memref<8x8x1024xf32, #tpu.memory_space<vmem>>, vector<8x1x512xf32>
    %416 = vector.shape_cast %415 : vector<8x1x512xf32> to vector<8x512xf32>
    %417 = arith.addf %414, %416 : vector<8x512xf32>
    %418 = vector.extract_strided_slice %413 {offsets = [0, 512], sizes = [8, 512], strides = [1, 1]} : vector<8x1024xf32> to vector<8x512xf32>
    %c0_124 = arith.constant 0 : index
    %c1_125 = arith.constant 1 : index
    %c512_126 = arith.constant 512 : index
    %419 = vector.load %arg8[%c0_124, %c1_125, %c512_126] : memref<8x8x1024xf32, #tpu.memory_space<vmem>>, vector<8x1x512xf32>
    %420 = vector.shape_cast %419 : vector<8x1x512xf32> to vector<8x512xf32>
    %421 = arith.addf %418, %420 : vector<8x512xf32>
    %422 = vector.extract_strided_slice %417 {offsets = [0, 0], sizes = [8, 128], strides = [1, 1]} : vector<8x512xf32> to vector<8x128xf32>
    %423 = arith.negf %422 : vector<8x128xf32>
    %424 = math.exp %423 : vector<8x128xf32>
    %cst_127 = arith.constant 1.000000e+00 : f32
    %425 = vector.broadcast %cst_127 : f32 to vector<8x128xf32>
    %426 = arith.addf %425, %424 : vector<8x128xf32>
    %427 = arith.divf %425, %426 : vector<8x128xf32>
    %428 = vector.extract_strided_slice %417 {offsets = [0, 128], sizes = [8, 128], strides = [1, 1]} : vector<8x512xf32> to vector<8x128xf32>
    %429 = arith.negf %428 : vector<8x128xf32>
    %430 = math.exp %429 : vector<8x128xf32>
    %cst_128 = arith.constant 1.000000e+00 : f32
    %431 = vector.broadcast %cst_128 : f32 to vector<8x128xf32>
    %432 = arith.addf %431, %430 : vector<8x128xf32>
    %433 = arith.divf %431, %432 : vector<8x128xf32>
    %434 = vector.extract_strided_slice %417 {offsets = [0, 256], sizes = [8, 128], strides = [1, 1]} : vector<8x512xf32> to vector<8x128xf32>
    %435 = math.tanh %434 : vector<8x128xf32>
    %436 = vector.extract_strided_slice %417 {offsets = [0, 384], sizes = [8, 128], strides = [1, 1]} : vector<8x512xf32> to vector<8x128xf32>
    %437 = arith.negf %436 : vector<8x128xf32>
    %438 = math.exp %437 : vector<8x128xf32>
    %cst_129 = arith.constant 1.000000e+00 : f32
    %439 = vector.broadcast %cst_129 : f32 to vector<8x128xf32>
    %440 = arith.addf %439, %438 : vector<8x128xf32>
    %441 = arith.divf %439, %440 : vector<8x128xf32>
    %442 = arith.mulf %433, %378 : vector<8x128xf32>
    %443 = arith.mulf %427, %435 : vector<8x128xf32>
    %444 = arith.addf %442, %443 : vector<8x128xf32>
    %445 = math.tanh %444 : vector<8x128xf32>
    %446 = arith.mulf %441, %445 : vector<8x128xf32>
    %447 = vector.extract_strided_slice %421 {offsets = [0, 0], sizes = [8, 128], strides = [1, 1]} : vector<8x512xf32> to vector<8x128xf32>
    %448 = arith.negf %447 : vector<8x128xf32>
    %449 = math.exp %448 : vector<8x128xf32>
    %cst_130 = arith.constant 1.000000e+00 : f32
    %450 = vector.broadcast %cst_130 : f32 to vector<8x128xf32>
    %451 = arith.addf %450, %449 : vector<8x128xf32>
    %452 = arith.divf %450, %451 : vector<8x128xf32>
    %453 = vector.extract_strided_slice %421 {offsets = [0, 128], sizes = [8, 128], strides = [1, 1]} : vector<8x512xf32> to vector<8x128xf32>
    %454 = arith.negf %453 : vector<8x128xf32>
    %455 = math.exp %454 : vector<8x128xf32>
    %cst_131 = arith.constant 1.000000e+00 : f32
    %456 = vector.broadcast %cst_131 : f32 to vector<8x128xf32>
    %457 = arith.addf %456, %455 : vector<8x128xf32>
    %458 = arith.divf %456, %457 : vector<8x128xf32>
    %459 = vector.extract_strided_slice %421 {offsets = [0, 256], sizes = [8, 128], strides = [1, 1]} : vector<8x512xf32> to vector<8x128xf32>
    %460 = math.tanh %459 : vector<8x128xf32>
    %461 = vector.extract_strided_slice %421 {offsets = [0, 384], sizes = [8, 128], strides = [1, 1]} : vector<8x512xf32> to vector<8x128xf32>
    %462 = arith.negf %461 : vector<8x128xf32>
    %463 = math.exp %462 : vector<8x128xf32>
    %cst_132 = arith.constant 1.000000e+00 : f32
    %464 = vector.broadcast %cst_132 : f32 to vector<8x128xf32>
    %465 = arith.addf %464, %463 : vector<8x128xf32>
    %466 = arith.divf %464, %465 : vector<8x128xf32>
    %467 = arith.mulf %458, %403 : vector<8x128xf32>
    %468 = arith.mulf %452, %460 : vector<8x128xf32>
    %469 = arith.addf %467, %468 : vector<8x128xf32>
    %470 = math.tanh %469 : vector<8x128xf32>
    %471 = arith.mulf %466, %470 : vector<8x128xf32>
    %c0_133 = arith.constant 0 : index
    %c6_134 = arith.constant 6 : index
    %c0_135 = arith.constant 0 : index
    %472 = vector.load %arg9[%c0_133, %c6_134, %c0_135] : memref<8x8x256xf32, #tpu.memory_space<vmem>>, vector<8x1x128xf32>
    %473 = vector.shape_cast %472 : vector<8x1x128xf32> to vector<8x128xf32>
    %474 = vector.shape_cast %446 : vector<8x128xf32> to vector<8x1x128xf32>
    tpu.vector_store %arg9[%c0_133, %c6_134, %c0_135], %474 {strides = array<i32>} : memref<8x8x256xf32, #tpu.memory_space<vmem>>, vector<8x1x128xf32>,
    %c0_136 = arith.constant 0 : index
    %c1_137 = arith.constant 1 : index
    %c128_138 = arith.constant 128 : index
    %475 = vector.load %arg9[%c0_136, %c1_137, %c128_138] : memref<8x8x256xf32, #tpu.memory_space<vmem>>, vector<8x1x128xf32>
    %476 = vector.shape_cast %475 : vector<8x1x128xf32> to vector<8x128xf32>
    %477 = vector.shape_cast %471 : vector<8x128xf32> to vector<8x1x128xf32>
    tpu.vector_store %arg9[%c0_136, %c1_137, %c128_138], %477 {strides = array<i32>} : memref<8x8x256xf32, #tpu.memory_space<vmem>>, vector<8x1x128xf32>,
    %478 = tpu.concatenate %446, %471 in 1 : vector<8x128xf32>, vector<8x128xf32> -> vector<8x256xf32>
    %cst_139 = arith.constant dense<0.000000e+00> : vector<8x1024xf32>
    %479 = tpu.matmul %478, %9, %cst_139 {dimension_numbers = #tpu.dot_dimension_numbers<[1], [0], [0], [1], [0, 0, 1, 1], [], []>} : vector<8x256xf32>, vector<256x1024xf32>, vector<8x1024xf32> -> vector<8x1024xf32>
    %480 = vector.extract_strided_slice %479 {offsets = [0, 0], sizes = [8, 512], strides = [1, 1]} : vector<8x1024xf32> to vector<8x512xf32>
    %c0_140 = arith.constant 0 : index
    %c7_141 = arith.constant 7 : index
    %c0_142 = arith.constant 0 : index
    %481 = vector.load %arg8[%c0_140, %c7_141, %c0_142] : memref<8x8x1024xf32, #tpu.memory_space<vmem>>, vector<8x1x512xf32>
    %482 = vector.shape_cast %481 : vector<8x1x512xf32> to vector<8x512xf32>
    %483 = arith.addf %480, %482 : vector<8x512xf32>
    %484 = vector.extract_strided_slice %479 {offsets = [0, 512], sizes = [8, 512], strides = [1, 1]} : vector<8x1024xf32> to vector<8x512xf32>
    %c0_143 = arith.constant 0 : index
    %c0_144 = arith.constant 0 : index
    %c512_145 = arith.constant 512 : index
    %485 = vector.load %arg8[%c0_143, %c0_144, %c512_145] : memref<8x8x1024xf32, #tpu.memory_space<vmem>>, vector<8x1x512xf32>
    %486 = vector.shape_cast %485 : vector<8x1x512xf32> to vector<8x512xf32>
    %487 = arith.addf %484, %486 : vector<8x512xf32>
    %488 = vector.extract_strided_slice %483 {offsets = [0, 0], sizes = [8, 128], strides = [1, 1]} : vector<8x512xf32> to vector<8x128xf32>
    %489 = arith.negf %488 : vector<8x128xf32>
    %490 = math.exp %489 : vector<8x128xf32>
    %cst_146 = arith.constant 1.000000e+00 : f32
    %491 = vector.broadcast %cst_146 : f32 to vector<8x128xf32>
    %492 = arith.addf %491, %490 : vector<8x128xf32>
    %493 = arith.divf %491, %492 : vector<8x128xf32>
    %494 = vector.extract_strided_slice %483 {offsets = [0, 128], sizes = [8, 128], strides = [1, 1]} : vector<8x512xf32> to vector<8x128xf32>
    %495 = arith.negf %494 : vector<8x128xf32>
    %496 = math.exp %495 : vector<8x128xf32>
    %cst_147 = arith.constant 1.000000e+00 : f32
    %497 = vector.broadcast %cst_147 : f32 to vector<8x128xf32>
    %498 = arith.addf %497, %496 : vector<8x128xf32>
    %499 = arith.divf %497, %498 : vector<8x128xf32>
    %500 = vector.extract_strided_slice %483 {offsets = [0, 256], sizes = [8, 128], strides = [1, 1]} : vector<8x512xf32> to vector<8x128xf32>
    %501 = math.tanh %500 : vector<8x128xf32>
    %502 = vector.extract_strided_slice %483 {offsets = [0, 384], sizes = [8, 128], strides = [1, 1]} : vector<8x512xf32> to vector<8x128xf32>
    %503 = arith.negf %502 : vector<8x128xf32>
    %504 = math.exp %503 : vector<8x128xf32>
    %cst_148 = arith.constant 1.000000e+00 : f32
    %505 = vector.broadcast %cst_148 : f32 to vector<8x128xf32>
    %506 = arith.addf %505, %504 : vector<8x128xf32>
    %507 = arith.divf %505, %506 : vector<8x128xf32>
    %508 = arith.mulf %499, %444 : vector<8x128xf32>
    %509 = arith.mulf %493, %501 : vector<8x128xf32>
    %510 = arith.addf %508, %509 : vector<8x128xf32>
    %511 = math.tanh %510 : vector<8x128xf32>
    %512 = arith.mulf %507, %511 : vector<8x128xf32>
    %513 = vector.extract_strided_slice %487 {offsets = [0, 0], sizes = [8, 128], strides = [1, 1]} : vector<8x512xf32> to vector<8x128xf32>
    %514 = arith.negf %513 : vector<8x128xf32>
    %515 = math.exp %514 : vector<8x128xf32>
    %cst_149 = arith.constant 1.000000e+00 : f32
    %516 = vector.broadcast %cst_149 : f32 to vector<8x128xf32>
    %517 = arith.addf %516, %515 : vector<8x128xf32>
    %518 = arith.divf %516, %517 : vector<8x128xf32>
    %519 = vector.extract_strided_slice %487 {offsets = [0, 128], sizes = [8, 128], strides = [1, 1]} : vector<8x512xf32> to vector<8x128xf32>
    %520 = arith.negf %519 : vector<8x128xf32>
    %521 = math.exp %520 : vector<8x128xf32>
    %cst_150 = arith.constant 1.000000e+00 : f32
    %522 = vector.broadcast %cst_150 : f32 to vector<8x128xf32>
    %523 = arith.addf %522, %521 : vector<8x128xf32>
    %524 = arith.divf %522, %523 : vector<8x128xf32>
    %525 = vector.extract_strided_slice %487 {offsets = [0, 256], sizes = [8, 128], strides = [1, 1]} : vector<8x512xf32> to vector<8x128xf32>
    %526 = math.tanh %525 : vector<8x128xf32>
    %527 = vector.extract_strided_slice %487 {offsets = [0, 384], sizes = [8, 128], strides = [1, 1]} : vector<8x512xf32> to vector<8x128xf32>
    %528 = arith.negf %527 : vector<8x128xf32>
    %529 = math.exp %528 : vector<8x128xf32>
    %cst_151 = arith.constant 1.000000e+00 : f32
    %530 = vector.broadcast %cst_151 : f32 to vector<8x128xf32>
    %531 = arith.addf %530, %529 : vector<8x128xf32>
    %532 = arith.divf %530, %531 : vector<8x128xf32>
    %533 = arith.mulf %524, %469 : vector<8x128xf32>
    %534 = arith.mulf %518, %526 : vector<8x128xf32>
    %535 = arith.addf %533, %534 : vector<8x128xf32>
    %536 = math.tanh %535 : vector<8x128xf32>
    %537 = arith.mulf %532, %536 : vector<8x128xf32>
    %c0_152 = arith.constant 0 : index
    %c7_153 = arith.constant 7 : index
    %c0_154 = arith.constant 0 : index
    %538 = vector.load %arg9[%c0_152, %c7_153, %c0_154] : memref<8x8x256xf32, #tpu.memory_space<vmem>>, vector<8x1x128xf32>
    %539 = vector.shape_cast %538 : vector<8x1x128xf32> to vector<8x128xf32>
    %540 = vector.shape_cast %512 : vector<8x128xf32> to vector<8x1x128xf32>
    tpu.vector_store %arg9[%c0_152, %c7_153, %c0_154], %540 {strides = array<i32>} : memref<8x8x256xf32, #tpu.memory_space<vmem>>, vector<8x1x128xf32>,
    %c0_155 = arith.constant 0 : index
    %c0_156 = arith.constant 0 : index
    %c128_157 = arith.constant 128 : index
    %541 = vector.load %arg9[%c0_155, %c0_156, %c128_157] : memref<8x8x256xf32, #tpu.memory_space<vmem>>, vector<8x1x128xf32>
    %542 = vector.shape_cast %541 : vector<8x1x128xf32> to vector<8x128xf32>
    %543 = vector.shape_cast %537 : vector<8x128xf32> to vector<8x1x128xf32>
    tpu.vector_store %arg9[%c0_155, %c0_156, %c128_157], %543 {strides = array<i32>} : memref<8x8x256xf32, #tpu.memory_space<vmem>>, vector<8x1x128xf32>,
    %c0_158 = arith.constant 0 : index
    %c0_159 = arith.constant 0 : index
    %c0_160 = arith.constant 0 : index
    %544 = vector.load %arg9[%c0_158, %c0_159, %c0_160] : memref<8x8x256xf32, #tpu.memory_space<vmem>>, vector<8x8x256xf32>
    %545 = vector.shape_cast %544 : vector<8x8x256xf32> to vector<64x256xf32>
    %c0_161 = arith.constant 0 : index
    %c0_162 = arith.constant 0 : index
    %546 = vector.load %arg5[%c0_161, %c0_162] : memref<256x128xf32, #tpu.memory_space<vmem>>, vector<256x128xf32>
    %cst_163 = arith.constant dense<0.000000e+00> : vector<64x128xf32>
    %547 = tpu.matmul %545, %546, %cst_163 {dimension_numbers = #tpu.dot_dimension_numbers<[1], [0], [0], [1], [0, 0, 1, 1], [], []>} : vector<64x256xf32>, vector<256x128xf32>, vector<64x128xf32> -> vector<64x128xf32>
    %548 = vector.shape_cast %547 : vector<64x128xf32> to vector<8x8x128xf32>
    %c0_164 = arith.constant 0 : index
    %c0_165 = arith.constant 0 : index
    %c0_166 = arith.constant 0 : index
    %549 = vector.load %arg7[%c0_164, %c0_165, %c0_166] : memref<8x8x128xf32, #tpu.memory_space<vmem>>, vector<8x8x128xf32>
    tpu.vector_store %arg7[%c0_164, %c0_165, %c0_166], %548 {strides = array<i32>} : memref<8x8x128xf32, #tpu.memory_space<vmem>>, vector<8x8x128xf32>,
    return
  }
  func.func @transform_0(%arg0: i32) -> (i32, i32, i32) {
    %c0_i32 = arith.constant 0 : i32
    %c0_i32_0 = arith.constant 0 : i32
    %c0_i32_1 = arith.constant 0 : i32
    return %arg0, %c0_i32, %c0_i32_0 : i32, i32, i32
  }
  func.func @transform_1(%arg0: i32) -> (i32, i32) {
    %c0_i32 = arith.constant 0 : i32
    %c0_i32_0 = arith.constant 0 : i32
    %c0_i32_1 = arith.constant 0 : i32
    return %c0_i32, %c0_i32_0 : i32, i32
  }
  func.func @transform_2(%arg0: i32) -> (i32, i32) {
    %c0_i32 = arith.constant 0 : i32
    %c0_i32_0 = arith.constant 0 : i32
    %c0_i32_1 = arith.constant 0 : i32
    return %c0_i32, %c0_i32_0 : i32, i32
  }
  func.func @transform_3(%arg0: i32) -> (i32, i32) {
    %c0_i32 = arith.constant 0 : i32
    %c0_i32_0 = arith.constant 0 : i32
    %c0_i32_1 = arith.constant 0 : i32
    return %c0_i32, %c0_i32_0 : i32, i32
  }
  func.func @transform_4(%arg0: i32) -> (i32, i32) {
    %c0_i32 = arith.constant 0 : i32
    %c0_i32_0 = arith.constant 0 : i32
    %c0_i32_1 = arith.constant 0 : i32
    return %c0_i32, %c0_i32_0 : i32, i32
  }
  func.func @transform_5(%arg0: i32) -> (i32, i32) {
    %c0_i32 = arith.constant 0 : i32
    %c0_i32_0 = arith.constant 0 : i32
    %c0_i32_1 = arith.constant 0 : i32
    return %c0_i32, %c0_i32_0 : i32, i32
  }
  func.func @transform_6(%arg0: i32) -> (i32, i32, i32) {
    %c0_i32 = arith.constant 0 : i32
    %c0_i32_0 = arith.constant 0 : i32
    %c0_i32_1 = arith.constant 0 : i32
    return %arg0, %c0_i32, %c0_i32_0 : i32, i32, i32
  }
}

</mosaic_0001>

<llo_original>
// kernel: tpu_custom_call.1
$region0: #{tpu_custom_call.1}
  #allocation0 [shape = 'u32[]', space=smem, size = 0x4, offset = 0x4, fixed_abs, tag = 'smem constant byte address 0x4 - core index']
  #allocation1 [shape = 'u32[144,128]{1,0:T(1,128)}', space=vmem, size = 0x12000, scoped, tag = 'internal scratch']
  #allocation2 [shape = 'f32[8,8,1024]{2,1,0:T(8,128)}', space=vmem, size = 0x40000, scoped, tag = 'scratch operand']
  #allocation3 [shape = 'f32[8,8,256]{2,1,0:T(8,128)}', space=vmem, size = 0x10000, scoped, tag = 'scratch operand']
  %s0 = inlined_call_operand.hbm [shape: f32[16,8,128], index: 0, kind: input, shape index: {}]
  %s1 = inlined_call_operand.hbm [shape: f32[128,1024], index: 1, kind: input, shape index: {}]
  %s2 = inlined_call_operand.hbm [shape: f32[256,1024], index: 2, kind: input, shape index: {}]
  %s3 = inlined_call_operand.vmem [shape: f32[1,1024], index: 3, kind: input, shape index: {}]
  %s4 = inlined_call_operand.hbm [shape: f32[256,128], index: 4, kind: input, shape index: {}]
  %s5 = inlined_call_operand.vmem [shape: f32[2,128], index: 5, kind: input, shape index: {}]
  %s6 = inlined_call_operand.hbm [shape: f32[16,8,128], index: 6, kind: output, shape index: {}]
  %s7 = sld [smem:[#allocation0]]
  $region73: #{tpu_custom_call.1} parent=0
    _
  %s9 = ssub.s32 1, %s7
  %s10 = scalar_select 0, %s9, %s7
  $region1: #{tpu_custom_call.1} parent=0
    #allocation4 [shape = 'u8[65536]{0}', space=vmem, size = 0x10000, scoped, tag = 'input window, operand 0']
    #allocation5 [shape = 's32[2]{0}', space=sflag, size = 0x8, scoped, tag = 'scoped memory for tpu_custom_call.1']
    #allocation6 [shape = 's32[2]{0}', space=sflag, size = 0x8, scoped, tag = 'scoped memory for tpu_custom_call.1']
    #allocation7 [shape = 'u8[524288]{0}', space=vmem, size = 0x80000, scoped, tag = 'input window, operand 1, single buffered']
    #allocation8 [shape = 's32[1]{0}', space=sflag, size = 0x4, scoped, tag = 'scoped memory for tpu_custom_call.1']
    #allocation9 [shape = 'u8[1048576]{0}', space=vmem, size = 0x100000, scoped, tag = 'input window, operand 2, single buffered']
    #allocation10 [shape = 'u8[131072]{0}', space=vmem, size = 0x20000, scoped, tag = 'input window, operand 4, single buffered']
    #allocation11 [shape = 's32[1]{0}', space=sflag, size = 0x4, scoped, tag = 'scoped memory for tpu_custom_call.1']
    #allocation12 [shape = 'u8[65536]{0}', space=vmem, size = 0x10000, scoped, tag = 'output window, operand 0']
    %11 = vsyncpa [#allocation5], 0
    %s12 = scalar_lea.sflag [#allocation5], 1
    %13 = vsyncpa %s12, 0
    %14 = vsyncpa [#allocation8], 0
    %15 = vsyncpa [#allocation11], 0
    %16 = vsyncpa [#allocation6], 0
    %s17 = scalar_lea.sflag [#allocation6], 1
    %18 = vsyncpa %s17, 0
    loop: start=0, step=1, limit=4
    $region2: #{tpu_custom_call.1} parent=1 // loop_pre_header
      _
    $region3: #{tpu_custom_call.1} parent=1 // loop_header
      %s20 = sphi 0, %s24
      %p21 = scmp.ge.s32.totalorder %s20, 4
      %s30 = sphi 0, %s32
      %s33 = sphi 0, %s30
      %s34 = sphi 0, %s33
      %s50 = sphi 0, %s34
      %s54 = sphi 0, %s54
      %s56 = sphi 0, %s54
      %s57 = sphi 0, %s56
      %s71 = sphi 0, %s57
      %s75 = sphi 0, %s75
      %s77 = sphi 0, %s75
      %s78 = sphi 0, %s77
      %s92 = sphi 0, %s78
      %s96 = sphi 0, %s96
      %s98 = sphi 0, %s96
      %s99 = sphi 0, %s98
      %s113 = sphi 0, %s99
      %s117 = sphi 0, %s117
      %s119 = sphi 0, %s117
      %s120 = sphi 0, %s119
      %s134 = sphi 0, %s120
      %s138 = sphi 0, %s138
      %s140 = sphi 0, %s138
      %s141 = sphi 0, %s140
      %s155 = sphi 0, %s141
      %s161 = sphi 0, %s163
      %s164 = sphi 0, %s161
      %s165 = sphi 0, %s164
      %s181 = sphi 0, %s165
    $region4: #{tpu_custom_call.1} parent=1 // loop_header_branch
      %23 = sbr.rel (%p21) target = $region8
    $region5: #{tpu_custom_call.1} parent=1 // loop_body
      %s25 = ssub.s32 %s20, 1
      %s26 = ssub.s32 %s20, 2
      %s27 = sadd.s32 %s20, 1
      %s28 = ssub.s32 %s20, %s27
      %p29 = scmp.eq.s32.totalorder %s28, 0
      %s31 = sadd.s32 %s30, 1
      %s32 = scalar_select %p29, %s30, %s31
      %p35 = pneg %p29
      %p36 = scmp.eq.s32.totalorder %s20, 1
      %p37 = por %p35, %p36
      %p38 = scmp.ne.s32.totalorder %s30, %s33
      %p39 = scmp.eq.s32.totalorder %s20, 0
      %p40 = por %p38, %p39
      %p41 = scmp.ne.s32.totalorder %s30, %s33
      %p42 = scmp.eq.s32.totalorder %s25, 1
      %p43 = por %p41, %p42
      %p44 = scmp.ne.s32.totalorder %s33, %s34
      %p45 = scmp.eq.s32.totalorder %s25, 0
      %p46 = por %p44, %p45
      %p47 = scmp.ne.s32.totalorder %s33, %s34
      %p48 = scmp.eq.s32.totalorder %s26, 1
      %p49 = por %p47, %p48
      %p51 = scmp.ne.s32.totalorder %s34, %s50
      %p52 = scmp.eq.s32.totalorder %s26, 0
      %p53 = por %p51, %p52
      %s55 = sadd.s32 %s54, 1
      %p58 = scmp.eq.s32.totalorder %s20, 1
      %p59 = scmp.ne.s32.totalorder %s54, %s56
      %p60 = scmp.eq.s32.totalorder %s20, 0
      %p61 = por %p59, %p60
      %p62 = scmp.ne.s32.totalorder %s54, %s56
      %p63 = scmp.eq.s32.totalorder %s25, 1
      %p64 = por %p62, %p63
      %p65 = scmp.ne.s32.totalorder %s56, %s57
      %p66 = scmp.eq.s32.totalorder %s25, 0
      %p67 = por %p65, %p66
      %p68 = scmp.ne.s32.totalorder %s56, %s57
      %p69 = scmp.eq.s32.totalorder %s26, 1
      %p70 = por %p68, %p69
      %p72 = scmp.ne.s32.totalorder %s57, %s71
      %p73 = scmp.eq.s32.totalorder %s26, 0
      %p74 = por %p72, %p73
      %s76 = sadd.s32 %s75, 1
      %p79 = scmp.eq.s32.totalorder %s20, 1
      %p80 = scmp.ne.s32.totalorder %s75, %s77
      %p81 = scmp.eq.s32.totalorder %s20, 0
      %p82 = por %p80, %p81
      %p83 = scmp.ne.s32.totalorder %s75, %s77
      %p84 = scmp.eq.s32.totalorder %s25, 1
      %p85 = por %p83, %p84
      %p86 = scmp.ne.s32.totalorder %s77, %s78
      %p87 = scmp.eq.s32.totalorder %s25, 0
      %p88 = por %p86, %p87
      %p89 = scmp.ne.s32.totalorder %s77, %s78
      %p90 = scmp.eq.s32.totalorder %s26, 1
      %p91 = por %p89, %p90
      %p93 = scmp.ne.s32.totalorder %s78, %s92
      %p94 = scmp.eq.s32.totalorder %s26, 0
      %p95 = por %p93, %p94
      %s97 = sadd.s32 %s96, 1
      %p100 = scmp.eq.s32.totalorder %s20, 1
      %p101 = scmp.ne.s32.totalorder %s96, %s98
      %p102 = scmp.eq.s32.totalorder %s20, 0
      %p103 = por %p101, %p102
      %p104 = scmp.ne.s32.totalorder %s96, %s98
      %p105 = scmp.eq.s32.totalorder %s25, 1
      %p106 = por %p104, %p105
      %p107 = scmp.ne.s32.totalorder %s98, %s99
      %p108 = scmp.eq.s32.totalorder %s25, 0
      %p109 = por %p107, %p108
      %p110 = scmp.ne.s32.totalorder %s98, %s99
      %p111 = scmp.eq.s32.totalorder %s26, 1
      %p112 = por %p110, %p111
      %p114 = scmp.ne.s32.totalorder %s99, %s113
      %p115 = scmp.eq.s32.totalorder %s26, 0
      %p116 = por %p114, %p115
      %s118 = sadd.s32 %s117, 1
      %p121 = scmp.eq.s32.totalorder %s20, 1
      %p122 = scmp.ne.s32.totalorder %s117, %s119
      %p123 = scmp.eq.s32.totalorder %s20, 0
      %p124 = por %p122, %p123
      %p125 = scmp.ne.s32.totalorder %s117, %s119
      %p126 = scmp.eq.s32.totalorder %s25, 1
      %p127 = por %p125, %p126
      %p128 = scmp.ne.s32.totalorder %s119, %s120
      %p129 = scmp.eq.s32.totalorder %s25, 0
      %p130 = por %p128, %p129
      %p131 = scmp.ne.s32.totalorder %s119, %s120
      %p132 = scmp.eq.s32.totalorder %s26, 1
      %p133 = por %p131, %p132
      %p135 = scmp.ne.s32.totalorder %s120, %s134
      %p136 = scmp.eq.s32.totalorder %s26, 0
      %p137 = por %p135, %p136
      %s139 = sadd.s32 %s138, 1
      %p142 = scmp.eq.s32.totalorder %s20, 1
      %p143 = scmp.ne.s32.totalorder %s138, %s140
      %p144 = scmp.eq.s32.totalorder %s20, 0
      %p145 = por %p143, %p144
      %p146 = scmp.ne.s32.totalorder %s138, %s140
      %p147 = scmp.eq.s32.totalorder %s25, 1
      %p148 = por %p146, %p147
      %p149 = scmp.ne.s32.totalorder %s140, %s141
      %p150 = scmp.eq.s32.totalorder %s25, 0
      %p151 = por %p149, %p150
      %p152 = scmp.ne.s32.totalorder %s140, %s141
      %p153 = scmp.eq.s32.totalorder %s26, 1
      %p154 = por %p152, %p153
      %p156 = scmp.ne.s32.totalorder %s141, %s155
      %p157 = scmp.eq.s32.totalorder %s26, 0
      %p158 = por %p156, %p157
      %s159 = ssub.s32 %s20, %s27
      %p160 = scmp.eq.s32.totalorder %s159, 0
      %s162 = sadd.s32 %s161, 1
      %s163 = scalar_select %p160, %s161, %s162
      %p166 = pneg %p160
      %p167 = scmp.eq.s32.totalorder %s20, 1
      %p168 = por %p166, %p167
      %p169 = scmp.ne.s32.totalorder %s161, %s164
      %p170 = scmp.eq.s32.totalorder %s20, 0
      %p171 = por %p169, %p170
      %p172 = scmp.ne.s32.totalorder %s161, %s164
      %p173 = scmp.eq.s32.totalorder %s25, 1
      %p174 = por %p172, %p173
      %p175 = scmp.ne.s32.totalorder %s164, %s165
      %p176 = scmp.eq.s32.totalorder %s25, 0
      %p177 = por %p175, %p176
      %p178 = scmp.ne.s32.totalorder %s164, %s165
      %p179 = scmp.eq.s32.totalorder %s26, 1
      %p180 = por %p178, %p179
      %p182 = scmp.ne.s32.totalorder %s165, %s181
      %p183 = scmp.eq.s32.totalorder %s26, 0
      %p184 = por %p182, %p183
      %p185 = scmp.le.s32.totalorder 1, %s20
      %p186 = scmp.lt.s32.totalorder %s20, 3
      %p187 = pnand %p185, %p186
      %p188 = pneg %p187
      // Predicated region
      $region9: #{tpu_custom_call.1} parent=5 // pred_check
        _
      $region10: #{tpu_custom_call.1} parent=5 // pred_check_branch
        %190 = sbr.rel (%p187) target = $region12
      $region11: #{tpu_custom_call.1} parent=5 // pred_region
        %s191 = ssub.s32 %s20, 1
        // Predicated region
        $region13: #{tpu_custom_call.1} parent=11 // pred_check
          %p192 = pneg %p67
        $region14: #{tpu_custom_call.1} parent=11 // pred_check_branch
          %194 = sbr.rel (%p192) target = $region16
        $region15: #{tpu_custom_call.1} parent=11 // pred_region
          %s196 = ssub.s32 16384, 16384
          %197 = vsyncadd [#allocation8], %s196
          %s198 = sshll.u32 [#allocation7], 4
          %s199 = int_to_ptr.vmem [resolvable:$true] %s198
          %204 = dma.hbm_to_vmem [thread:$0]  %s1, 16384, %s199, [#allocation8], 1024, 1024, 64
        $region16: #{tpu_custom_call.1} parent=11 // pred_fallthru
          _
        // Predicated region
        $region17: #{tpu_custom_call.1} parent=11 // pred_check
          %p205 = pneg %p88
        $region18: #{tpu_custom_call.1} parent=11 // pred_check_branch
          %207 = sbr.rel (%p205) target = $region20
        $region19: #{tpu_custom_call.1} parent=11 // pred_region
          %s209 = ssub.s32 32768, 32768
          %210 = vsyncadd [#allocation8], %s209
          %s211 = sshll.u32 [#allocation9], 4
          %s212 = int_to_ptr.vmem [resolvable:$true] %s211
          %217 = dma.hbm_to_vmem [thread:$0]  %s2, 32768, %s212, [#allocation8], 1024, 1024, 64
        $region20: #{tpu_custom_call.1} parent=11 // pred_fallthru
          _
        // Predicated region
        $region21: #{tpu_custom_call.1} parent=11 // pred_check
          %p218 = pneg %p109
        $region22: #{tpu_custom_call.1} parent=11 // pred_check_branch
          %220 = sbr.rel (%p218) target = $region24
        $region23: #{tpu_custom_call.1} parent=11 // pred_region
          _
        $region24: #{tpu_custom_call.1} parent=11 // pred_fallthru
          _
        // Predicated region
        $region25: #{tpu_custom_call.1} parent=11 // pred_check
          %p221 = pneg %p130
        $region26: #{tpu_custom_call.1} parent=11 // pred_check_branch
          %223 = sbr.rel (%p221) target = $region28
        $region27: #{tpu_custom_call.1} parent=11 // pred_region
          %s225 = ssub.s32 4096, 4096
          %226 = vsyncadd [#allocation11], %s225
          %s227 = sshll.u32 [#allocation10], 4
          %s228 = int_to_ptr.vmem [resolvable:$true] %s227
          %233 = dma.hbm_to_vmem [thread:$0]  %s4, 4096, %s228, [#allocation11], 128, 128, 8
        $region28: #{tpu_custom_call.1} parent=11 // pred_fallthru
          _
        // Predicated region
        $region29: #{tpu_custom_call.1} parent=11 // pred_check
          %p234 = pneg %p151
        $region30: #{tpu_custom_call.1} parent=11 // pred_check_branch
          %236 = sbr.rel (%p234) target = $region32
        $region31: #{tpu_custom_call.1} parent=11 // pred_region
          _
        $region32: #{tpu_custom_call.1} parent=11 // pred_fallthru
          _
      $region12: #{tpu_custom_call.1} parent=5 // pred_fallthru
        _
      %p237 = scmp.lt.s32.totalorder %s20, 2
      // Predicated region
      $region33: #{tpu_custom_call.1} parent=5 // pred_check
        %p238 = pneg %p237
      $region34: #{tpu_custom_call.1} parent=5 // pred_check_branch
        %240 = sbr.rel (%p238) target = $region36
      $region35: #{tpu_custom_call.1} parent=5 // pred_region
        // Predicated region
        $region37: #{tpu_custom_call.1} parent=35 // pred_check
          %p241 = pneg %p40
        $region38: #{tpu_custom_call.1} parent=35 // pred_check_branch
          %243 = sbr.rel (%p241) target = $region40
        $region39: #{tpu_custom_call.1} parent=35 // pred_region
          %s244 = sand.u32 %s30, 1
          %s245 = scalar_lea.sflag [#allocation5], %s244
          %s246 = sand.u32 %s30, 1
          %s247 = smul.addr %s246, 64
          %s248 = scalar_lea.vmem [#allocation4], %s247
          %s249 = smul.u32 8, %s20
          %s251 = ssub.s32 1024, 1024
          %252 = vsyncadd %s245, %s251
          %s253 = smul.addr %s249, 128
          %s254 = scalar_lea.hbm %s0, %s253
          %s255 = sshll.u32 %s248, 4
          %s256 = int_to_ptr.vmem [resolvable:$true] %s255
          %261 = dma.hbm_to_vmem [thread:$0]  %s254, 1024, %s256, %s245, 128, 128, 8
        $region40: #{tpu_custom_call.1} parent=35 // pred_fallthru
          _
      $region36: #{tpu_custom_call.1} parent=5 // pred_fallthru
        _
      %p262 = scmp.le.s32.totalorder 1, %s20
      %p263 = scmp.lt.s32.totalorder %s20, 3
      %p264 = pnand %p262, %p263
      %p265 = pneg %p264
      // Predicated region
      $region41: #{tpu_custom_call.1} parent=5 // pred_check
        _
      $region42: #{tpu_custom_call.1} parent=5 // pred_check_branch
        %267 = sbr.rel (%p264) target = $region44
      $region43: #{tpu_custom_call.1} parent=5 // pred_region
        %s268 = ssub.s32 %s20, 1
        %s269 = sand.u32 %s33, 1
        %s270 = scalar_lea.sflag [#allocation5], %s269
        %s271 = sand.u32 %s33, 1
        %s272 = smul.addr %s271, 64
        %s273 = scalar_lea.vmem [#allocation4], %s272
        // Predicated region
        $region45: #{tpu_custom_call.1} parent=43 // pred_check
          %p274 = pneg %p46
        $region46: #{tpu_custom_call.1} parent=43 // pred_check_branch
          %276 = sbr.rel (%p274) target = $region48
        $region47: #{tpu_custom_call.1} parent=43 // pred_region
          %277 = dma.done %s270, 1024
        $region48: #{tpu_custom_call.1} parent=43 // pred_fallthru
          _
        // Predicated region
        $region49: #{tpu_custom_call.1} parent=43 // pred_check
          %p278 = pneg %p67
        $region50: #{tpu_custom_call.1} parent=43 // pred_check_branch
          %280 = sbr.rel (%p278) target = $region52
        $region51: #{tpu_custom_call.1} parent=43 // pred_region
          %281 = dma.done [#allocation8], 16384
        $region52: #{tpu_custom_call.1} parent=43 // pred_fallthru
          _
        // Predicated region
        $region53: #{tpu_custom_call.1} parent=43 // pred_check
          %p282 = pneg %p88
        $region54: #{tpu_custom_call.1} parent=43 // pred_check_branch
          %284 = sbr.rel (%p282) target = $region56
        $region55: #{tpu_custom_call.1} parent=43 // pred_region
          %285 = dma.done [#allocation8], 32768
        $region56: #{tpu_custom_call.1} parent=43 // pred_fallthru
          _
        // Predicated region
        $region57: #{tpu_custom_call.1} parent=43 // pred_check
          %p286 = pneg %p130
        $region58: #{tpu_custom_call.1} parent=43 // pred_check_branch
          %288 = sbr.rel (%p286) target = $region60
        $region59: #{tpu_custom_call.1} parent=43 // pred_region
          %289 = dma.done [#allocation11], 4096
        $region60: #{tpu_custom_call.1} parent=43 // pred_fallthru
          _
        %s290 = sand.u32 %s33, 1
        %s291 = scalar_lea.sflag [#allocation5], %s290
        %s292 = sand.u32 %s33, 1
        %s293 = smul.addr %s292, 64
        %s294 = scalar_lea.vmem [#allocation4], %s293
        %p295 = pneg %p46
        %p296 = pneg %p43
        %p297 = pneg %p67
        %p298 = pneg %p64
        %p299 = pneg %p88
        %p300 = pneg %p85
        %p301 = pneg %p109
        %p302 = pneg %p106
        %p303 = pneg %p130
        %p304 = pneg %p127
        %p305 = pneg %p151
        %p306 = pneg %p148
        %p307 = pneg %p177
        %p308 = pneg %p174
        %s309 = sand.u32 %s164, 1
        %s310 = scalar_lea.sflag [#allocation6], %s309
        %s311 = sand.u32 %s164, 1
        %s312 = smul.addr %s311, 64
        %s313 = scalar_lea.vmem [#allocation12], %s312
        %s314 = smul.u32 8, %s25
        %s315 = smul.u32 8, %s25
        %v316 = vld [vmem:[%s273] sm:$0xff]
        %v317 = vld [vmem:[%s273 + $0x8] sm:$0xff]
        %v318 = vld [vmem:[%s273 + $0x10] sm:$0xff]
        %v319 = vld [vmem:[%s273 + $0x18] sm:$0xff]
        %v320 = vld [vmem:[%s273 + $0x20] sm:$0xff]
        %v321 = vld [vmem:[%s273 + $0x28] sm:$0xff]
        %v322 = vld [vmem:[%s273 + $0x30] sm:$0xff]
        %v323 = vld [vmem:[%s273 + $0x38] sm:$0xff]
        %v324 = vld [vmem:[#allocation7] sm:$0xff]
        %v325 = vld [vmem:[#allocation7 + $0x8] sm:$0xff]
        %v326 = vld [vmem:[#allocation7 + $0x10] sm:$0xff]
        %v327 = vld [vmem:[#allocation7 + $0x18] sm:$0xff]
        %v328 = vld [vmem:[#allocation7 + $0x20] sm:$0xff]
        %v329 = vld [vmem:[#allocation7 + $0x28] sm:$0xff]
        %v330 = vld [vmem:[#allocation7 + $0x30] sm:$0xff]
        %v331 = vld [vmem:[#allocation7 + $0x38] sm:$0xff]
        %v332 = vld [vmem:[#allocation7 + $0x40] sm:$0xff]
        %v333 = vld [vmem:[#allocation7 + $0x48] sm:$0xff]
        %v334 = vld [vmem:[#allocation7 + $0x50] sm:$0xff]
        %v335 = vld [vmem:[#allocation7 + $0x58] sm:$0xff]
        %v336 = vld [vmem:[#allocation7 + $0x60] sm:$0xff]
        %v337 = vld [vmem:[#allocation7 + $0x68] sm:$0xff]
        %v338 = vld [vmem:[#allocation7 + $0x70] sm:$0xff]
        %v339 = vld [vmem:[#allocation7 + $0x78] sm:$0xff]
        %v340 = vld [vmem:[#allocation7 + $0x80] sm:$0xff]
        %v341 = vld [vmem:[#allocation7 + $0x88] sm:$0xff]
        %v342 = vld [vmem:[#allocation7 + $0x90] sm:$0xff]
        %v343 = vld [vmem:[#allocation7 + $0x98] sm:$0xff]
        %v344 = vld [vmem:[#allocation7 + $0xa0] sm:$0xff]
        %v345 = vld [vmem:[#allocation7 + $0xa8] sm:$0xff]
        %v346 = vld [vmem:[#allocation7 + $0xb0] sm:$0xff]
        %v347 = vld [vmem:[#allocation7 + $0xb8] sm:$0xff]
        %v348 = vld [vmem:[#allocation7 + $0xc0] sm:$0xff]
        %v349 = vld [vmem:[#allocation7 + $0xc8] sm:$0xff]
        %v350 = vld [vmem:[#allocation7 + $0xd0] sm:$0xff]
        %v351 = vld [vmem:[#allocation7 + $0xd8] sm:$0xff]
        %v352 = vld [vmem:[#allocation7 + $0xe0] sm:$0xff]
        %v353 = vld [vmem:[#allocation7 + $0xe8] sm:$0xff]
        %v354 = vld [vmem:[#allocation7 + $0xf0] sm:$0xff]
        %v355 = vld [vmem:[#allocation7 + $0xf8] sm:$0xff]
        %v356 = vld [vmem:[#allocation7 + $0x100] sm:$0xff]
        %v357 = vld [vmem:[#allocation7 + $0x108] sm:$0xff]
        %v358 = vld [vmem:[#allocation7 + $0x110] sm:$0xff]
        %v359 = vld [vmem:[#allocation7 + $0x118] sm:$0xff]
        %v360 = vld [vmem:[#allocation7 + $0x120] sm:$0xff]
        %v361 = vld [vmem:[#allocation7 + $0x128] sm:$0xff]
        %v362 = vld [vmem:[#allocation7 + $0x130] sm:$0xff]
        %v363 = vld [vmem:[#allocation7 + $0x138] sm:$0xff]
        %v364 = vld [vmem:[#allocation7 + $0x140] sm:$0xff]
        %v365 = vld [vmem:[#allocation7 + $0x148] sm:$0xff]
        %v366 = vld [vmem:[#allocation7 + $0x150] sm:$0xff]
        %v367 = vld [vmem:[#allocation7 + $0x158] sm:$0xff]
        %v368 = vld [vmem:[#allocation7 + $0x160] sm:$0xff]
        %v369 = vld [vmem:[#allocation7 + $0x168] sm:$0xff]
        %v370 = vld [vmem:[#allocation7 + $0x170] sm:$0xff]
        %v371 = vld [vmem:[#allocation7 + $0x178] sm:$0xff]
        %v372 = vld [vmem:[#allocation7 + $0x180] sm:$0xff]
        %v373 = vld [vmem:[#allocation7 + $0x188] sm:$0xff]
        %v374 = vld [vmem:[#allocation7 + $0x190] sm:$0xff]
        %v375 = vld [vmem:[#allocation7 + $0x198] sm:$0xff]
        %v376 = vld [vmem:[#allocation7 + $0x1a0] sm:$0xff]
        %v377 = vld [vmem:[#allocation7 + $0x1a8] sm:$0xff]
        %v378 = vld [vmem:[#allocation7 + $0x1b0] sm:$0xff]
        %v379 = vld [vmem:[#allocation7 + $0x1b8] sm:$0xff]
        %v380 = vld [vmem:[#allocation7 + $0x1c0] sm:$0xff]
        %v381 = vld [vmem:[#allocation7 + $0x1c8] sm:$0xff]
        %v382 = vld [vmem:[#allocation7 + $0x1d0] sm:$0xff]
        %v383 = vld [vmem:[#allocation7 + $0x1d8] sm:$0xff]
        %v384 = vld [vmem:[#allocation7 + $0x1e0] sm:$0xff]
        %v385 = vld [vmem:[#allocation7 + $0x1e8] sm:$0xff]
        %v386 = vld [vmem:[#allocation7 + $0x1f0] sm:$0xff]
        %v387 = vld [vmem:[#allocation7 + $0x1f8] sm:$0xff]
        %v388 = vld [vmem:[#allocation7 + $0x200] sm:$0xff]
        %v389 = vld [vmem:[#allocation7 + $0x208] sm:$0xff]
        %v390 = vld [vmem:[#allocation7 + $0x210] sm:$0xff]
        %v391 = vld [vmem:[#allocation7 + $0x218] sm:$0xff]
        %v392 = vld [vmem:[#allocation7 + $0x220] sm:$0xff]
        %v393 = vld [vmem:[#allocation7 + $0x228] sm:$0xff]
        %v394 = vld [vmem:[#allocation7 + $0x230] sm:$0xff]
        %v395 = vld [vmem:[#allocation7 + $0x238] sm:$0xff]
        %v396 = vld [vmem:[#allocation7 + $0x240] sm:$0xff]
        %v397 = vld [vmem:[#allocation7 + $0x248] sm:$0xff]
        %v398 = vld [vmem:[#allocation7 + $0x250] sm:$0xff]
        %v399 = vld [vmem:[#allocation7 + $0x258] sm:$0xff]
        %v400 = vld [vmem:[#allocation7 + $0x260] sm:$0xff]
        %v401 = vld [vmem:[#allocation7 + $0x268] sm:$0xff]
        %v402 = vld [vmem:[#allocation7 + $0x270] sm:$0xff]
        %v403 = vld [vmem:[#allocation7 + $0x278] sm:$0xff]
        %v404 = vld [vmem:[#allocation7 + $0x280] sm:$0xff]
        %v405 = vld [vmem:[#allocation7 + $0x288] sm:$0xff]
        %v406 = vld [vmem:[#allocation7 + $0x290] sm:$0xff]
        %v407 = vld [vmem:[#allocation7 + $0x298] sm:$0xff]
        %v408 = vld [vmem:[#allocation7 + $0x2a0] sm:$0xff]
        %v409 = vld [vmem:[#allocation7 + $0x2a8] sm:$0xff]
        %v410 = vld [vmem:[#allocation7 + $0x2b0] sm:$0xff]
        %v411 = vld [vmem:[#allocation7 + $0x2b8] sm:$0xff]
        %v412 = vld [vmem:[#allocation7 + $0x2c0] sm:$0xff]
        %v413 = vld [vmem:[#allocation7 + $0x2c8] sm:$0xff]
        %v414 = vld [vmem:[#allocation7 + $0x2d0] sm:$0xff]
        %v415 = vld [vmem:[#allocation7 + $0x2d8] sm:$0xff]
        %v416 = vld [vmem:[#allocation7 + $0x2e0] sm:$0xff]
        %v417 = vld [vmem:[#allocation7 + $0x2e8] sm:$0xff]
        %v418 = vld [vmem:[#allocation7 + $0x2f0] sm:$0xff]
        %v419 = vld [vmem:[#allocation7 + $0x2f8] sm:$0xff]
        %v420 = vld [vmem:[#allocation7 + $0x300] sm:$0xff]
        %v421 = vld [vmem:[#allocation7 + $0x308] sm:$0xff]
        %v422 = vld [vmem:[#allocation7 + $0x310] sm:$0xff]
        %v423 = vld [vmem:[#allocation7 + $0x318] sm:$0xff]
        %v424 = vld [vmem:[#allocation7 + $0x320] sm:$0xff]
        %v425 = vld [vmem:[#allocation7 + $0x328] sm:$0xff]
        %v426 = vld [vmem:[#allocation7 + $0x330] sm:$0xff]
        %v427 = vld [vmem:[#allocation7 + $0x338] sm:$0xff]
        %v428 = vld [vmem:[#allocation7 + $0x340] sm:$0xff]
        %v429 = vld [vmem:[#allocation7 + $0x348] sm:$0xff]
        %v430 = vld [vmem:[#allocation7 + $0x350] sm:$0xff]
        %v431 = vld [vmem:[#allocation7 + $0x358] sm:$0xff]
        %v432 = vld [vmem:[#allocation7 + $0x360] sm:$0xff]
        %v433 = vld [vmem:[#allocation7 + $0x368] sm:$0xff]
        %v434 = vld [vmem:[#allocation7 + $0x370] sm:$0xff]
        %v435 = vld [vmem:[#allocation7 + $0x378] sm:$0xff]
        %v436 = vld [vmem:[#allocation7 + $0x380] sm:$0xff]
        %v437 = vld [vmem:[#allocation7 + $0x388] sm:$0xff]
        %v438 = vld [vmem:[#allocation7 + $0x390] sm:$0xff]
        %v439 = vld [vmem:[#allocation7 + $0x398] sm:$0xff]
        %v440 = vld [vmem:[#allocation7 + $0x3a0] sm:$0xff]
        %v441 = vld [vmem:[#allocation7 + $0x3a8] sm:$0xff]
        %v442 = vld [vmem:[#allocation7 + $0x3b0] sm:$0xff]
        %v443 = vld [vmem:[#allocation7 + $0x3b8] sm:$0xff]
        %v444 = vld [vmem:[#allocation7 + $0x3c0] sm:$0xff]
        %v445 = vld [vmem:[#allocation7 + $0x3c8] sm:$0xff]
        %v446 = vld [vmem:[#allocation7 + $0x3d0] sm:$0xff]
        %v447 = vld [vmem:[#allocation7 + $0x3d8] sm:$0xff]
        %v448 = vld [vmem:[#allocation7 + $0x3e0] sm:$0xff]
        %v449 = vld [vmem:[#allocation7 + $0x3e8] sm:$0xff]
        %v450 = vld [vmem:[#allocation7 + $0x3f0] sm:$0xff]
        %v451 = vld [vmem:[#allocation7 + $0x3f8] sm:$0xff]
        %v452 = vld [vmem:[%s3] sm:$0xff]
        %v454 = vlaneseq
        %v455 = vshrl.u32 %v454, 7
        %v456 = vsub.s32 0, %v455
        %v457 = vrot.slane %v452, %v456
        %v458 = vlaneseq
        %v459 = vshrl.u32 %v458, 7
        %v460 = vsub.s32 1, %v459
        %v461 = vrot.slane %v452, %v460
        %v462 = vlaneseq
        %v463 = vshrl.u32 %v462, 7
        %v464 = vsub.s32 2, %v463
        %v465 = vrot.slane %v452, %v464
        %v466 = vlaneseq
        %v467 = vshrl.u32 %v466, 7
        %v468 = vsub.s32 3, %v467
        %v469 = vrot.slane %v452, %v468
        %v470 = vlaneseq
        %v471 = vshrl.u32 %v470, 7
        %v472 = vsub.s32 4, %v471
        %v473 = vrot.slane %v452, %v472
        %v474 = vlaneseq
        %v475 = vshrl.u32 %v474, 7
        %v476 = vsub.s32 5, %v475
        %v477 = vrot.slane %v452, %v476
        %v478 = vlaneseq
        %v479 = vshrl.u32 %v478, 7
        %v480 = vsub.s32 6, %v479
        %v481 = vrot.slane %v452, %v480
        %v482 = vlaneseq
        %v483 = vshrl.u32 %v482, 7
        %v484 = vsub.s32 7, %v483
        %v485 = vrot.slane %v452, %v484
        %494 = vmatprep.subr.mxu0 %v325
        %495 = vmatpush1.msra.mxu0 %v324
        %496 = vmatprep.subr.mxu0 %v333
        %497 = vmatpush1.msra.mxu0 %v332
        %498 = vmatprep.subr.mxu0 %v341
        %499 = vmatpush1.msra.mxu0 %v340
        %500 = vmatprep.subr.mxu0 %v349
        %501 = vmatpush1.msra.mxu0 %v348
        %502 = vmatprep.subr.mxu0 %v357
        %503 = vmatpush1.msra.mxu0 %v356
        %504 = vmatprep.subr.mxu0 %v365
        %505 = vmatpush1.msra.mxu0 %v364
        %506 = vmatprep.subr.mxu0 %v373
        %507 = vmatpush1.msra.mxu0 %v372
        %508 = vmatprep.subr.mxu0 %v381
        %509 = vmatpush1.msra.mxu0 %v380
        %510 = vmatprep.subr.mxu0 %v389
        %511 = vmatpush1.msra.mxu0 %v388
        %512 = vmatprep.subr.mxu0 %v397
        %513 = vmatpush1.msra.mxu0 %v396
        %514 = vmatprep.subr.mxu0 %v405
        %515 = vmatpush1.msra.mxu0 %v404
        %516 = vmatprep.subr.mxu0 %v413
        %517 = vmatpush1.msra.mxu0 %v412
        %518 = vmatprep.subr.mxu0 %v421
        %519 = vmatpush1.msra.mxu0 %v420
        %520 = vmatprep.subr.mxu0 %v429
        %521 = vmatpush1.msra.mxu0 %v428
        %522 = vmatprep.subr.mxu0 %v437
        %523 = vmatpush1.msra.mxu0 %v436
        %524 = vmatprep.subr.mxu0 %v445
        %525 = vmatpush1.msra.mxu0 %v444
        %526 = vmatprep.subr.mxu0 0.0
        %527 = vmatpush1.msra.mxu0 0.0
        %528 = vmatprep.subr.mxu0 0.0
        %529 = vmatpush1.msra.mxu0 0.0
        %530 = vmatprep.subr.mxu0 0.0
        %531 = vmatpush1.msra.mxu0 0.0
        %532 = vmatprep.subr.mxu0 0.0
        %533 = vmatpush1.msra.mxu0 0.0
        %534 = vmatprep.subr.mxu0 0.0
        %535 = vmatpush1.msra.mxu0 0.0
        %536 = vmatprep.subr.mxu0 0.0
        %537 = vmatpush1.msra.mxu0 0.0
        %538 = vmatprep.subr.mxu0 0.0
        %539 = vmatpush1.msra.mxu0 0.0
        %540 = vmatprep.subr.mxu0 0.0
        %541 = vmatpush1.msra.mxu0 0.0
        %542 = vmatprep.subr.mxu0 0.0
        %543 = vmatpush1.msra.mxu0 0.0
        %544 = vmatprep.subr.mxu0 0.0
        %545 = vmatpush1.msra.mxu0 0.0
        %546 = vmatprep.subr.mxu0 0.0
        %547 = vmatpush1.msra.mxu0 0.0
        %548 = vmatprep.subr.mxu0 0.0
        %549 = vmatpush1.msra.mxu0 0.0
        %550 = vmatprep.subr.mxu0 0.0
        %551 = vmatpush1.msra.mxu0 0.0
        %552 = vmatprep.subr.mxu0 0.0
        %553 = vmatpush1.msra.mxu0 0.0
        %554 = vmatprep.subr.mxu0 0.0
        %555 = vmatpush1.msra.mxu0 0.0
        %556 = vmatprep.subr.mxu0 0.0
        %557 = vmatpush1.msra.mxu0 0.0
        %558 = vmatprep.mubr.f32.mxu0 0.0
        %559 = vmatmul.mubr.f32.gmra.mrb[0].mxu0 %v316
        %v560 = vpop.f32.mrb[0].mxu0
        %v561 = vadd.f32 %v457, %v560
        %v562 = vpop.f32.mrb[0].mxu0
        %v563 = vadd.f32 %v461, %v562
        %564 = vmatprep.mubr.f32.mxu0 0.0
        %565 = vmatmul.mubr.f32.gmra.mrb[0].mxu0 %v317
        %v566 = vpop.f32.mrb[0].mxu0
        %v567 = vadd.f32 %v457, %v566
        %v568 = vpop.f32.mrb[0].mxu0
        %v569 = vadd.f32 %v461, %v568
        %570 = vmatprep.mubr.f32.mxu0 0.0
        %571 = vmatmul.mubr.f32.gmra.mrb[0].mxu0 %v318
        %v572 = vpop.f32.mrb[0].mxu0
        %v573 = vadd.f32 %v457, %v572
        %v574 = vpop.f32.mrb[0].mxu0
        %v575 = vadd.f32 %v461, %v574
        %576 = vmatprep.mubr.f32.mxu0 0.0
        %577 = vmatmul.mubr.f32.gmra.mrb[0].mxu0 %v319
        %v578 = vpop.f32.mrb[0].mxu0
        %v579 = vadd.f32 %v457, %v578
        %v580 = vpop.f32.mrb[0].mxu0
        %v581 = vadd.f32 %v461, %v580
        %582 = vmatprep.mubr.f32.mxu0 0.0
        %583 = vmatmul.mubr.f32.gmra.mrb[0].mxu0 %v320
        %v584 = vpop.f32.mrb[0].mxu0
        %v585 = vadd.f32 %v457, %v584
        %v586 = vpop.f32.mrb[0].mxu0
        %v587 = vadd.f32 %v461, %v586
        %588 = vmatprep.mubr.f32.mxu0 0.0
        %589 = vmatmul.mubr.f32.gmra.mrb[0].mxu0 %v321
        %v590 = vpop.f32.mrb[0].mxu0
        %v591 = vadd.f32 %v457, %v590
        %v592 = vpop.f32.mrb[0].mxu0
        %v593 = vadd.f32 %v461, %v592
        %594 = vmatprep.mubr.f32.mxu0 0.0
        %595 = vmatmul.mubr.f32.gmra.mrb[0].mxu0 %v322
        %v596 = vpop.f32.mrb[0].mxu0
        %v597 = vadd.f32 %v457, %v596
        %v598 = vpop.f32.mrb[0].mxu0
        %v599 = vadd.f32 %v461, %v598
        %600 = vmatprep.mubr.f32.mxu0 0.0
        %601 = vmatmul.mubr.f32.gmra.mrb[0].mxu0 %v323
        %v602 = vpop.f32.mrb[0].mxu0
        %v603 = vadd.f32 %v457, %v602
        %v604 = vpop.f32.mrb[0].mxu0
        %v605 = vadd.f32 %v461, %v604
        %606 = vdwg.mxu0
        %607 = vmatprep.subr.mxu0 %v327
        %608 = vmatpush1.msra.mxu0 %v326
        %609 = vmatprep.subr.mxu0 %v335
        %610 = vmatpush1.msra.mxu0 %v334
        %611 = vmatprep.subr.mxu0 %v343
        %612 = vmatpush1.msra.mxu0 %v342
        %613 = vmatprep.subr.mxu0 %v351
        %614 = vmatpush1.msra.mxu0 %v350
        %615 = vmatprep.subr.mxu0 %v359
        %616 = vmatpush1.msra.mxu0 %v358
        %617 = vmatprep.subr.mxu0 %v367
        %618 = vmatpush1.msra.mxu0 %v366
        %619 = vmatprep.subr.mxu0 %v375
        %620 = vmatpush1.msra.mxu0 %v374
        %621 = vmatprep.subr.mxu0 %v383
        %622 = vmatpush1.msra.mxu0 %v382
        %623 = vmatprep.subr.mxu0 %v391
        %624 = vmatpush1.msra.mxu0 %v390
        %625 = vmatprep.subr.mxu0 %v399
        %626 = vmatpush1.msra.mxu0 %v398
        %627 = vmatprep.subr.mxu0 %v407
        %628 = vmatpush1.msra.mxu0 %v406
        %629 = vmatprep.subr.mxu0 %v415
        %630 = vmatpush1.msra.mxu0 %v414
        %631 = vmatprep.subr.mxu0 %v423
        %632 = vmatpush1.msra.mxu0 %v422
        %633 = vmatprep.subr.mxu0 %v431
        %634 = vmatpush1.msra.mxu0 %v430
        %635 = vmatprep.subr.mxu0 %v439
        %636 = vmatpush1.msra.mxu0 %v438
        %637 = vmatprep.subr.mxu0 %v447
        %638 = vmatpush1.msra.mxu0 %v446
        %639 = vmatprep.subr.mxu0 0.0
        %640 = vmatpush1.msra.mxu0 0.0
        %641 = vmatprep.subr.mxu0 0.0
        %642 = vmatpush1.msra.mxu0 0.0
        %643 = vmatprep.subr.mxu0 0.0
        %644 = vmatpush1.msra.mxu0 0.0
        %645 = vmatprep.subr.mxu0 0.0
        %646 = vmatpush1.msra.mxu0 0.0
        %647 = vmatprep.subr.mxu0 0.0
        %648 = vmatpush1.msra.mxu0 0.0
        %649 = vmatprep.subr.mxu0 0.0
        %650 = vmatpush1.msra.mxu0 0.0
        %651 = vmatprep.subr.mxu0 0.0
        %652 = vmatpush1.msra.mxu0 0.0
        %653 = vmatprep.subr.mxu0 0.0
        %654 = vmatpush1.msra.mxu0 0.0
        %655 = vmatprep.subr.mxu0 0.0
        %656 = vmatpush1.msra.mxu0 0.0
        %657 = vmatprep.subr.mxu0 0.0
        %658 = vmatpush1.msra.mxu0 0.0
        %659 = vmatprep.subr.mxu0 0.0
        %660 = vmatpush1.msra.mxu0 0.0
        %661 = vmatprep.subr.mxu0 0.0
        %662 = vmatpush1.msra.mxu0 0.0
        %663 = vmatprep.subr.mxu0 0.0
        %664 = vmatpush1.msra.mxu0 0.0
        %665 = vmatprep.subr.mxu0 0.0
        %666 = vmatpush1.msra.mxu0 0.0
        %667 = vmatprep.subr.mxu0 0.0
        %668 = vmatpush1.msra.mxu0 0.0
        %669 = vmatprep.subr.mxu0 0.0
        %670 = vmatpush1.msra.mxu0 0.0
        %671 = vmatprep.mubr.f32.mxu0 0.0
        %672 = vmatmul.mubr.f32.gmra.mrb[0].mxu0 %v316
        %v673 = vpop.f32.mrb[0].mxu0
        %v674 = vadd.f32 %v465, %v673
        %v675 = vpop.f32.mrb[0].mxu0
        %v676 = vadd.f32 %v469, %v675
        %677 = vmatprep.mubr.f32.mxu0 0.0
        %678 = vmatmul.mubr.f32.gmra.mrb[0].mxu0 %v317
        %v679 = vpop.f32.mrb[0].mxu0
        %v680 = vadd.f32 %v465, %v679
        %v681 = vpop.f32.mrb[0].mxu0
        %v682 = vadd.f32 %v469, %v681
        %683 = vmatprep.mubr.f32.mxu0 0.0
        %684 = vmatmul.mubr.f32.gmra.mrb[0].mxu0 %v318
        %v685 = vpop.f32.mrb[0].mxu0
        %v686 = vadd.f32 %v465, %v685
        %v687 = vpop.f32.mrb[0].mxu0
        %v688 = vadd.f32 %v469, %v687
        %689 = vmatprep.mubr.f32.mxu0 0.0
        %690 = vmatmul.mubr.f32.gmra.mrb[0].mxu0 %v319
        %v691 = vpop.f32.mrb[0].mxu0
        %v692 = vadd.f32 %v465, %v691
        %v693 = vpop.f32.mrb[0].mxu0
        %v694 = vadd.f32 %v469, %v693
        %695 = vmatprep.mubr.f32.mxu0 0.0
        %696 = vmatmul.mubr.f32.gmra.mrb[0].mxu0 %v320
        %v697 = vpop.f32.mrb[0].mxu0
        %v698 = vadd.f32 %v465, %v697
        %v699 = vpop.f32.mrb[0].mxu0
        %v700 = vadd.f32 %v469, %v699
        %701 = vmatprep.mubr.f32.mxu0 0.0
        %702 = vmatmul.mubr.f32.gmra.mrb[0].mxu0 %v321
        %v703 = vpop.f32.mrb[0].mxu0
        %v704 = vadd.f32 %v465, %v703
        %v705 = vpop.f32.mrb[0].mxu0
        %v706 = vadd.f32 %v469, %v705
        %707 = vmatprep.mubr.f32.mxu0 0.0
        %708 = vmatmul.mubr.f32.gmra.mrb[0].mxu0 %v322
        %v709 = vpop.f32.mrb[0].mxu0
        %v710 = vadd.f32 %v465, %v709
        %v711 = vpop.f32.mrb[0].mxu0
        %v712 = vadd.f32 %v469, %v711
        %713 = vmatprep.mubr.f32.mxu0 0.0
        %714 = vmatmul.mubr.f32.gmra.mrb[0].mxu0 %v323
        %v715 = vpop.f32.mrb[0].mxu0
        %v716 = vadd.f32 %v465, %v715
        %v717 = vpop.f32.mrb[0].mxu0
        %v718 = vadd.f32 %v469, %v717
        %719 = vdwg.mxu0
        %720 = vmatprep.subr.mxu0 %v329
        %721 = vmatpush1.msra.mxu0 %v328
        %722 = vmatprep.subr.mxu0 %v337
        %723 = vmatpush1.msra.mxu0 %v336
        %724 = vmatprep.subr.mxu0 %v345
        %725 = vmatpush1.msra.mxu0 %v344
        %726 = vmatprep.subr.mxu0 %v353
        %727 = vmatpush1.msra.mxu0 %v352
        %728 = vmatprep.subr.mxu0 %v361
        %729 = vmatpush1.msra.mxu0 %v360
        %730 = vmatprep.subr.mxu0 %v369
        %731 = vmatpush1.msra.mxu0 %v368
        %732 = vmatprep.subr.mxu0 %v377
        %733 = vmatpush1.msra.mxu0 %v376
        %734 = vmatprep.subr.mxu0 %v385
        %735 = vmatpush1.msra.mxu0 %v384
        %736 = vmatprep.subr.mxu0 %v393
        %737 = vmatpush1.msra.mxu0 %v392
        %738 = vmatprep.subr.mxu0 %v401
        %739 = vmatpush1.msra.mxu0 %v400
        %740 = vmatprep.subr.mxu0 %v409
        %741 = vmatpush1.msra.mxu0 %v408
        %742 = vmatprep.subr.mxu0 %v417
        %743 = vmatpush1.msra.mxu0 %v416
        %744 = vmatprep.subr.mxu0 %v425
        %745 = vmatpush1.msra.mxu0 %v424
        %746 = vmatprep.subr.mxu0 %v433
        %747 = vmatpush1.msra.mxu0 %v432
        %748 = vmatprep.subr.mxu0 %v441
        %749 = vmatpush1.msra.mxu0 %v440
        %750 = vmatprep.subr.mxu0 %v449
        %751 = vmatpush1.msra.mxu0 %v448
        %752 = vmatprep.subr.mxu0 0.0
        %753 = vmatpush1.msra.mxu0 0.0
        %754 = vmatprep.subr.mxu0 0.0
        %755 = vmatpush1.msra.mxu0 0.0
        %756 = vmatprep.subr.mxu0 0.0
        %757 = vmatpush1.msra.mxu0 0.0
        %758 = vmatprep.subr.mxu0 0.0
        %759 = vmatpush1.msra.mxu0 0.0
        %760 = vmatprep.subr.mxu0 0.0
        %761 = vmatpush1.msra.mxu0 0.0
        %762 = vmatprep.subr.mxu0 0.0
        %763 = vmatpush1.msra.mxu0 0.0
        %764 = vmatprep.subr.mxu0 0.0
        %765 = vmatpush1.msra.mxu0 0.0
        %766 = vmatprep.subr.mxu0 0.0
        %767 = vmatpush1.msra.mxu0 0.0
        %768 = vmatprep.subr.mxu0 0.0
        %769 = vmatpush1.msra.mxu0 0.0
        %770 = vmatprep.subr.mxu0 0.0
        %771 = vmatpush1.msra.mxu0 0.0
        %772 = vmatprep.subr.mxu0 0.0
        %773 = vmatpush1.msra.mxu0 0.0
        %774 = vmatprep.subr.mxu0 0.0
        %775 = vmatpush1.msra.mxu0 0.0
        %776 = vmatprep.subr.mxu0 0.0
        %777 = vmatpush1.msra.mxu0 0.0
        %778 = vmatprep.subr.mxu0 0.0
        %779 = vmatpush1.msra.mxu0 0.0
        %780 = vmatprep.subr.mxu0 0.0
        %781 = vmatpush1.msra.mxu0 0.0
        %782 = vmatprep.subr.mxu0 0.0
        %783 = vmatpush1.msra.mxu0 0.0
        %784 = vmatprep.mubr.f32.mxu0 0.0
        %785 = vmatmul.mubr.f32.gmra.mrb[0].mxu0 %v316
        %v786 = vpop.f32.mrb[0].mxu0
        %v787 = vadd.f32 %v473, %v786
        %v788 = vpop.f32.mrb[0].mxu0
        %v789 = vadd.f32 %v477, %v788
        %790 = vmatprep.mubr.f32.mxu0 0.0
        %791 = vmatmul.mubr.f32.gmra.mrb[0].mxu0 %v317
        %v792 = vpop.f32.mrb[0].mxu0
        %v793 = vadd.f32 %v473, %v792
        %v794 = vpop.f32.mrb[0].mxu0
        %v795 = vadd.f32 %v477, %v794
        %796 = vmatprep.mubr.f32.mxu0 0.0
        %797 = vmatmul.mubr.f32.gmra.mrb[0].mxu0 %v318
        %v798 = vpop.f32.mrb[0].mxu0
        %v799 = vadd.f32 %v473, %v798
        %v800 = vpop.f32.mrb[0].mxu0
        %v801 = vadd.f32 %v477, %v800
        %802 = vmatprep.mubr.f32.mxu0 0.0
        %803 = vmatmul.mubr.f32.gmra.mrb[0].mxu0 %v319
        %v804 = vpop.f32.mrb[0].mxu0
        %v805 = vadd.f32 %v473, %v804
        %v806 = vpop.f32.mrb[0].mxu0
        %v807 = vadd.f32 %v477, %v806
        %808 = vmatprep.mubr.f32.mxu0 0.0
        %809 = vmatmul.mubr.f32.gmra.mrb[0].mxu0 %v320
        %v810 = vpop.f32.mrb[0].mxu0
        %v811 = vadd.f32 %v473, %v810
        %v812 = vpop.f32.mrb[0].mxu0
        %v813 = vadd.f32 %v477, %v812
        %814 = vmatprep.mubr.f32.mxu0 0.0
        %815 = vmatmul.mubr.f32.gmra.mrb[0].mxu0 %v321
        %v816 = vpop.f32.mrb[0].mxu0
        %v817 = vadd.f32 %v473, %v816
        %v818 = vpop.f32.mrb[0].mxu0
        %v819 = vadd.f32 %v477, %v818
        %820 = vmatprep.mubr.f32.mxu0 0.0
        %821 = vmatmul.mubr.f32.gmra.mrb[0].mxu0 %v322
        %v822 = vpop.f32.mrb[0].mxu0
        %v823 = vadd.f32 %v473, %v822
        %v824 = vpop.f32.mrb[0].mxu0
        %v825 = vadd.f32 %v477, %v824
        %826 = vmatprep.mubr.f32.mxu0 0.0
        %827 = vmatmul.mubr.f32.gmra.mrb[0].mxu0 %v323
        %v828 = vpop.f32.mrb[0].mxu0
        %v829 = vadd.f32 %v473, %v828
        %v830 = vpop.f32.mrb[0].mxu0
        %v831 = vadd.f32 %v477, %v830
        %832 = vdwg.mxu0
        %833 = vmatprep.subr.mxu0 %v331
        %834 = vmatpush1.msra.mxu0 %v330
        %835 = vmatprep.subr.mxu0 %v339
        %836 = vmatpush1.msra.mxu0 %v338
        %837 = vmatprep.subr.mxu0 %v347
        %838 = vmatpush1.msra.mxu0 %v346
        %839 = vmatprep.subr.mxu0 %v355
        %840 = vmatpush1.msra.mxu0 %v354
        %841 = vmatprep.subr.mxu0 %v363
        %842 = vmatpush1.msra.mxu0 %v362
        %843 = vmatprep.subr.mxu0 %v371
        %844 = vmatpush1.msra.mxu0 %v370
        %845 = vmatprep.subr.mxu0 %v379
        %846 = vmatpush1.msra.mxu0 %v378
        %847 = vmatprep.subr.mxu0 %v387
        %848 = vmatpush1.msra.mxu0 %v386
        %849 = vmatprep.subr.mxu0 %v395
        %850 = vmatpush1.msra.mxu0 %v394
        %851 = vmatprep.subr.mxu0 %v403
        %852 = vmatpush1.msra.mxu0 %v402
        %853 = vmatprep.subr.mxu0 %v411
        %854 = vmatpush1.msra.mxu0 %v410
        %855 = vmatprep.subr.mxu0 %v419
        %856 = vmatpush1.msra.mxu0 %v418
        %857 = vmatprep.subr.mxu0 %v427
        %858 = vmatpush1.msra.mxu0 %v426
        %859 = vmatprep.subr.mxu0 %v435
        %860 = vmatpush1.msra.mxu0 %v434
        %861 = vmatprep.subr.mxu0 %v443
        %862 = vmatpush1.msra.mxu0 %v442
        %863 = vmatprep.subr.mxu0 %v451
        %864 = vmatpush1.msra.mxu0 %v450
        %865 = vmatprep.subr.mxu0 0.0
        %866 = vmatpush1.msra.mxu0 0.0
        %867 = vmatprep.subr.mxu0 0.0
        %868 = vmatpush1.msra.mxu0 0.0
        %869 = vmatprep.subr.mxu0 0.0
        %870 = vmatpush1.msra.mxu0 0.0
        %871 = vmatprep.subr.mxu0 0.0
        %872 = vmatpush1.msra.mxu0 0.0
        %873 = vmatprep.subr.mxu0 0.0
        %874 = vmatpush1.msra.mxu0 0.0
        %875 = vmatprep.subr.mxu0 0.0
        %876 = vmatpush1.msra.mxu0 0.0
        %877 = vmatprep.subr.mxu0 0.0
        %878 = vmatpush1.msra.mxu0 0.0
        %879 = vmatprep.subr.mxu0 0.0
        %880 = vmatpush1.msra.mxu0 0.0
        %881 = vmatprep.subr.mxu0 0.0
        %882 = vmatpush1.msra.mxu0 0.0
        %883 = vmatprep.subr.mxu0 0.0
        %884 = vmatpush1.msra.mxu0 0.0
        %885 = vmatprep.subr.mxu0 0.0
        %886 = vmatpush1.msra.mxu0 0.0
        %887 = vmatprep.subr.mxu0 0.0
        %888 = vmatpush1.msra.mxu0 0.0
        %889 = vmatprep.subr.mxu0 0.0
        %890 = vmatpush1.msra.mxu0 0.0
        %891 = vmatprep.subr.mxu0 0.0
        %892 = vmatpush1.msra.mxu0 0.0
        %893 = vmatprep.subr.mxu0 0.0
        %894 = vmatpush1.msra.mxu0 0.0
        %895 = vmatprep.subr.mxu0 0.0
        %896 = vmatpush1.msra.mxu0 0.0
        %897 = vmatprep.mubr.f32.mxu0 0.0
        %898 = vmatmul.mubr.f32.gmra.mrb[0].mxu0 %v316
        %v899 = vpop.f32.mrb[0].mxu0
        %v900 = vadd.f32 %v481, %v899
        %v901 = vpop.f32.mrb[0].mxu0
        %v902 = vadd.f32 %v485, %v901
        %903 = vmatprep.mubr.f32.mxu0 0.0
        %904 = vmatmul.mubr.f32.gmra.mrb[0].mxu0 %v317
        %v905 = vpop.f32.mrb[0].mxu0
        %v906 = vadd.f32 %v481, %v905
        %v907 = vpop.f32.mrb[0].mxu0
        %v908 = vadd.f32 %v485, %v907
        %909 = vmatprep.mubr.f32.mxu0 0.0
        %910 = vmatmul.mubr.f32.gmra.mrb[0].mxu0 %v318
        %v911 = vpop.f32.mrb[0].mxu0
        %v912 = vadd.f32 %v481, %v911
        %v913 = vpop.f32.mrb[0].mxu0
        %v914 = vadd.f32 %v485, %v913
        %915 = vmatprep.mubr.f32.mxu0 0.0
        %916 = vmatmul.mubr.f32.gmra.mrb[0].mxu0 %v319
        %v917 = vpop.f32.mrb[0].mxu0
        %v918 = vadd.f32 %v481, %v917
        %v919 = vpop.f32.mrb[0].mxu0
        %v920 = vadd.f32 %v485, %v919
        %921 = vmatprep.mubr.f32.mxu0 0.0
        %922 = vmatmul.mubr.f32.gmra.mrb[0].mxu0 %v320
        %v923 = vpop.f32.mrb[0].mxu0
        %v924 = vadd.f32 %v481, %v923
        %v925 = vpop.f32.mrb[0].mxu0
        %v926 = vadd.f32 %v485, %v925
        %927 = vmatprep.mubr.f32.mxu0 0.0
        %928 = vmatmul.mubr.f32.gmra.mrb[0].mxu0 %v321
        %v929 = vpop.f32.mrb[0].mxu0
        %v930 = vadd.f32 %v481, %v929
        %v931 = vpop.f32.mrb[0].mxu0
        %v932 = vadd.f32 %v485, %v931
        %933 = vmatprep.mubr.f32.mxu0 0.0
        %934 = vmatmul.mubr.f32.gmra.mrb[0].mxu0 %v322
        %v935 = vpop.f32.mrb[0].mxu0
        %v936 = vadd.f32 %v481, %v935
        %v937 = vpop.f32.mrb[0].mxu0
        %v938 = vadd.f32 %v485, %v937
        %939 = vmatprep.mubr.f32.mxu0 0.0
        %940 = vmatmul.mubr.f32.gmra.mrb[0].mxu0 %v323
        %v941 = vpop.f32.mrb[0].mxu0
        %v942 = vadd.f32 %v481, %v941
        %v943 = vpop.f32.mrb[0].mxu0
        %v944 = vadd.f32 %v485, %v943
        %945 = vdwg.mxu0
        %946 = vst [vmem:[#allocation2] sm:$0xff] %v561
        %947 = vst [vmem:[#allocation2 + $0x8] sm:$0xff] %v563
        %948 = vst [vmem:[#allocation2 + $0x10] sm:$0xff] %v674
        %949 = vst [vmem:[#allocation2 + $0x18] sm:$0xff] %v676
        %950 = vst [vmem:[#allocation2 + $0x20] sm:$0xff] %v787
        %951 = vst [vmem:[#allocation2 + $0x28] sm:$0xff] %v789
        %952 = vst [vmem:[#allocation2 + $0x30] sm:$0xff] %v900
        %953 = vst [vmem:[#allocation2 + $0x38] sm:$0xff] %v902
        %954 = vst [vmem:[#allocation2 + $0x40] sm:$0xff] %v567
        %955 = vst [vmem:[#allocation2 + $0x48] sm:$0xff] %v569
        %956 = vst [vmem:[#allocation2 + $0x50] sm:$0xff] %v680
        %957 = vst [vmem:[#allocation2 + $0x58] sm:$0xff] %v682
        %958 = vst [vmem:[#allocation2 + $0x60] sm:$0xff] %v793
        %959 = vst [vmem:[#allocation2 + $0x68] sm:$0xff] %v795
        %960 = vst [vmem:[#allocation2 + $0x70] sm:$0xff] %v906
        %961 = vst [vmem:[#allocation2 + $0x78] sm:$0xff] %v908
        %962 = vst [vmem:[#allocation2 + $0x80] sm:$0xff] %v573
        %963 = vst [vmem:[#allocation2 + $0x88] sm:$0xff] %v575
        %964 = vst [vmem:[#allocation2 + $0x90] sm:$0xff] %v686
        %965 = vst [vmem:[#allocation2 + $0x98] sm:$0xff] %v688
        %966 = vst [vmem:[#allocation2 + $0xa0] sm:$0xff] %v799
        %967 = vst [vmem:[#allocation2 + $0xa8] sm:$0xff] %v801
        %968 = vst [vmem:[#allocation2 + $0xb0] sm:$0xff] %v912
        %969 = vst [vmem:[#allocation2 + $0xb8] sm:$0xff] %v914
        %970 = vst [vmem:[#allocation2 + $0xc0] sm:$0xff] %v579
        %971 = vst [vmem:[#allocation2 + $0xc8] sm:$0xff] %v581
        %972 = vst [vmem:[#allocation2 + $0xd0] sm:$0xff] %v692
        %973 = vst [vmem:[#allocation2 + $0xd8] sm:$0xff] %v694
        %974 = vst [vmem:[#allocation2 + $0xe0] sm:$0xff] %v805
        %975 = vst [vmem:[#allocation2 + $0xe8] sm:$0xff] %v807
        %976 = vst [vmem:[#allocation2 + $0xf0] sm:$0xff] %v918
        %977 = vst [vmem:[#allocation2 + $0xf8] sm:$0xff] %v920
        %978 = vst [vmem:[#allocation2 + $0x100] sm:$0xff] %v585
        %979 = vst [vmem:[#allocation2 + $0x108] sm:$0xff] %v587
        %980 = vst [vmem:[#allocation2 + $0x110] sm:$0xff] %v698
        %981 = vst [vmem:[#allocation2 + $0x118] sm:$0xff] %v700
        %982 = vst [vmem:[#allocation2 + $0x120] sm:$0xff] %v811
        %983 = vst [vmem:[#allocation2 + $0x128] sm:$0xff] %v813
        %984 = vst [vmem:[#allocation2 + $0x130] sm:$0xff] %v924
        %985 = vst [vmem:[#allocation2 + $0x138] sm:$0xff] %v926
        %986 = vst [vmem:[#allocation2 + $0x140] sm:$0xff] %v591
        %987 = vst [vmem:[#allocation2 + $0x148] sm:$0xff] %v593
        %988 = vst [vmem:[#allocation2 + $0x150] sm:$0xff] %v704
        %989 = vst [vmem:[#allocation2 + $0x158] sm:$0xff] %v706
        %990 = vst [vmem:[#allocation2 + $0x160] sm:$0xff] %v817
        %991 = vst [vmem:[#allocation2 + $0x168] sm:$0xff] %v819
        %992 = vst [vmem:[#allocation2 + $0x170] sm:$0xff] %v930
        %993 = vst [vmem:[#allocation2 + $0x178] sm:$0xff] %v932
        %994 = vst [vmem:[#allocation2 + $0x180] sm:$0xff] %v597
        %995 = vst [vmem:[#allocation2 + $0x188] sm:$0xff] %v599
        %996 = vst [vmem:[#allocation2 + $0x190] sm:$0xff] %v710
        %997 = vst [vmem:[#allocation2 + $0x198] sm:$0xff] %v712
        %998 = vst [vmem:[#allocation2 + $0x1a0] sm:$0xff] %v823
        %999 = vst [vmem:[#allocation2 + $0x1a8] sm:$0xff] %v825
        %1000 = vst [vmem:[#allocation2 + $0x1b0] sm:$0xff] %v936
        %1001 = vst [vmem:[#allocation2 + $0x1b8] sm:$0xff] %v938
        %1002 = vst [vmem:[#allocation2 + $0x1c0] sm:$0xff] %v603
        %1003 = vst [vmem:[#allocation2 + $0x1c8] sm:$0xff] %v605
        %1004 = vst [vmem:[#allocation2 + $0x1d0] sm:$0xff] %v716
        %1005 = vst [vmem:[#allocation2 + $0x1d8] sm:$0xff] %v718
        %1006 = vst [vmem:[#allocation2 + $0x1e0] sm:$0xff] %v829
        %1007 = vst [vmem:[#allocation2 + $0x1e8] sm:$0xff] %v831
        %1008 = vst [vmem:[#allocation2 + $0x1f0] sm:$0xff] %v942
        %1009 = vst [vmem:[#allocation2 + $0x1f8] sm:$0xff] %v944
        %v1010 = vld [vmem:[#allocation9] sm:$0xff]
        %v1011 = vld [vmem:[#allocation9 + $0x8] sm:$0xff]
        %v1012 = vld [vmem:[#allocation9 + $0x10] sm:$0xff]
        %v1013 = vld [vmem:[#allocation9 + $0x18] sm:$0xff]
        %v1014 = vld [vmem:[#allocation9 + $0x20] sm:$0xff]
        %v1015 = vld [vmem:[#allocation9 + $0x28] sm:$0xff]
        %v1016 = vld [vmem:[#allocation9 + $0x30] sm:$0xff]
        %v1017 = vld [vmem:[#allocation9 + $0x38] sm:$0xff]
        %v1018 = vld [vmem:[#allocation9 + $0x40] sm:$0xff]
        %v1019 = vld [vmem:[#allocation9 + $0x48] sm:$0xff]
        %v1020 = vld [vmem:[#allocation9 + $0x50] sm:$0xff]
        %v1021 = vld [vmem:[#allocation9 + $0x58] sm:$0xff]
        %v1022 = vld [vmem:[#allocation9 + $0x60] sm:$0xff]
        %v1023 = vld [vmem:[#allocation9 + $0x68] sm:$0xff]
        %v1024 = vld [vmem:[#allocation9 + $0x70] sm:$0xff]
        %v1025 = vld [vmem:[#allocation9 + $0x78] sm:$0xff]
        %v1026 = vld [vmem:[#allocation9 + $0x80] sm:$0xff]
        %v1027 = vld [vmem:[#allocation9 + $0x88] sm:$0xff]
        %v1028 = vld [vmem:[#allocation9 + $0x90] sm:$0xff]
        %v1029 = vld [vmem:[#allocation9 + $0x98] sm:$0xff]
        %v1030 = vld [vmem:[#allocation9 + $0xa0] sm:$0xff]
        %v1031 = vld [vmem:[#allocation9 + $0xa8] sm:$0xff]
        %v1032 = vld [vmem:[#allocation9 + $0xb0] sm:$0xff]
        %v1033 = vld [vmem:[#allocation9 + $0xb8] sm:$0xff]
        %v1034 = vld [vmem:[#allocation9 + $0xc0] sm:$0xff]
        %v1035 = vld [vmem:[#allocation9 + $0xc8] sm:$0xff]
        %v1036 = vld [vmem:[#allocation9 + $0xd0] sm:$0xff]
        %v1037 = vld [vmem:[#allocation9 + $0xd8] sm:$0xff]
        %v1038 = vld [vmem:[#allocation9 + $0xe0] sm:$0xff]
        %v1039 = vld [vmem:[#allocation9 + $0xe8] sm:$0xff]
        %v1040 = vld [vmem:[#allocation9 + $0xf0] sm:$0xff]
        %v1041 = vld [vmem:[#allocation9 + $0xf8] sm:$0xff]
        %v1042 = vld [vmem:[#allocation9 + $0x100] sm:$0xff]
        %v1043 = vld [vmem:[#allocation9 + $0x108] sm:$0xff]
        %v1044 = vld [vmem:[#allocation9 + $0x110] sm:$0xff]
        %v1045 = vld [vmem:[#allocation9 + $0x118] sm:$0xff]
        %v1046 = vld [vmem:[#allocation9 + $0x120] sm:$0xff]
        %v1047 = vld [vmem:[#allocation9 + $0x128] sm:$0xff]
        %v1048 = vld [vmem:[#allocation9 + $0x130] sm:$0xff]
        %v1049 = vld [vmem:[#allocation9 + $0x138] sm:$0xff]
        %v1050 = vld [vmem:[#allocation9 + $0x140] sm:$0xff]
        %v1051 = vld [vmem:[#allocation9 + $0x148] sm:$0xff]
        %v1052 = vld [vmem:[#allocation9 + $0x150] sm:$0xff]
        %v1053 = vld [vmem:[#allocation9 + $0x158] sm:$0xff]
        %v1054 = vld [vmem:[#allocation9 + $0x160] sm:$0xff]
        %v1055 = vld [vmem:[#allocation9 + $0x168] sm:$0xff]
        %v1056 = vld [vmem:[#allocation9 + $0x170] sm:$0xff]
        %v1057 = vld [vmem:[#allocation9 + $0x178] sm:$0xff]
        %v1058 = vld [vmem:[#allocation9 + $0x180] sm:$0xff]
        %v1059 = vld [vmem:[#allocation9 + $0x188] sm:$0xff]
        %v1060 = vld [vmem:[#allocation9 + $0x190] sm:$0xff]
        %v1061 = vld [vmem:[#allocation9 + $0x198] sm:$0xff]
        %v1062 = vld [vmem:[#allocation9 + $0x1a0] sm:$0xff]
        %v1063 = vld [vmem:[#allocation9 + $0x1a8] sm:$0xff]
        %v1064 = vld [vmem:[#allocation9 + $0x1b0] sm:$0xff]
        %v1065 = vld [vmem:[#allocation9 + $0x1b8] sm:$0xff]
        %v1066 = vld [vmem:[#allocation9 + $0x1c0] sm:$0xff]
        %v1067 = vld [vmem:[#allocation9 + $0x1c8] sm:$0xff]
        %v1068 = vld [vmem:[#allocation9 + $0x1d0] sm:$0xff]
        %v1069 = vld [vmem:[#allocation9 + $0x1d8] sm:$0xff]
        %v1070 = vld [vmem:[#allocation9 + $0x1e0] sm:$0xff]
        %v1071 = vld [vmem:[#allocation9 + $0x1e8] sm:$0xff]
        %v1072 = vld [vmem:[#allocation9 + $0x1f0] sm:$0xff]
        %v1073 = vld [vmem:[#allocation9 + $0x1f8] sm:$0xff]
        %v1074 = vld [vmem:[#allocation9 + $0x200] sm:$0xff]
        %v1075 = vld [vmem:[#allocation9 + $0x208] sm:$0xff]
        %v1076 = vld [vmem:[#allocation9 + $0x210] sm:$0xff]
        %v1077 = vld [vmem:[#allocation9 + $0x218] sm:$0xff]
        %v1078 = vld [vmem:[#allocation9 + $0x220] sm:$0xff]
        %v1079 = vld [vmem:[#allocation9 + $0x228] sm:$0xff]
        %v1080 = vld [vmem:[#allocation9 + $0x230] sm:$0xff]
        %v1081 = vld [vmem:[#allocation9 + $0x238] sm:$0xff]
        %v1082 = vld [vmem:[#allocation9 + $0x240] sm:$0xff]
        %v1083 = vld [vmem:[#allocation9 + $0x248] sm:$0xff]
        %v1084 = vld [vmem:[#allocation9 + $0x250] sm:$0xff]
        %v1085 = vld [vmem:[#allocation9 + $0x258] sm:$0xff]
        %v1086 = vld [vmem:[#allocation9 + $0x260] sm:$0xff]
        %v1087 = vld [vmem:[#allocation9 + $0x268] sm:$0xff]
        %v1088 = vld [vmem:[#allocation9 + $0x270] sm:$0xff]
        %v1089 = vld [vmem:[#allocation9 + $0x278] sm:$0xff]
        %v1090 = vld [vmem:[#allocation9 + $0x280] sm:$0xff]
        %v1091 = vld [vmem:[#allocation9 + $0x288] sm:$0xff]
        %v1092 = vld [vmem:[#allocation9 + $0x290] sm:$0xff]
        %v1093 = vld [vmem:[#allocation9 + $0x298] sm:$0xff]
        %v1094 = vld [vmem:[#allocation9 + $0x2a0] sm:$0xff]
        %v1095 = vld [vmem:[#allocation9 + $0x2a8] sm:$0xff]
        %v1096 = vld [vmem:[#allocation9 + $0x2b0] sm:$0xff]
        %v1097 = vld [vmem:[#allocation9 + $0x2b8] sm:$0xff]
        %v1098 = vld [vmem:[#allocation9 + $0x2c0] sm:$0xff]
        %v1099 = vld [vmem:[#allocation9 + $0x2c8] sm:$0xff]
        %v1100 = vld [vmem:[#allocation9 + $0x2d0] sm:$0xff]
        %v1101 = vld [vmem:[#allocation9 + $0x2d8] sm:$0xff]
        %v1102 = vld [vmem:[#allocation9 + $0x2e0] sm:$0xff]
        %v1103 = vld [vmem:[#allocation9 + $0x2e8] sm:$0xff]
        %v1104 = vld [vmem:[#allocation9 + $0x2f0] sm:$0xff]
        %v1105 = vld [vmem:[#allocation9 + $0x2f8] sm:$0xff]
        %v1106 = vld [vmem:[#allocation9 + $0x300] sm:$0xff]
        %v1107 = vld [vmem:[#allocation9 + $0x308] sm:$0xff]
        %v1108 = vld [vmem:[#allocation9 + $0x310] sm:$0xff]
        %v1109 = vld [vmem:[#allocation9 + $0x318] sm:$0xff]
        %v1110 = vld [vmem:[#allocation9 + $0x320] sm:$0xff]
        %v1111 = vld [vmem:[#allocation9 + $0x328] sm:$0xff]
        %v1112 = vld [vmem:[#allocation9 + $0x330] sm:$0xff]
        %v1113 = vld [vmem:[#allocation9 + $0x338] sm:$0xff]
        %v1114 = vld [vmem:[#allocation9 + $0x340] sm:$0xff]
        %v1115 = vld [vmem:[#allocation9 + $0x348] sm:$0xff]
        %v1116 = vld [vmem:[#allocation9 + $0x350] sm:$0xff]
        %v1117 = vld [vmem:[#allocation9 + $0x358] sm:$0xff]
        %v1118 = vld [vmem:[#allocation9 + $0x360] sm:$0xff]
        %v1119 = vld [vmem:[#allocation9 + $0x368] sm:$0xff]
        %v1120 = vld [vmem:[#allocation9 + $0x370] sm:$0xff]
        %v1121 = vld [vmem:[#allocation9 + $0x378] sm:$0xff]
        %v1122 = vld [vmem:[#allocation9 + $0x380] sm:$0xff]
        %v1123 = vld [vmem:[#allocation9 + $0x388] sm:$0xff]
        %v1124 = vld [vmem:[#allocation9 + $0x390] sm:$0xff]
        %v1125 = vld [vmem:[#allocation9 + $0x398] sm:$0xff]
        %v1126 = vld [vmem:[#allocation9 + $0x3a0] sm:$0xff]
        %v1127 = vld [vmem:[#allocation9 + $0x3a8] sm:$0xff]
        %v1128 = vld [vmem:[#allocation9 + $0x3b0] sm:$0xff]
        %v1129 = vld [vmem:[#allocation9 + $0x3b8] sm:$0xff]
        %v1130 = vld [vmem:[#allocation9 + $0x3c0] sm:$0xff]
        %v1131 = vld [vmem:[#allocation9 + $0x3c8] sm:$0xff]
        %v1132 = vld [vmem:[#allocation9 + $0x3d0] sm:$0xff]
        %v1133 = vld [vmem:[#allocation9 + $0x3d8] sm:$0xff]
        %v1134 = vld [vmem:[#allocation9 + $0x3e0] sm:$0xff]
        %v1135 = vld [vmem:[#allocation9 + $0x3e8] sm:$0xff]
        %v1136 = vld [vmem:[#allocation9 + $0x3f0] sm:$0xff]
        %v1137 = vld [vmem:[#allocation9 + $0x3f8] sm:$0xff]
        %v1138 = vld [vmem:[#allocation9 + $0x400] sm:$0xff]
        %v1139 = vld [vmem:[#allocation9 + $0x408] sm:$0xff]
        %v1140 = vld [vmem:[#allocation9 + $0x410] sm:$0xff]
        %v1141 = vld [vmem:[#allocation9 + $0x418] sm:$0xff]
        %v1142 = vld [vmem:[#allocation9 + $0x420] sm:$0xff]
        %v1143 = vld [vmem:[#allocation9 + $0x428] sm:$0xff]
        %v1144 = vld [vmem:[#allocation9 + $0x430] sm:$0xff]
        %v1145 = vld [vmem:[#allocation9 + $0x438] sm:$0xff]
        %v1146 = vld [vmem:[#allocation9 + $0x440] sm:$0xff]
        %v1147 = vld [vmem:[#allocation9 + $0x448] sm:$0xff]
        %v1148 = vld [vmem:[#allocation9 + $0x450] sm:$0xff]
        %v1149 = vld [vmem:[#allocation9 + $0x458] sm:$0xff]
        %v1150 = vld [vmem:[#allocation9 + $0x460] sm:$0xff]
        %v1151 = vld [vmem:[#allocation9 + $0x468] sm:$0xff]
        %v1152 = vld [vmem:[#allocation9 + $0x470] sm:$0xff]
        %v1153 = vld [vmem:[#allocation9 + $0x478] sm:$0xff]
        %v1154 = vld [vmem:[#allocation9 + $0x480] sm:$0xff]
        %v1155 = vld [vmem:[#allocation9 + $0x488] sm:$0xff]
        %v1156 = vld [vmem:[#allocation9 + $0x490] sm:$0xff]
        %v1157 = vld [vmem:[#allocation9 + $0x498] sm:$0xff]
        %v1158 = vld [vmem:[#allocation9 + $0x4a0] sm:$0xff]
        %v1159 = vld [vmem:[#allocation9 + $0x4a8] sm:$0xff]
        %v1160 = vld [vmem:[#allocation9 + $0x4b0] sm:$0xff]
        %v1161 = vld [vmem:[#allocation9 + $0x4b8] sm:$0xff]
        %v1162 = vld [vmem:[#allocation9 + $0x4c0] sm:$0xff]
        %v1163 = vld [vmem:[#allocation9 + $0x4c8] sm:$0xff]
        %v1164 = vld [vmem:[#allocation9 + $0x4d0] sm:$0xff]
        %v1165 = vld [vmem:[#allocation9 + $0x4d8] sm:$0xff]
        %v1166 = vld [vmem:[#allocation9 + $0x4e0] sm:$0xff]
        %v1167 = vld [vmem:[#allocation9 + $0x4e8] sm:$0xff]
        %v1168 = vld [vmem:[#allocation9 + $0x4f0] sm:$0xff]
        %v1169 = vld [vmem:[#allocation9 + $0x4f8] sm:$0xff]
        %v1170 = vld [vmem:[#allocation9 + $0x500] sm:$0xff]
        %v1171 = vld [vmem:[#allocation9 + $0x508] sm:$0xff]
        %v1172 = vld [vmem:[#allocation9 + $0x510] sm:$0xff]
        %v1173 = vld [vmem:[#allocation9 + $0x518] sm:$0xff]
        %v1174 = vld [vmem:[#allocation9 + $0x520] sm:$0xff]
        %v1175 = vld [vmem:[#allocation9 + $0x528] sm:$0xff]
        %v1176 = vld [vmem:[#allocation9 + $0x530] sm:$0xff]
        %v1177 = vld [vmem:[#allocation9 + $0x538] sm:$0xff]
        %v1178 = vld [vmem:[#allocation9 + $0x540] sm:$0xff]
        %v1179 = vld [vmem:[#allocation9 + $0x548] sm:$0xff]
        %v1180 = vld [vmem:[#allocation9 + $0x550] sm:$0xff]
        %v1181 = vld [vmem:[#allocation9 + $0x558] sm:$0xff]
        %v1182 = vld [vmem:[#allocation9 + $0x560] sm:$0xff]
        %v1183 = vld [vmem:[#allocation9 + $0x568] sm:$0xff]
        %v1184 = vld [vmem:[#allocation9 + $0x570] sm:$0xff]
        %v1185 = vld [vmem:[#allocation9 + $0x578] sm:$0xff]
        %v1186 = vld [vmem:[#allocation9 + $0x580] sm:$0xff]
        %v1187 = vld [vmem:[#allocation9 + $0x588] sm:$0xff]
        %v1188 = vld [vmem:[#allocation9 + $0x590] sm:$0xff]
        %v1189 = vld [vmem:[#allocation9 + $0x598] sm:$0xff]
        %v1190 = vld [vmem:[#allocation9 + $0x5a0] sm:$0xff]
        %v1191 = vld [vmem:[#allocation9 + $0x5a8] sm:$0xff]
        %v1192 = vld [vmem:[#allocation9 + $0x5b0] sm:$0xff]
        %v1193 = vld [vmem:[#allocation9 + $0x5b8] sm:$0xff]
        %v1194 = vld [vmem:[#allocation9 + $0x5c0] sm:$0xff]
        %v1195 = vld [vmem:[#allocation9 + $0x5c8] sm:$0xff]
        %v1196 = vld [vmem:[#allocation9 + $0x5d0] sm:$0xff]
        %v1197 = vld [vmem:[#allocation9 + $0x5d8] sm:$0xff]
        %v1198 = vld [vmem:[#allocation9 + $0x5e0] sm:$0xff]
        %v1199 = vld [vmem:[#allocation9 + $0x5e8] sm:$0xff]
        %v1200 = vld [vmem:[#allocation9 + $0x5f0] sm:$0xff]
        %v1201 = vld [vmem:[#allocation9 + $0x5f8] sm:$0xff]
        %v1202 = vld [vmem:[#allocation9 + $0x600] sm:$0xff]
        %v1203 = vld [vmem:[#allocation9 + $0x608] sm:$0xff]
        %v1204 = vld [vmem:[#allocation9 + $0x610] sm:$0xff]
        %v1205 = vld [vmem:[#allocation9 + $0x618] sm:$0xff]
        %v1206 = vld [vmem:[#allocation9 + $0x620] sm:$0xff]
        %v1207 = vld [vmem:[#allocation9 + $0x628] sm:$0xff]
        %v1208 = vld [vmem:[#allocation9 + $0x630] sm:$0xff]
        %v1209 = vld [vmem:[#allocation9 + $0x638] sm:$0xff]
        %v1210 = vld [vmem:[#allocation9 + $0x640] sm:$0xff]
        %v1211 = vld [vmem:[#allocation9 + $0x648] sm:$0xff]
        %v1212 = vld [vmem:[#allocation9 + $0x650] sm:$0xff]
        %v1213 = vld [vmem:[#allocation9 + $0x658] sm:$0xff]
        %v1214 = vld [vmem:[#allocation9 + $0x660] sm:$0xff]
        %v1215 = vld [vmem:[#allocation9 + $0x668] sm:$0xff]
        %v1216 = vld [vmem:[#allocation9 + $0x670] sm:$0xff]
        %v1217 = vld [vmem:[#allocation9 + $0x678] sm:$0xff]
        %v1218 = vld [vmem:[#allocation9 + $0x680] sm:$0xff]
        %v1219 = vld [vmem:[#allocation9 + $0x688] sm:$0xff]
        %v1220 = vld [vmem:[#allocation9 + $0x690] sm:$0xff]
        %v1221 = vld [vmem:[#allocation9 + $0x698] sm:$0xff]
        %v1222 = vld [vmem:[#allocation9 + $0x6a0] sm:$0xff]
        %v1223 = vld [vmem:[#allocation9 + $0x6a8] sm:$0xff]
        %v1224 = vld [vmem:[#allocation9 + $0x6b0] sm:$0xff]
        %v1225 = vld [vmem:[#allocation9 + $0x6b8] sm:$0xff]
        %v1226 = vld [vmem:[#allocation9 + $0x6c0] sm:$0xff]
        %v1227 = vld [vmem:[#allocation9 + $0x6c8] sm:$0xff]
        %v1228 = vld [vmem:[#allocation9 + $0x6d0] sm:$0xff]
        %v1229 = vld [vmem:[#allocation9 + $0x6d8] sm:$0xff]
        %v1230 = vld [vmem:[#allocation9 + $0x6e0] sm:$0xff]
        %v1231 = vld [vmem:[#allocation9 + $0x6e8] sm:$0xff]
        %v1232 = vld [vmem:[#allocation9 + $0x6f0] sm:$0xff]
        %v1233 = vld [vmem:[#allocation9 + $0x6f8] sm:$0xff]
        %v1234 = vld [vmem:[#allocation9 + $0x700] sm:$0xff]
        %v1235 = vld [vmem:[#allocation9 + $0x708] sm:$0xff]
        %v1236 = vld [vmem:[#allocation9 + $0x710] sm:$0xff]
        %v1237 = vld [vmem:[#allocation9 + $0x718] sm:$0xff]
        %v1238 = vld [vmem:[#allocation9 + $0x720] sm:$0xff]
        %v1239 = vld [vmem:[#allocation9 + $0x728] sm:$0xff]
        %v1240 = vld [vmem:[#allocation9 + $0x730] sm:$0xff]
        %v1241 = vld [vmem:[#allocation9 + $0x738] sm:$0xff]
        %v1242 = vld [vmem:[#allocation9 + $0x740] sm:$0xff]
        %v1243 = vld [vmem:[#allocation9 + $0x748] sm:$0xff]
        %v1244 = vld [vmem:[#allocation9 + $0x750] sm:$0xff]
        %v1245 = vld [vmem:[#allocation9 + $0x758] sm:$0xff]
        %v1246 = vld [vmem:[#allocation9 + $0x760] sm:$0xff]
        %v1247 = vld [vmem:[#allocation9 + $0x768] sm:$0xff]
        %v1248 = vld [vmem:[#allocation9 + $0x770] sm:$0xff]
        %v1249 = vld [vmem:[#allocation9 + $0x778] sm:$0xff]
        %v1250 = vld [vmem:[#allocation9 + $0x780] sm:$0xff]
        %v1251 = vld [vmem:[#allocation9 + $0x788] sm:$0xff]
        %v1252 = vld [vmem:[#allocation9 + $0x790] sm:$0xff]
        %v1253 = vld [vmem:[#allocation9 + $0x798] sm:$0xff]
        %v1254 = vld [vmem:[#allocation9 + $0x7a0] sm:$0xff]
        %v1255 = vld [vmem:[#allocation9 + $0x7a8] sm:$0xff]
        %v1256 = vld [vmem:[#allocation9 + $0x7b0] sm:$0xff]
        %v1257 = vld [vmem:[#allocation9 + $0x7b8] sm:$0xff]
        %v1258 = vld [vmem:[#allocation9 + $0x7c0] sm:$0xff]
        %v1259 = vld [vmem:[#allocation9 + $0x7c8] sm:$0xff]
        %v1260 = vld [vmem:[#allocation9 + $0x7d0] sm:$0xff]
        %v1261 = vld [vmem:[#allocation9 + $0x7d8] sm:$0xff]
        %v1262 = vld [vmem:[#allocation9 + $0x7e0] sm:$0xff]
        %v1263 = vld [vmem:[#allocation9 + $0x7e8] sm:$0xff]
        %v1264 = vld [vmem:[#allocation9 + $0x7f0] sm:$0xff]
        %v1265 = vld [vmem:[#allocation9 + $0x7f8] sm:$0xff]
        %v1266 = vld [vmem:[%s5] sm:$0x1]
        %v1267 = vlaneseq
        %v1268 = vshrl.u32 %v1267, 7
        %v1269 = vsub.s32 0, %v1268
        %v1270 = vrot.slane %v1266, %v1269
        %v1271 = vld [vmem:[%s5 + $0x1] sm:$0x1]
        %v1272 = vlaneseq
        %v1273 = vshrl.u32 %v1272, 7
        %v1274 = vsub.s32 0, %v1273
        %v1275 = vrot.slane %v1271, %v1274
        %1276 = vmatprep.subr.mxu0 %v1011
        %1277 = vmatpush1.msra.mxu0 %v1010
        %1278 = vmatprep.subr.mxu0 %v1019
        %1279 = vmatpush1.msra.mxu0 %v1018
        %1280 = vmatprep.subr.mxu0 %v1027
        %1281 = vmatpush1.msra.mxu0 %v1026
        %1282 = vmatprep.subr.mxu0 %v1035
        %1283 = vmatpush1.msra.mxu0 %v1034
        %1284 = vmatprep.subr.mxu0 %v1043
        %1285 = vmatpush1.msra.mxu0 %v1042
        %1286 = vmatprep.subr.mxu0 %v1051
        %1287 = vmatpush1.msra.mxu0 %v1050
        %1288 = vmatprep.subr.mxu0 %v1059
        %1289 = vmatpush1.msra.mxu0 %v1058
        %1290 = vmatprep.subr.mxu0 %v1067
        %1291 = vmatpush1.msra.mxu0 %v1066
        %1292 = vmatprep.subr.mxu0 %v1075
        %1293 = vmatpush1.msra.mxu0 %v1074
        %1294 = vmatprep.subr.mxu0 %v1083
        %1295 = vmatpush1.msra.mxu0 %v1082
        %1296 = vmatprep.subr.mxu0 %v1091
        %1297 = vmatpush1.msra.mxu0 %v1090
        %1298 = vmatprep.subr.mxu0 %v1099
        %1299 = vmatpush1.msra.mxu0 %v1098
        %1300 = vmatprep.subr.mxu0 %v1107
        %1301 = vmatpush1.msra.mxu0 %v1106
        %1302 = vmatprep.subr.mxu0 %v1115
        %1303 = vmatpush1.msra.mxu0 %v1114
        %1304 = vmatprep.subr.mxu0 %v1123
        %1305 = vmatpush1.msra.mxu0 %v1122
        %1306 = vmatprep.subr.mxu0 %v1131
        %1307 = vmatpush1.msra.mxu0 %v1130
        %1308 = vmatprep.subr.mxu0 %v1139
        %1309 = vmatpush1.msra.mxu0 %v1138
        %1310 = vmatprep.subr.mxu0 %v1147
        %1311 = vmatpush1.msra.mxu0 %v1146
        %1312 = vmatprep.subr.mxu0 %v1155
        %1313 = vmatpush1.msra.mxu0 %v1154
        %1314 = vmatprep.subr.mxu0 %v1163
        %1315 = vmatpush1.msra.mxu0 %v1162
        %1316 = vmatprep.subr.mxu0 %v1171
        %1317 = vmatpush1.msra.mxu0 %v1170
        %1318 = vmatprep.subr.mxu0 %v1179
        %1319 = vmatpush1.msra.mxu0 %v1178
        %1320 = vmatprep.subr.mxu0 %v1187
        %1321 = vmatpush1.msra.mxu0 %v1186
        %1322 = vmatprep.subr.mxu0 %v1195
        %1323 = vmatpush1.msra.mxu0 %v1194
        %1324 = vmatprep.subr.mxu0 %v1203
        %1325 = vmatpush1.msra.mxu0 %v1202
        %1326 = vmatprep.subr.mxu0 %v1211
        %1327 = vmatpush1.msra.mxu0 %v1210
        %1328 = vmatprep.subr.mxu0 %v1219
        %1329 = vmatpush1.msra.mxu0 %v1218
        %1330 = vmatprep.subr.mxu0 %v1227
        %1331 = vmatpush1.msra.mxu0 %v1226
        %1332 = vmatprep.subr.mxu0 %v1235
        %1333 = vmatpush1.msra.mxu0 %v1234
        %1334 = vmatprep.subr.mxu0 %v1243
        %1335 = vmatpush1.msra.mxu0 %v1242
        %1336 = vmatprep.subr.mxu0 %v1251
        %1337 = vmatpush1.msra.mxu0 %v1250
        %1338 = vmatprep.subr.mxu0 %v1259
        %1339 = vmatpush1.msra.mxu0 %v1258
        %1340 = vmatprep.mubr.f32.mxu0 %v1270
        %1341 = vmatmul.mubr.f32.gmra.mrb[0].mxu0 %v1270
        %v1342 = vpop.f32.mrb[0].mxu0
        %v1343 = vadd.f32 0.0, %v1342
        %v1344 = vpop.f32.mrb[0].mxu0
        %v1345 = vadd.f32 0.0, %v1344
        %1346 = vdwg.mxu0
        %1347 = vmatprep.subr.mxu0 %v1013
        %1348 = vmatpush1.msra.mxu0 %v1012
        %1349 = vmatprep.subr.mxu0 %v1021
        %1350 = vmatpush1.msra.mxu0 %v1020
        %1351 = vmatprep.subr.mxu0 %v1029
        %1352 = vmatpush1.msra.mxu0 %v1028
        %1353 = vmatprep.subr.mxu0 %v1037
        %1354 = vmatpush1.msra.mxu0 %v1036
        %1355 = vmatprep.subr.mxu0 %v1045
        %1356 = vmatpush1.msra.mxu0 %v1044
        %1357 = vmatprep.subr.mxu0 %v1053
        %1358 = vmatpush1.msra.mxu0 %v1052
        %1359 = vmatprep.subr.mxu0 %v1061
        %1360 = vmatpush1.msra.mxu0 %v1060
        %1361 = vmatprep.subr.mxu0 %v1069
        %1362 = vmatpush1.msra.mxu0 %v1068
        %1363 = vmatprep.subr.mxu0 %v1077
        %1364 = vmatpush1.msra.mxu0 %v1076
        %1365 = vmatprep.subr.mxu0 %v1085
        %1366 = vmatpush1.msra.mxu0 %v1084
        %1367 = vmatprep.subr.mxu0 %v1093
        %1368 = vmatpush1.msra.mxu0 %v1092
        %1369 = vmatprep.subr.mxu0 %v1101
        %1370 = vmatpush1.msra.mxu0 %v1100
        %1371 = vmatprep.subr.mxu0 %v1109
        %1372 = vmatpush1.msra.mxu0 %v1108
        %1373 = vmatprep.subr.mxu0 %v1117
        %1374 = vmatpush1.msra.mxu0 %v1116
        %1375 = vmatprep.subr.mxu0 %v1125
        %1376 = vmatpush1.msra.mxu0 %v1124
        %1377 = vmatprep.subr.mxu0 %v1133
        %1378 = vmatpush1.msra.mxu0 %v1132
        %1379 = vmatprep.subr.mxu0 %v1141
        %1380 = vmatpush1.msra.mxu0 %v1140
        %1381 = vmatprep.subr.mxu0 %v1149
        %1382 = vmatpush1.msra.mxu0 %v1148
        %1383 = vmatprep.subr.mxu0 %v1157
        %1384 = vmatpush1.msra.mxu0 %v1156
        %1385 = vmatprep.subr.mxu0 %v1165
        %1386 = vmatpush1.msra.mxu0 %v1164
        %1387 = vmatprep.subr.mxu0 %v1173
        %1388 = vmatpush1.msra.mxu0 %v1172
        %1389 = vmatprep.subr.mxu0 %v1181
        %1390 = vmatpush1.msra.mxu0 %v1180
        %1391 = vmatprep.subr.mxu0 %v1189
        %1392 = vmatpush1.msra.mxu0 %v1188
        %1393 = vmatprep.subr.mxu0 %v1197
        %1394 = vmatpush1.msra.mxu0 %v1196
        %1395 = vmatprep.subr.mxu0 %v1205
        %1396 = vmatpush1.msra.mxu0 %v1204
        %1397 = vmatprep.subr.mxu0 %v1213
        %1398 = vmatpush1.msra.mxu0 %v1212
        %1399 = vmatprep.subr.mxu0 %v1221
        %1400 = vmatpush1.msra.mxu0 %v1220
        %1401 = vmatprep.subr.mxu0 %v1229
        %1402 = vmatpush1.msra.mxu0 %v1228
        %1403 = vmatprep.subr.mxu0 %v1237
        %1404 = vmatpush1.msra.mxu0 %v1236
        %1405 = vmatprep.subr.mxu0 %v1245
        %1406 = vmatpush1.msra.mxu0 %v1244
        %1407 = vmatprep.subr.mxu0 %v1253
        %1408 = vmatpush1.msra.mxu0 %v1252
        %1409 = vmatprep.subr.mxu0 %v1261
        %1410 = vmatpush1.msra.mxu0 %v1260
        %1411 = vmatprep.mubr.f32.mxu0 %v1270
        %1412 = vmatmul.mubr.f32.gmra.mrb[0].mxu0 %v1270
        %v1413 = vpop.f32.mrb[0].mxu0
        %v1414 = vadd.f32 0.0, %v1413
        %v1415 = vpop.f32.mrb[0].mxu0
        %v1416 = vadd.f32 0.0, %v1415
        %1417 = vdwg.mxu0
        %1418 = vmatprep.subr.mxu0 %v1015
        %1419 = vmatpush1.msra.mxu0 %v1014
        %1420 = vmatprep.subr.mxu0 %v1023
        %1421 = vmatpush1.msra.mxu0 %v1022
        %1422 = vmatprep.subr.mxu0 %v1031
        %1423 = vmatpush1.msra.mxu0 %v1030
        %1424 = vmatprep.subr.mxu0 %v1039
        %1425 = vmatpush1.msra.mxu0 %v1038
        %1426 = vmatprep.subr.mxu0 %v1047
        %1427 = vmatpush1.msra.mxu0 %v1046
        %1428 = vmatprep.subr.mxu0 %v1055
        %1429 = vmatpush1.msra.mxu0 %v1054
        %1430 = vmatprep.subr.mxu0 %v1063
        %1431 = vmatpush1.msra.mxu0 %v1062
        %1432 = vmatprep.subr.mxu0 %v1071
        %1433 = vmatpush1.msra.mxu0 %v1070
        %1434 = vmatprep.subr.mxu0 %v1079
        %1435 = vmatpush1.msra.mxu0 %v1078
        %1436 = vmatprep.subr.mxu0 %v1087
        %1437 = vmatpush1.msra.mxu0 %v1086
        %1438 = vmatprep.subr.mxu0 %v1095
        %1439 = vmatpush1.msra.mxu0 %v1094
        %1440 = vmatprep.subr.mxu0 %v1103
        %1441 = vmatpush1.msra.mxu0 %v1102
        %1442 = vmatprep.subr.mxu0 %v1111
        %1443 = vmatpush1.msra.mxu0 %v1110
        %1444 = vmatprep.subr.mxu0 %v1119
        %1445 = vmatpush1.msra.mxu0 %v1118
        %1446 = vmatprep.subr.mxu0 %v1127
        %1447 = vmatpush1.msra.mxu0 %v1126
        %1448 = vmatprep.subr.mxu0 %v1135
        %1449 = vmatpush1.msra.mxu0 %v1134
        %1450 = vmatprep.subr.mxu0 %v1143
        %1451 = vmatpush1.msra.mxu0 %v1142
        %1452 = vmatprep.subr.mxu0 %v1151
        %1453 = vmatpush1.msra.mxu0 %v1150
        %1454 = vmatprep.subr.mxu0 %v1159
        %1455 = vmatpush1.msra.mxu0 %v1158
        %1456 = vmatprep.subr.mxu0 %v1167
        %1457 = vmatpush1.msra.mxu0 %v1166
        %1458 = vmatprep.subr.mxu0 %v1175
        %1459 = vmatpush1.msra.mxu0 %v1174
        %1460 = vmatprep.subr.mxu0 %v1183
        %1461 = vmatpush1.msra.mxu0 %v1182
        %1462 = vmatprep.subr.mxu0 %v1191
        %1463 = vmatpush1.msra.mxu0 %v1190
        %1464 = vmatprep.subr.mxu0 %v1199
        %1465 = vmatpush1.msra.mxu0 %v1198
        %1466 = vmatprep.subr.mxu0 %v1207
        %1467 = vmatpush1.msra.mxu0 %v1206
        %1468 = vmatprep.subr.mxu0 %v1215
        %1469 = vmatpush1.msra.mxu0 %v1214
        %1470 = vmatprep.subr.mxu0 %v1223
        %1471 = vmatpush1.msra.mxu0 %v1222
        %1472 = vmatprep.subr.mxu0 %v1231
        %1473 = vmatpush1.msra.mxu0 %v1230
        %1474 = vmatprep.subr.mxu0 %v1239
        %1475 = vmatpush1.msra.mxu0 %v1238
        %1476 = vmatprep.subr.mxu0 %v1247
        %1477 = vmatpush1.msra.mxu0 %v1246
        %1478 = vmatprep.subr.mxu0 %v1255
        %1479 = vmatpush1.msra.mxu0 %v1254
        %1480 = vmatprep.subr.mxu0 %v1263
        %1481 = vmatpush1.msra.mxu0 %v1262
        %1482 = vmatprep.mubr.f32.mxu0 %v1270
        %1483 = vmatmul.mubr.f32.gmra.mrb[0].mxu0 %v1270
        %v1484 = vpop.f32.mrb[0].mxu0
        %v1485 = vadd.f32 0.0, %v1484
        %v1486 = vpop.f32.mrb[0].mxu0
        %v1487 = vadd.f32 0.0, %v1486
        %1488 = vdwg.mxu0
        %1489 = vmatprep.subr.mxu0 %v1017
        %1490 = vmatpush1.msra.mxu0 %v1016
        %1491 = vmatprep.subr.mxu0 %v1025
        %1492 = vmatpush1.msra.mxu0 %v1024
        %1493 = vmatprep.subr.mxu0 %v1033
        %1494 = vmatpush1.msra.mxu0 %v1032
        %1495 = vmatprep.subr.mxu0 %v1041
        %1496 = vmatpush1.msra.mxu0 %v1040
        %1497 = vmatprep.subr.mxu0 %v1049
        %1498 = vmatpush1.msra.mxu0 %v1048
        %1499 = vmatprep.subr.mxu0 %v1057
        %1500 = vmatpush1.msra.mxu0 %v1056
        %1501 = vmatprep.subr.mxu0 %v1065
        %1502 = vmatpush1.msra.mxu0 %v1064
        %1503 = vmatprep.subr.mxu0 %v1073
        %1504 = vmatpush1.msra.mxu0 %v1072
        %1505 = vmatprep.subr.mxu0 %v1081
        %1506 = vmatpush1.msra.mxu0 %v1080
        %1507 = vmatprep.subr.mxu0 %v1089
        %1508 = vmatpush1.msra.mxu0 %v1088
        %1509 = vmatprep.subr.mxu0 %v1097
        %1510 = vmatpush1.msra.mxu0 %v1096
        %1511 = vmatprep.subr.mxu0 %v1105
        %1512 = vmatpush1.msra.mxu0 %v1104
        %1513 = vmatprep.subr.mxu0 %v1113
        %1514 = vmatpush1.msra.mxu0 %v1112
        %1515 = vmatprep.subr.mxu0 %v1121
        %1516 = vmatpush1.msra.mxu0 %v1120
        %1517 = vmatprep.subr.mxu0 %v1129
        %1518 = vmatpush1.msra.mxu0 %v1128
        %1519 = vmatprep.subr.mxu0 %v1137
        %1520 = vmatpush1.msra.mxu0 %v1136
        %1521 = vmatprep.subr.mxu0 %v1145
        %1522 = vmatpush1.msra.mxu0 %v1144
        %1523 = vmatprep.subr.mxu0 %v1153
        %1524 = vmatpush1.msra.mxu0 %v1152
        %1525 = vmatprep.subr.mxu0 %v1161
        %1526 = vmatpush1.msra.mxu0 %v1160
        %1527 = vmatprep.subr.mxu0 %v1169
        %1528 = vmatpush1.msra.mxu0 %v1168
        %1529 = vmatprep.subr.mxu0 %v1177
        %1530 = vmatpush1.msra.mxu0 %v1176
        %1531 = vmatprep.subr.mxu0 %v1185
        %1532 = vmatpush1.msra.mxu0 %v1184
        %1533 = vmatprep.subr.mxu0 %v1193
        %1534 = vmatpush1.msra.mxu0 %v1192
        %1535 = vmatprep.subr.mxu0 %v1201
        %1536 = vmatpush1.msra.mxu0 %v1200
        %1537 = vmatprep.subr.mxu0 %v1209
        %1538 = vmatpush1.msra.mxu0 %v1208
        %1539 = vmatprep.subr.mxu0 %v1217
        %1540 = vmatpush1.msra.mxu0 %v1216
        %1541 = vmatprep.subr.mxu0 %v1225
        %1542 = vmatpush1.msra.mxu0 %v1224
        %1543 = vmatprep.subr.mxu0 %v1233
        %1544 = vmatpush1.msra.mxu0 %v1232
        %1545 = vmatprep.subr.mxu0 %v1241
        %1546 = vmatpush1.msra.mxu0 %v1240
        %1547 = vmatprep.subr.mxu0 %v1249
        %1548 = vmatpush1.msra.mxu0 %v1248
        %1549 = vmatprep.subr.mxu0 %v1257
        %1550 = vmatpush1.msra.mxu0 %v1256
        %1551 = vmatprep.subr.mxu0 %v1265
        %1552 = vmatpush1.msra.mxu0 %v1264
        %1553 = vmatprep.mubr.f32.mxu0 %v1270
        %1554 = vmatmul.mubr.f32.gmra.mrb[0].mxu0 %v1270
        %v1555 = vpop.f32.mrb[0].mxu0
        %v1556 = vadd.f32 0.0, %v1555
        %v1557 = vpop.f32.mrb[0].mxu0
        %v1558 = vadd.f32 0.0, %v1557
        %1559 = vdwg.mxu0
        %v1560 = vld [vmem:[#allocation2] ss:$8 sm:$0xf]
        %s1561 = scalar_lea.vmem [#allocation2], 64
        %v1562 = vld [vmem:[%s1561] ss:$8 sm:$0xf]
        %s1563 = scalar_lea.vmem [#allocation2], 128
        %v1564 = vld [vmem:[%s1563] ss:$8 sm:$0xf]
        %s1565 = scalar_lea.vmem [#allocation2], 192
        %v1566 = vld [vmem:[%s1565] ss:$8 sm:$0xf]
        %s1567 = scalar_lea.vmem [#allocation2], 256
        %v1568 = vld [vmem:[%s1567] ss:$8 sm:$0xf]
        %s1569 = scalar_lea.vmem [#allocation2], 320
        %v1570 = vld [vmem:[%s1569] ss:$8 sm:$0xf]
        %s1571 = scalar_lea.vmem [#allocation2], 384
        %v1572 = vld [vmem:[%s1571] ss:$8 sm:$0xf]
        %s1573 = scalar_lea.vmem [#allocation2], 448
        %v1574 = vld [vmem:[%s1573] ss:$8 sm:$0xf]
        %v1583 = vcombine.low %v1560, %v1562
        %v1584 = vcombine.low %v1564, %v1566
        %v1585 = vcombine.low %v1568, %v1570
        %v1586 = vcombine.low %v1572, %v1574
        %v1588 = vunpack.c.l.s4 1966171168
        %v1589 = vunpack.c.0.s8 %v1588
        %v1590 = vlaneseq
        %v1591 = vshrl.u32 %v1590, 7
        %v1592 = vsub.s32 %v1589, %v1591
        %v1593 = vrot.slane %v1583, %v1592
        %v1595 = vunpack.c.l.s4 1966171168
        %v1596 = vunpack.c.0.s8 %v1595
        %v1597 = vlaneseq
        %v1598 = vshrl.u32 %v1597, 7
        %v1599 = vsub.s32 %v1596, %v1598
        %v1600 = vrot.slane %v1584, %v1599
        %v1602 = vunpack.c.l.s4 1966171168
        %v1603 = vunpack.c.0.s8 %v1602
        %v1604 = vlaneseq
        %v1605 = vshrl.u32 %v1604, 7
        %v1606 = vsub.s32 %v1603, %v1605
        %v1607 = vrot.slane %v1585, %v1606
        %v1609 = vunpack.c.l.s4 1966171168
        %v1610 = vunpack.c.0.s8 %v1609
        %v1611 = vlaneseq
        %v1612 = vshrl.u32 %v1611, 7
        %v1613 = vsub.s32 %v1610, %v1612
        %v1614 = vrot.slane %v1586, %v1613
        %v1615 = vcombine.low %v1593, %v1600
        %v1616 = vcombine.high %v1593, %v1600
        %v1617 = vcombine.low %v1607, %v1614
        %v1618 = vcombine.high %v1607, %v1614
        %v1620 = vunpack.c.l.s4 1966171168
        %v1621 = vunpack.c.0.s8 %v1620
        %v1622 = vlaneseq
        %v1623 = vshrl.u32 %v1622, 7
        %v1624 = vsub.s32 %v1621, %v1623
        %v1625 = vrot.slane %v1615, %v1624
        %v1627 = vunpack.c.l.s4 1966171168
        %v1628 = vunpack.c.0.s8 %v1627
        %v1629 = vlaneseq
        %v1630 = vshrl.u32 %v1629, 7
        %v1631 = vsub.s32 %v1628, %v1630
        %v1632 = vrot.slane %v1616, %v1631
        %v1634 = vunpack.c.l.s4 1966171168
        %v1635 = vunpack.c.0.s8 %v1634
        %v1636 = vlaneseq
        %v1637 = vshrl.u32 %v1636, 7
        %v1638 = vsub.s32 %v1635, %v1637
        %v1639 = vrot.slane %v1617, %v1638
        %v1641 = vunpack.c.l.s4 1966171168
        %v1642 = vunpack.c.0.s8 %v1641
        %v1643 = vlaneseq
        %v1644 = vshrl.u32 %v1643, 7
        %v1645 = vsub.s32 %v1642, %v1644
        %v1646 = vrot.slane %v1618, %v1645
        %v1647 = vcombine.low %v1625, %v1639
        %v1648 = vcombine.high %v1625, %v1639
        %v1649 = vcombine.low %v1632, %v1646
        %v1650 = vcombine.high %v1632, %v1646
        %v1655 = vadd.f32 %v1343, %v1647
        %v1656 = vadd.f32 %v1345, %v1649
        %v1657 = vadd.f32 %v1414, %v1648
        %v1658 = vadd.f32 %v1416, %v1650
        %s1659 = scalar_lea.vmem [#allocation2], 39
        %v1660 = vld [vmem:[%s1659] ss:$8 sm:$0xf]
        %s1661 = scalar_lea.vmem [#allocation2], 103
        %v1662 = vld [vmem:[%s1661] ss:$8 sm:$0xf]
        %s1663 = scalar_lea.vmem [#allocation2], 167
        %v1664 = vld [vmem:[%s1663] ss:$8 sm:$0xf]
        %s1665 = scalar_lea.vmem [#allocation2], 231
        %v1666 = vld [vmem:[%s1665] ss:$8 sm:$0xf]
        %s1667 = scalar_lea.vmem [#allocation2], 295
        %v1668 = vld [vmem:[%s1667] ss:$8 sm:$0xf]
        %s1669 = scalar_lea.vmem [#allocation2], 359
        %v1670 = vld [vmem:[%s1669] ss:$8 sm:$0xf]
        %s1671 = scalar_lea.vmem [#allocation2], 423
        %v1672 = vld [vmem:[%s1671] ss:$8 sm:$0xf]
        %s1673 = scalar_lea.vmem [#allocation2], 487
        %v1674 = vld [vmem:[%s1673] ss:$8 sm:$0xf]
        %v1683 = vcombine.low %v1660, %v1662
        %v1684 = vcombine.low %v1664, %v1666
        %v1685 = vcombine.low %v1668, %v1670
        %v1686 = vcombine.low %v1672, %v1674
        %v1688 = vunpack.c.l.s4 1966171168
        %v1689 = vunpack.c.0.s8 %v1688
        %v1690 = vlaneseq
        %v1691 = vshrl.u32 %v1690, 7
        %v1692 = vsub.s32 %v1689, %v1691
        %v1693 = vrot.slane %v1683, %v1692
        %v1695 = vunpack.c.l.s4 1966171168
        %v1696 = vunpack.c.0.s8 %v1695
        %v1697 = vlaneseq
        %v1698 = vshrl.u32 %v1697, 7
        %v1699 = vsub.s32 %v1696, %v1698
        %v1700 = vrot.slane %v1684, %v1699
        %v1702 = vunpack.c.l.s4 1966171168
        %v1703 = vunpack.c.0.s8 %v1702
        %v1704 = vlaneseq
        %v1705 = vshrl.u32 %v1704, 7
        %v1706 = vsub.s32 %v1703, %v1705
        %v1707 = vrot.slane %v1685, %v1706
        %v1709 = vunpack.c.l.s4 1966171168
        %v1710 = vunpack.c.0.s8 %v1709
        %v1711 = vlaneseq
        %v1712 = vshrl.u32 %v1711, 7
        %v1713 = vsub.s32 %v1710, %v1712
        %v1714 = vrot.slane %v1686, %v1713
        %v1715 = vcombine.low %v1693, %v1700
        %v1716 = vcombine.high %v1693, %v1700
        %v1717 = vcombine.low %v1707, %v1714
        %v1718 = vcombine.high %v1707, %v1714
        %v1720 = vunpack.c.l.s4 1966171168
        %v1721 = vunpack.c.0.s8 %v1720
        %v1722 = vlaneseq
        %v1723 = vshrl.u32 %v1722, 7
        %v1724 = vsub.s32 %v1721, %v1723
        %v1725 = vrot.slane %v1715, %v1724
        %v1727 = vunpack.c.l.s4 1966171168
        %v1728 = vunpack.c.0.s8 %v1727
        %v1729 = vlaneseq
        %v1730 = vshrl.u32 %v1729, 7
        %v1731 = vsub.s32 %v1728, %v1730
        %v1732 = vrot.slane %v1716, %v1731
        %v1734 = vunpack.c.l.s4 1966171168
        %v1735 = vunpack.c.0.s8 %v1734
        %v1736 = vlaneseq
        %v1737 = vshrl.u32 %v1736, 7
        %v1738 = vsub.s32 %v1735, %v1737
        %v1739 = vrot.slane %v1717, %v1738
        %v1741 = vunpack.c.l.s4 1966171168
        %v1742 = vunpack.c.0.s8 %v1741
        %v1743 = vlaneseq
        %v1744 = vshrl.u32 %v1743, 7
        %v1745 = vsub.s32 %v1742, %v1744
        %v1746 = vrot.slane %v1718, %v1745
        %v1747 = vcombine.low %v1725, %v1739
        %v1748 = vcombine.high %v1725, %v1739
        %v1749 = vcombine.low %v1732, %v1746
        %v1750 = vcombine.high %v1732, %v1746
        %v1755 = vadd.f32 %v1485, %v1747
        %v1756 = vadd.f32 %v1487, %v1749
        %v1757 = vadd.f32 %v1556, %v1748
        %v1758 = vadd.f32 %v1558, %v1750
        %v1759 = vxor.u32 %v1655, 2147483648
        %v1760 = vmul.f32 %v1759, 1.442695
        %v1761 = vpow.pop %v1760
        %v1762 = vadd.f32 %v1761, 1.0
        %v1763 = vrcp.pop %v1762
        %v1764 = vmul.f32 1.0, %v1763
        %v1765 = vxor.u32 %v1656, 2147483648
        %v1766 = vmul.f32 %v1765, 1.442695
        %v1767 = vpow.pop %v1766
        %v1768 = vadd.f32 %v1767, 1.0
        %v1769 = vrcp.pop %v1768
        %v1770 = vmul.f32 1.0, %v1769
        %v1771 = vtanh.pop %v1657
        %v1772 = vxor.u32 %v1658, 2147483648
        %v1773 = vmul.f32 %v1772, 1.442695
        %v1774 = vpow.pop %v1773
        %v1775 = vadd.f32 %v1774, 1.0
        %v1776 = vrcp.pop %v1775
        %v1777 = vmul.f32 1.0, %v1776
        %v1778 = vmul.f32 %v1770, %v1275
        %v1779 = vmul.f32 %v1764, %v1771
        %v1780 = vadd.f32 %v1778, %v1779
        %v1781 = vtanh.pop %v1780
        %v1782 = vmul.f32 %v1777, %v1781
        %v1783 = vxor.u32 %v1755, 2147483648
        %v1784 = vmul.f32 %v1783, 1.442695
        %v1785 = vpow.pop %v1784
        %v1786 = vadd.f32 %v1785, 1.0
        %v1787 = vrcp.pop %v1786
        %v1788 = vmul.f32 1.0, %v1787
        %v1789 = vxor.u32 %v1756, 2147483648
        %v1790 = vmul.f32 %v1789, 1.442695
        %v1791 = vpow.pop %v1790
        %v1792 = vadd.f32 %v1791, 1.0
        %v1793 = vrcp.pop %v1792
        %v1794 = vmul.f32 1.0, %v1793
        %v1795 = vtanh.pop %v1757
        %v1796 = vxor.u32 %v1758, 2147483648
        %v1797 = vmul.f32 %v1796, 1.442695
        %v1798 = vpow.pop %v1797
        %v1799 = vadd.f32 %v1798, 1.0
        %v1800 = vrcp.pop %v1799
        %v1801 = vmul.f32 1.0, %v1800
        %v1802 = vmul.f32 %v1794, %v1275
        %v1803 = vmul.f32 %v1788, %v1795
        %v1804 = vadd.f32 %v1802, %v1803
        %v1805 = vtanh.pop %v1804
        %v1806 = vmul.f32 %v1801, %v1805
        %v1808 = vcombine.high %v1782, %v1782
        %v1810 = vunpack.c.l.s4 1966171168
        %v1811 = vunpack.c.0.s8 %v1810
        %v1812 = vlaneseq
        %v1813 = vshrl.u32 %v1812, 7
        %v1814 = vsub.s32 %v1811, %v1813
        %v1815 = vrot.slane %v1782, %v1814
        %v1817 = vunpack.c.l.s4 1966171168
        %v1818 = vunpack.c.0.s8 %v1817
        %v1819 = vlaneseq
        %v1820 = vshrl.u32 %v1819, 7
        %v1821 = vsub.s32 %v1818, %v1820
        %v1822 = vrot.slane %v1808, %v1821
        %v1823 = vcombine.high %v1815, %v1815
        %v1824 = vcombine.high %v1822, %v1822
        %v1826 = vunpack.c.l.s4 1966171168
        %v1827 = vunpack.c.0.s8 %v1826
        %v1828 = vlaneseq
        %v1829 = vshrl.u32 %v1828, 7
        %v1830 = vsub.s32 %v1827, %v1829
        %v1831 = vrot.slane %v1815, %v1830
        %v1833 = vunpack.c.l.s4 1966171168
        %v1834 = vunpack.c.0.s8 %v1833
        %v1835 = vlaneseq
        %v1836 = vshrl.u32 %v1835, 7
        %v1837 = vsub.s32 %v1834, %v1836
        %v1838 = vrot.slane %v1822, %v1837
        %v1840 = vunpack.c.l.s4 1966171168
        %v1841 = vunpack.c.0.s8 %v1840
        %v1842 = vlaneseq
        %v1843 = vshrl.u32 %v1842, 7
        %v1844 = vsub.s32 %v1841, %v1843
        %v1845 = vrot.slane %v1823, %v1844
        %v1847 = vunpack.c.l.s4 1966171168
        %v1848 = vunpack.c.0.s8 %v1847
        %v1849 = vlaneseq
        %v1850 = vshrl.u32 %v1849, 7
        %v1851 = vsub.s32 %v1848, %v1850
        %v1852 = vrot.slane %v1824, %v1851
        %v1853 = vcombine.high %v1831, %v1831
        %v1854 = vcombine.high %v1838, %v1838
        %v1855 = vcombine.high %v1845, %v1845
        %v1856 = vcombine.high %v1852, %v1852
        %1865 = vst [vmem:[#allocation3] sm:$0x1] %v1831
        %1866 = vst [vmem:[#allocation3 + $0x10] sm:$0x1] %v1845
        %1867 = vst [vmem:[#allocation3 + $0x20] sm:$0x1] %v1853
        %1868 = vst [vmem:[#allocation3 + $0x30] sm:$0x1] %v1855
        %1869 = vst [vmem:[#allocation3 + $0x40] sm:$0x1] %v1838
        %1870 = vst [vmem:[#allocation3 + $0x50] sm:$0x1] %v1852
        %1871 = vst [vmem:[#allocation3 + $0x60] sm:$0x1] %v1854
        %1872 = vst [vmem:[#allocation3 + $0x70] sm:$0x1] %v1856
        %v1874 = vcombine.high %v1806, %v1806
        %v1876 = vunpack.c.l.s4 1966171168
        %v1877 = vunpack.c.0.s8 %v1876
        %v1878 = vlaneseq
        %v1879 = vshrl.u32 %v1878, 7
        %v1880 = vsub.s32 %v1877, %v1879
        %v1881 = vrot.slane %v1806, %v1880
        %v1883 = vunpack.c.l.s4 1966171168
        %v1884 = vunpack.c.0.s8 %v1883
        %v1885 = vlaneseq
        %v1886 = vshrl.u32 %v1885, 7
        %v1887 = vsub.s32 %v1884, %v1886
        %v1888 = vrot.slane %v1874, %v1887
        %v1889 = vcombine.high %v1881, %v1881
        %v1890 = vcombine.high %v1888, %v1888
        %v1892 = vunpack.c.l.s4 1966171168
        %v1893 = vunpack.c.0.s8 %v1892
        %v1894 = vlaneseq
        %v1895 = vshrl.u32 %v1894, 7
        %v1896 = vsub.s32 %v1893, %v1895
        %v1897 = vrot.slane %v1881, %v1896
        %v1899 = vunpack.c.l.s4 1966171168
        %v1900 = vunpack.c.0.s8 %v1899
        %v1901 = vlaneseq
        %v1902 = vshrl.u32 %v1901, 7
        %v1903 = vsub.s32 %v1900, %v1902
        %v1904 = vrot.slane %v1888, %v1903
        %v1906 = vunpack.c.l.s4 1966171168
        %v1907 = vunpack.c.0.s8 %v1906
        %v1908 = vlaneseq
        %v1909 = vshrl.u32 %v1908, 7
        %v1910 = vsub.s32 %v1907, %v1909
        %v1911 = vrot.slane %v1889, %v1910
        %v1913 = vunpack.c.l.s4 1966171168
        %v1914 = vunpack.c.0.s8 %v1913
        %v1915 = vlaneseq
        %v1916 = vshrl.u32 %v1915, 7
        %v1917 = vsub.s32 %v1914, %v1916
        %v1918 = vrot.slane %v1890, %v1917
        %v1919 = vcombine.high %v1897, %v1897
        %v1920 = vcombine.high %v1904, %v1904
        %v1921 = vcombine.high %v1911, %v1911
        %v1922 = vcombine.high %v1918, %v1918
        %1931 = vst [vmem:[#allocation3 + $0xf] sm:$0x1] %v1897
        %1932 = vst [vmem:[#allocation3 + $0x1f] sm:$0x1] %v1911
        %1933 = vst [vmem:[#allocation3 + $0x2f] sm:$0x1] %v1919
        %1934 = vst [vmem:[#allocation3 + $0x3f] sm:$0x1] %v1921
        %1935 = vst [vmem:[#allocation3 + $0x4f] sm:$0x1] %v1904
        %1936 = vst [vmem:[#allocation3 + $0x5f] sm:$0x1] %v1918
        %1937 = vst [vmem:[#allocation3 + $0x6f] sm:$0x1] %v1920
        %1938 = vst [vmem:[#allocation3 + $0x7f] sm:$0x1] %v1922
        %1939 = vmatprep.subr.mxu0 %v1011
        %1940 = vmatpush1.msra.mxu0 %v1010
        %1941 = vmatprep.subr.mxu0 %v1019
        %1942 = vmatpush1.msra.mxu0 %v1018
        %1943 = vmatprep.subr.mxu0 %v1027
        %1944 = vmatpush1.msra.mxu0 %v1026
        %1945 = vmatprep.subr.mxu0 %v1035
        %1946 = vmatpush1.msra.mxu0 %v1034
        %1947 = vmatprep.subr.mxu0 %v1043
        %1948 = vmatpush1.msra.mxu0 %v1042
        %1949 = vmatprep.subr.mxu0 %v1051
        %1950 = vmatpush1.msra.mxu0 %v1050
        %1951 = vmatprep.subr.mxu0 %v1059
        %1952 = vmatpush1.msra.mxu0 %v1058
        %1953 = vmatprep.subr.mxu0 %v1067
        %1954 = vmatpush1.msra.mxu0 %v1066
        %1955 = vmatprep.subr.mxu0 %v1075
        %1956 = vmatpush1.msra.mxu0 %v1074
        %1957 = vmatprep.subr.mxu0 %v1083
        %1958 = vmatpush1.msra.mxu0 %v1082
        %1959 = vmatprep.subr.mxu0 %v1091
        %1960 = vmatpush1.msra.mxu0 %v1090
        %1961 = vmatprep.subr.mxu0 %v1099
        %1962 = vmatpush1.msra.mxu0 %v1098
        %1963 = vmatprep.subr.mxu0 %v1107
        %1964 = vmatpush1.msra.mxu0 %v1106
        %1965 = vmatprep.subr.mxu0 %v1115
        %1966 = vmatpush1.msra.mxu0 %v1114
        %1967 = vmatprep.subr.mxu0 %v1123
        %1968 = vmatpush1.msra.mxu0 %v1122
        %1969 = vmatprep.subr.mxu0 %v1131
        %1970 = vmatpush1.msra.mxu0 %v1130
        %1971 = vmatprep.subr.mxu0 %v1139
        %1972 = vmatpush1.msra.mxu0 %v1138
        %1973 = vmatprep.subr.mxu0 %v1147
        %1974 = vmatpush1.msra.mxu0 %v1146
        %1975 = vmatprep.subr.mxu0 %v1155
        %1976 = vmatpush1.msra.mxu0 %v1154
        %1977 = vmatprep.subr.mxu0 %v1163
        %1978 = vmatpush1.msra.mxu0 %v1162
        %1979 = vmatprep.subr.mxu0 %v1171
        %1980 = vmatpush1.msra.mxu0 %v1170
        %1981 = vmatprep.subr.mxu0 %v1179
        %1982 = vmatpush1.msra.mxu0 %v1178
        %1983 = vmatprep.subr.mxu0 %v1187
        %1984 = vmatpush1.msra.mxu0 %v1186
        %1985 = vmatprep.subr.mxu0 %v1195
        %1986 = vmatpush1.msra.mxu0 %v1194
        %1987 = vmatprep.subr.mxu0 %v1203
        %1988 = vmatpush1.msra.mxu0 %v1202
        %1989 = vmatprep.subr.mxu0 %v1211
        %1990 = vmatpush1.msra.mxu0 %v1210
        %1991 = vmatprep.subr.mxu0 %v1219
        %1992 = vmatpush1.msra.mxu0 %v1218
        %1993 = vmatprep.subr.mxu0 %v1227
        %1994 = vmatpush1.msra.mxu0 %v1226
        %1995 = vmatprep.subr.mxu0 %v1235
        %1996 = vmatpush1.msra.mxu0 %v1234
        %1997 = vmatprep.subr.mxu0 %v1243
        %1998 = vmatpush1.msra.mxu0 %v1242
        %1999 = vmatprep.subr.mxu0 %v1251
        %2000 = vmatpush1.msra.mxu0 %v1250
        %2001 = vmatprep.subr.mxu0 %v1259
        %2002 = vmatpush1.msra.mxu0 %v1258
        %2003 = vmatprep.mubr.f32.mxu0 %v1806
        %2004 = vmatmul.mubr.f32.gmra.mrb[0].mxu0 %v1782
        %v2005 = vpop.f32.mrb[0].mxu0
        %v2006 = vadd.f32 0.0, %v2005
        %v2007 = vpop.f32.mrb[0].mxu0
        %v2008 = vadd.f32 0.0, %v2007
        %2009 = vdwg.mxu0
        %2010 = vmatprep.subr.mxu0 %v1013
        %2011 = vmatpush1.msra.mxu0 %v1012
        %2012 = vmatprep.subr.mxu0 %v1021
        %2013 = vmatpush1.msra.mxu0 %v1020
        %2014 = vmatprep.subr.mxu0 %v1029
        %2015 = vmatpush1.msra.mxu0 %v1028
        %2016 = vmatprep.subr.mxu0 %v1037
        %2017 = vmatpush1.msra.mxu0 %v1036
        %2018 = vmatprep.subr.mxu0 %v1045
        %2019 = vmatpush1.msra.mxu0 %v1044
        %2020 = vmatprep.subr.mxu0 %v1053
        %2021 = vmatpush1.msra.mxu0 %v1052
        %2022 = vmatprep.subr.mxu0 %v1061
        %2023 = vmatpush1.msra.mxu0 %v1060
        %2024 = vmatprep.subr.mxu0 %v1069
        %2025 = vmatpush1.msra.mxu0 %v1068
        %2026 = vmatprep.subr.mxu0 %v1077
        %2027 = vmatpush1.msra.mxu0 %v1076
        %2028 = vmatprep.subr.mxu0 %v1085
        %2029 = vmatpush1.msra.mxu0 %v1084
        %2030 = vmatprep.subr.mxu0 %v1093
        %2031 = vmatpush1.msra.mxu0 %v1092
        %2032 = vmatprep.subr.mxu0 %v1101
        %2033 = vmatpush1.msra.mxu0 %v1100
        %2034 = vmatprep.subr.mxu0 %v1109
        %2035 = vmatpush1.msra.mxu0 %v1108
        %2036 = vmatprep.subr.mxu0 %v1117
        %2037 = vmatpush1.msra.mxu0 %v1116
        %2038 = vmatprep.subr.mxu0 %v1125
        %2039 = vmatpush1.msra.mxu0 %v1124
        %2040 = vmatprep.subr.mxu0 %v1133
        %2041 = vmatpush1.msra.mxu0 %v1132
        %2042 = vmatprep.subr.mxu0 %v1141
        %2043 = vmatpush1.msra.mxu0 %v1140
        %2044 = vmatprep.subr.mxu0 %v1149
        %2045 = vmatpush1.msra.mxu0 %v1148
        %2046 = vmatprep.subr.mxu0 %v1157
        %2047 = vmatpush1.msra.mxu0 %v1156
        %2048 = vmatprep.subr.mxu0 %v1165
        %2049 = vmatpush1.msra.mxu0 %v1164
        %2050 = vmatprep.subr.mxu0 %v1173
        %2051 = vmatpush1.msra.mxu0 %v1172
        %2052 = vmatprep.subr.mxu0 %v1181
        %2053 = vmatpush1.msra.mxu0 %v1180
        %2054 = vmatprep.subr.mxu0 %v1189
        %2055 = vmatpush1.msra.mxu0 %v1188
        %2056 = vmatprep.subr.mxu0 %v1197
        %2057 = vmatpush1.msra.mxu0 %v1196
        %2058 = vmatprep.subr.mxu0 %v1205
        %2059 = vmatpush1.msra.mxu0 %v1204
        %2060 = vmatprep.subr.mxu0 %v1213
        %2061 = vmatpush1.msra.mxu0 %v1212
        %2062 = vmatprep.subr.mxu0 %v1221
        %2063 = vmatpush1.msra.mxu0 %v1220
        %2064 = vmatprep.subr.mxu0 %v1229
        %2065 = vmatpush1.msra.mxu0 %v1228
        %2066 = vmatprep.subr.mxu0 %v1237
        %2067 = vmatpush1.msra.mxu0 %v1236
        %2068 = vmatprep.subr.mxu0 %v1245
        %2069 = vmatpush1.msra.mxu0 %v1244
        %2070 = vmatprep.subr.mxu0 %v1253
        %2071 = vmatpush1.msra.mxu0 %v1252
        %2072 = vmatprep.subr.mxu0 %v1261
        %2073 = vmatpush1.msra.mxu0 %v1260
        %2074 = vmatprep.mubr.f32.mxu0 %v1806
        %2075 = vmatmul.mubr.f32.gmra.mrb[0].mxu0 %v1782
        %v2076 = vpop.f32.mrb[0].mxu0
        %v2077 = vadd.f32 0.0, %v2076
        %v2078 = vpop.f32.mrb[0].mxu0
        %v2079 = vadd.f32 0.0, %v2078
        %2080 = vdwg.mxu0
        %2081 = vmatprep.subr.mxu0 %v1015
        %2082 = vmatpush1.msra.mxu0 %v1014
        %2083 = vmatprep.subr.mxu0 %v1023
        %2084 = vmatpush1.msra.mxu0 %v1022
        %2085 = vmatprep.subr.mxu0 %v1031
        %2086 = vmatpush1.msra.mxu0 %v1030
        %2087 = vmatprep.subr.mxu0 %v1039
        %2088 = vmatpush1.msra.mxu0 %v1038
        %2089 = vmatprep.subr.mxu0 %v1047
        %2090 = vmatpush1.msra.mxu0 %v1046
        %2091 = vmatprep.subr.mxu0 %v1055
        %2092 = vmatpush1.msra.mxu0 %v1054
        %2093 = vmatprep.subr.mxu0 %v1063
        %2094 = vmatpush1.msra.mxu0 %v1062
        %2095 = vmatprep.subr.mxu0 %v1071
        %2096 = vmatpush1.msra.mxu0 %v1070
        %2097 = vmatprep.subr.mxu0 %v1079
        %2098 = vmatpush1.msra.mxu0 %v1078
        %2099 = vmatprep.subr.mxu0 %v1087
        %2100 = vmatpush1.msra.mxu0 %v1086
        %2101 = vmatprep.subr.mxu0 %v1095
        %2102 = vmatpush1.msra.mxu0 %v1094
        %2103 = vmatprep.subr.mxu0 %v1103
        %2104 = vmatpush1.msra.mxu0 %v1102
        %2105 = vmatprep.subr.mxu0 %v1111
        %2106 = vmatpush1.msra.mxu0 %v1110
        %2107 = vmatprep.subr.mxu0 %v1119
        %2108 = vmatpush1.msra.mxu0 %v1118
        %2109 = vmatprep.subr.mxu0 %v1127
        %2110 = vmatpush1.msra.mxu0 %v1126
        %2111 = vmatprep.subr.mxu0 %v1135
        %2112 = vmatpush1.msra.mxu0 %v1134
        %2113 = vmatprep.subr.mxu0 %v1143
        %2114 = vmatpush1.msra.mxu0 %v1142
        %2115 = vmatprep.subr.mxu0 %v1151
        %2116 = vmatpush1.msra.mxu0 %v1150
        %2117 = vmatprep.subr.mxu0 %v1159
        %2118 = vmatpush1.msra.mxu0 %v1158
        %2119 = vmatprep.subr.mxu0 %v1167
        %2120 = vmatpush1.msra.mxu0 %v1166
        %2121 = vmatprep.subr.mxu0 %v1175
        %2122 = vmatpush1.msra.mxu0 %v1174
        %2123 = vmatprep.subr.mxu0 %v1183
        %2124 = vmatpush1.msra.mxu0 %v1182
        %2125 = vmatprep.subr.mxu0 %v1191
        %2126 = vmatpush1.msra.mxu0 %v1190
        %2127 = vmatprep.subr.mxu0 %v1199
        %2128 = vmatpush1.msra.mxu0 %v1198
        %2129 = vmatprep.subr.mxu0 %v1207
        %2130 = vmatpush1.msra.mxu0 %v1206
        %2131 = vmatprep.subr.mxu0 %v1215
        %2132 = vmatpush1.msra.mxu0 %v1214
        %2133 = vmatprep.subr.mxu0 %v1223
        %2134 = vmatpush1.msra.mxu0 %v1222
        %2135 = vmatprep.subr.mxu0 %v1231
        %2136 = vmatpush1.msra.mxu0 %v1230
        %2137 = vmatprep.subr.mxu0 %v1239
        %2138 = vmatpush1.msra.mxu0 %v1238
        %2139 = vmatprep.subr.mxu0 %v1247
        %2140 = vmatpush1.msra.mxu0 %v1246
        %2141 = vmatprep.subr.mxu0 %v1255
        %2142 = vmatpush1.msra.mxu0 %v1254
        %2143 = vmatprep.subr.mxu0 %v1263
        %2144 = vmatpush1.msra.mxu0 %v1262
        %2145 = vmatprep.mubr.f32.mxu0 %v1806
        %2146 = vmatmul.mubr.f32.gmra.mrb[0].mxu0 %v1782
        %v2147 = vpop.f32.mrb[0].mxu0
        %v2148 = vadd.f32 0.0, %v2147
        %v2149 = vpop.f32.mrb[0].mxu0
        %v2150 = vadd.f32 0.0, %v2149
        %2151 = vdwg.mxu0
        %2152 = vmatprep.subr.mxu0 %v1017
        %2153 = vmatpush1.msra.mxu0 %v1016
        %2154 = vmatprep.subr.mxu0 %v1025
        %2155 = vmatpush1.msra.mxu0 %v1024
        %2156 = vmatprep.subr.mxu0 %v1033
        %2157 = vmatpush1.msra.mxu0 %v1032
        %2158 = vmatprep.subr.mxu0 %v1041
        %2159 = vmatpush1.msra.mxu0 %v1040
        %2160 = vmatprep.subr.mxu0 %v1049
        %2161 = vmatpush1.msra.mxu0 %v1048
        %2162 = vmatprep.subr.mxu0 %v1057
        %2163 = vmatpush1.msra.mxu0 %v1056
        %2164 = vmatprep.subr.mxu0 %v1065
        %2165 = vmatpush1.msra.mxu0 %v1064
        %2166 = vmatprep.subr.mxu0 %v1073
        %2167 = vmatpush1.msra.mxu0 %v1072
        %2168 = vmatprep.subr.mxu0 %v1081
        %2169 = vmatpush1.msra.mxu0 %v1080
        %2170 = vmatprep.subr.mxu0 %v1089
        %2171 = vmatpush1.msra.mxu0 %v1088
        %2172 = vmatprep.subr.mxu0 %v1097
        %2173 = vmatpush1.msra.mxu0 %v1096
        %2174 = vmatprep.subr.mxu0 %v1105
        %2175 = vmatpush1.msra.mxu0 %v1104
        %2176 = vmatprep.subr.mxu0 %v1113
        %2177 = vmatpush1.msra.mxu0 %v1112
        %2178 = vmatprep.subr.mxu0 %v1121
        %2179 = vmatpush1.msra.mxu0 %v1120
        %2180 = vmatprep.subr.mxu0 %v1129
        %2181 = vmatpush1.msra.mxu0 %v1128
        %2182 = vmatprep.subr.mxu0 %v1137
        %2183 = vmatpush1.msra.mxu0 %v1136
        %2184 = vmatprep.subr.mxu0 %v1145
        %2185 = vmatpush1.msra.mxu0 %v1144
        %2186 = vmatprep.subr.mxu0 %v1153
        %2187 = vmatpush1.msra.mxu0 %v1152
        %2188 = vmatprep.subr.mxu0 %v1161
        %2189 = vmatpush1.msra.mxu0 %v1160
        %2190 = vmatprep.subr.mxu0 %v1169
        %2191 = vmatpush1.msra.mxu0 %v1168
        %2192 = vmatprep.subr.mxu0 %v1177
        %2193 = vmatpush1.msra.mxu0 %v1176
        %2194 = vmatprep.subr.mxu0 %v1185
        %2195 = vmatpush1.msra.mxu0 %v1184
        %2196 = vmatprep.subr.mxu0 %v1193
        %2197 = vmatpush1.msra.mxu0 %v1192
        %2198 = vmatprep.subr.mxu0 %v1201
        %2199 = vmatpush1.msra.mxu0 %v1200
        %2200 = vmatprep.subr.mxu0 %v1209
        %2201 = vmatpush1.msra.mxu0 %v1208
        %2202 = vmatprep.subr.mxu0 %v1217
        %2203 = vmatpush1.msra.mxu0 %v1216
        %2204 = vmatprep.subr.mxu0 %v1225
        %2205 = vmatpush1.msra.mxu0 %v1224
        %2206 = vmatprep.subr.mxu0 %v1233
        %2207 = vmatpush1.msra.mxu0 %v1232
        %2208 = vmatprep.subr.mxu0 %v1241
        %2209 = vmatpush1.msra.mxu0 %v1240
        %2210 = vmatprep.subr.mxu0 %v1249
        %2211 = vmatpush1.msra.mxu0 %v1248
        %2212 = vmatprep.subr.mxu0 %v1257
        %2213 = vmatpush1.msra.mxu0 %v1256
        %2214 = vmatprep.subr.mxu0 %v1265
        %2215 = vmatpush1.msra.mxu0 %v1264
        %2216 = vmatprep.mubr.f32.mxu0 %v1806
        %2217 = vmatmul.mubr.f32.gmra.mrb[0].mxu0 %v1782
        %v2218 = vpop.f32.mrb[0].mxu0
        %v2219 = vadd.f32 0.0, %v2218
        %v2220 = vpop.f32.mrb[0].mxu0
        %v2221 = vadd.f32 0.0, %v2220
        %2222 = vdwg.mxu0
        %s2223 = scalar_lea.vmem [#allocation2], 1
        %v2224 = vld [vmem:[%s2223] ss:$8 sm:$0xf]
        %s2225 = scalar_lea.vmem [#allocation2], 65
        %v2226 = vld [vmem:[%s2225] ss:$8 sm:$0xf]
        %s2227 = scalar_lea.vmem [#allocation2], 129
        %v2228 = vld [vmem:[%s2227] ss:$8 sm:$0xf]
        %s2229 = scalar_lea.vmem [#allocation2], 193
        %v2230 = vld [vmem:[%s2229] ss:$8 sm:$0xf]
        %s2231 = scalar_lea.vmem [#allocation2], 257
        %v2232 = vld [vmem:[%s2231] ss:$8 sm:$0xf]
        %s2233 = scalar_lea.vmem [#allocation2], 321
        %v2234 = vld [vmem:[%s2233] ss:$8 sm:$0xf]
        %s2235 = scalar_lea.vmem [#allocation2], 385
        %v2236 = vld [vmem:[%s2235] ss:$8 sm:$0xf]
        %s2237 = scalar_lea.vmem [#allocation2], 449
        %v2238 = vld [vmem:[%s2237] ss:$8 sm:$0xf]
        %v2247 = vcombine.low %v2224, %v2226
        %v2248 = vcombine.low %v2228, %v2230
        %v2249 = vcombine.low %v2232, %v2234
        %v2250 = vcombine.low %v2236, %v2238
        %v2252 = vunpack.c.l.s4 1966171168
        %v2253 = vunpack.c.0.s8 %v2252
        %v2254 = vlaneseq
        %v2255 = vshrl.u32 %v2254, 7
        %v2256 = vsub.s32 %v2253, %v2255
        %v2257 = vrot.slane %v2247, %v2256
        %v2259 = vunpack.c.l.s4 1966171168
        %v2260 = vunpack.c.0.s8 %v2259
        %v2261 = vlaneseq
        %v2262 = vshrl.u32 %v2261, 7
        %v2263 = vsub.s32 %v2260, %v2262
        %v2264 = vrot.slane %v2248, %v2263
        %v2266 = vunpack.c.l.s4 1966171168
        %v2267 = vunpack.c.0.s8 %v2266
        %v2268 = vlaneseq
        %v2269 = vshrl.u32 %v2268, 7
        %v2270 = vsub.s32 %v2267, %v2269
        %v2271 = vrot.slane %v2249, %v2270
        %v2273 = vunpack.c.l.s4 1966171168
        %v2274 = vunpack.c.0.s8 %v2273
        %v2275 = vlaneseq
        %v2276 = vshrl.u32 %v2275, 7
        %v2277 = vsub.s32 %v2274, %v2276
        %v2278 = vrot.slane %v2250, %v2277
        %v2279 = vcombine.low %v2257, %v2264
        %v2280 = vcombine.high %v2257, %v2264
        %v2281 = vcombine.low %v2271, %v2278
        %v2282 = vcombine.high %v2271, %v2278
        %v2284 = vunpack.c.l.s4 1966171168
        %v2285 = vunpack.c.0.s8 %v2284
        %v2286 = vlaneseq
        %v2287 = vshrl.u32 %v2286, 7
        %v2288 = vsub.s32 %v2285, %v2287
        %v2289 = vrot.slane %v2279, %v2288
        %v2291 = vunpack.c.l.s4 1966171168
        %v2292 = vunpack.c.0.s8 %v2291
        %v2293 = vlaneseq
        %v2294 = vshrl.u32 %v2293, 7
        %v2295 = vsub.s32 %v2292, %v2294
        %v2296 = vrot.slane %v2280, %v2295
        %v2298 = vunpack.c.l.s4 1966171168
        %v2299 = vunpack.c.0.s8 %v2298
        %v2300 = vlaneseq
        %v2301 = vshrl.u32 %v2300, 7
        %v2302 = vsub.s32 %v2299, %v2301
        %v2303 = vrot.slane %v2281, %v2302
        %v2305 = vunpack.c.l.s4 1966171168
        %v2306 = vunpack.c.0.s8 %v2305
        %v2307 = vlaneseq
        %v2308 = vshrl.u32 %v2307, 7
        %v2309 = vsub.s32 %v2306, %v2308
        %v2310 = vrot.slane %v2282, %v2309
        %v2311 = vcombine.low %v2289, %v2303
        %v2312 = vcombine.high %v2289, %v2303
        %v2313 = vcombine.low %v2296, %v2310
        %v2314 = vcombine.high %v2296, %v2310
        %v2319 = vadd.f32 %v2006, %v2311
        %v2320 = vadd.f32 %v2008, %v2313
        %v2321 = vadd.f32 %v2077, %v2312
        %v2322 = vadd.f32 %v2079, %v2314
        %s2323 = scalar_lea.vmem [#allocation2], 38
        %v2324 = vld [vmem:[%s2323] ss:$8 sm:$0xf]
        %s2325 = scalar_lea.vmem [#allocation2], 102
        %v2326 = vld [vmem:[%s2325] ss:$8 sm:$0xf]
        %s2327 = scalar_lea.vmem [#allocation2], 166
        %v2328 = vld [vmem:[%s2327] ss:$8 sm:$0xf]
        %s2329 = scalar_lea.vmem [#allocation2], 230
        %v2330 = vld [vmem:[%s2329] ss:$8 sm:$0xf]
        %s2331 = scalar_lea.vmem [#allocation2], 294
        %v2332 = vld [vmem:[%s2331] ss:$8 sm:$0xf]
        %s2333 = scalar_lea.vmem [#allocation2], 358
        %v2334 = vld [vmem:[%s2333] ss:$8 sm:$0xf]
        %s2335 = scalar_lea.vmem [#allocation2], 422
        %v2336 = vld [vmem:[%s2335] ss:$8 sm:$0xf]
        %s2337 = scalar_lea.vmem [#allocation2], 486
        %v2338 = vld [vmem:[%s2337] ss:$8 sm:$0xf]
        %v2347 = vcombine.low %v2324, %v2326
        %v2348 = vcombine.low %v2328, %v2330
        %v2349 = vcombine.low %v2332, %v2334
        %v2350 = vcombine.low %v2336, %v2338
        %v2352 = vunpack.c.l.s4 1966171168
        %v2353 = vunpack.c.0.s8 %v2352
        %v2354 = vlaneseq
        %v2355 = vshrl.u32 %v2354, 7
        %v2356 = vsub.s32 %v2353, %v2355
        %v2357 = vrot.slane %v2347, %v2356
        %v2359 = vunpack.c.l.s4 1966171168
        %v2360 = vunpack.c.0.s8 %v2359
        %v2361 = vlaneseq
        %v2362 = vshrl.u32 %v2361, 7
        %v2363 = vsub.s32 %v2360, %v2362
        %v2364 = vrot.slane %v2348, %v2363
        %v2366 = vunpack.c.l.s4 1966171168
        %v2367 = vunpack.c.0.s8 %v2366
        %v2368 = vlaneseq
        %v2369 = vshrl.u32 %v2368, 7
        %v2370 = vsub.s32 %v2367, %v2369
        %v2371 = vrot.slane %v2349, %v2370
        %v2373 = vunpack.c.l.s4 1966171168
        %v2374 = vunpack.c.0.s8 %v2373
        %v2375 = vlaneseq
        %v2376 = vshrl.u32 %v2375, 7
        %v2377 = vsub.s32 %v2374, %v2376
        %v2378 = vrot.slane %v2350, %v2377
        %v2379 = vcombine.low %v2357, %v2364
        %v2380 = vcombine.high %v2357, %v2364
        %v2381 = vcombine.low %v2371, %v2378
        %v2382 = vcombine.high %v2371, %v2378
        %v2384 = vunpack.c.l.s4 1966171168
        %v2385 = vunpack.c.0.s8 %v2384
        %v2386 = vlaneseq
        %v2387 = vshrl.u32 %v2386, 7
        %v2388 = vsub.s32 %v2385, %v2387
        %v2389 = vrot.slane %v2379, %v2388
        %v2391 = vunpack.c.l.s4 1966171168
        %v2392 = vunpack.c.0.s8 %v2391
        %v2393 = vlaneseq
        %v2394 = vshrl.u32 %v2393, 7
        %v2395 = vsub.s32 %v2392, %v2394
        %v2396 = vrot.slane %v2380, %v2395
        %v2398 = vunpack.c.l.s4 1966171168
        %v2399 = vunpack.c.0.s8 %v2398
        %v2400 = vlaneseq
        %v2401 = vshrl.u32 %v2400, 7
        %v2402 = vsub.s32 %v2399, %v2401
        %v2403 = vrot.slane %v2381, %v2402
        %v2405 = vunpack.c.l.s4 1966171168
        %v2406 = vunpack.c.0.s8 %v2405
        %v2407 = vlaneseq
        %v2408 = vshrl.u32 %v2407, 7
        %v2409 = vsub.s32 %v2406, %v2408
        %v2410 = vrot.slane %v2382, %v2409
        %v2411 = vcombine.low %v2389, %v2403
        %v2412 = vcombine.high %v2389, %v2403
        %v2413 = vcombine.low %v2396, %v2410
        %v2414 = vcombine.high %v2396, %v2410
        %v2419 = vadd.f32 %v2148, %v2411
        %v2420 = vadd.f32 %v2150, %v2413
        %v2421 = vadd.f32 %v2219, %v2412
        %v2422 = vadd.f32 %v2221, %v2414
        %v2423 = vxor.u32 %v2319, 2147483648
        %v2424 = vmul.f32 %v2423, 1.442695
        %v2425 = vpow.pop %v2424
        %v2426 = vadd.f32 %v2425, 1.0
        %v2427 = vrcp.pop %v2426
        %v2428 = vmul.f32 1.0, %v2427
        %v2429 = vxor.u32 %v2320, 2147483648
        %v2430 = vmul.f32 %v2429, 1.442695
        %v2431 = vpow.pop %v2430
        %v2432 = vadd.f32 %v2431, 1.0
        %v2433 = vrcp.pop %v2432
        %v2434 = vmul.f32 1.0, %v2433
        %v2435 = vtanh.pop %v2321
        %v2436 = vxor.u32 %v2322, 2147483648
        %v2437 = vmul.f32 %v2436, 1.442695
        %v2438 = vpow.pop %v2437
        %v2439 = vadd.f32 %v2438, 1.0
        %v2440 = vrcp.pop %v2439
        %v2441 = vmul.f32 1.0, %v2440
        %v2442 = vmul.f32 %v2434, %v1780
        %v2443 = vmul.f32 %v2428, %v2435
        %v2444 = vadd.f32 %v2442, %v2443
        %v2445 = vtanh.pop %v2444
        %v2446 = vmul.f32 %v2441, %v2445
        %v2447 = vxor.u32 %v2419, 2147483648
        %v2448 = vmul.f32 %v2447, 1.442695
        %v2449 = vpow.pop %v2448
        %v2450 = vadd.f32 %v2449, 1.0
        %v2451 = vrcp.pop %v2450
        %v2452 = vmul.f32 1.0, %v2451
        %v2453 = vxor.u32 %v2420, 2147483648
        %v2454 = vmul.f32 %v2453, 1.442695
        %v2455 = vpow.pop %v2454
        %v2456 = vadd.f32 %v2455, 1.0
        %v2457 = vrcp.pop %v2456
        %v2458 = vmul.f32 1.0, %v2457
        %v2459 = vtanh.pop %v2421
        %v2460 = vxor.u32 %v2422, 2147483648
        %v2461 = vmul.f32 %v2460, 1.442695
        %v2462 = vpow.pop %v2461
        %v2463 = vadd.f32 %v2462, 1.0
        %v2464 = vrcp.pop %v2463
        %v2465 = vmul.f32 1.0, %v2464
        %v2466 = vmul.f32 %v2458, %v1804
        %v2467 = vmul.f32 %v2452, %v2459
        %v2468 = vadd.f32 %v2466, %v2467
        %v2469 = vtanh.pop %v2468
        %v2470 = vmul.f32 %v2465, %v2469
        %v2472 = vcombine.high %v2446, %v2446
        %v2474 = vunpack.c.l.s4 1966171168
        %v2475 = vunpack.c.0.s8 %v2474
        %v2476 = vlaneseq
        %v2477 = vshrl.u32 %v2476, 7
        %v2478 = vsub.s32 %v2475, %v2477
        %v2479 = vrot.slane %v2446, %v2478
        %v2481 = vunpack.c.l.s4 1966171168
        %v2482 = vunpack.c.0.s8 %v2481
        %v2483 = vlaneseq
        %v2484 = vshrl.u32 %v2483, 7
        %v2485 = vsub.s32 %v2482, %v2484
        %v2486 = vrot.slane %v2472, %v2485
        %v2487 = vcombine.high %v2479, %v2479
        %v2488 = vcombine.high %v2486, %v2486
        %v2490 = vunpack.c.l.s4 1966171168
        %v2491 = vunpack.c.0.s8 %v2490
        %v2492 = vlaneseq
        %v2493 = vshrl.u32 %v2492, 7
        %v2494 = vsub.s32 %v2491, %v2493
        %v2495 = vrot.slane %v2479, %v2494
        %v2497 = vunpack.c.l.s4 1966171168
        %v2498 = vunpack.c.0.s8 %v2497
        %v2499 = vlaneseq
        %v2500 = vshrl.u32 %v2499, 7
        %v2501 = vsub.s32 %v2498, %v2500
        %v2502 = vrot.slane %v2486, %v2501
        %v2504 = vunpack.c.l.s4 1966171168
        %v2505 = vunpack.c.0.s8 %v2504
        %v2506 = vlaneseq
        %v2507 = vshrl.u32 %v2506, 7
        %v2508 = vsub.s32 %v2505, %v2507
        %v2509 = vrot.slane %v2487, %v2508
        %v2511 = vunpack.c.l.s4 1966171168
        %v2512 = vunpack.c.0.s8 %v2511
        %v2513 = vlaneseq
        %v2514 = vshrl.u32 %v2513, 7
        %v2515 = vsub.s32 %v2512, %v2514
        %v2516 = vrot.slane %v2488, %v2515
        %v2517 = vcombine.high %v2495, %v2495
        %v2518 = vcombine.high %v2502, %v2502
        %v2519 = vcombine.high %v2509, %v2509
        %v2520 = vcombine.high %v2516, %v2516
        %2529 = vst [vmem:[#allocation3 + $0x1] sm:$0x1] %v2495
        %2530 = vst [vmem:[#allocation3 + $0x11] sm:$0x1] %v2509
        %2531 = vst [vmem:[#allocation3 + $0x21] sm:$0x1] %v2517
        %2532 = vst [vmem:[#allocation3 + $0x31] sm:$0x1] %v2519
        %2533 = vst [vmem:[#allocation3 + $0x41] sm:$0x1] %v2502
        %2534 = vst [vmem:[#allocation3 + $0x51] sm:$0x1] %v2516
        %2535 = vst [vmem:[#allocation3 + $0x61] sm:$0x1] %v2518
        %2536 = vst [vmem:[#allocation3 + $0x71] sm:$0x1] %v2520
        %v2538 = vcombine.high %v2470, %v2470
        %v2540 = vunpack.c.l.s4 1966171168
        %v2541 = vunpack.c.0.s8 %v2540
        %v2542 = vlaneseq
        %v2543 = vshrl.u32 %v2542, 7
        %v2544 = vsub.s32 %v2541, %v2543
        %v2545 = vrot.slane %v2470, %v2544
        %v2547 = vunpack.c.l.s4 1966171168
        %v2548 = vunpack.c.0.s8 %v2547
        %v2549 = vlaneseq
        %v2550 = vshrl.u32 %v2549, 7
        %v2551 = vsub.s32 %v2548, %v2550
        %v2552 = vrot.slane %v2538, %v2551
        %v2553 = vcombine.high %v2545, %v2545
        %v2554 = vcombine.high %v2552, %v2552
        %v2556 = vunpack.c.l.s4 1966171168
        %v2557 = vunpack.c.0.s8 %v2556
        %v2558 = vlaneseq
        %v2559 = vshrl.u32 %v2558, 7
        %v2560 = vsub.s32 %v2557, %v2559
        %v2561 = vrot.slane %v2545, %v2560
        %v2563 = vunpack.c.l.s4 1966171168
        %v2564 = vunpack.c.0.s8 %v2563
        %v2565 = vlaneseq
        %v2566 = vshrl.u32 %v2565, 7
        %v2567 = vsub.s32 %v2564, %v2566
        %v2568 = vrot.slane %v2552, %v2567
        %v2570 = vunpack.c.l.s4 1966171168
        %v2571 = vunpack.c.0.s8 %v2570
        %v2572 = vlaneseq
        %v2573 = vshrl.u32 %v2572, 7
        %v2574 = vsub.s32 %v2571, %v2573
        %v2575 = vrot.slane %v2553, %v2574
        %v2577 = vunpack.c.l.s4 1966171168
        %v2578 = vunpack.c.0.s8 %v2577
        %v2579 = vlaneseq
        %v2580 = vshrl.u32 %v2579, 7
        %v2581 = vsub.s32 %v2578, %v2580
        %v2582 = vrot.slane %v2554, %v2581
        %v2583 = vcombine.high %v2561, %v2561
        %v2584 = vcombine.high %v2568, %v2568
        %v2585 = vcombine.high %v2575, %v2575
        %v2586 = vcombine.high %v2582, %v2582
        %2595 = vst [vmem:[#allocation3 + $0xe] sm:$0x1] %v2561
        %2596 = vst [vmem:[#allocation3 + $0x1e] sm:$0x1] %v2575
        %2597 = vst [vmem:[#allocation3 + $0x2e] sm:$0x1] %v2583
        %2598 = vst [vmem:[#allocation3 + $0x3e] sm:$0x1] %v2585
        %2599 = vst [vmem:[#allocation3 + $0x4e] sm:$0x1] %v2568
        %2600 = vst [vmem:[#allocation3 + $0x5e] sm:$0x1] %v2582
        %2601 = vst [vmem:[#allocation3 + $0x6e] sm:$0x1] %v2584
        %2602 = vst [vmem:[#allocation3 + $0x7e] sm:$0x1] %v2586
        %2603 = vmatprep.subr.mxu0 %v1011
        %2604 = vmatpush1.msra.mxu0 %v1010
        %2605 = vmatprep.subr.mxu0 %v1019
        %2606 = vmatpush1.msra.mxu0 %v1018
        %2607 = vmatprep.subr.mxu0 %v1027
        %2608 = vmatpush1.msra.mxu0 %v1026
        %2609 = vmatprep.subr.mxu0 %v1035
        %2610 = vmatpush1.msra.mxu0 %v1034
        %2611 = vmatprep.subr.mxu0 %v1043
        %2612 = vmatpush1.msra.mxu0 %v1042
        %2613 = vmatprep.subr.mxu0 %v1051
        %2614 = vmatpush1.msra.mxu0 %v1050
        %2615 = vmatprep.subr.mxu0 %v1059
        %2616 = vmatpush1.msra.mxu0 %v1058
        %2617 = vmatprep.subr.mxu0 %v1067
        %2618 = vmatpush1.msra.mxu0 %v1066
        %2619 = vmatprep.subr.mxu0 %v1075
        %2620 = vmatpush1.msra.mxu0 %v1074
        %2621 = vmatprep.subr.mxu0 %v1083
        %2622 = vmatpush1.msra.mxu0 %v1082
        %2623 = vmatprep.subr.mxu0 %v1091
        %2624 = vmatpush1.msra.mxu0 %v1090
        %2625 = vmatprep.subr.mxu0 %v1099
        %2626 = vmatpush1.msra.mxu0 %v1098
        %2627 = vmatprep.subr.mxu0 %v1107
        %2628 = vmatpush1.msra.mxu0 %v1106
        %2629 = vmatprep.subr.mxu0 %v1115
        %2630 = vmatpush1.msra.mxu0 %v1114
        %2631 = vmatprep.subr.mxu0 %v1123
        %2632 = vmatpush1.msra.mxu0 %v1122
        %2633 = vmatprep.subr.mxu0 %v1131
        %2634 = vmatpush1.msra.mxu0 %v1130
        %2635 = vmatprep.subr.mxu0 %v1139
        %2636 = vmatpush1.msra.mxu0 %v1138
        %2637 = vmatprep.subr.mxu0 %v1147
        %2638 = vmatpush1.msra.mxu0 %v1146
        %2639 = vmatprep.subr.mxu0 %v1155
        %2640 = vmatpush1.msra.mxu0 %v1154
        %2641 = vmatprep.subr.mxu0 %v1163
        %2642 = vmatpush1.msra.mxu0 %v1162
        %2643 = vmatprep.subr.mxu0 %v1171
        %2644 = vmatpush1.msra.mxu0 %v1170
        %2645 = vmatprep.subr.mxu0 %v1179
        %2646 = vmatpush1.msra.mxu0 %v1178
        %2647 = vmatprep.subr.mxu0 %v1187
        %2648 = vmatpush1.msra.mxu0 %v1186
        %2649 = vmatprep.subr.mxu0 %v1195
        %2650 = vmatpush1.msra.mxu0 %v1194
        %2651 = vmatprep.subr.mxu0 %v1203
        %2652 = vmatpush1.msra.mxu0 %v1202
        %2653 = vmatprep.subr.mxu0 %v1211
        %2654 = vmatpush1.msra.mxu0 %v1210
        %2655 = vmatprep.subr.mxu0 %v1219
        %2656 = vmatpush1.msra.mxu0 %v1218
        %2657 = vmatprep.subr.mxu0 %v1227
        %2658 = vmatpush1.msra.mxu0 %v1226
        %2659 = vmatprep.subr.mxu0 %v1235
        %2660 = vmatpush1.msra.mxu0 %v1234
        %2661 = vmatprep.subr.mxu0 %v1243
        %2662 = vmatpush1.msra.mxu0 %v1242
        %2663 = vmatprep.subr.mxu0 %v1251
        %2664 = vmatpush1.msra.mxu0 %v1250
        %2665 = vmatprep.subr.mxu0 %v1259
        %2666 = vmatpush1.msra.mxu0 %v1258
        %2667 = vmatprep.mubr.f32.mxu0 %v2470
        %2668 = vmatmul.mubr.f32.gmra.mrb[0].mxu0 %v2446
        %v2669 = vpop.f32.mrb[0].mxu0
        %v2670 = vadd.f32 0.0, %v2669
        %v2671 = vpop.f32.mrb[0].mxu0
        %v2672 = vadd.f32 0.0, %v2671
        %2673 = vdwg.mxu0
        %2674 = vmatprep.subr.mxu0 %v1013
        %2675 = vmatpush1.msra.mxu0 %v1012
        %2676 = vmatprep.subr.mxu0 %v1021
        %2677 = vmatpush1.msra.mxu0 %v1020
        %2678 = vmatprep.subr.mxu0 %v1029
        %2679 = vmatpush1.msra.mxu0 %v1028
        %2680 = vmatprep.subr.mxu0 %v1037
        %2681 = vmatpush1.msra.mxu0 %v1036
        %2682 = vmatprep.subr.mxu0 %v1045
        %2683 = vmatpush1.msra.mxu0 %v1044
        %2684 = vmatprep.subr.mxu0 %v1053
        %2685 = vmatpush1.msra.mxu0 %v1052
        %2686 = vmatprep.subr.mxu0 %v1061
        %2687 = vmatpush1.msra.mxu0 %v1060
        %2688 = vmatprep.subr.mxu0 %v1069
        %2689 = vmatpush1.msra.mxu0 %v1068
        %2690 = vmatprep.subr.mxu0 %v1077
        %2691 = vmatpush1.msra.mxu0 %v1076
        %2692 = vmatprep.subr.mxu0 %v1085
        %2693 = vmatpush1.msra.mxu0 %v1084
        %2694 = vmatprep.subr.mxu0 %v1093
        %2695 = vmatpush1.msra.mxu0 %v1092
        %2696 = vmatprep.subr.mxu0 %v1101
        %2697 = vmatpush1.msra.mxu0 %v1100
        %2698 = vmatprep.subr.mxu0 %v1109
        %2699 = vmatpush1.msra.mxu0 %v1108
        %2700 = vmatprep.subr.mxu0 %v1117
        %2701 = vmatpush1.msra.mxu0 %v1116
        %2702 = vmatprep.subr.mxu0 %v1125
        %2703 = vmatpush1.msra.mxu0 %v1124
        %2704 = vmatprep.subr.mxu0 %v1133
        %2705 = vmatpush1.msra.mxu0 %v1132
        %2706 = vmatprep.subr.mxu0 %v1141
        %2707 = vmatpush1.msra.mxu0 %v1140
        %2708 = vmatprep.subr.mxu0 %v1149
        %2709 = vmatpush1.msra.mxu0 %v1148
        %2710 = vmatprep.subr.mxu0 %v1157
        %2711 = vmatpush1.msra.mxu0 %v1156
        %2712 = vmatprep.subr.mxu0 %v1165
        %2713 = vmatpush1.msra.mxu0 %v1164
        %2714 = vmatprep.subr.mxu0 %v1173
        %2715 = vmatpush1.msra.mxu0 %v1172
        %2716 = vmatprep.subr.mxu0 %v1181
        %2717 = vmatpush1.msra.mxu0 %v1180
        %2718 = vmatprep.subr.mxu0 %v1189
        %2719 = vmatpush1.msra.mxu0 %v1188
        %2720 = vmatprep.subr.mxu0 %v1197
        %2721 = vmatpush1.msra.mxu0 %v1196
        %2722 = vmatprep.subr.mxu0 %v1205
        %2723 = vmatpush1.msra.mxu0 %v1204
        %2724 = vmatprep.subr.mxu0 %v1213
        %2725 = vmatpush1.msra.mxu0 %v1212
        %2726 = vmatprep.subr.mxu0 %v1221
        %2727 = vmatpush1.msra.mxu0 %v1220
        %2728 = vmatprep.subr.mxu0 %v1229
        %2729 = vmatpush1.msra.mxu0 %v1228
        %2730 = vmatprep.subr.mxu0 %v1237
        %2731 = vmatpush1.msra.mxu0 %v1236
        %2732 = vmatprep.subr.mxu0 %v1245
        %2733 = vmatpush1.msra.mxu0 %v1244
        %2734 = vmatprep.subr.mxu0 %v1253
        %2735 = vmatpush1.msra.mxu0 %v1252
        %2736 = vmatprep.subr.mxu0 %v1261
        %2737 = vmatpush1.msra.mxu0 %v1260
        %2738 = vmatprep.mubr.f32.mxu0 %v2470
        %2739 = vmatmul.mubr.f32.gmra.mrb[0].mxu0 %v2446
        %v2740 = vpop.f32.mrb[0].mxu0
        %v2741 = vadd.f32 0.0, %v2740
        %v2742 = vpop.f32.mrb[0].mxu0
        %v2743 = vadd.f32 0.0, %v2742
        %2744 = vdwg.mxu0
        %2745 = vmatprep.subr.mxu0 %v1015
        %2746 = vmatpush1.msra.mxu0 %v1014
        %2747 = vmatprep.subr.mxu0 %v1023
        %2748 = vmatpush1.msra.mxu0 %v1022
        %2749 = vmatprep.subr.mxu0 %v1031
        %2750 = vmatpush1.msra.mxu0 %v1030
        %2751 = vmatprep.subr.mxu0 %v1039
        %2752 = vmatpush1.msra.mxu0 %v1038
        %2753 = vmatprep.subr.mxu0 %v1047
        %2754 = vmatpush1.msra.mxu0 %v1046
        %2755 = vmatprep.subr.mxu0 %v1055
        %2756 = vmatpush1.msra.mxu0 %v1054
        %2757 = vmatprep.subr.mxu0 %v1063
        %2758 = vmatpush1.msra.mxu0 %v1062
        %2759 = vmatprep.subr.mxu0 %v1071
        %2760 = vmatpush1.msra.mxu0 %v1070
        %2761 = vmatprep.subr.mxu0 %v1079
        %2762 = vmatpush1.msra.mxu0 %v1078
        %2763 = vmatprep.subr.mxu0 %v1087
        %2764 = vmatpush1.msra.mxu0 %v1086
        %2765 = vmatprep.subr.mxu0 %v1095
        %2766 = vmatpush1.msra.mxu0 %v1094
        %2767 = vmatprep.subr.mxu0 %v1103
        %2768 = vmatpush1.msra.mxu0 %v1102
        %2769 = vmatprep.subr.mxu0 %v1111
        %2770 = vmatpush1.msra.mxu0 %v1110
        %2771 = vmatprep.subr.mxu0 %v1119
        %2772 = vmatpush1.msra.mxu0 %v1118
        %2773 = vmatprep.subr.mxu0 %v1127
        %2774 = vmatpush1.msra.mxu0 %v1126
        %2775 = vmatprep.subr.mxu0 %v1135
        %2776 = vmatpush1.msra.mxu0 %v1134
        %2777 = vmatprep.subr.mxu0 %v1143
        %2778 = vmatpush1.msra.mxu0 %v1142
        %2779 = vmatprep.subr.mxu0 %v1151
        %2780 = vmatpush1.msra.mxu0 %v1150
        %2781 = vmatprep.subr.mxu0 %v1159
        %2782 = vmatpush1.msra.mxu0 %v1158
        %2783 = vmatprep.subr.mxu0 %v1167
        %2784 = vmatpush1.msra.mxu0 %v1166
        %2785 = vmatprep.subr.mxu0 %v1175
        %2786 = vmatpush1.msra.mxu0 %v1174
        %2787 = vmatprep.subr.mxu0 %v1183
        %2788 = vmatpush1.msra.mxu0 %v1182
        %2789 = vmatprep.subr.mxu0 %v1191
        %2790 = vmatpush1.msra.mxu0 %v1190
        %2791 = vmatprep.subr.mxu0 %v1199
        %2792 = vmatpush1.msra.mxu0 %v1198
        %2793 = vmatprep.subr.mxu0 %v1207
        %2794 = vmatpush1.msra.mxu0 %v1206
        %2795 = vmatprep.subr.mxu0 %v1215
        %2796 = vmatpush1.msra.mxu0 %v1214
        %2797 = vmatprep.subr.mxu0 %v1223
        %2798 = vmatpush1.msra.mxu0 %v1222
        %2799 = vmatprep.subr.mxu0 %v1231
        %2800 = vmatpush1.msra.mxu0 %v1230
        %2801 = vmatprep.subr.mxu0 %v1239
        %2802 = vmatpush1.msra.mxu0 %v1238
        %2803 = vmatprep.subr.mxu0 %v1247
        %2804 = vmatpush1.msra.mxu0 %v1246
        %2805 = vmatprep.subr.mxu0 %v1255
        %2806 = vmatpush1.msra.mxu0 %v1254
        %2807 = vmatprep.subr.mxu0 %v1263
        %2808 = vmatpush1.msra.mxu0 %v1262
        %2809 = vmatprep.mubr.f32.mxu0 %v2470
        %2810 = vmatmul.mubr.f32.gmra.mrb[0].mxu0 %v2446
        %v2811 = vpop.f32.mrb[0].mxu0
        %v2812 = vadd.f32 0.0, %v2811
        %v2813 = vpop.f32.mrb[0].mxu0
        %v2814 = vadd.f32 0.0, %v2813
        %2815 = vdwg.mxu0
        %2816 = vmatprep.subr.mxu0 %v1017
        %2817 = vmatpush1.msra.mxu0 %v1016
        %2818 = vmatprep.subr.mxu0 %v1025
        %2819 = vmatpush1.msra.mxu0 %v1024
        %2820 = vmatprep.subr.mxu0 %v1033
        %2821 = vmatpush1.msra.mxu0 %v1032
        %2822 = vmatprep.subr.mxu0 %v1041
        %2823 = vmatpush1.msra.mxu0 %v1040
        %2824 = vmatprep.subr.mxu0 %v1049
        %2825 = vmatpush1.msra.mxu0 %v1048
        %2826 = vmatprep.subr.mxu0 %v1057
        %2827 = vmatpush1.msra.mxu0 %v1056
        %2828 = vmatprep.subr.mxu0 %v1065
        %2829 = vmatpush1.msra.mxu0 %v1064
        %2830 = vmatprep.subr.mxu0 %v1073
        %2831 = vmatpush1.msra.mxu0 %v1072
        %2832 = vmatprep.subr.mxu0 %v1081
        %2833 = vmatpush1.msra.mxu0 %v1080
        %2834 = vmatprep.subr.mxu0 %v1089
        %2835 = vmatpush1.msra.mxu0 %v1088
        %2836 = vmatprep.subr.mxu0 %v1097
        %2837 = vmatpush1.msra.mxu0 %v1096
        %2838 = vmatprep.subr.mxu0 %v1105
        %2839 = vmatpush1.msra.mxu0 %v1104
        %2840 = vmatprep.subr.mxu0 %v1113
        %2841 = vmatpush1.msra.mxu0 %v1112
        %2842 = vmatprep.subr.mxu0 %v1121
        %2843 = vmatpush1.msra.mxu0 %v1120
        %2844 = vmatprep.subr.mxu0 %v1129
        %2845 = vmatpush1.msra.mxu0 %v1128
        %2846 = vmatprep.subr.mxu0 %v1137
        %2847 = vmatpush1.msra.mxu0 %v1136
        %2848 = vmatprep.subr.mxu0 %v1145
        %2849 = vmatpush1.msra.mxu0 %v1144
        %2850 = vmatprep.subr.mxu0 %v1153
        %2851 = vmatpush1.msra.mxu0 %v1152
        %2852 = vmatprep.subr.mxu0 %v1161
        %2853 = vmatpush1.msra.mxu0 %v1160
        %2854 = vmatprep.subr.mxu0 %v1169
        %2855 = vmatpush1.msra.mxu0 %v1168
        %2856 = vmatprep.subr.mxu0 %v1177
        %2857 = vmatpush1.msra.mxu0 %v1176
        %2858 = vmatprep.subr.mxu0 %v1185
        %2859 = vmatpush1.msra.mxu0 %v1184
        %2860 = vmatprep.subr.mxu0 %v1193
        %2861 = vmatpush1.msra.mxu0 %v1192
        %2862 = vmatprep.subr.mxu0 %v1201
        %2863 = vmatpush1.msra.mxu0 %v1200
        %2864 = vmatprep.subr.mxu0 %v1209
        %2865 = vmatpush1.msra.mxu0 %v1208
        %2866 = vmatprep.subr.mxu0 %v1217
        %2867 = vmatpush1.msra.mxu0 %v1216
        %2868 = vmatprep.subr.mxu0 %v1225
        %2869 = vmatpush1.msra.mxu0 %v1224
        %2870 = vmatprep.subr.mxu0 %v1233
        %2871 = vmatpush1.msra.mxu0 %v1232
        %2872 = vmatprep.subr.mxu0 %v1241
        %2873 = vmatpush1.msra.mxu0 %v1240
        %2874 = vmatprep.subr.mxu0 %v1249
        %2875 = vmatpush1.msra.mxu0 %v1248
        %2876 = vmatprep.subr.mxu0 %v1257
        %2877 = vmatpush1.msra.mxu0 %v1256
        %2878 = vmatprep.subr.mxu0 %v1265
        %2879 = vmatpush1.msra.mxu0 %v1264
        %2880 = vmatprep.mubr.f32.mxu0 %v2470
        %2881 = vmatmul.mubr.f32.gmra.mrb[0].mxu0 %v2446
        %v2882 = vpop.f32.mrb[0].mxu0
        %v2883 = vadd.f32 0.0, %v2882
        %v2884 = vpop.f32.mrb[0].mxu0
        %v2885 = vadd.f32 0.0, %v2884
        %2886 = vdwg.mxu0
        %s2887 = scalar_lea.vmem [#allocation2], 2
        %v2888 = vld [vmem:[%s2887] ss:$8 sm:$0xf]
        %s2889 = scalar_lea.vmem [#allocation2], 66
        %v2890 = vld [vmem:[%s2889] ss:$8 sm:$0xf]
        %s2891 = scalar_lea.vmem [#allocation2], 130
        %v2892 = vld [vmem:[%s2891] ss:$8 sm:$0xf]
        %s2893 = scalar_lea.vmem [#allocation2], 194
        %v2894 = vld [vmem:[%s2893] ss:$8 sm:$0xf]
        %s2895 = scalar_lea.vmem [#allocation2], 258
        %v2896 = vld [vmem:[%s2895] ss:$8 sm:$0xf]
        %s2897 = scalar_lea.vmem [#allocation2], 322
        %v2898 = vld [vmem:[%s2897] ss:$8 sm:$0xf]
        %s2899 = scalar_lea.vmem [#allocation2], 386
        %v2900 = vld [vmem:[%s2899] ss:$8 sm:$0xf]
        %s2901 = scalar_lea.vmem [#allocation2], 450
        %v2902 = vld [vmem:[%s2901] ss:$8 sm:$0xf]
        %v2911 = vcombine.low %v2888, %v2890
        %v2912 = vcombine.low %v2892, %v2894
        %v2913 = vcombine.low %v2896, %v2898
        %v2914 = vcombine.low %v2900, %v2902
        %v2916 = vunpack.c.l.s4 1966171168
        %v2917 = vunpack.c.0.s8 %v2916
        %v2918 = vlaneseq
        %v2919 = vshrl.u32 %v2918, 7
        %v2920 = vsub.s32 %v2917, %v2919
        %v2921 = vrot.slane %v2911, %v2920
        %v2923 = vunpack.c.l.s4 1966171168
        %v2924 = vunpack.c.0.s8 %v2923
        %v2925 = vlaneseq
        %v2926 = vshrl.u32 %v2925, 7
        %v2927 = vsub.s32 %v2924, %v2926
        %v2928 = vrot.slane %v2912, %v2927
        %v2930 = vunpack.c.l.s4 1966171168
        %v2931 = vunpack.c.0.s8 %v2930
        %v2932 = vlaneseq
        %v2933 = vshrl.u32 %v2932, 7
        %v2934 = vsub.s32 %v2931, %v2933
        %v2935 = vrot.slane %v2913, %v2934
        %v2937 = vunpack.c.l.s4 1966171168
        %v2938 = vunpack.c.0.s8 %v2937
        %v2939 = vlaneseq
        %v2940 = vshrl.u32 %v2939, 7
        %v2941 = vsub.s32 %v2938, %v2940
        %v2942 = vrot.slane %v2914, %v2941
        %v2943 = vcombine.low %v2921, %v2928
        %v2944 = vcombine.high %v2921, %v2928
        %v2945 = vcombine.low %v2935, %v2942
        %v2946 = vcombine.high %v2935, %v2942
        %v2948 = vunpack.c.l.s4 1966171168
        %v2949 = vunpack.c.0.s8 %v2948
        %v2950 = vlaneseq
        %v2951 = vshrl.u32 %v2950, 7
        %v2952 = vsub.s32 %v2949, %v2951
        %v2953 = vrot.slane %v2943, %v2952
        %v2955 = vunpack.c.l.s4 1966171168
        %v2956 = vunpack.c.0.s8 %v2955
        %v2957 = vlaneseq
        %v2958 = vshrl.u32 %v2957, 7
        %v2959 = vsub.s32 %v2956, %v2958
        %v2960 = vrot.slane %v2944, %v2959
        %v2962 = vunpack.c.l.s4 1966171168
        %v2963 = vunpack.c.0.s8 %v2962
        %v2964 = vlaneseq
        %v2965 = vshrl.u32 %v2964, 7
        %v2966 = vsub.s32 %v2963, %v2965
        %v2967 = vrot.slane %v2945, %v2966
        %v2969 = vunpack.c.l.s4 1966171168
        %v2970 = vunpack.c.0.s8 %v2969
        %v2971 = vlaneseq
        %v2972 = vshrl.u32 %v2971, 7
        %v2973 = vsub.s32 %v2970, %v2972
        %v2974 = vrot.slane %v2946, %v2973
        %v2975 = vcombine.low %v2953, %v2967
        %v2976 = vcombine.high %v2953, %v2967
        %v2977 = vcombine.low %v2960, %v2974
        %v2978 = vcombine.high %v2960, %v2974
        %v2983 = vadd.f32 %v2670, %v2975
        %v2984 = vadd.f32 %v2672, %v2977
        %v2985 = vadd.f32 %v2741, %v2976
        %v2986 = vadd.f32 %v2743, %v2978
        %s2987 = scalar_lea.vmem [#allocation2], 37
        %v2988 = vld [vmem:[%s2987] ss:$8 sm:$0xf]
        %s2989 = scalar_lea.vmem [#allocation2], 101
        %v2990 = vld [vmem:[%s2989] ss:$8 sm:$0xf]
        %s2991 = scalar_lea.vmem [#allocation2], 165
        %v2992 = vld [vmem:[%s2991] ss:$8 sm:$0xf]
        %s2993 = scalar_lea.vmem [#allocation2], 229
        %v2994 = vld [vmem:[%s2993] ss:$8 sm:$0xf]
        %s2995 = scalar_lea.vmem [#allocation2], 293
        %v2996 = vld [vmem:[%s2995] ss:$8 sm:$0xf]
        %s2997 = scalar_lea.vmem [#allocation2], 357
        %v2998 = vld [vmem:[%s2997] ss:$8 sm:$0xf]
        %s2999 = scalar_lea.vmem [#allocation2], 421
        %v3000 = vld [vmem:[%s2999] ss:$8 sm:$0xf]
        %s3001 = scalar_lea.vmem [#allocation2], 485
        %v3002 = vld [vmem:[%s3001] ss:$8 sm:$0xf]
        %v3011 = vcombine.low %v2988, %v2990
        %v3012 = vcombine.low %v2992, %v2994
        %v3013 = vcombine.low %v2996, %v2998
        %v3014 = vcombine.low %v3000, %v3002
        %v3016 = vunpack.c.l.s4 1966171168
        %v3017 = vunpack.c.0.s8 %v3016
        %v3018 = vlaneseq
        %v3019 = vshrl.u32 %v3018, 7
        %v3020 = vsub.s32 %v3017, %v3019
        %v3021 = vrot.slane %v3011, %v3020
        %v3023 = vunpack.c.l.s4 1966171168
        %v3024 = vunpack.c.0.s8 %v3023
        %v3025 = vlaneseq
        %v3026 = vshrl.u32 %v3025, 7
        %v3027 = vsub.s32 %v3024, %v3026
        %v3028 = vrot.slane %v3012, %v3027
        %v3030 = vunpack.c.l.s4 1966171168
        %v3031 = vunpack.c.0.s8 %v3030
        %v3032 = vlaneseq
        %v3033 = vshrl.u32 %v3032, 7
        %v3034 = vsub.s32 %v3031, %v3033
        %v3035 = vrot.slane %v3013, %v3034
        %v3037 = vunpack.c.l.s4 1966171168
        %v3038 = vunpack.c.0.s8 %v3037
        %v3039 = vlaneseq
        %v3040 = vshrl.u32 %v3039, 7
        %v3041 = vsub.s32 %v3038, %v3040
        %v3042 = vrot.slane %v3014, %v3041
        %v3043 = vcombine.low %v3021, %v3028
        %v3044 = vcombine.high %v3021, %v3028
        %v3045 = vcombine.low %v3035, %v3042
        %v3046 = vcombine.high %v3035, %v3042
        %v3048 = vunpack.c.l.s4 1966171168
        %v3049 = vunpack.c.0.s8 %v3048
        %v3050 = vlaneseq
        %v3051 = vshrl.u32 %v3050, 7
        %v3052 = vsub.s32 %v3049, %v3051
        %v3053 = vrot.slane %v3043, %v3052
        %v3055 = vunpack.c.l.s4 1966171168
        %v3056 = vunpack.c.0.s8 %v3055
        %v3057 = vlaneseq
        %v3058 = vshrl.u32 %v3057, 7
        %v3059 = vsub.s32 %v3056, %v3058
        %v3060 = vrot.slane %v3044, %v3059
        %v3062 = vunpack.c.l.s4 1966171168
        %v3063 = vunpack.c.0.s8 %v3062
        %v3064 = vlaneseq
        %v3065 = vshrl.u32 %v3064, 7
        %v3066 = vsub.s32 %v3063, %v3065
        %v3067 = vrot.slane %v3045, %v3066
        %v3069 = vunpack.c.l.s4 1966171168
        %v3070 = vunpack.c.0.s8 %v3069
        %v3071 = vlaneseq
        %v3072 = vshrl.u32 %v3071, 7
        %v3073 = vsub.s32 %v3070, %v3072
        %v3074 = vrot.slane %v3046, %v3073
        %v3075 = vcombine.low %v3053, %v3067
        %v3076 = vcombine.high %v3053, %v3067
        %v3077 = vcombine.low %v3060, %v3074
        %v3078 = vcombine.high %v3060, %v3074
        %v3083 = vadd.f32 %v2812, %v3075
        %v3084 = vadd.f32 %v2814, %v3077
        %v3085 = vadd.f32 %v2883, %v3076
        %v3086 = vadd.f32 %v2885, %v3078
        %v3087 = vxor.u32 %v2983, 2147483648
        %v3088 = vmul.f32 %v3087, 1.442695
        %v3089 = vpow.pop %v3088
        %v3090 = vadd.f32 %v3089, 1.0
        %v3091 = vrcp.pop %v3090
        %v3092 = vmul.f32 1.0, %v3091
        %v3093 = vxor.u32 %v2984, 2147483648
        %v3094 = vmul.f32 %v3093, 1.442695
        %v3095 = vpow.pop %v3094
        %v3096 = vadd.f32 %v3095, 1.0
        %v3097 = vrcp.pop %v3096
        %v3098 = vmul.f32 1.0, %v3097
        %v3099 = vtanh.pop %v2985
        %v3100 = vxor.u32 %v2986, 2147483648
        %v3101 = vmul.f32 %v3100, 1.442695
        %v3102 = vpow.pop %v3101
        %v3103 = vadd.f32 %v3102, 1.0
        %v3104 = vrcp.pop %v3103
        %v3105 = vmul.f32 1.0, %v3104
        %v3106 = vmul.f32 %v3098, %v2444
        %v3107 = vmul.f32 %v3092, %v3099
        %v3108 = vadd.f32 %v3106, %v3107
        %v3109 = vtanh.pop %v3108
        %v3110 = vmul.f32 %v3105, %v3109
        %v3111 = vxor.u32 %v3083, 2147483648
        %v3112 = vmul.f32 %v3111, 1.442695
        %v3113 = vpow.pop %v3112
        %v3114 = vadd.f32 %v3113, 1.0
        %v3115 = vrcp.pop %v3114
        %v3116 = vmul.f32 1.0, %v3115
        %v3117 = vxor.u32 %v3084, 2147483648
        %v3118 = vmul.f32 %v3117, 1.442695
        %v3119 = vpow.pop %v3118
        %v3120 = vadd.f32 %v3119, 1.0
        %v3121 = vrcp.pop %v3120
        %v3122 = vmul.f32 1.0, %v3121
        %v3123 = vtanh.pop %v3085
        %v3124 = vxor.u32 %v3086, 2147483648
        %v3125 = vmul.f32 %v3124, 1.442695
        %v3126 = vpow.pop %v3125
        %v3127 = vadd.f32 %v3126, 1.0
        %v3128 = vrcp.pop %v3127
        %v3129 = vmul.f32 1.0, %v3128
        %v3130 = vmul.f32 %v3122, %v2468
        %v3131 = vmul.f32 %v3116, %v3123
        %v3132 = vadd.f32 %v3130, %v3131
        %v3133 = vtanh.pop %v3132
        %v3134 = vmul.f32 %v3129, %v3133
        %v3136 = vcombine.high %v3110, %v3110
        %v3138 = vunpack.c.l.s4 1966171168
        %v3139 = vunpack.c.0.s8 %v3138
        %v3140 = vlaneseq
        %v3141 = vshrl.u32 %v3140, 7
        %v3142 = vsub.s32 %v3139, %v3141
        %v3143 = vrot.slane %v3110, %v3142
        %v3145 = vunpack.c.l.s4 1966171168
        %v3146 = vunpack.c.0.s8 %v3145
        %v3147 = vlaneseq
        %v3148 = vshrl.u32 %v3147, 7
        %v3149 = vsub.s32 %v3146, %v3148
        %v3150 = vrot.slane %v3136, %v3149
        %v3151 = vcombine.high %v3143, %v3143
        %v3152 = vcombine.high %v3150, %v3150
        %v3154 = vunpack.c.l.s4 1966171168
        %v3155 = vunpack.c.0.s8 %v3154
        %v3156 = vlaneseq
        %v3157 = vshrl.u32 %v3156, 7
        %v3158 = vsub.s32 %v3155, %v3157
        %v3159 = vrot.slane %v3143, %v3158
        %v3161 = vunpack.c.l.s4 1966171168
        %v3162 = vunpack.c.0.s8 %v3161
        %v3163 = vlaneseq
        %v3164 = vshrl.u32 %v3163, 7
        %v3165 = vsub.s32 %v3162, %v3164
        %v3166 = vrot.slane %v3150, %v3165
        %v3168 = vunpack.c.l.s4 1966171168
        %v3169 = vunpack.c.0.s8 %v3168
        %v3170 = vlaneseq
        %v3171 = vshrl.u32 %v3170, 7
        %v3172 = vsub.s32 %v3169, %v3171
        %v3173 = vrot.slane %v3151, %v3172
        %v3175 = vunpack.c.l.s4 1966171168
        %v3176 = vunpack.c.0.s8 %v3175
        %v3177 = vlaneseq
        %v3178 = vshrl.u32 %v3177, 7
        %v3179 = vsub.s32 %v3176, %v3178
        %v3180 = vrot.slane %v3152, %v3179
        %v3181 = vcombine.high %v3159, %v3159
        %v3182 = vcombine.high %v3166, %v3166
        %v3183 = vcombine.high %v3173, %v3173
        %v3184 = vcombine.high %v3180, %v3180
        %3193 = vst [vmem:[#allocation3 + $0x2] sm:$0x1] %v3159
        %3194 = vst [vmem:[#allocation3 + $0x12] sm:$0x1] %v3173
        %3195 = vst [vmem:[#allocation3 + $0x22] sm:$0x1] %v3181
        %3196 = vst [vmem:[#allocation3 + $0x32] sm:$0x1] %v3183
        %3197 = vst [vmem:[#allocation3 + $0x42] sm:$0x1] %v3166
        %3198 = vst [vmem:[#allocation3 + $0x52] sm:$0x1] %v3180
        %3199 = vst [vmem:[#allocation3 + $0x62] sm:$0x1] %v3182
        %3200 = vst [vmem:[#allocation3 + $0x72] sm:$0x1] %v3184
        %v3202 = vcombine.high %v3134, %v3134
        %v3204 = vunpack.c.l.s4 1966171168
        %v3205 = vunpack.c.0.s8 %v3204
        %v3206 = vlaneseq
        %v3207 = vshrl.u32 %v3206, 7
        %v3208 = vsub.s32 %v3205, %v3207
        %v3209 = vrot.slane %v3134, %v3208
        %v3211 = vunpack.c.l.s4 1966171168
        %v3212 = vunpack.c.0.s8 %v3211
        %v3213 = vlaneseq
        %v3214 = vshrl.u32 %v3213, 7
        %v3215 = vsub.s32 %v3212, %v3214
        %v3216 = vrot.slane %v3202, %v3215
        %v3217 = vcombine.high %v3209, %v3209
        %v3218 = vcombine.high %v3216, %v3216
        %v3220 = vunpack.c.l.s4 1966171168
        %v3221 = vunpack.c.0.s8 %v3220
        %v3222 = vlaneseq
        %v3223 = vshrl.u32 %v3222, 7
        %v3224 = vsub.s32 %v3221, %v3223
        %v3225 = vrot.slane %v3209, %v3224
        %v3227 = vunpack.c.l.s4 1966171168
        %v3228 = vunpack.c.0.s8 %v3227
        %v3229 = vlaneseq
        %v3230 = vshrl.u32 %v3229, 7
        %v3231 = vsub.s32 %v3228, %v3230
        %v3232 = vrot.slane %v3216, %v3231
        %v3234 = vunpack.c.l.s4 1966171168
        %v3235 = vunpack.c.0.s8 %v3234
        %v3236 = vlaneseq
        %v3237 = vshrl.u32 %v3236, 7
        %v3238 = vsub.s32 %v3235, %v3237
        %v3239 = vrot.slane %v3217, %v3238
        %v3241 = vunpack.c.l.s4 1966171168
        %v3242 = vunpack.c.0.s8 %v3241
        %v3243 = vlaneseq
        %v3244 = vshrl.u32 %v3243, 7
        %v3245 = vsub.s32 %v3242, %v3244
        %v3246 = vrot.slane %v3218, %v3245
        %v3247 = vcombine.high %v3225, %v3225
        %v3248 = vcombine.high %v3232, %v3232
        %v3249 = vcombine.high %v3239, %v3239
        %v3250 = vcombine.high %v3246, %v3246
        %3259 = vst [vmem:[#allocation3 + $0xd] sm:$0x1] %v3225
        %3260 = vst [vmem:[#allocation3 + $0x1d] sm:$0x1] %v3239
        %3261 = vst [vmem:[#allocation3 + $0x2d] sm:$0x1] %v3247
        %3262 = vst [vmem:[#allocation3 + $0x3d] sm:$0x1] %v3249
        %3263 = vst [vmem:[#allocation3 + $0x4d] sm:$0x1] %v3232
        %3264 = vst [vmem:[#allocation3 + $0x5d] sm:$0x1] %v3246
        %3265 = vst [vmem:[#allocation3 + $0x6d] sm:$0x1] %v3248
        %3266 = vst [vmem:[#allocation3 + $0x7d] sm:$0x1] %v3250
        %3267 = vmatprep.subr.mxu0 %v1011
        %3268 = vmatpush1.msra.mxu0 %v1010
        %3269 = vmatprep.subr.mxu0 %v1019
        %3270 = vmatpush1.msra.mxu0 %v1018
        %3271 = vmatprep.subr.mxu0 %v1027
        %3272 = vmatpush1.msra.mxu0 %v1026
        %3273 = vmatprep.subr.mxu0 %v1035
        %3274 = vmatpush1.msra.mxu0 %v1034
        %3275 = vmatprep.subr.mxu0 %v1043
        %3276 = vmatpush1.msra.mxu0 %v1042
        %3277 = vmatprep.subr.mxu0 %v1051
        %3278 = vmatpush1.msra.mxu0 %v1050
        %3279 = vmatprep.subr.mxu0 %v1059
        %3280 = vmatpush1.msra.mxu0 %v1058
        %3281 = vmatprep.subr.mxu0 %v1067
        %3282 = vmatpush1.msra.mxu0 %v1066
        %3283 = vmatprep.subr.mxu0 %v1075
        %3284 = vmatpush1.msra.mxu0 %v1074
        %3285 = vmatprep.subr.mxu0 %v1083
        %3286 = vmatpush1.msra.mxu0 %v1082
        %3287 = vmatprep.subr.mxu0 %v1091
        %3288 = vmatpush1.msra.mxu0 %v1090
        %3289 = vmatprep.subr.mxu0 %v1099
        %3290 = vmatpush1.msra.mxu0 %v1098
        %3291 = vmatprep.subr.mxu0 %v1107
        %3292 = vmatpush1.msra.mxu0 %v1106
        %3293 = vmatprep.subr.mxu0 %v1115
        %3294 = vmatpush1.msra.mxu0 %v1114
        %3295 = vmatprep.subr.mxu0 %v1123
        %3296 = vmatpush1.msra.mxu0 %v1122
        %3297 = vmatprep.subr.mxu0 %v1131
        %3298 = vmatpush1.msra.mxu0 %v1130
        %3299 = vmatprep.subr.mxu0 %v1139
        %3300 = vmatpush1.msra.mxu0 %v1138
        %3301 = vmatprep.subr.mxu0 %v1147
        %3302 = vmatpush1.msra.mxu0 %v1146
        %3303 = vmatprep.subr.mxu0 %v1155
        %3304 = vmatpush1.msra.mxu0 %v1154
        %3305 = vmatprep.subr.mxu0 %v1163
        %3306 = vmatpush1.msra.mxu0 %v1162
        %3307 = vmatprep.subr.mxu0 %v1171
        %3308 = vmatpush1.msra.mxu0 %v1170
        %3309 = vmatprep.subr.mxu0 %v1179
        %3310 = vmatpush1.msra.mxu0 %v1178
        %3311 = vmatprep.subr.mxu0 %v1187
        %3312 = vmatpush1.msra.mxu0 %v1186
        %3313 = vmatprep.subr.mxu0 %v1195
        %3314 = vmatpush1.msra.mxu0 %v1194
        %3315 = vmatprep.subr.mxu0 %v1203
        %3316 = vmatpush1.msra.mxu0 %v1202
        %3317 = vmatprep.subr.mxu0 %v1211
        %3318 = vmatpush1.msra.mxu0 %v1210
        %3319 = vmatprep.subr.mxu0 %v1219
        %3320 = vmatpush1.msra.mxu0 %v1218
        %3321 = vmatprep.subr.mxu0 %v1227
        %3322 = vmatpush1.msra.mxu0 %v1226
        %3323 = vmatprep.subr.mxu0 %v1235
        %3324 = vmatpush1.msra.mxu0 %v1234
        %3325 = vmatprep.subr.mxu0 %v1243
        %3326 = vmatpush1.msra.mxu0 %v1242
        %3327 = vmatprep.subr.mxu0 %v1251
        %3328 = vmatpush1.msra.mxu0 %v1250
        %3329 = vmatprep.subr.mxu0 %v1259
        %3330 = vmatpush1.msra.mxu0 %v1258
        %3331 = vmatprep.mubr.f32.mxu0 %v3134
        %3332 = vmatmul.mubr.f32.gmra.mrb[0].mxu0 %v3110
        %v3333 = vpop.f32.mrb[0].mxu0
        %v3334 = vadd.f32 0.0, %v3333
        %v3335 = vpop.f32.mrb[0].mxu0
        %v3336 = vadd.f32 0.0, %v3335
        %3337 = vdwg.mxu0
        %3338 = vmatprep.subr.mxu0 %v1013
        %3339 = vmatpush1.msra.mxu0 %v1012
        %3340 = vmatprep.subr.mxu0 %v1021
        %3341 = vmatpush1.msra.mxu0 %v1020
        %3342 = vmatprep.subr.mxu0 %v1029
        %3343 = vmatpush1.msra.mxu0 %v1028
        %3344 = vmatprep.subr.mxu0 %v1037
        %3345 = vmatpush1.msra.mxu0 %v1036
        %3346 = vmatprep.subr.mxu0 %v1045
        %3347 = vmatpush1.msra.mxu0 %v1044
        %3348 = vmatprep.subr.mxu0 %v1053
        %3349 = vmatpush1.msra.mxu0 %v1052
        %3350 = vmatprep.subr.mxu0 %v1061
        %3351 = vmatpush1.msra.mxu0 %v1060
        %3352 = vmatprep.subr.mxu0 %v1069
        %3353 = vmatpush1.msra.mxu0 %v1068
        %3354 = vmatprep.subr.mxu0 %v1077
        %3355 = vmatpush1.msra.mxu0 %v1076
        %3356 = vmatprep.subr.mxu0 %v1085
        %3357 = vmatpush1.msra.mxu0 %v1084
        %3358 = vmatprep.subr.mxu0 %v1093
        %3359 = vmatpush1.msra.mxu0 %v1092
        %3360 = vmatprep.subr.mxu0 %v1101
        %3361 = vmatpush1.msra.mxu0 %v1100
        %3362 = vmatprep.subr.mxu0 %v1109
        %3363 = vmatpush1.msra.mxu0 %v1108
        %3364 = vmatprep.subr.mxu0 %v1117
        %3365 = vmatpush1.msra.mxu0 %v1116
        %3366 = vmatprep.subr.mxu0 %v1125
        %3367 = vmatpush1.msra.mxu0 %v1124
        %3368 = vmatprep.subr.mxu0 %v1133
        %3369 = vmatpush1.msra.mxu0 %v1132
        %3370 = vmatprep.subr.mxu0 %v1141
        %3371 = vmatpush1.msra.mxu0 %v1140
        %3372 = vmatprep.subr.mxu0 %v1149
        %3373 = vmatpush1.msra.mxu0 %v1148
        %3374 = vmatprep.subr.mxu0 %v1157
        %3375 = vmatpush1.msra.mxu0 %v1156
        %3376 = vmatprep.subr.mxu0 %v1165
        %3377 = vmatpush1.msra.mxu0 %v1164
        %3378 = vmatprep.subr.mxu0 %v1173
        %3379 = vmatpush1.msra.mxu0 %v1172
        %3380 = vmatprep.subr.mxu0 %v1181
        %3381 = vmatpush1.msra.mxu0 %v1180
        %3382 = vmatprep.subr.mxu0 %v1189
        %3383 = vmatpush1.msra.mxu0 %v1188
        %3384 = vmatprep.subr.mxu0 %v1197
        %3385 = vmatpush1.msra.mxu0 %v1196
        %3386 = vmatprep.subr.mxu0 %v1205
        %3387 = vmatpush1.msra.mxu0 %v1204
        %3388 = vmatprep.subr.mxu0 %v1213
        %3389 = vmatpush1.msra.mxu0 %v1212
        %3390 = vmatprep.subr.mxu0 %v1221
        %3391 = vmatpush1.msra.mxu0 %v1220
        %3392 = vmatprep.subr.mxu0 %v1229
        %3393 = vmatpush1.msra.mxu0 %v1228
        %3394 = vmatprep.subr.mxu0 %v1237
        %3395 = vmatpush1.msra.mxu0 %v1236
        %3396 = vmatprep.subr.mxu0 %v1245
        %3397 = vmatpush1.msra.mxu0 %v1244
        %3398 = vmatprep.subr.mxu0 %v1253
        %3399 = vmatpush1.msra.mxu0 %v1252
        %3400 = vmatprep.subr.mxu0 %v1261
        %3401 = vmatpush1.msra.mxu0 %v1260
        %3402 = vmatprep.mubr.f32.mxu0 %v3134
        %3403 = vmatmul.mubr.f32.gmra.mrb[0].mxu0 %v3110
        %v3404 = vpop.f32.mrb[0].mxu0
        %v3405 = vadd.f32 0.0, %v3404
        %v3406 = vpop.f32.mrb[0].mxu0
        %v3407 = vadd.f32 0.0, %v3406
        %3408 = vdwg.mxu0
        %3409 = vmatprep.subr.mxu0 %v1015
        %3410 = vmatpush1.msra.mxu0 %v1014
        %3411 = vmatprep.subr.mxu0 %v1023
        %3412 = vmatpush1.msra.mxu0 %v1022
        %3413 = vmatprep.subr.mxu0 %v1031
        %3414 = vmatpush1.msra.mxu0 %v1030
        %3415 = vmatprep.subr.mxu0 %v1039
        %3416 = vmatpush1.msra.mxu0 %v1038
        %3417 = vmatprep.subr.mxu0 %v1047
        %3418 = vmatpush1.msra.mxu0 %v1046
        %3419 = vmatprep.subr.mxu0 %v1055
        %3420 = vmatpush1.msra.mxu0 %v1054
        %3421 = vmatprep.subr.mxu0 %v1063
        %3422 = vmatpush1.msra.mxu0 %v1062
        %3423 = vmatprep.subr.mxu0 %v1071
        %3424 = vmatpush1.msra.mxu0 %v1070
        %3425 = vmatprep.subr.mxu0 %v1079
        %3426 = vmatpush1.msra.mxu0 %v1078
        %3427 = vmatprep.subr.mxu0 %v1087
        %3428 = vmatpush1.msra.mxu0 %v1086
        %3429 = vmatprep.subr.mxu0 %v1095
        %3430 = vmatpush1.msra.mxu0 %v1094
        %3431 = vmatprep.subr.mxu0 %v1103
        %3432 = vmatpush1.msra.mxu0 %v1102
        %3433 = vmatprep.subr.mxu0 %v1111
        %3434 = vmatpush1.msra.mxu0 %v1110
        %3435 = vmatprep.subr.mxu0 %v1119
        %3436 = vmatpush1.msra.mxu0 %v1118
        %3437 = vmatprep.subr.mxu0 %v1127
        %3438 = vmatpush1.msra.mxu0 %v1126
        %3439 = vmatprep.subr.mxu0 %v1135
        %3440 = vmatpush1.msra.mxu0 %v1134
        %3441 = vmatprep.subr.mxu0 %v1143
        %3442 = vmatpush1.msra.mxu0 %v1142
        %3443 = vmatprep.subr.mxu0 %v1151
        %3444 = vmatpush1.msra.mxu0 %v1150
        %3445 = vmatprep.subr.mxu0 %v1159
        %3446 = vmatpush1.msra.mxu0 %v1158
        %3447 = vmatprep.subr.mxu0 %v1167
        %3448 = vmatpush1.msra.mxu0 %v1166
        %3449 = vmatprep.subr.mxu0 %v1175
        %3450 = vmatpush1.msra.mxu0 %v1174
        %3451 = vmatprep.subr.mxu0 %v1183
        %3452 = vmatpush1.msra.mxu0 %v1182
        %3453 = vmatprep.subr.mxu0 %v1191
        %3454 = vmatpush1.msra.mxu0 %v1190
        %3455 = vmatprep.subr.mxu0 %v1199
        %3456 = vmatpush1.msra.mxu0 %v1198
        %3457 = vmatprep.subr.mxu0 %v1207
        %3458 = vmatpush1.msra.mxu0 %v1206
        %3459 = vmatprep.subr.mxu0 %v1215
        %3460 = vmatpush1.msra.mxu0 %v1214
        %3461 = vmatprep.subr.mxu0 %v1223
        %3462 = vmatpush1.msra.mxu0 %v1222
        %3463 = vmatprep.subr.mxu0 %v1231
        %3464 = vmatpush1.msra.mxu0 %v1230
        %3465 = vmatprep.subr.mxu0 %v1239
        %3466 = vmatpush1.msra.mxu0 %v1238
        %3467 = vmatprep.subr.mxu0 %v1247
        %3468 = vmatpush1.msra.mxu0 %v1246
        %3469 = vmatprep.subr.mxu0 %v1255
        %3470 = vmatpush1.msra.mxu0 %v1254
        %3471 = vmatprep.subr.mxu0 %v1263
        %3472 = vmatpush1.msra.mxu0 %v1262
        %3473 = vmatprep.mubr.f32.mxu0 %v3134
        %3474 = vmatmul.mubr.f32.gmra.mrb[0].mxu0 %v3110
        %v3475 = vpop.f32.mrb[0].mxu0
        %v3476 = vadd.f32 0.0, %v3475
        %v3477 = vpop.f32.mrb[0].mxu0
        %v3478 = vadd.f32 0.0, %v3477
        %3479 = vdwg.mxu0
        %3480 = vmatprep.subr.mxu0 %v1017
        %3481 = vmatpush1.msra.mxu0 %v1016
        %3482 = vmatprep.subr.mxu0 %v1025
        %3483 = vmatpush1.msra.mxu0 %v1024
        %3484 = vmatprep.subr.mxu0 %v1033
        %3485 = vmatpush1.msra.mxu0 %v1032
        %3486 = vmatprep.subr.mxu0 %v1041
        %3487 = vmatpush1.msra.mxu0 %v1040
        %3488 = vmatprep.subr.mxu0 %v1049
        %3489 = vmatpush1.msra.mxu0 %v1048
        %3490 = vmatprep.subr.mxu0 %v1057
        %3491 = vmatpush1.msra.mxu0 %v1056
        %3492 = vmatprep.subr.mxu0 %v1065
        %3493 = vmatpush1.msra.mxu0 %v1064
        %3494 = vmatprep.subr.mxu0 %v1073
        %3495 = vmatpush1.msra.mxu0 %v1072
        %3496 = vmatprep.subr.mxu0 %v1081
        %3497 = vmatpush1.msra.mxu0 %v1080
        %3498 = vmatprep.subr.mxu0 %v1089
        %3499 = vmatpush1.msra.mxu0 %v1088
        %3500 = vmatprep.subr.mxu0 %v1097
        %3501 = vmatpush1.msra.mxu0 %v1096
        %3502 = vmatprep.subr.mxu0 %v1105
        %3503 = vmatpush1.msra.mxu0 %v1104
        %3504 = vmatprep.subr.mxu0 %v1113
        %3505 = vmatpush1.msra.mxu0 %v1112
        %3506 = vmatprep.subr.mxu0 %v1121
        %3507 = vmatpush1.msra.mxu0 %v1120
        %3508 = vmatprep.subr.mxu0 %v1129
        %3509 = vmatpush1.msra.mxu0 %v1128
        %3510 = vmatprep.subr.mxu0 %v1137
        %3511 = vmatpush1.msra.mxu0 %v1136
        %3512 = vmatprep.subr.mxu0 %v1145
        %3513 = vmatpush1.msra.mxu0 %v1144
        %3514 = vmatprep.subr.mxu0 %v1153
        %3515 = vmatpush1.msra.mxu0 %v1152
        %3516 = vmatprep.subr.mxu0 %v1161
        %3517 = vmatpush1.msra.mxu0 %v1160
        %3518 = vmatprep.subr.mxu0 %v1169
        %3519 = vmatpush1.msra.mxu0 %v1168
        %3520 = vmatprep.subr.mxu0 %v1177
        %3521 = vmatpush1.msra.mxu0 %v1176
        %3522 = vmatprep.subr.mxu0 %v1185
        %3523 = vmatpush1.msra.mxu0 %v1184
        %3524 = vmatprep.subr.mxu0 %v1193
        %3525 = vmatpush1.msra.mxu0 %v1192
        %3526 = vmatprep.subr.mxu0 %v1201
        %3527 = vmatpush1.msra.mxu0 %v1200
        %3528 = vmatprep.subr.mxu0 %v1209
        %3529 = vmatpush1.msra.mxu0 %v1208
        %3530 = vmatprep.subr.mxu0 %v1217
        %3531 = vmatpush1.msra.mxu0 %v1216
        %3532 = vmatprep.subr.mxu0 %v1225
        %3533 = vmatpush1.msra.mxu0 %v1224
        %3534 = vmatprep.subr.mxu0 %v1233
        %3535 = vmatpush1.msra.mxu0 %v1232
        %3536 = vmatprep.subr.mxu0 %v1241
        %3537 = vmatpush1.msra.mxu0 %v1240
        %3538 = vmatprep.subr.mxu0 %v1249
        %3539 = vmatpush1.msra.mxu0 %v1248
        %3540 = vmatprep.subr.mxu0 %v1257
        %3541 = vmatpush1.msra.mxu0 %v1256
        %3542 = vmatprep.subr.mxu0 %v1265
        %3543 = vmatpush1.msra.mxu0 %v1264
        %3544 = vmatprep.mubr.f32.mxu0 %v3134
        %3545 = vmatmul.mubr.f32.gmra.mrb[0].mxu0 %v3110
        %v3546 = vpop.f32.mrb[0].mxu0
        %v3547 = vadd.f32 0.0, %v3546
        %v3548 = vpop.f32.mrb[0].mxu0
        %v3549 = vadd.f32 0.0, %v3548
        %3550 = vdwg.mxu0
        %s3551 = scalar_lea.vmem [#allocation2], 3
        %v3552 = vld [vmem:[%s3551] ss:$8 sm:$0xf]
        %s3553 = scalar_lea.vmem [#allocation2], 67
        %v3554 = vld [vmem:[%s3553] ss:$8 sm:$0xf]
        %s3555 = scalar_lea.vmem [#allocation2], 131
        %v3556 = vld [vmem:[%s3555] ss:$8 sm:$0xf]
        %s3557 = scalar_lea.vmem [#allocation2], 195
        %v3558 = vld [vmem:[%s3557] ss:$8 sm:$0xf]
        %s3559 = scalar_lea.vmem [#allocation2], 259
        %v3560 = vld [vmem:[%s3559] ss:$8 sm:$0xf]
        %s3561 = scalar_lea.vmem [#allocation2], 323
        %v3562 = vld [vmem:[%s3561] ss:$8 sm:$0xf]
        %s3563 = scalar_lea.vmem [#allocation2], 387
        %v3564 = vld [vmem:[%s3563] ss:$8 sm:$0xf]
        %s3565 = scalar_lea.vmem [#allocation2], 451
        %v3566 = vld [vmem:[%s3565] ss:$8 sm:$0xf]
        %v3575 = vcombine.low %v3552, %v3554
        %v3576 = vcombine.low %v3556, %v3558
        %v3577 = vcombine.low %v3560, %v3562
        %v3578 = vcombine.low %v3564, %v3566
        %v3580 = vunpack.c.l.s4 1966171168
        %v3581 = vunpack.c.0.s8 %v3580
        %v3582 = vlaneseq
        %v3583 = vshrl.u32 %v3582, 7
        %v3584 = vsub.s32 %v3581, %v3583
        %v3585 = vrot.slane %v3575, %v3584
        %v3587 = vunpack.c.l.s4 1966171168
        %v3588 = vunpack.c.0.s8 %v3587
        %v3589 = vlaneseq
        %v3590 = vshrl.u32 %v3589, 7
        %v3591 = vsub.s32 %v3588, %v3590
        %v3592 = vrot.slane %v3576, %v3591
        %v3594 = vunpack.c.l.s4 1966171168
        %v3595 = vunpack.c.0.s8 %v3594
        %v3596 = vlaneseq
        %v3597 = vshrl.u32 %v3596, 7
        %v3598 = vsub.s32 %v3595, %v3597
        %v3599 = vrot.slane %v3577, %v3598
        %v3601 = vunpack.c.l.s4 1966171168
        %v3602 = vunpack.c.0.s8 %v3601
        %v3603 = vlaneseq
        %v3604 = vshrl.u32 %v3603, 7
        %v3605 = vsub.s32 %v3602, %v3604
        %v3606 = vrot.slane %v3578, %v3605
        %v3607 = vcombine.low %v3585, %v3592
        %v3608 = vcombine.high %v3585, %v3592
        %v3609 = vcombine.low %v3599, %v3606
        %v3610 = vcombine.high %v3599, %v3606
        %v3612 = vunpack.c.l.s4 1966171168
        %v3613 = vunpack.c.0.s8 %v3612
        %v3614 = vlaneseq
        %v3615 = vshrl.u32 %v3614, 7
        %v3616 = vsub.s32 %v3613, %v3615
        %v3617 = vrot.slane %v3607, %v3616
        %v3619 = vunpack.c.l.s4 1966171168
        %v3620 = vunpack.c.0.s8 %v3619
        %v3621 = vlaneseq
        %v3622 = vshrl.u32 %v3621, 7
        %v3623 = vsub.s32 %v3620, %v3622
        %v3624 = vrot.slane %v3608, %v3623
        %v3626 = vunpack.c.l.s4 1966171168
        %v3627 = vunpack.c.0.s8 %v3626
        %v3628 = vlaneseq
        %v3629 = vshrl.u32 %v3628, 7
        %v3630 = vsub.s32 %v3627, %v3629
        %v3631 = vrot.slane %v3609, %v3630
        %v3633 = vunpack.c.l.s4 1966171168
        %v3634 = vunpack.c.0.s8 %v3633
        %v3635 = vlaneseq
        %v3636 = vshrl.u32 %v3635, 7
        %v3637 = vsub.s32 %v3634, %v3636
        %v3638 = vrot.slane %v3610, %v3637
        %v3639 = vcombine.low %v3617, %v3631
        %v3640 = vcombine.high %v3617, %v3631
        %v3641 = vcombine.low %v3624, %v3638
        %v3642 = vcombine.high %v3624, %v3638
        %v3647 = vadd.f32 %v3334, %v3639
        %v3648 = vadd.f32 %v3336, %v3641
        %v3649 = vadd.f32 %v3405, %v3640
        %v3650 = vadd.f32 %v3407, %v3642
        %s3651 = scalar_lea.vmem [#allocation2], 36
        %v3652 = vld [vmem:[%s3651] ss:$8 sm:$0xf]
        %s3653 = scalar_lea.vmem [#allocation2], 100
        %v3654 = vld [vmem:[%s3653] ss:$8 sm:$0xf]
        %s3655 = scalar_lea.vmem [#allocation2], 164
        %v3656 = vld [vmem:[%s3655] ss:$8 sm:$0xf]
        %s3657 = scalar_lea.vmem [#allocation2], 228
        %v3658 = vld [vmem:[%s3657] ss:$8 sm:$0xf]
        %s3659 = scalar_lea.vmem [#allocation2], 292
        %v3660 = vld [vmem:[%s3659] ss:$8 sm:$0xf]
        %s3661 = scalar_lea.vmem [#allocation2], 356
        %v3662 = vld [vmem:[%s3661] ss:$8 sm:$0xf]
        %s3663 = scalar_lea.vmem [#allocation2], 420
        %v3664 = vld [vmem:[%s3663] ss:$8 sm:$0xf]
        %s3665 = scalar_lea.vmem [#allocation2], 484
        %v3666 = vld [vmem:[%s3665] ss:$8 sm:$0xf]
        %v3675 = vcombine.low %v3652, %v3654
        %v3676 = vcombine.low %v3656, %v3658
        %v3677 = vcombine.low %v3660, %v3662
        %v3678 = vcombine.low %v3664, %v3666
        %v3680 = vunpack.c.l.s4 1966171168
        %v3681 = vunpack.c.0.s8 %v3680
        %v3682 = vlaneseq
        %v3683 = vshrl.u32 %v3682, 7
        %v3684 = vsub.s32 %v3681, %v3683
        %v3685 = vrot.slane %v3675, %v3684
        %v3687 = vunpack.c.l.s4 1966171168
        %v3688 = vunpack.c.0.s8 %v3687
        %v3689 = vlaneseq
        %v3690 = vshrl.u32 %v3689, 7
        %v3691 = vsub.s32 %v3688, %v3690
        %v3692 = vrot.slane %v3676, %v3691
        %v3694 = vunpack.c.l.s4 1966171168
        %v3695 = vunpack.c.0.s8 %v3694
        %v3696 = vlaneseq
        %v3697 = vshrl.u32 %v3696, 7
        %v3698 = vsub.s32 %v3695, %v3697
        %v3699 = vrot.slane %v3677, %v3698
        %v3701 = vunpack.c.l.s4 1966171168
        %v3702 = vunpack.c.0.s8 %v3701
        %v3703 = vlaneseq
        %v3704 = vshrl.u32 %v3703, 7
        %v3705 = vsub.s32 %v3702, %v3704
        %v3706 = vrot.slane %v3678, %v3705
        %v3707 = vcombine.low %v3685, %v3692
        %v3708 = vcombine.high %v3685, %v3692
        %v3709 = vcombine.low %v3699, %v3706
        %v3710 = vcombine.high %v3699, %v3706
        %v3712 = vunpack.c.l.s4 1966171168
        %v3713 = vunpack.c.0.s8 %v3712
        %v3714 = vlaneseq
        %v3715 = vshrl.u32 %v3714, 7
        %v3716 = vsub.s32 %v3713, %v3715
        %v3717 = vrot.slane %v3707, %v3716
        %v3719 = vunpack.c.l.s4 1966171168
        %v3720 = vunpack.c.0.s8 %v3719
        %v3721 = vlaneseq
        %v3722 = vshrl.u32 %v3721, 7
        %v3723 = vsub.s32 %v3720, %v3722
        %v3724 = vrot.slane %v3708, %v3723
        %v3726 = vunpack.c.l.s4 1966171168
        %v3727 = vunpack.c.0.s8 %v3726
        %v3728 = vlaneseq
        %v3729 = vshrl.u32 %v3728, 7
        %v3730 = vsub.s32 %v3727, %v3729
        %v3731 = vrot.slane %v3709, %v3730
        %v3733 = vunpack.c.l.s4 1966171168
        %v3734 = vunpack.c.0.s8 %v3733
        %v3735 = vlaneseq
        %v3736 = vshrl.u32 %v3735, 7
        %v3737 = vsub.s32 %v3734, %v3736
        %v3738 = vrot.slane %v3710, %v3737
        %v3739 = vcombine.low %v3717, %v3731
        %v3740 = vcombine.high %v3717, %v3731
        %v3741 = vcombine.low %v3724, %v3738
        %v3742 = vcombine.high %v3724, %v3738
        %v3747 = vadd.f32 %v3476, %v3739
        %v3748 = vadd.f32 %v3478, %v3741
        %v3749 = vadd.f32 %v3547, %v3740
        %v3750 = vadd.f32 %v3549, %v3742
        %v3751 = vxor.u32 %v3647, 2147483648
        %v3752 = vmul.f32 %v3751, 1.442695
        %v3753 = vpow.pop %v3752
        %v3754 = vadd.f32 %v3753, 1.0
        %v3755 = vrcp.pop %v3754
        %v3756 = vmul.f32 1.0, %v3755
        %v3757 = vxor.u32 %v3648, 2147483648
        %v3758 = vmul.f32 %v3757, 1.442695
        %v3759 = vpow.pop %v3758
        %v3760 = vadd.f32 %v3759, 1.0
        %v3761 = vrcp.pop %v3760
        %v3762 = vmul.f32 1.0, %v3761
        %v3763 = vtanh.pop %v3649
        %v3764 = vxor.u32 %v3650, 2147483648
        %v3765 = vmul.f32 %v3764, 1.442695
        %v3766 = vpow.pop %v3765
        %v3767 = vadd.f32 %v3766, 1.0
        %v3768 = vrcp.pop %v3767
        %v3769 = vmul.f32 1.0, %v3768
        %v3770 = vmul.f32 %v3762, %v3108
        %v3771 = vmul.f32 %v3756, %v3763
        %v3772 = vadd.f32 %v3770, %v3771
        %v3773 = vtanh.pop %v3772
        %v3774 = vmul.f32 %v3769, %v3773
        %v3775 = vxor.u32 %v3747, 2147483648
        %v3776 = vmul.f32 %v3775, 1.442695
        %v3777 = vpow.pop %v3776
        %v3778 = vadd.f32 %v3777, 1.0
        %v3779 = vrcp.pop %v3778
        %v3780 = vmul.f32 1.0, %v3779
        %v3781 = vxor.u32 %v3748, 2147483648
        %v3782 = vmul.f32 %v3781, 1.442695
        %v3783 = vpow.pop %v3782
        %v3784 = vadd.f32 %v3783, 1.0
        %v3785 = vrcp.pop %v3784
        %v3786 = vmul.f32 1.0, %v3785
        %v3787 = vtanh.pop %v3749
        %v3788 = vxor.u32 %v3750, 2147483648
        %v3789 = vmul.f32 %v3788, 1.442695
        %v3790 = vpow.pop %v3789
        %v3791 = vadd.f32 %v3790, 1.0
        %v3792 = vrcp.pop %v3791
        %v3793 = vmul.f32 1.0, %v3792
        %v3794 = vmul.f32 %v3786, %v3132
        %v3795 = vmul.f32 %v3780, %v3787
        %v3796 = vadd.f32 %v3794, %v3795
        %v3797 = vtanh.pop %v3796
        %v3798 = vmul.f32 %v3793, %v3797
        %v3800 = vcombine.high %v3774, %v3774
        %v3802 = vunpack.c.l.s4 1966171168
        %v3803 = vunpack.c.0.s8 %v3802
        %v3804 = vlaneseq
        %v3805 = vshrl.u32 %v3804, 7
        %v3806 = vsub.s32 %v3803, %v3805
        %v3807 = vrot.slane %v3774, %v3806
        %v3809 = vunpack.c.l.s4 1966171168
        %v3810 = vunpack.c.0.s8 %v3809
        %v3811 = vlaneseq
        %v3812 = vshrl.u32 %v3811, 7
        %v3813 = vsub.s32 %v3810, %v3812
        %v3814 = vrot.slane %v3800, %v3813
        %v3815 = vcombine.high %v3807, %v3807
        %v3816 = vcombine.high %v3814, %v3814
        %v3818 = vunpack.c.l.s4 1966171168
        %v3819 = vunpack.c.0.s8 %v3818
        %v3820 = vlaneseq
        %v3821 = vshrl.u32 %v3820, 7
        %v3822 = vsub.s32 %v3819, %v3821
        %v3823 = vrot.slane %v3807, %v3822
        %v3825 = vunpack.c.l.s4 1966171168
        %v3826 = vunpack.c.0.s8 %v3825
        %v3827 = vlaneseq
        %v3828 = vshrl.u32 %v3827, 7
        %v3829 = vsub.s32 %v3826, %v3828
        %v3830 = vrot.slane %v3814, %v3829
        %v3832 = vunpack.c.l.s4 1966171168
        %v3833 = vunpack.c.0.s8 %v3832
        %v3834 = vlaneseq
        %v3835 = vshrl.u32 %v3834, 7
        %v3836 = vsub.s32 %v3833, %v3835
        %v3837 = vrot.slane %v3815, %v3836
        %v3839 = vunpack.c.l.s4 1966171168
        %v3840 = vunpack.c.0.s8 %v3839
        %v3841 = vlaneseq
        %v3842 = vshrl.u32 %v3841, 7
        %v3843 = vsub.s32 %v3840, %v3842
        %v3844 = vrot.slane %v3816, %v3843
        %v3845 = vcombine.high %v3823, %v3823
        %v3846 = vcombine.high %v3830, %v3830
        %v3847 = vcombine.high %v3837, %v3837
        %v3848 = vcombine.high %v3844, %v3844
        %3857 = vst [vmem:[#allocation3 + $0x3] sm:$0x1] %v3823
        %3858 = vst [vmem:[#allocation3 + $0x13] sm:$0x1] %v3837
        %3859 = vst [vmem:[#allocation3 + $0x23] sm:$0x1] %v3845
        %3860 = vst [vmem:[#allocation3 + $0x33] sm:$0x1] %v3847
        %3861 = vst [vmem:[#allocation3 + $0x43] sm:$0x1] %v3830
        %3862 = vst [vmem:[#allocation3 + $0x53] sm:$0x1] %v3844
        %3863 = vst [vmem:[#allocation3 + $0x63] sm:$0x1] %v3846
        %3864 = vst [vmem:[#allocation3 + $0x73] sm:$0x1] %v3848
        %v3866 = vcombine.high %v3798, %v3798
        %v3868 = vunpack.c.l.s4 1966171168
        %v3869 = vunpack.c.0.s8 %v3868
        %v3870 = vlaneseq
        %v3871 = vshrl.u32 %v3870, 7
        %v3872 = vsub.s32 %v3869, %v3871
        %v3873 = vrot.slane %v3798, %v3872
        %v3875 = vunpack.c.l.s4 1966171168
        %v3876 = vunpack.c.0.s8 %v3875
        %v3877 = vlaneseq
        %v3878 = vshrl.u32 %v3877, 7
        %v3879 = vsub.s32 %v3876, %v3878
        %v3880 = vrot.slane %v3866, %v3879
        %v3881 = vcombine.high %v3873, %v3873
        %v3882 = vcombine.high %v3880, %v3880
        %v3884 = vunpack.c.l.s4 1966171168
        %v3885 = vunpack.c.0.s8 %v3884
        %v3886 = vlaneseq
        %v3887 = vshrl.u32 %v3886, 7
        %v3888 = vsub.s32 %v3885, %v3887
        %v3889 = vrot.slane %v3873, %v3888
        %v3891 = vunpack.c.l.s4 1966171168
        %v3892 = vunpack.c.0.s8 %v3891
        %v3893 = vlaneseq
        %v3894 = vshrl.u32 %v3893, 7
        %v3895 = vsub.s32 %v3892, %v3894
        %v3896 = vrot.slane %v3880, %v3895
        %v3898 = vunpack.c.l.s4 1966171168
        %v3899 = vunpack.c.0.s8 %v3898
        %v3900 = vlaneseq
        %v3901 = vshrl.u32 %v3900, 7
        %v3902 = vsub.s32 %v3899, %v3901
        %v3903 = vrot.slane %v3881, %v3902
        %v3905 = vunpack.c.l.s4 1966171168
        %v3906 = vunpack.c.0.s8 %v3905
        %v3907 = vlaneseq
        %v3908 = vshrl.u32 %v3907, 7
        %v3909 = vsub.s32 %v3906, %v3908
        %v3910 = vrot.slane %v3882, %v3909
        %v3911 = vcombine.high %v3889, %v3889
        %v3912 = vcombine.high %v3896, %v3896
        %v3913 = vcombine.high %v3903, %v3903
        %v3914 = vcombine.high %v3910, %v3910
        %3923 = vst [vmem:[#allocation3 + $0xc] sm:$0x1] %v3889
        %3924 = vst [vmem:[#allocation3 + $0x1c] sm:$0x1] %v3903
        %3925 = vst [vmem:[#allocation3 + $0x2c] sm:$0x1] %v3911
        %3926 = vst [vmem:[#allocation3 + $0x3c] sm:$0x1] %v3913
        %3927 = vst [vmem:[#allocation3 + $0x4c] sm:$0x1] %v3896
        %3928 = vst [vmem:[#allocation3 + $0x5c] sm:$0x1] %v3910
        %3929 = vst [vmem:[#allocation3 + $0x6c] sm:$0x1] %v3912
        %3930 = vst [vmem:[#allocation3 + $0x7c] sm:$0x1] %v3914
        %3931 = vmatprep.subr.mxu0 %v1011
        %3932 = vmatpush1.msra.mxu0 %v1010
        %3933 = vmatprep.subr.mxu0 %v1019
        %3934 = vmatpush1.msra.mxu0 %v1018
        %3935 = vmatprep.subr.mxu0 %v1027
        %3936 = vmatpush1.msra.mxu0 %v1026
        %3937 = vmatprep.subr.mxu0 %v1035
        %3938 = vmatpush1.msra.mxu0 %v1034
        %3939 = vmatprep.subr.mxu0 %v1043
        %3940 = vmatpush1.msra.mxu0 %v1042
        %3941 = vmatprep.subr.mxu0 %v1051
        %3942 = vmatpush1.msra.mxu0 %v1050
        %3943 = vmatprep.subr.mxu0 %v1059
        %3944 = vmatpush1.msra.mxu0 %v1058
        %3945 = vmatprep.subr.mxu0 %v1067
        %3946 = vmatpush1.msra.mxu0 %v1066
        %3947 = vmatprep.subr.mxu0 %v1075
        %3948 = vmatpush1.msra.mxu0 %v1074
        %3949 = vmatprep.subr.mxu0 %v1083
        %3950 = vmatpush1.msra.mxu0 %v1082
        %3951 = vmatprep.subr.mxu0 %v1091
        %3952 = vmatpush1.msra.mxu0 %v1090
        %3953 = vmatprep.subr.mxu0 %v1099
        %3954 = vmatpush1.msra.mxu0 %v1098
        %3955 = vmatprep.subr.mxu0 %v1107
        %3956 = vmatpush1.msra.mxu0 %v1106
        %3957 = vmatprep.subr.mxu0 %v1115
        %3958 = vmatpush1.msra.mxu0 %v1114
        %3959 = vmatprep.subr.mxu0 %v1123
        %3960 = vmatpush1.msra.mxu0 %v1122
        %3961 = vmatprep.subr.mxu0 %v1131
        %3962 = vmatpush1.msra.mxu0 %v1130
        %3963 = vmatprep.subr.mxu0 %v1139
        %3964 = vmatpush1.msra.mxu0 %v1138
        %3965 = vmatprep.subr.mxu0 %v1147
        %3966 = vmatpush1.msra.mxu0 %v1146
        %3967 = vmatprep.subr.mxu0 %v1155
        %3968 = vmatpush1.msra.mxu0 %v1154
        %3969 = vmatprep.subr.mxu0 %v1163
        %3970 = vmatpush1.msra.mxu0 %v1162
        %3971 = vmatprep.subr.mxu0 %v1171
        %3972 = vmatpush1.msra.mxu0 %v1170
        %3973 = vmatprep.subr.mxu0 %v1179
        %3974 = vmatpush1.msra.mxu0 %v1178
        %3975 = vmatprep.subr.mxu0 %v1187
        %3976 = vmatpush1.msra.mxu0 %v1186
        %3977 = vmatprep.subr.mxu0 %v1195
        %3978 = vmatpush1.msra.mxu0 %v1194
        %3979 = vmatprep.subr.mxu0 %v1203
        %3980 = vmatpush1.msra.mxu0 %v1202
        %3981 = vmatprep.subr.mxu0 %v1211
        %3982 = vmatpush1.msra.mxu0 %v1210
        %3983 = vmatprep.subr.mxu0 %v1219
        %3984 = vmatpush1.msra.mxu0 %v1218
        %3985 = vmatprep.subr.mxu0 %v1227
        %3986 = vmatpush1.msra.mxu0 %v1226
        %3987 = vmatprep.subr.mxu0 %v1235
        %3988 = vmatpush1.msra.mxu0 %v1234
        %3989 = vmatprep.subr.mxu0 %v1243
        %3990 = vmatpush1.msra.mxu0 %v1242
        %3991 = vmatprep.subr.mxu0 %v1251
        %3992 = vmatpush1.msra.mxu0 %v1250
        %3993 = vmatprep.subr.mxu0 %v1259
        %3994 = vmatpush1.msra.mxu0 %v1258
        %3995 = vmatprep.mubr.f32.mxu0 %v3798
        %3996 = vmatmul.mubr.f32.gmra.mrb[0].mxu0 %v3774
        %v3997 = vpop.f32.mrb[0].mxu0
        %v3998 = vadd.f32 0.0, %v3997
        %v3999 = vpop.f32.mrb[0].mxu0
        %v4000 = vadd.f32 0.0, %v3999
        %4001 = vdwg.mxu0
        %4002 = vmatprep.subr.mxu0 %v1013
        %4003 = vmatpush1.msra.mxu0 %v1012
        %4004 = vmatprep.subr.mxu0 %v1021
        %4005 = vmatpush1.msra.mxu0 %v1020
        %4006 = vmatprep.subr.mxu0 %v1029
        %4007 = vmatpush1.msra.mxu0 %v1028
        %4008 = vmatprep.subr.mxu0 %v1037
        %4009 = vmatpush1.msra.mxu0 %v1036
        %4010 = vmatprep.subr.mxu0 %v1045
        %4011 = vmatpush1.msra.mxu0 %v1044
        %4012 = vmatprep.subr.mxu0 %v1053
        %4013 = vmatpush1.msra.mxu0 %v1052
        %4014 = vmatprep.subr.mxu0 %v1061
        %4015 = vmatpush1.msra.mxu0 %v1060
        %4016 = vmatprep.subr.mxu0 %v1069
        %4017 = vmatpush1.msra.mxu0 %v1068
        %4018 = vmatprep.subr.mxu0 %v1077
        %4019 = vmatpush1.msra.mxu0 %v1076
        %4020 = vmatprep.subr.mxu0 %v1085
        %4021 = vmatpush1.msra.mxu0 %v1084
        %4022 = vmatprep.subr.mxu0 %v1093
        %4023 = vmatpush1.msra.mxu0 %v1092
        %4024 = vmatprep.subr.mxu0 %v1101
        %4025 = vmatpush1.msra.mxu0 %v1100
        %4026 = vmatprep.subr.mxu0 %v1109
        %4027 = vmatpush1.msra.mxu0 %v1108
        %4028 = vmatprep.subr.mxu0 %v1117
        %4029 = vmatpush1.msra.mxu0 %v1116
        %4030 = vmatprep.subr.mxu0 %v1125
        %4031 = vmatpush1.msra.mxu0 %v1124
        %4032 = vmatprep.subr.mxu0 %v1133
        %4033 = vmatpush1.msra.mxu0 %v1132
        %4034 = vmatprep.subr.mxu0 %v1141
        %4035 = vmatpush1.msra.mxu0 %v1140
        %4036 = vmatprep.subr.mxu0 %v1149
        %4037 = vmatpush1.msra.mxu0 %v1148
        %4038 = vmatprep.subr.mxu0 %v1157
        %4039 = vmatpush1.msra.mxu0 %v1156
        %4040 = vmatprep.subr.mxu0 %v1165
        %4041 = vmatpush1.msra.mxu0 %v1164
        %4042 = vmatprep.subr.mxu0 %v1173
        %4043 = vmatpush1.msra.mxu0 %v1172
        %4044 = vmatprep.subr.mxu0 %v1181
        %4045 = vmatpush1.msra.mxu0 %v1180
        %4046 = vmatprep.subr.mxu0 %v1189
        %4047 = vmatpush1.msra.mxu0 %v1188
        %4048 = vmatprep.subr.mxu0 %v1197
        %4049 = vmatpush1.msra.mxu0 %v1196
        %4050 = vmatprep.subr.mxu0 %v1205
        %4051 = vmatpush1.msra.mxu0 %v1204
        %4052 = vmatprep.subr.mxu0 %v1213
        %4053 = vmatpush1.msra.mxu0 %v1212
        %4054 = vmatprep.subr.mxu0 %v1221
        %4055 = vmatpush1.msra.mxu0 %v1220
        %4056 = vmatprep.subr.mxu0 %v1229
        %4057 = vmatpush1.msra.mxu0 %v1228
        %4058 = vmatprep.subr.mxu0 %v1237
        %4059 = vmatpush1.msra.mxu0 %v1236
        %4060 = vmatprep.subr.mxu0 %v1245
        %4061 = vmatpush1.msra.mxu0 %v1244
        %4062 = vmatprep.subr.mxu0 %v1253
        %4063 = vmatpush1.msra.mxu0 %v1252
        %4064 = vmatprep.subr.mxu0 %v1261
        %4065 = vmatpush1.msra.mxu0 %v1260
        %4066 = vmatprep.mubr.f32.mxu0 %v3798
        %4067 = vmatmul.mubr.f32.gmra.mrb[0].mxu0 %v3774
        %v4068 = vpop.f32.mrb[0].mxu0
        %v4069 = vadd.f32 0.0, %v4068
        %v4070 = vpop.f32.mrb[0].mxu0
        %v4071 = vadd.f32 0.0, %v4070
        %4072 = vdwg.mxu0
        %4073 = vmatprep.subr.mxu0 %v1015
        %4074 = vmatpush1.msra.mxu0 %v1014
        %4075 = vmatprep.subr.mxu0 %v1023
        %4076 = vmatpush1.msra.mxu0 %v1022
        %4077 = vmatprep.subr.mxu0 %v1031
        %4078 = vmatpush1.msra.mxu0 %v1030
        %4079 = vmatprep.subr.mxu0 %v1039
        %4080 = vmatpush1.msra.mxu0 %v1038
        %4081 = vmatprep.subr.mxu0 %v1047
        %4082 = vmatpush1.msra.mxu0 %v1046
        %4083 = vmatprep.subr.mxu0 %v1055
        %4084 = vmatpush1.msra.mxu0 %v1054
        %4085 = vmatprep.subr.mxu0 %v1063
        %4086 = vmatpush1.msra.mxu0 %v1062
        %4087 = vmatprep.subr.mxu0 %v1071
        %4088 = vmatpush1.msra.mxu0 %v1070
        %4089 = vmatprep.subr.mxu0 %v1079
        %4090 = vmatpush1.msra.mxu0 %v1078
        %4091 = vmatprep.subr.mxu0 %v1087
        %4092 = vmatpush1.msra.mxu0 %v1086
        %4093 = vmatprep.subr.mxu0 %v1095
        %4094 = vmatpush1.msra.mxu0 %v1094
        %4095 = vmatprep.subr.mxu0 %v1103
        %4096 = vmatpush1.msra.mxu0 %v1102
        %4097 = vmatprep.subr.mxu0 %v1111
        %4098 = vmatpush1.msra.mxu0 %v1110
        %4099 = vmatprep.subr.mxu0 %v1119
        %4100 = vmatpush1.msra.mxu0 %v1118
        %4101 = vmatprep.subr.mxu0 %v1127
        %4102 = vmatpush1.msra.mxu0 %v1126
        %4103 = vmatprep.subr.mxu0 %v1135
        %4104 = vmatpush1.msra.mxu0 %v1134
        %4105 = vmatprep.subr.mxu0 %v1143
        %4106 = vmatpush1.msra.mxu0 %v1142
        %4107 = vmatprep.subr.mxu0 %v1151
        %4108 = vmatpush1.msra.mxu0 %v1150
        %4109 = vmatprep.subr.mxu0 %v1159
        %4110 = vmatpush1.msra.mxu0 %v1158
        %4111 = vmatprep.subr.mxu0 %v1167
        %4112 = vmatpush1.msra.mxu0 %v1166
        %4113 = vmatprep.subr.mxu0 %v1175
        %4114 = vmatpush1.msra.mxu0 %v1174
        %4115 = vmatprep.subr.mxu0 %v1183
        %4116 = vmatpush1.msra.mxu0 %v1182
        %4117 = vmatprep.subr.mxu0 %v1191
        %4118 = vmatpush1.msra.mxu0 %v1190
        %4119 = vmatprep.subr.mxu0 %v1199
        %4120 = vmatpush1.msra.mxu0 %v1198
        %4121 = vmatprep.subr.mxu0 %v1207
        %4122 = vmatpush1.msra.mxu0 %v1206
        %4123 = vmatprep.subr.mxu0 %v1215
        %4124 = vmatpush1.msra.mxu0 %v1214
        %4125 = vmatprep.subr.mxu0 %v1223
        %4126 = vmatpush1.msra.mxu0 %v1222
        %4127 = vmatprep.subr.mxu0 %v1231
        %4128 = vmatpush1.msra.mxu0 %v1230
        %4129 = vmatprep.subr.mxu0 %v1239
        %4130 = vmatpush1.msra.mxu0 %v1238
        %4131 = vmatprep.subr.mxu0 %v1247
        %4132 = vmatpush1.msra.mxu0 %v1246
        %4133 = vmatprep.subr.mxu0 %v1255
        %4134 = vmatpush1.msra.mxu0 %v1254
        %4135 = vmatprep.subr.mxu0 %v1263
        %4136 = vmatpush1.msra.mxu0 %v1262
        %4137 = vmatprep.mubr.f32.mxu0 %v3798
        %4138 = vmatmul.mubr.f32.gmra.mrb[0].mxu0 %v3774
        %v4139 = vpop.f32.mrb[0].mxu0
        %v4140 = vadd.f32 0.0, %v4139
        %v4141 = vpop.f32.mrb[0].mxu0
        %v4142 = vadd.f32 0.0, %v4141
        %4143 = vdwg.mxu0
        %4144 = vmatprep.subr.mxu0 %v1017
        %4145 = vmatpush1.msra.mxu0 %v1016
        %4146 = vmatprep.subr.mxu0 %v1025
        %4147 = vmatpush1.msra.mxu0 %v1024
        %4148 = vmatprep.subr.mxu0 %v1033
        %4149 = vmatpush1.msra.mxu0 %v1032
        %4150 = vmatprep.subr.mxu0 %v1041
        %4151 = vmatpush1.msra.mxu0 %v1040
        %4152 = vmatprep.subr.mxu0 %v1049
        %4153 = vmatpush1.msra.mxu0 %v1048
        %4154 = vmatprep.subr.mxu0 %v1057
        %4155 = vmatpush1.msra.mxu0 %v1056
        %4156 = vmatprep.subr.mxu0 %v1065
        %4157 = vmatpush1.msra.mxu0 %v1064
        %4158 = vmatprep.subr.mxu0 %v1073
        %4159 = vmatpush1.msra.mxu0 %v1072
        %4160 = vmatprep.subr.mxu0 %v1081
        %4161 = vmatpush1.msra.mxu0 %v1080
        %4162 = vmatprep.subr.mxu0 %v1089
        %4163 = vmatpush1.msra.mxu0 %v1088
        %4164 = vmatprep.subr.mxu0 %v1097
        %4165 = vmatpush1.msra.mxu0 %v1096
        %4166 = vmatprep.subr.mxu0 %v1105
        %4167 = vmatpush1.msra.mxu0 %v1104
        %4168 = vmatprep.subr.mxu0 %v1113
        %4169 = vmatpush1.msra.mxu0 %v1112
        %4170 = vmatprep.subr.mxu0 %v1121
        %4171 = vmatpush1.msra.mxu0 %v1120
        %4172 = vmatprep.subr.mxu0 %v1129
        %4173 = vmatpush1.msra.mxu0 %v1128
        %4174 = vmatprep.subr.mxu0 %v1137
        %4175 = vmatpush1.msra.mxu0 %v1136
        %4176 = vmatprep.subr.mxu0 %v1145
        %4177 = vmatpush1.msra.mxu0 %v1144
        %4178 = vmatprep.subr.mxu0 %v1153
        %4179 = vmatpush1.msra.mxu0 %v1152
        %4180 = vmatprep.subr.mxu0 %v1161
        %4181 = vmatpush1.msra.mxu0 %v1160
        %4182 = vmatprep.subr.mxu0 %v1169
        %4183 = vmatpush1.msra.mxu0 %v1168
        %4184 = vmatprep.subr.mxu0 %v1177
        %4185 = vmatpush1.msra.mxu0 %v1176
        %4186 = vmatprep.subr.mxu0 %v1185
        %4187 = vmatpush1.msra.mxu0 %v1184
        %4188 = vmatprep.subr.mxu0 %v1193
        %4189 = vmatpush1.msra.mxu0 %v1192
        %4190 = vmatprep.subr.mxu0 %v1201
        %4191 = vmatpush1.msra.mxu0 %v1200
        %4192 = vmatprep.subr.mxu0 %v1209
        %4193 = vmatpush1.msra.mxu0 %v1208
        %4194 = vmatprep.subr.mxu0 %v1217
        %4195 = vmatpush1.msra.mxu0 %v1216
        %4196 = vmatprep.subr.mxu0 %v1225
        %4197 = vmatpush1.msra.mxu0 %v1224
        %4198 = vmatprep.subr.mxu0 %v1233
        %4199 = vmatpush1.msra.mxu0 %v1232
        %4200 = vmatprep.subr.mxu0 %v1241
        %4201 = vmatpush1.msra.mxu0 %v1240
        %4202 = vmatprep.subr.mxu0 %v1249
        %4203 = vmatpush1.msra.mxu0 %v1248
        %4204 = vmatprep.subr.mxu0 %v1257
        %4205 = vmatpush1.msra.mxu0 %v1256
        %4206 = vmatprep.subr.mxu0 %v1265
        %4207 = vmatpush1.msra.mxu0 %v1264
        %4208 = vmatprep.mubr.f32.mxu0 %v3798
        %4209 = vmatmul.mubr.f32.gmra.mrb[0].mxu0 %v3774
        %v4210 = vpop.f32.mrb[0].mxu0
        %v4211 = vadd.f32 0.0, %v4210
        %v4212 = vpop.f32.mrb[0].mxu0
        %v4213 = vadd.f32 0.0, %v4212
        %4214 = vdwg.mxu0
        %s4215 = scalar_lea.vmem [#allocation2], 4
        %v4216 = vld [vmem:[%s4215] ss:$8 sm:$0xf]
        %s4217 = scalar_lea.vmem [#allocation2], 68
        %v4218 = vld [vmem:[%s4217] ss:$8 sm:$0xf]
        %s4219 = scalar_lea.vmem [#allocation2], 132
        %v4220 = vld [vmem:[%s4219] ss:$8 sm:$0xf]
        %s4221 = scalar_lea.vmem [#allocation2], 196
        %v4222 = vld [vmem:[%s4221] ss:$8 sm:$0xf]
        %s4223 = scalar_lea.vmem [#allocation2], 260
        %v4224 = vld [vmem:[%s4223] ss:$8 sm:$0xf]
        %s4225 = scalar_lea.vmem [#allocation2], 324
        %v4226 = vld [vmem:[%s4225] ss:$8 sm:$0xf]
        %s4227 = scalar_lea.vmem [#allocation2], 388
        %v4228 = vld [vmem:[%s4227] ss:$8 sm:$0xf]
        %s4229 = scalar_lea.vmem [#allocation2], 452
        %v4230 = vld [vmem:[%s4229] ss:$8 sm:$0xf]
        %v4239 = vcombine.low %v4216, %v4218
        %v4240 = vcombine.low %v4220, %v4222
        %v4241 = vcombine.low %v4224, %v4226
        %v4242 = vcombine.low %v4228, %v4230
        %v4244 = vunpack.c.l.s4 1966171168
        %v4245 = vunpack.c.0.s8 %v4244
        %v4246 = vlaneseq
        %v4247 = vshrl.u32 %v4246, 7
        %v4248 = vsub.s32 %v4245, %v4247
        %v4249 = vrot.slane %v4239, %v4248
        %v4251 = vunpack.c.l.s4 1966171168
        %v4252 = vunpack.c.0.s8 %v4251
        %v4253 = vlaneseq
        %v4254 = vshrl.u32 %v4253, 7
        %v4255 = vsub.s32 %v4252, %v4254
        %v4256 = vrot.slane %v4240, %v4255
        %v4258 = vunpack.c.l.s4 1966171168
        %v4259 = vunpack.c.0.s8 %v4258
        %v4260 = vlaneseq
        %v4261 = vshrl.u32 %v4260, 7
        %v4262 = vsub.s32 %v4259, %v4261
        %v4263 = vrot.slane %v4241, %v4262
        %v4265 = vunpack.c.l.s4 1966171168
        %v4266 = vunpack.c.0.s8 %v4265
        %v4267 = vlaneseq
        %v4268 = vshrl.u32 %v4267, 7
        %v4269 = vsub.s32 %v4266, %v4268
        %v4270 = vrot.slane %v4242, %v4269
        %v4271 = vcombine.low %v4249, %v4256
        %v4272 = vcombine.high %v4249, %v4256
        %v4273 = vcombine.low %v4263, %v4270
        %v4274 = vcombine.high %v4263, %v4270
        %v4276 = vunpack.c.l.s4 1966171168
        %v4277 = vunpack.c.0.s8 %v4276
        %v4278 = vlaneseq
        %v4279 = vshrl.u32 %v4278, 7
        %v4280 = vsub.s32 %v4277, %v4279
        %v4281 = vrot.slane %v4271, %v4280
        %v4283 = vunpack.c.l.s4 1966171168
        %v4284 = vunpack.c.0.s8 %v4283
        %v4285 = vlaneseq
        %v4286 = vshrl.u32 %v4285, 7
        %v4287 = vsub.s32 %v4284, %v4286
        %v4288 = vrot.slane %v4272, %v4287
        %v4290 = vunpack.c.l.s4 1966171168
        %v4291 = vunpack.c.0.s8 %v4290
        %v4292 = vlaneseq
        %v4293 = vshrl.u32 %v4292, 7
        %v4294 = vsub.s32 %v4291, %v4293
        %v4295 = vrot.slane %v4273, %v4294
        %v4297 = vunpack.c.l.s4 1966171168
        %v4298 = vunpack.c.0.s8 %v4297
        %v4299 = vlaneseq
        %v4300 = vshrl.u32 %v4299, 7
        %v4301 = vsub.s32 %v4298, %v4300
        %v4302 = vrot.slane %v4274, %v4301
        %v4303 = vcombine.low %v4281, %v4295
        %v4304 = vcombine.high %v4281, %v4295
        %v4305 = vcombine.low %v4288, %v4302
        %v4306 = vcombine.high %v4288, %v4302
        %v4311 = vadd.f32 %v3998, %v4303
        %v4312 = vadd.f32 %v4000, %v4305
        %v4313 = vadd.f32 %v4069, %v4304
        %v4314 = vadd.f32 %v4071, %v4306
        %s4315 = scalar_lea.vmem [#allocation2], 35
        %v4316 = vld [vmem:[%s4315] ss:$8 sm:$0xf]
        %s4317 = scalar_lea.vmem [#allocation2], 99
        %v4318 = vld [vmem:[%s4317] ss:$8 sm:$0xf]
        %s4319 = scalar_lea.vmem [#allocation2], 163
        %v4320 = vld [vmem:[%s4319] ss:$8 sm:$0xf]
        %s4321 = scalar_lea.vmem [#allocation2], 227
        %v4322 = vld [vmem:[%s4321] ss:$8 sm:$0xf]
        %s4323 = scalar_lea.vmem [#allocation2], 291
        %v4324 = vld [vmem:[%s4323] ss:$8 sm:$0xf]
        %s4325 = scalar_lea.vmem [#allocation2], 355
        %v4326 = vld [vmem:[%s4325] ss:$8 sm:$0xf]
        %s4327 = scalar_lea.vmem [#allocation2], 419
        %v4328 = vld [vmem:[%s4327] ss:$8 sm:$0xf]
        %s4329 = scalar_lea.vmem [#allocation2], 483
        %v4330 = vld [vmem:[%s4329] ss:$8 sm:$0xf]
        %v4339 = vcombine.low %v4316, %v4318
        %v4340 = vcombine.low %v4320, %v4322
        %v4341 = vcombine.low %v4324, %v4326
        %v4342 = vcombine.low %v4328, %v4330
        %v4344 = vunpack.c.l.s4 1966171168
        %v4345 = vunpack.c.0.s8 %v4344
        %v4346 = vlaneseq
        %v4347 = vshrl.u32 %v4346, 7
        %v4348 = vsub.s32 %v4345, %v4347
        %v4349 = vrot.slane %v4339, %v4348
        %v4351 = vunpack.c.l.s4 1966171168
        %v4352 = vunpack.c.0.s8 %v4351
        %v4353 = vlaneseq
        %v4354 = vshrl.u32 %v4353, 7
        %v4355 = vsub.s32 %v4352, %v4354
        %v4356 = vrot.slane %v4340, %v4355
        %v4358 = vunpack.c.l.s4 1966171168
        %v4359 = vunpack.c.0.s8 %v4358
        %v4360 = vlaneseq
        %v4361 = vshrl.u32 %v4360, 7
        %v4362 = vsub.s32 %v4359, %v4361
        %v4363 = vrot.slane %v4341, %v4362
        %v4365 = vunpack.c.l.s4 1966171168
        %v4366 = vunpack.c.0.s8 %v4365
        %v4367 = vlaneseq
        %v4368 = vshrl.u32 %v4367, 7
        %v4369 = vsub.s32 %v4366, %v4368
        %v4370 = vrot.slane %v4342, %v4369
        %v4371 = vcombine.low %v4349, %v4356
        %v4372 = vcombine.high %v4349, %v4356
        %v4373 = vcombine.low %v4363, %v4370
        %v4374 = vcombine.high %v4363, %v4370
        %v4376 = vunpack.c.l.s4 1966171168
        %v4377 = vunpack.c.0.s8 %v4376
        %v4378 = vlaneseq
        %v4379 = vshrl.u32 %v4378, 7
        %v4380 = vsub.s32 %v4377, %v4379
        %v4381 = vrot.slane %v4371, %v4380
        %v4383 = vunpack.c.l.s4 1966171168
        %v4384 = vunpack.c.0.s8 %v4383
        %v4385 = vlaneseq
        %v4386 = vshrl.u32 %v4385, 7
        %v4387 = vsub.s32 %v4384, %v4386
        %v4388 = vrot.slane %v4372, %v4387
        %v4390 = vunpack.c.l.s4 1966171168
        %v4391 = vunpack.c.0.s8 %v4390
        %v4392 = vlaneseq
        %v4393 = vshrl.u32 %v4392, 7
        %v4394 = vsub.s32 %v4391, %v4393
        %v4395 = vrot.slane %v4373, %v4394
        %v4397 = vunpack.c.l.s4 1966171168
        %v4398 = vunpack.c.0.s8 %v4397
        %v4399 = vlaneseq
        %v4400 = vshrl.u32 %v4399, 7
        %v4401 = vsub.s32 %v4398, %v4400
        %v4402 = vrot.slane %v4374, %v4401
        %v4403 = vcombine.low %v4381, %v4395
        %v4404 = vcombine.high %v4381, %v4395
        %v4405 = vcombine.low %v4388, %v4402
        %v4406 = vcombine.high %v4388, %v4402
        %v4411 = vadd.f32 %v4140, %v4403
        %v4412 = vadd.f32 %v4142, %v4405
        %v4413 = vadd.f32 %v4211, %v4404
        %v4414 = vadd.f32 %v4213, %v4406
        %v4415 = vxor.u32 %v4311, 2147483648
        %v4416 = vmul.f32 %v4415, 1.442695
        %v4417 = vpow.pop %v4416
        %v4418 = vadd.f32 %v4417, 1.0
        %v4419 = vrcp.pop %v4418
        %v4420 = vmul.f32 1.0, %v4419
        %v4421 = vxor.u32 %v4312, 2147483648
        %v4422 = vmul.f32 %v4421, 1.442695
        %v4423 = vpow.pop %v4422
        %v4424 = vadd.f32 %v4423, 1.0
        %v4425 = vrcp.pop %v4424
        %v4426 = vmul.f32 1.0, %v4425
        %v4427 = vtanh.pop %v4313
        %v4428 = vxor.u32 %v4314, 2147483648
        %v4429 = vmul.f32 %v4428, 1.442695
        %v4430 = vpow.pop %v4429
        %v4431 = vadd.f32 %v4430, 1.0
        %v4432 = vrcp.pop %v4431
        %v4433 = vmul.f32 1.0, %v4432
        %v4434 = vmul.f32 %v4426, %v3772
        %v4435 = vmul.f32 %v4420, %v4427
        %v4436 = vadd.f32 %v4434, %v4435
        %v4437 = vtanh.pop %v4436
        %v4438 = vmul.f32 %v4433, %v4437
        %v4439 = vxor.u32 %v4411, 2147483648
        %v4440 = vmul.f32 %v4439, 1.442695
        %v4441 = vpow.pop %v4440
        %v4442 = vadd.f32 %v4441, 1.0
        %v4443 = vrcp.pop %v4442
        %v4444 = vmul.f32 1.0, %v4443
        %v4445 = vxor.u32 %v4412, 2147483648
        %v4446 = vmul.f32 %v4445, 1.442695
        %v4447 = vpow.pop %v4446
        %v4448 = vadd.f32 %v4447, 1.0
        %v4449 = vrcp.pop %v4448
        %v4450 = vmul.f32 1.0, %v4449
        %v4451 = vtanh.pop %v4413
        %v4452 = vxor.u32 %v4414, 2147483648
        %v4453 = vmul.f32 %v4452, 1.442695
        %v4454 = vpow.pop %v4453
        %v4455 = vadd.f32 %v4454, 1.0
        %v4456 = vrcp.pop %v4455
        %v4457 = vmul.f32 1.0, %v4456
        %v4458 = vmul.f32 %v4450, %v3796
        %v4459 = vmul.f32 %v4444, %v4451
        %v4460 = vadd.f32 %v4458, %v4459
        %v4461 = vtanh.pop %v4460
        %v4462 = vmul.f32 %v4457, %v4461
        %v4464 = vcombine.high %v4438, %v4438
        %v4466 = vunpack.c.l.s4 1966171168
        %v4467 = vunpack.c.0.s8 %v4466
        %v4468 = vlaneseq
        %v4469 = vshrl.u32 %v4468, 7
        %v4470 = vsub.s32 %v4467, %v4469
        %v4471 = vrot.slane %v4438, %v4470
        %v4473 = vunpack.c.l.s4 1966171168
        %v4474 = vunpack.c.0.s8 %v4473
        %v4475 = vlaneseq
        %v4476 = vshrl.u32 %v4475, 7
        %v4477 = vsub.s32 %v4474, %v4476
        %v4478 = vrot.slane %v4464, %v4477
        %v4479 = vcombine.high %v4471, %v4471
        %v4480 = vcombine.high %v4478, %v4478
        %v4482 = vunpack.c.l.s4 1966171168
        %v4483 = vunpack.c.0.s8 %v4482
        %v4484 = vlaneseq
        %v4485 = vshrl.u32 %v4484, 7
        %v4486 = vsub.s32 %v4483, %v4485
        %v4487 = vrot.slane %v4471, %v4486
        %v4489 = vunpack.c.l.s4 1966171168
        %v4490 = vunpack.c.0.s8 %v4489
        %v4491 = vlaneseq
        %v4492 = vshrl.u32 %v4491, 7
        %v4493 = vsub.s32 %v4490, %v4492
        %v4494 = vrot.slane %v4478, %v4493
        %v4496 = vunpack.c.l.s4 1966171168
        %v4497 = vunpack.c.0.s8 %v4496
        %v4498 = vlaneseq
        %v4499 = vshrl.u32 %v4498, 7
        %v4500 = vsub.s32 %v4497, %v4499
        %v4501 = vrot.slane %v4479, %v4500
        %v4503 = vunpack.c.l.s4 1966171168
        %v4504 = vunpack.c.0.s8 %v4503
        %v4505 = vlaneseq
        %v4506 = vshrl.u32 %v4505, 7
        %v4507 = vsub.s32 %v4504, %v4506
        %v4508 = vrot.slane %v4480, %v4507
        %v4509 = vcombine.high %v4487, %v4487
        %v4510 = vcombine.high %v4494, %v4494
        %v4511 = vcombine.high %v4501, %v4501
        %v4512 = vcombine.high %v4508, %v4508
        %4521 = vst [vmem:[#allocation3 + $0x4] sm:$0x1] %v4487
        %4522 = vst [vmem:[#allocation3 + $0x14] sm:$0x1] %v4501
        %4523 = vst [vmem:[#allocation3 + $0x24] sm:$0x1] %v4509
        %4524 = vst [vmem:[#allocation3 + $0x34] sm:$0x1] %v4511
        %4525 = vst [vmem:[#allocation3 + $0x44] sm:$0x1] %v4494
        %4526 = vst [vmem:[#allocation3 + $0x54] sm:$0x1] %v4508
        %4527 = vst [vmem:[#allocation3 + $0x64] sm:$0x1] %v4510
        %4528 = vst [vmem:[#allocation3 + $0x74] sm:$0x1] %v4512
        %v4530 = vcombine.high %v4462, %v4462
        %v4532 = vunpack.c.l.s4 1966171168
        %v4533 = vunpack.c.0.s8 %v4532
        %v4534 = vlaneseq
        %v4535 = vshrl.u32 %v4534, 7
        %v4536 = vsub.s32 %v4533, %v4535
        %v4537 = vrot.slane %v4462, %v4536
        %v4539 = vunpack.c.l.s4 1966171168
        %v4540 = vunpack.c.0.s8 %v4539
        %v4541 = vlaneseq
        %v4542 = vshrl.u32 %v4541, 7
        %v4543 = vsub.s32 %v4540, %v4542
        %v4544 = vrot.slane %v4530, %v4543
        %v4545 = vcombine.high %v4537, %v4537
        %v4546 = vcombine.high %v4544, %v4544
        %v4548 = vunpack.c.l.s4 1966171168
        %v4549 = vunpack.c.0.s8 %v4548
        %v4550 = vlaneseq
        %v4551 = vshrl.u32 %v4550, 7
        %v4552 = vsub.s32 %v4549, %v4551
        %v4553 = vrot.slane %v4537, %v4552
        %v4555 = vunpack.c.l.s4 1966171168
        %v4556 = vunpack.c.0.s8 %v4555
        %v4557 = vlaneseq
        %v4558 = vshrl.u32 %v4557, 7
        %v4559 = vsub.s32 %v4556, %v4558
        %v4560 = vrot.slane %v4544, %v4559
        %v4562 = vunpack.c.l.s4 1966171168
        %v4563 = vunpack.c.0.s8 %v4562
        %v4564 = vlaneseq
        %v4565 = vshrl.u32 %v4564, 7
        %v4566 = vsub.s32 %v4563, %v4565
        %v4567 = vrot.slane %v4545, %v4566
        %v4569 = vunpack.c.l.s4 1966171168
        %v4570 = vunpack.c.0.s8 %v4569
        %v4571 = vlaneseq
        %v4572 = vshrl.u32 %v4571, 7
        %v4573 = vsub.s32 %v4570, %v4572
        %v4574 = vrot.slane %v4546, %v4573
        %v4575 = vcombine.high %v4553, %v4553
        %v4576 = vcombine.high %v4560, %v4560
        %v4577 = vcombine.high %v4567, %v4567
        %v4578 = vcombine.high %v4574, %v4574
        %4587 = vst [vmem:[#allocation3 + $0xb] sm:$0x1] %v4553
        %4588 = vst [vmem:[#allocation3 + $0x1b] sm:$0x1] %v4567
        %4589 = vst [vmem:[#allocation3 + $0x2b] sm:$0x1] %v4575
        %4590 = vst [vmem:[#allocation3 + $0x3b] sm:$0x1] %v4577
        %4591 = vst [vmem:[#allocation3 + $0x4b] sm:$0x1] %v4560
        %4592 = vst [vmem:[#allocation3 + $0x5b] sm:$0x1] %v4574
        %4593 = vst [vmem:[#allocation3 + $0x6b] sm:$0x1] %v4576
        %4594 = vst [vmem:[#allocation3 + $0x7b] sm:$0x1] %v4578
        %4595 = vmatprep.subr.mxu0 %v1011
        %4596 = vmatpush1.msra.mxu0 %v1010
        %4597 = vmatprep.subr.mxu0 %v1019
        %4598 = vmatpush1.msra.mxu0 %v1018
        %4599 = vmatprep.subr.mxu0 %v1027
        %4600 = vmatpush1.msra.mxu0 %v1026
        %4601 = vmatprep.subr.mxu0 %v1035
        %4602 = vmatpush1.msra.mxu0 %v1034
        %4603 = vmatprep.subr.mxu0 %v1043
        %4604 = vmatpush1.msra.mxu0 %v1042
        %4605 = vmatprep.subr.mxu0 %v1051
        %4606 = vmatpush1.msra.mxu0 %v1050
        %4607 = vmatprep.subr.mxu0 %v1059
        %4608 = vmatpush1.msra.mxu0 %v1058
        %4609 = vmatprep.subr.mxu0 %v1067
        %4610 = vmatpush1.msra.mxu0 %v1066
        %4611 = vmatprep.subr.mxu0 %v1075
        %4612 = vmatpush1.msra.mxu0 %v1074
        %4613 = vmatprep.subr.mxu0 %v1083
        %4614 = vmatpush1.msra.mxu0 %v1082
        %4615 = vmatprep.subr.mxu0 %v1091
        %4616 = vmatpush1.msra.mxu0 %v1090
        %4617 = vmatprep.subr.mxu0 %v1099
        %4618 = vmatpush1.msra.mxu0 %v1098
        %4619 = vmatprep.subr.mxu0 %v1107
        %4620 = vmatpush1.msra.mxu0 %v1106
        %4621 = vmatprep.subr.mxu0 %v1115
        %4622 = vmatpush1.msra.mxu0 %v1114
        %4623 = vmatprep.subr.mxu0 %v1123
        %4624 = vmatpush1.msra.mxu0 %v1122
        %4625 = vmatprep.subr.mxu0 %v1131
        %4626 = vmatpush1.msra.mxu0 %v1130
        %4627 = vmatprep.subr.mxu0 %v1139
        %4628 = vmatpush1.msra.mxu0 %v1138
        %4629 = vmatprep.subr.mxu0 %v1147
        %4630 = vmatpush1.msra.mxu0 %v1146
        %4631 = vmatprep.subr.mxu0 %v1155
        %4632 = vmatpush1.msra.mxu0 %v1154
        %4633 = vmatprep.subr.mxu0 %v1163
        %4634 = vmatpush1.msra.mxu0 %v1162
        %4635 = vmatprep.subr.mxu0 %v1171
        %4636 = vmatpush1.msra.mxu0 %v1170
        %4637 = vmatprep.subr.mxu0 %v1179
        %4638 = vmatpush1.msra.mxu0 %v1178
        %4639 = vmatprep.subr.mxu0 %v1187
        %4640 = vmatpush1.msra.mxu0 %v1186
        %4641 = vmatprep.subr.mxu0 %v1195
        %4642 = vmatpush1.msra.mxu0 %v1194
        %4643 = vmatprep.subr.mxu0 %v1203
        %4644 = vmatpush1.msra.mxu0 %v1202
        %4645 = vmatprep.subr.mxu0 %v1211
        %4646 = vmatpush1.msra.mxu0 %v1210
        %4647 = vmatprep.subr.mxu0 %v1219
        %4648 = vmatpush1.msra.mxu0 %v1218
        %4649 = vmatprep.subr.mxu0 %v1227
        %4650 = vmatpush1.msra.mxu0 %v1226
        %4651 = vmatprep.subr.mxu0 %v1235
        %4652 = vmatpush1.msra.mxu0 %v1234
        %4653 = vmatprep.subr.mxu0 %v1243
        %4654 = vmatpush1.msra.mxu0 %v1242
        %4655 = vmatprep.subr.mxu0 %v1251
        %4656 = vmatpush1.msra.mxu0 %v1250
        %4657 = vmatprep.subr.mxu0 %v1259
        %4658 = vmatpush1.msra.mxu0 %v1258
        %4659 = vmatprep.mubr.f32.mxu0 %v4462
        %4660 = vmatmul.mubr.f32.gmra.mrb[0].mxu0 %v4438
        %v4661 = vpop.f32.mrb[0].mxu0
        %v4662 = vadd.f32 0.0, %v4661
        %v4663 = vpop.f32.mrb[0].mxu0
        %v4664 = vadd.f32 0.0, %v4663
        %4665 = vdwg.mxu0
        %4666 = vmatprep.subr.mxu0 %v1013
        %4667 = vmatpush1.msra.mxu0 %v1012
        %4668 = vmatprep.subr.mxu0 %v1021
        %4669 = vmatpush1.msra.mxu0 %v1020
        %4670 = vmatprep.subr.mxu0 %v1029
        %4671 = vmatpush1.msra.mxu0 %v1028
        %4672 = vmatprep.subr.mxu0 %v1037
        %4673 = vmatpush1.msra.mxu0 %v1036
        %4674 = vmatprep.subr.mxu0 %v1045
        %4675 = vmatpush1.msra.mxu0 %v1044
        %4676 = vmatprep.subr.mxu0 %v1053
        %4677 = vmatpush1.msra.mxu0 %v1052
        %4678 = vmatprep.subr.mxu0 %v1061
        %4679 = vmatpush1.msra.mxu0 %v1060
        %4680 = vmatprep.subr.mxu0 %v1069
        %4681 = vmatpush1.msra.mxu0 %v1068
        %4682 = vmatprep.subr.mxu0 %v1077
        %4683 = vmatpush1.msra.mxu0 %v1076
        %4684 = vmatprep.subr.mxu0 %v1085
        %4685 = vmatpush1.msra.mxu0 %v1084
        %4686 = vmatprep.subr.mxu0 %v1093
        %4687 = vmatpush1.msra.mxu0 %v1092
        %4688 = vmatprep.subr.mxu0 %v1101
        %4689 = vmatpush1.msra.mxu0 %v1100
        %4690 = vmatprep.subr.mxu0 %v1109
        %4691 = vmatpush1.msra.mxu0 %v1108
        %4692 = vmatprep.subr.mxu0 %v1117
        %4693 = vmatpush1.msra.mxu0 %v1116
        %4694 = vmatprep.subr.mxu0 %v1125
        %4695 = vmatpush1.msra.mxu0 %v1124
        %4696 = vmatprep.subr.mxu0 %v1133
        %4697 = vmatpush1.msra.mxu0 %v1132
        %4698 = vmatprep.subr.mxu0 %v1141
        %4699 = vmatpush1.msra.mxu0 %v1140
        %4700 = vmatprep.subr.mxu0 %v1149
        %4701 = vmatpush1.msra.mxu0 %v1148
        %4702 = vmatprep.subr.mxu0 %v1157
        %4703 = vmatpush1.msra.mxu0 %v1156
        %4704 = vmatprep.subr.mxu0 %v1165
        %4705 = vmatpush1.msra.mxu0 %v1164
        %4706 = vmatprep.subr.mxu0 %v1173
        %4707 = vmatpush1.msra.mxu0 %v1172
        %4708 = vmatprep.subr.mxu0 %v1181
        %4709 = vmatpush1.msra.mxu0 %v1180
        %4710 = vmatprep.subr.mxu0 %v1189
        %4711 = vmatpush1.msra.mxu0 %v1188
        %4712 = vmatprep.subr.mxu0 %v1197
        %4713 = vmatpush1.msra.mxu0 %v1196
        %4714 = vmatprep.subr.mxu0 %v1205
        %4715 = vmatpush1.msra.mxu0 %v1204
        %4716 = vmatprep.subr.mxu0 %v1213
        %4717 = vmatpush1.msra.mxu0 %v1212
        %4718 = vmatprep.subr.mxu0 %v1221
        %4719 = vmatpush1.msra.mxu0 %v1220
        %4720 = vmatprep.subr.mxu0 %v1229
        %4721 = vmatpush1.msra.mxu0 %v1228
        %4722 = vmatprep.subr.mxu0 %v1237
        %4723 = vmatpush1.msra.mxu0 %v1236
        %4724 = vmatprep.subr.mxu0 %v1245
        %4725 = vmatpush1.msra.mxu0 %v1244
        %4726 = vmatprep.subr.mxu0 %v1253
        %4727 = vmatpush1.msra.mxu0 %v1252
        %4728 = vmatprep.subr.mxu0 %v1261
        %4729 = vmatpush1.msra.mxu0 %v1260
        %4730 = vmatprep.mubr.f32.mxu0 %v4462
        %4731 = vmatmul.mubr.f32.gmra.mrb[0].mxu0 %v4438
        %v4732 = vpop.f32.mrb[0].mxu0
        %v4733 = vadd.f32 0.0, %v4732
        %v4734 = vpop.f32.mrb[0].mxu0
        %v4735 = vadd.f32 0.0, %v4734
        %4736 = vdwg.mxu0
        %4737 = vmatprep.subr.mxu0 %v1015
        %4738 = vmatpush1.msra.mxu0 %v1014
        %4739 = vmatprep.subr.mxu0 %v1023
        %4740 = vmatpush1.msra.mxu0 %v1022
        %4741 = vmatprep.subr.mxu0 %v1031
        %4742 = vmatpush1.msra.mxu0 %v1030
        %4743 = vmatprep.subr.mxu0 %v1039
        %4744 = vmatpush1.msra.mxu0 %v1038
        %4745 = vmatprep.subr.mxu0 %v1047
        %4746 = vmatpush1.msra.mxu0 %v1046
        %4747 = vmatprep.subr.mxu0 %v1055
        %4748 = vmatpush1.msra.mxu0 %v1054
        %4749 = vmatprep.subr.mxu0 %v1063
        %4750 = vmatpush1.msra.mxu0 %v1062
        %4751 = vmatprep.subr.mxu0 %v1071
        %4752 = vmatpush1.msra.mxu0 %v1070
        %4753 = vmatprep.subr.mxu0 %v1079
        %4754 = vmatpush1.msra.mxu0 %v1078
        %4755 = vmatprep.subr.mxu0 %v1087
        %4756 = vmatpush1.msra.mxu0 %v1086
        %4757 = vmatprep.subr.mxu0 %v1095
        %4758 = vmatpush1.msra.mxu0 %v1094
        %4759 = vmatprep.subr.mxu0 %v1103
        %4760 = vmatpush1.msra.mxu0 %v1102
        %4761 = vmatprep.subr.mxu0 %v1111
        %4762 = vmatpush1.msra.mxu0 %v1110
        %4763 = vmatprep.subr.mxu0 %v1119
        %4764 = vmatpush1.msra.mxu0 %v1118
        %4765 = vmatprep.subr.mxu0 %v1127
        %4766 = vmatpush1.msra.mxu0 %v1126
        %4767 = vmatprep.subr.mxu0 %v1135
        %4768 = vmatpush1.msra.mxu0 %v1134
        %4769 = vmatprep.subr.mxu0 %v1143
        %4770 = vmatpush1.msra.mxu0 %v1142
        %4771 = vmatprep.subr.mxu0 %v1151
        %4772 = vmatpush1.msra.mxu0 %v1150
        %4773 = vmatprep.subr.mxu0 %v1159
        %4774 = vmatpush1.msra.mxu0 %v1158
        %4775 = vmatprep.subr.mxu0 %v1167
        %4776 = vmatpush1.msra.mxu0 %v1166
        %4777 = vmatprep.subr.mxu0 %v1175
        %4778 = vmatpush1.msra.mxu0 %v1174
        %4779 = vmatprep.subr.mxu0 %v1183
        %4780 = vmatpush1.msra.mxu0 %v1182
        %4781 = vmatprep.subr.mxu0 %v1191
        %4782 = vmatpush1.msra.mxu0 %v1190
        %4783 = vmatprep.subr.mxu0 %v1199
        %4784 = vmatpush1.msra.mxu0 %v1198
        %4785 = vmatprep.subr.mxu0 %v1207
        %4786 = vmatpush1.msra.mxu0 %v1206
        %4787 = vmatprep.subr.mxu0 %v1215
        %4788 = vmatpush1.msra.mxu0 %v1214
        %4789 = vmatprep.subr.mxu0 %v1223
        %4790 = vmatpush1.msra.mxu0 %v1222
        %4791 = vmatprep.subr.mxu0 %v1231
        %4792 = vmatpush1.msra.mxu0 %v1230
        %4793 = vmatprep.subr.mxu0 %v1239
        %4794 = vmatpush1.msra.mxu0 %v1238
        %4795 = vmatprep.subr.mxu0 %v1247
        %4796 = vmatpush1.msra.mxu0 %v1246
        %4797 = vmatprep.subr.mxu0 %v1255
        %4798 = vmatpush1.msra.mxu0 %v1254
        %4799 = vmatprep.subr.mxu0 %v1263
        %4800 = vmatpush1.msra.mxu0 %v1262
        %4801 = vmatprep.mubr.f32.mxu0 %v4462
        %4802 = vmatmul.mubr.f32.gmra.mrb[0].mxu0 %v4438
        %v4803 = vpop.f32.mrb[0].mxu0
        %v4804 = vadd.f32 0.0, %v4803
        %v4805 = vpop.f32.mrb[0].mxu0
        %v4806 = vadd.f32 0.0, %v4805
        %4807 = vdwg.mxu0
        %4808 = vmatprep.subr.mxu0 %v1017
        %4809 = vmatpush1.msra.mxu0 %v1016
        %4810 = vmatprep.subr.mxu0 %v1025
        %4811 = vmatpush1.msra.mxu0 %v1024
        %4812 = vmatprep.subr.mxu0 %v1033
        %4813 = vmatpush1.msra.mxu0 %v1032
        %4814 = vmatprep.subr.mxu0 %v1041
        %4815 = vmatpush1.msra.mxu0 %v1040
        %4816 = vmatprep.subr.mxu0 %v1049
        %4817 = vmatpush1.msra.mxu0 %v1048
        %4818 = vmatprep.subr.mxu0 %v1057
        %4819 = vmatpush1.msra.mxu0 %v1056
        %4820 = vmatprep.subr.mxu0 %v1065
        %4821 = vmatpush1.msra.mxu0 %v1064
        %4822 = vmatprep.subr.mxu0 %v1073
        %4823 = vmatpush1.msra.mxu0 %v1072
        %4824 = vmatprep.subr.mxu0 %v1081
        %4825 = vmatpush1.msra.mxu0 %v1080
        %4826 = vmatprep.subr.mxu0 %v1089
        %4827 = vmatpush1.msra.mxu0 %v1088
        %4828 = vmatprep.subr.mxu0 %v1097
        %4829 = vmatpush1.msra.mxu0 %v1096
        %4830 = vmatprep.subr.mxu0 %v1105
        %4831 = vmatpush1.msra.mxu0 %v1104
        %4832 = vmatprep.subr.mxu0 %v1113
        %4833 = vmatpush1.msra.mxu0 %v1112
        %4834 = vmatprep.subr.mxu0 %v1121
        %4835 = vmatpush1.msra.mxu0 %v1120
        %4836 = vmatprep.subr.mxu0 %v1129
        %4837 = vmatpush1.msra.mxu0 %v1128
        %4838 = vmatprep.subr.mxu0 %v1137
        %4839 = vmatpush1.msra.mxu0 %v1136
        %4840 = vmatprep.subr.mxu0 %v1145
        %4841 = vmatpush1.msra.mxu0 %v1144
        %4842 = vmatprep.subr.mxu0 %v1153
        %4843 = vmatpush1.msra.mxu0 %v1152
        %4844 = vmatprep.subr.mxu0 %v1161
        %4845 = vmatpush1.msra.mxu0 %v1160
        %4846 = vmatprep.subr.mxu0 %v1169
        %4847 = vmatpush1.msra.mxu0 %v1168
        %4848 = vmatprep.subr.mxu0 %v1177
        %4849 = vmatpush1.msra.mxu0 %v1176
        %4850 = vmatprep.subr.mxu0 %v1185
        %4851 = vmatpush1.msra.mxu0 %v1184
        %4852 = vmatprep.subr.mxu0 %v1193
        %4853 = vmatpush1.msra.mxu0 %v1192
        %4854 = vmatprep.subr.mxu0 %v1201
        %4855 = vmatpush1.msra.mxu0 %v1200
        %4856 = vmatprep.subr.mxu0 %v1209
        %4857 = vmatpush1.msra.mxu0 %v1208
        %4858 = vmatprep.subr.mxu0 %v1217
        %4859 = vmatpush1.msra.mxu0 %v1216
        %4860 = vmatprep.subr.mxu0 %v1225
        %4861 = vmatpush1.msra.mxu0 %v1224
        %4862 = vmatprep.subr.mxu0 %v1233
        %4863 = vmatpush1.msra.mxu0 %v1232
        %4864 = vmatprep.subr.mxu0 %v1241
        %4865 = vmatpush1.msra.mxu0 %v1240
        %4866 = vmatprep.subr.mxu0 %v1249
        %4867 = vmatpush1.msra.mxu0 %v1248
        %4868 = vmatprep.subr.mxu0 %v1257
        %4869 = vmatpush1.msra.mxu0 %v1256
        %4870 = vmatprep.subr.mxu0 %v1265
        %4871 = vmatpush1.msra.mxu0 %v1264
        %4872 = vmatprep.mubr.f32.mxu0 %v4462
        %4873 = vmatmul.mubr.f32.gmra.mrb[0].mxu0 %v4438
        %v4874 = vpop.f32.mrb[0].mxu0
        %v4875 = vadd.f32 0.0, %v4874
        %v4876 = vpop.f32.mrb[0].mxu0
        %v4877 = vadd.f32 0.0, %v4876
        %4878 = vdwg.mxu0
        %s4879 = scalar_lea.vmem [#allocation2], 5
        %v4880 = vld [vmem:[%s4879] ss:$8 sm:$0xf]
        %s4881 = scalar_lea.vmem [#allocation2], 69
        %v4882 = vld [vmem:[%s4881] ss:$8 sm:$0xf]
        %s4883 = scalar_lea.vmem [#allocation2], 133
        %v4884 = vld [vmem:[%s4883] ss:$8 sm:$0xf]
        %s4885 = scalar_lea.vmem [#allocation2], 197
        %v4886 = vld [vmem:[%s4885] ss:$8 sm:$0xf]
        %s4887 = scalar_lea.vmem [#allocation2], 261
        %v4888 = vld [vmem:[%s4887] ss:$8 sm:$0xf]
        %s4889 = scalar_lea.vmem [#allocation2], 325
        %v4890 = vld [vmem:[%s4889] ss:$8 sm:$0xf]
        %s4891 = scalar_lea.vmem [#allocation2], 389
        %v4892 = vld [vmem:[%s4891] ss:$8 sm:$0xf]
        %s4893 = scalar_lea.vmem [#allocation2], 453
        %v4894 = vld [vmem:[%s4893] ss:$8 sm:$0xf]
        %v4903 = vcombine.low %v4880, %v4882
        %v4904 = vcombine.low %v4884, %v4886
        %v4905 = vcombine.low %v4888, %v4890
        %v4906 = vcombine.low %v4892, %v4894
        %v4908 = vunpack.c.l.s4 1966171168
        %v4909 = vunpack.c.0.s8 %v4908
        %v4910 = vlaneseq
        %v4911 = vshrl.u32 %v4910, 7
        %v4912 = vsub.s32 %v4909, %v4911
        %v4913 = vrot.slane %v4903, %v4912
        %v4915 = vunpack.c.l.s4 1966171168
        %v4916 = vunpack.c.0.s8 %v4915
        %v4917 = vlaneseq
        %v4918 = vshrl.u32 %v4917, 7
        %v4919 = vsub.s32 %v4916, %v4918
        %v4920 = vrot.slane %v4904, %v4919
        %v4922 = vunpack.c.l.s4 1966171168
        %v4923 = vunpack.c.0.s8 %v4922
        %v4924 = vlaneseq
        %v4925 = vshrl.u32 %v4924, 7
        %v4926 = vsub.s32 %v4923, %v4925
        %v4927 = vrot.slane %v4905, %v4926
        %v4929 = vunpack.c.l.s4 1966171168
        %v4930 = vunpack.c.0.s8 %v4929
        %v4931 = vlaneseq
        %v4932 = vshrl.u32 %v4931, 7
        %v4933 = vsub.s32 %v4930, %v4932
        %v4934 = vrot.slane %v4906, %v4933
        %v4935 = vcombine.low %v4913, %v4920
        %v4936 = vcombine.high %v4913, %v4920
        %v4937 = vcombine.low %v4927, %v4934
        %v4938 = vcombine.high %v4927, %v4934
        %v4940 = vunpack.c.l.s4 1966171168
        %v4941 = vunpack.c.0.s8 %v4940
        %v4942 = vlaneseq
        %v4943 = vshrl.u32 %v4942, 7
        %v4944 = vsub.s32 %v4941, %v4943
        %v4945 = vrot.slane %v4935, %v4944
        %v4947 = vunpack.c.l.s4 1966171168
        %v4948 = vunpack.c.0.s8 %v4947
        %v4949 = vlaneseq
        %v4950 = vshrl.u32 %v4949, 7
        %v4951 = vsub.s32 %v4948, %v4950
        %v4952 = vrot.slane %v4936, %v4951
        %v4954 = vunpack.c.l.s4 1966171168
        %v4955 = vunpack.c.0.s8 %v4954
        %v4956 = vlaneseq
        %v4957 = vshrl.u32 %v4956, 7
        %v4958 = vsub.s32 %v4955, %v4957
        %v4959 = vrot.slane %v4937, %v4958
        %v4961 = vunpack.c.l.s4 1966171168
        %v4962 = vunpack.c.0.s8 %v4961
        %v4963 = vlaneseq
        %v4964 = vshrl.u32 %v4963, 7
        %v4965 = vsub.s32 %v4962, %v4964
        %v4966 = vrot.slane %v4938, %v4965
        %v4967 = vcombine.low %v4945, %v4959
        %v4968 = vcombine.high %v4945, %v4959
        %v4969 = vcombine.low %v4952, %v4966
        %v4970 = vcombine.high %v4952, %v4966
        %v4975 = vadd.f32 %v4662, %v4967
        %v4976 = vadd.f32 %v4664, %v4969
        %v4977 = vadd.f32 %v4733, %v4968
        %v4978 = vadd.f32 %v4735, %v4970
        %s4979 = scalar_lea.vmem [#allocation2], 34
        %v4980 = vld [vmem:[%s4979] ss:$8 sm:$0xf]
        %s4981 = scalar_lea.vmem [#allocation2], 98
        %v4982 = vld [vmem:[%s4981] ss:$8 sm:$0xf]
        %s4983 = scalar_lea.vmem [#allocation2], 162
        %v4984 = vld [vmem:[%s4983] ss:$8 sm:$0xf]
        %s4985 = scalar_lea.vmem [#allocation2], 226
        %v4986 = vld [vmem:[%s4985] ss:$8 sm:$0xf]
        %s4987 = scalar_lea.vmem [#allocation2], 290
        %v4988 = vld [vmem:[%s4987] ss:$8 sm:$0xf]
        %s4989 = scalar_lea.vmem [#allocation2], 354
        %v4990 = vld [vmem:[%s4989] ss:$8 sm:$0xf]
        %s4991 = scalar_lea.vmem [#allocation2], 418
        %v4992 = vld [vmem:[%s4991] ss:$8 sm:$0xf]
        %s4993 = scalar_lea.vmem [#allocation2], 482
        %v4994 = vld [vmem:[%s4993] ss:$8 sm:$0xf]
        %v5003 = vcombine.low %v4980, %v4982
        %v5004 = vcombine.low %v4984, %v4986
        %v5005 = vcombine.low %v4988, %v4990
        %v5006 = vcombine.low %v4992, %v4994
        %v5008 = vunpack.c.l.s4 1966171168
        %v5009 = vunpack.c.0.s8 %v5008
        %v5010 = vlaneseq
        %v5011 = vshrl.u32 %v5010, 7
        %v5012 = vsub.s32 %v5009, %v5011
        %v5013 = vrot.slane %v5003, %v5012
        %v5015 = vunpack.c.l.s4 1966171168
        %v5016 = vunpack.c.0.s8 %v5015
        %v5017 = vlaneseq
        %v5018 = vshrl.u32 %v5017, 7
        %v5019 = vsub.s32 %v5016, %v5018
        %v5020 = vrot.slane %v5004, %v5019
        %v5022 = vunpack.c.l.s4 1966171168
        %v5023 = vunpack.c.0.s8 %v5022
        %v5024 = vlaneseq
        %v5025 = vshrl.u32 %v5024, 7
        %v5026 = vsub.s32 %v5023, %v5025
        %v5027 = vrot.slane %v5005, %v5026
        %v5029 = vunpack.c.l.s4 1966171168
        %v5030 = vunpack.c.0.s8 %v5029
        %v5031 = vlaneseq
        %v5032 = vshrl.u32 %v5031, 7
        %v5033 = vsub.s32 %v5030, %v5032
        %v5034 = vrot.slane %v5006, %v5033
        %v5035 = vcombine.low %v5013, %v5020
        %v5036 = vcombine.high %v5013, %v5020
        %v5037 = vcombine.low %v5027, %v5034
        %v5038 = vcombine.high %v5027, %v5034
        %v5040 = vunpack.c.l.s4 1966171168
        %v5041 = vunpack.c.0.s8 %v5040
        %v5042 = vlaneseq
        %v5043 = vshrl.u32 %v5042, 7
        %v5044 = vsub.s32 %v5041, %v5043
        %v5045 = vrot.slane %v5035, %v5044
        %v5047 = vunpack.c.l.s4 1966171168
        %v5048 = vunpack.c.0.s8 %v5047
        %v5049 = vlaneseq
        %v5050 = vshrl.u32 %v5049, 7
        %v5051 = vsub.s32 %v5048, %v5050
        %v5052 = vrot.slane %v5036, %v5051
        %v5054 = vunpack.c.l.s4 1966171168
        %v5055 = vunpack.c.0.s8 %v5054
        %v5056 = vlaneseq
        %v5057 = vshrl.u32 %v5056, 7
        %v5058 = vsub.s32 %v5055, %v5057
        %v5059 = vrot.slane %v5037, %v5058
        %v5061 = vunpack.c.l.s4 1966171168
        %v5062 = vunpack.c.0.s8 %v5061
        %v5063 = vlaneseq
        %v5064 = vshrl.u32 %v5063, 7
        %v5065 = vsub.s32 %v5062, %v5064
        %v5066 = vrot.slane %v5038, %v5065
        %v5067 = vcombine.low %v5045, %v5059
        %v5068 = vcombine.high %v5045, %v5059
        %v5069 = vcombine.low %v5052, %v5066
        %v5070 = vcombine.high %v5052, %v5066
        %v5075 = vadd.f32 %v4804, %v5067
        %v5076 = vadd.f32 %v4806, %v5069
        %v5077 = vadd.f32 %v4875, %v5068
        %v5078 = vadd.f32 %v4877, %v5070
        %v5079 = vxor.u32 %v4975, 2147483648
        %v5080 = vmul.f32 %v5079, 1.442695
        %v5081 = vpow.pop %v5080
        %v5082 = vadd.f32 %v5081, 1.0
        %v5083 = vrcp.pop %v5082
        %v5084 = vmul.f32 1.0, %v5083
        %v5085 = vxor.u32 %v4976, 2147483648
        %v5086 = vmul.f32 %v5085, 1.442695
        %v5087 = vpow.pop %v5086
        %v5088 = vadd.f32 %v5087, 1.0
        %v5089 = vrcp.pop %v5088
        %v5090 = vmul.f32 1.0, %v5089
        %v5091 = vtanh.pop %v4977
        %v5092 = vxor.u32 %v4978, 2147483648
        %v5093 = vmul.f32 %v5092, 1.442695
        %v5094 = vpow.pop %v5093
        %v5095 = vadd.f32 %v5094, 1.0
        %v5096 = vrcp.pop %v5095
        %v5097 = vmul.f32 1.0, %v5096
        %v5098 = vmul.f32 %v5090, %v4436
        %v5099 = vmul.f32 %v5084, %v5091
        %v5100 = vadd.f32 %v5098, %v5099
        %v5101 = vtanh.pop %v5100
        %v5102 = vmul.f32 %v5097, %v5101
        %v5103 = vxor.u32 %v5075, 2147483648
        %v5104 = vmul.f32 %v5103, 1.442695
        %v5105 = vpow.pop %v5104
        %v5106 = vadd.f32 %v5105, 1.0
        %v5107 = vrcp.pop %v5106
        %v5108 = vmul.f32 1.0, %v5107
        %v5109 = vxor.u32 %v5076, 2147483648
        %v5110 = vmul.f32 %v5109, 1.442695
        %v5111 = vpow.pop %v5110
        %v5112 = vadd.f32 %v5111, 1.0
        %v5113 = vrcp.pop %v5112
        %v5114 = vmul.f32 1.0, %v5113
        %v5115 = vtanh.pop %v5077
        %v5116 = vxor.u32 %v5078, 2147483648
        %v5117 = vmul.f32 %v5116, 1.442695
        %v5118 = vpow.pop %v5117
        %v5119 = vadd.f32 %v5118, 1.0
        %v5120 = vrcp.pop %v5119
        %v5121 = vmul.f32 1.0, %v5120
        %v5122 = vmul.f32 %v5114, %v4460
        %v5123 = vmul.f32 %v5108, %v5115
        %v5124 = vadd.f32 %v5122, %v5123
        %v5125 = vtanh.pop %v5124
        %v5126 = vmul.f32 %v5121, %v5125
        %v5128 = vcombine.high %v5102, %v5102
        %v5130 = vunpack.c.l.s4 1966171168
        %v5131 = vunpack.c.0.s8 %v5130
        %v5132 = vlaneseq
        %v5133 = vshrl.u32 %v5132, 7
        %v5134 = vsub.s32 %v5131, %v5133
        %v5135 = vrot.slane %v5102, %v5134
        %v5137 = vunpack.c.l.s4 1966171168
        %v5138 = vunpack.c.0.s8 %v5137
        %v5139 = vlaneseq
        %v5140 = vshrl.u32 %v5139, 7
        %v5141 = vsub.s32 %v5138, %v5140
        %v5142 = vrot.slane %v5128, %v5141
        %v5143 = vcombine.high %v5135, %v5135
        %v5144 = vcombine.high %v5142, %v5142
        %v5146 = vunpack.c.l.s4 1966171168
        %v5147 = vunpack.c.0.s8 %v5146
        %v5148 = vlaneseq
        %v5149 = vshrl.u32 %v5148, 7
        %v5150 = vsub.s32 %v5147, %v5149
        %v5151 = vrot.slane %v5135, %v5150
        %v5153 = vunpack.c.l.s4 1966171168
        %v5154 = vunpack.c.0.s8 %v5153
        %v5155 = vlaneseq
        %v5156 = vshrl.u32 %v5155, 7
        %v5157 = vsub.s32 %v5154, %v5156
        %v5158 = vrot.slane %v5142, %v5157
        %v5160 = vunpack.c.l.s4 1966171168
        %v5161 = vunpack.c.0.s8 %v5160
        %v5162 = vlaneseq
        %v5163 = vshrl.u32 %v5162, 7
        %v5164 = vsub.s32 %v5161, %v5163
        %v5165 = vrot.slane %v5143, %v5164
        %v5167 = vunpack.c.l.s4 1966171168
        %v5168 = vunpack.c.0.s8 %v5167
        %v5169 = vlaneseq
        %v5170 = vshrl.u32 %v5169, 7
        %v5171 = vsub.s32 %v5168, %v5170
        %v5172 = vrot.slane %v5144, %v5171
        %v5173 = vcombine.high %v5151, %v5151
        %v5174 = vcombine.high %v5158, %v5158
        %v5175 = vcombine.high %v5165, %v5165
        %v5176 = vcombine.high %v5172, %v5172
        %5185 = vst [vmem:[#allocation3 + $0x5] sm:$0x1] %v5151
        %5186 = vst [vmem:[#allocation3 + $0x15] sm:$0x1] %v5165
        %5187 = vst [vmem:[#allocation3 + $0x25] sm:$0x1] %v5173
        %5188 = vst [vmem:[#allocation3 + $0x35] sm:$0x1] %v5175
        %5189 = vst [vmem:[#allocation3 + $0x45] sm:$0x1] %v5158
        %5190 = vst [vmem:[#allocation3 + $0x55] sm:$0x1] %v5172
        %5191 = vst [vmem:[#allocation3 + $0x65] sm:$0x1] %v5174
        %5192 = vst [vmem:[#allocation3 + $0x75] sm:$0x1] %v5176
        %v5194 = vcombine.high %v5126, %v5126
        %v5196 = vunpack.c.l.s4 1966171168
        %v5197 = vunpack.c.0.s8 %v5196
        %v5198 = vlaneseq
        %v5199 = vshrl.u32 %v5198, 7
        %v5200 = vsub.s32 %v5197, %v5199
        %v5201 = vrot.slane %v5126, %v5200
        %v5203 = vunpack.c.l.s4 1966171168
        %v5204 = vunpack.c.0.s8 %v5203
        %v5205 = vlaneseq
        %v5206 = vshrl.u32 %v5205, 7
        %v5207 = vsub.s32 %v5204, %v5206
        %v5208 = vrot.slane %v5194, %v5207
        %v5209 = vcombine.high %v5201, %v5201
        %v5210 = vcombine.high %v5208, %v5208
        %v5212 = vunpack.c.l.s4 1966171168
        %v5213 = vunpack.c.0.s8 %v5212
        %v5214 = vlaneseq
        %v5215 = vshrl.u32 %v5214, 7
        %v5216 = vsub.s32 %v5213, %v5215
        %v5217 = vrot.slane %v5201, %v5216
        %v5219 = vunpack.c.l.s4 1966171168
        %v5220 = vunpack.c.0.s8 %v5219
        %v5221 = vlaneseq
        %v5222 = vshrl.u32 %v5221, 7
        %v5223 = vsub.s32 %v5220, %v5222
        %v5224 = vrot.slane %v5208, %v5223
        %v5226 = vunpack.c.l.s4 1966171168
        %v5227 = vunpack.c.0.s8 %v5226
        %v5228 = vlaneseq
        %v5229 = vshrl.u32 %v5228, 7
        %v5230 = vsub.s32 %v5227, %v5229
        %v5231 = vrot.slane %v5209, %v5230
        %v5233 = vunpack.c.l.s4 1966171168
        %v5234 = vunpack.c.0.s8 %v5233
        %v5235 = vlaneseq
        %v5236 = vshrl.u32 %v5235, 7
        %v5237 = vsub.s32 %v5234, %v5236
        %v5238 = vrot.slane %v5210, %v5237
        %v5239 = vcombine.high %v5217, %v5217
        %v5240 = vcombine.high %v5224, %v5224
        %v5241 = vcombine.high %v5231, %v5231
        %v5242 = vcombine.high %v5238, %v5238
        %5251 = vst [vmem:[#allocation3 + $0xa] sm:$0x1] %v5217
        %5252 = vst [vmem:[#allocation3 + $0x1a] sm:$0x1] %v5231
        %5253 = vst [vmem:[#allocation3 + $0x2a] sm:$0x1] %v5239
        %5254 = vst [vmem:[#allocation3 + $0x3a] sm:$0x1] %v5241
        %5255 = vst [vmem:[#allocation3 + $0x4a] sm:$0x1] %v5224
        %5256 = vst [vmem:[#allocation3 + $0x5a] sm:$0x1] %v5238
        %5257 = vst [vmem:[#allocation3 + $0x6a] sm:$0x1] %v5240
        %5258 = vst [vmem:[#allocation3 + $0x7a] sm:$0x1] %v5242
        %5259 = vmatprep.subr.mxu0 %v1011
        %5260 = vmatpush1.msra.mxu0 %v1010
        %5261 = vmatprep.subr.mxu0 %v1019
        %5262 = vmatpush1.msra.mxu0 %v1018
        %5263 = vmatprep.subr.mxu0 %v1027
        %5264 = vmatpush1.msra.mxu0 %v1026
        %5265 = vmatprep.subr.mxu0 %v1035
        %5266 = vmatpush1.msra.mxu0 %v1034
        %5267 = vmatprep.subr.mxu0 %v1043
        %5268 = vmatpush1.msra.mxu0 %v1042
        %5269 = vmatprep.subr.mxu0 %v1051
        %5270 = vmatpush1.msra.mxu0 %v1050
        %5271 = vmatprep.subr.mxu0 %v1059
        %5272 = vmatpush1.msra.mxu0 %v1058
        %5273 = vmatprep.subr.mxu0 %v1067
        %5274 = vmatpush1.msra.mxu0 %v1066
        %5275 = vmatprep.subr.mxu0 %v1075
        %5276 = vmatpush1.msra.mxu0 %v1074
        %5277 = vmatprep.subr.mxu0 %v1083
        %5278 = vmatpush1.msra.mxu0 %v1082
        %5279 = vmatprep.subr.mxu0 %v1091
        %5280 = vmatpush1.msra.mxu0 %v1090
        %5281 = vmatprep.subr.mxu0 %v1099
        %5282 = vmatpush1.msra.mxu0 %v1098
        %5283 = vmatprep.subr.mxu0 %v1107
        %5284 = vmatpush1.msra.mxu0 %v1106
        %5285 = vmatprep.subr.mxu0 %v1115
        %5286 = vmatpush1.msra.mxu0 %v1114
        %5287 = vmatprep.subr.mxu0 %v1123
        %5288 = vmatpush1.msra.mxu0 %v1122
        %5289 = vmatprep.subr.mxu0 %v1131
        %5290 = vmatpush1.msra.mxu0 %v1130
        %5291 = vmatprep.subr.mxu0 %v1139
        %5292 = vmatpush1.msra.mxu0 %v1138
        %5293 = vmatprep.subr.mxu0 %v1147
        %5294 = vmatpush1.msra.mxu0 %v1146
        %5295 = vmatprep.subr.mxu0 %v1155
        %5296 = vmatpush1.msra.mxu0 %v1154
        %5297 = vmatprep.subr.mxu0 %v1163
        %5298 = vmatpush1.msra.mxu0 %v1162
        %5299 = vmatprep.subr.mxu0 %v1171
        %5300 = vmatpush1.msra.mxu0 %v1170
        %5301 = vmatprep.subr.mxu0 %v1179
        %5302 = vmatpush1.msra.mxu0 %v1178
        %5303 = vmatprep.subr.mxu0 %v1187
        %5304 = vmatpush1.msra.mxu0 %v1186
        %5305 = vmatprep.subr.mxu0 %v1195
        %5306 = vmatpush1.msra.mxu0 %v1194
        %5307 = vmatprep.subr.mxu0 %v1203
        %5308 = vmatpush1.msra.mxu0 %v1202
        %5309 = vmatprep.subr.mxu0 %v1211
        %5310 = vmatpush1.msra.mxu0 %v1210
        %5311 = vmatprep.subr.mxu0 %v1219
        %5312 = vmatpush1.msra.mxu0 %v1218
        %5313 = vmatprep.subr.mxu0 %v1227
        %5314 = vmatpush1.msra.mxu0 %v1226
        %5315 = vmatprep.subr.mxu0 %v1235
        %5316 = vmatpush1.msra.mxu0 %v1234
        %5317 = vmatprep.subr.mxu0 %v1243
        %5318 = vmatpush1.msra.mxu0 %v1242
        %5319 = vmatprep.subr.mxu0 %v1251
        %5320 = vmatpush1.msra.mxu0 %v1250
        %5321 = vmatprep.subr.mxu0 %v1259
        %5322 = vmatpush1.msra.mxu0 %v1258
        %5323 = vmatprep.mubr.f32.mxu0 %v5126
        %5324 = vmatmul.mubr.f32.gmra.mrb[0].mxu0 %v5102
        %v5325 = vpop.f32.mrb[0].mxu0
        %v5326 = vadd.f32 0.0, %v5325
        %v5327 = vpop.f32.mrb[0].mxu0
        %v5328 = vadd.f32 0.0, %v5327
        %5329 = vdwg.mxu0
        %5330 = vmatprep.subr.mxu0 %v1013
        %5331 = vmatpush1.msra.mxu0 %v1012
        %5332 = vmatprep.subr.mxu0 %v1021
        %5333 = vmatpush1.msra.mxu0 %v1020
        %5334 = vmatprep.subr.mxu0 %v1029
        %5335 = vmatpush1.msra.mxu0 %v1028
        %5336 = vmatprep.subr.mxu0 %v1037
        %5337 = vmatpush1.msra.mxu0 %v1036
        %5338 = vmatprep.subr.mxu0 %v1045
        %5339 = vmatpush1.msra.mxu0 %v1044
        %5340 = vmatprep.subr.mxu0 %v1053
        %5341 = vmatpush1.msra.mxu0 %v1052
        %5342 = vmatprep.subr.mxu0 %v1061
        %5343 = vmatpush1.msra.mxu0 %v1060
        %5344 = vmatprep.subr.mxu0 %v1069
        %5345 = vmatpush1.msra.mxu0 %v1068
        %5346 = vmatprep.subr.mxu0 %v1077
        %5347 = vmatpush1.msra.mxu0 %v1076
        %5348 = vmatprep.subr.mxu0 %v1085
        %5349 = vmatpush1.msra.mxu0 %v1084
        %5350 = vmatprep.subr.mxu0 %v1093
        %5351 = vmatpush1.msra.mxu0 %v1092
        %5352 = vmatprep.subr.mxu0 %v1101
        %5353 = vmatpush1.msra.mxu0 %v1100
        %5354 = vmatprep.subr.mxu0 %v1109
        %5355 = vmatpush1.msra.mxu0 %v1108
        %5356 = vmatprep.subr.mxu0 %v1117
        %5357 = vmatpush1.msra.mxu0 %v1116
        %5358 = vmatprep.subr.mxu0 %v1125
        %5359 = vmatpush1.msra.mxu0 %v1124
        %5360 = vmatprep.subr.mxu0 %v1133
        %5361 = vmatpush1.msra.mxu0 %v1132
        %5362 = vmatprep.subr.mxu0 %v1141
        %5363 = vmatpush1.msra.mxu0 %v1140
        %5364 = vmatprep.subr.mxu0 %v1149
        %5365 = vmatpush1.msra.mxu0 %v1148
        %5366 = vmatprep.subr.mxu0 %v1157
        %5367 = vmatpush1.msra.mxu0 %v1156
        %5368 = vmatprep.subr.mxu0 %v1165
        %5369 = vmatpush1.msra.mxu0 %v1164
        %5370 = vmatprep.subr.mxu0 %v1173
        %5371 = vmatpush1.msra.mxu0 %v1172
        %5372 = vmatprep.subr.mxu0 %v1181
        %5373 = vmatpush1.msra.mxu0 %v1180
        %5374 = vmatprep.subr.mxu0 %v1189
        %5375 = vmatpush1.msra.mxu0 %v1188
        %5376 = vmatprep.subr.mxu0 %v1197
        %5377 = vmatpush1.msra.mxu0 %v1196
        %5378 = vmatprep.subr.mxu0 %v1205
        %5379 = vmatpush1.msra.mxu0 %v1204
        %5380 = vmatprep.subr.mxu0 %v1213
        %5381 = vmatpush1.msra.mxu0 %v1212
        %5382 = vmatprep.subr.mxu0 %v1221
        %5383 = vmatpush1.msra.mxu0 %v1220
        %5384 = vmatprep.subr.mxu0 %v1229
        %5385 = vmatpush1.msra.mxu0 %v1228
        %5386 = vmatprep.subr.mxu0 %v1237
        %5387 = vmatpush1.msra.mxu0 %v1236
        %5388 = vmatprep.subr.mxu0 %v1245
        %5389 = vmatpush1.msra.mxu0 %v1244
        %5390 = vmatprep.subr.mxu0 %v1253
        %5391 = vmatpush1.msra.mxu0 %v1252
        %5392 = vmatprep.subr.mxu0 %v1261
        %5393 = vmatpush1.msra.mxu0 %v1260
        %5394 = vmatprep.mubr.f32.mxu0 %v5126
        %5395 = vmatmul.mubr.f32.gmra.mrb[0].mxu0 %v5102
        %v5396 = vpop.f32.mrb[0].mxu0
        %v5397 = vadd.f32 0.0, %v5396
        %v5398 = vpop.f32.mrb[0].mxu0
        %v5399 = vadd.f32 0.0, %v5398
        %5400 = vdwg.mxu0
        %5401 = vmatprep.subr.mxu0 %v1015
        %5402 = vmatpush1.msra.mxu0 %v1014
        %5403 = vmatprep.subr.mxu0 %v1023
        %5404 = vmatpush1.msra.mxu0 %v1022
        %5405 = vmatprep.subr.mxu0 %v1031
        %5406 = vmatpush1.msra.mxu0 %v1030
        %5407 = vmatprep.subr.mxu0 %v1039
        %5408 = vmatpush1.msra.mxu0 %v1038
        %5409 = vmatprep.subr.mxu0 %v1047
        %5410 = vmatpush1.msra.mxu0 %v1046
        %5411 = vmatprep.subr.mxu0 %v1055
        %5412 = vmatpush1.msra.mxu0 %v1054
        %5413 = vmatprep.subr.mxu0 %v1063
        %5414 = vmatpush1.msra.mxu0 %v1062
        %5415 = vmatprep.subr.mxu0 %v1071
        %5416 = vmatpush1.msra.mxu0 %v1070
        %5417 = vmatprep.subr.mxu0 %v1079
        %5418 = vmatpush1.msra.mxu0 %v1078
        %5419 = vmatprep.subr.mxu0 %v1087
        %5420 = vmatpush1.msra.mxu0 %v1086
        %5421 = vmatprep.subr.mxu0 %v1095
        %5422 = vmatpush1.msra.mxu0 %v1094
        %5423 = vmatprep.subr.mxu0 %v1103
        %5424 = vmatpush1.msra.mxu0 %v1102
        %5425 = vmatprep.subr.mxu0 %v1111
        %5426 = vmatpush1.msra.mxu0 %v1110
        %5427 = vmatprep.subr.mxu0 %v1119
        %5428 = vmatpush1.msra.mxu0 %v1118
        %5429 = vmatprep.subr.mxu0 %v1127
        %5430 = vmatpush1.msra.mxu0 %v1126
        %5431 = vmatprep.subr.mxu0 %v1135
        %5432 = vmatpush1.msra.mxu0 %v1134
        %5433 = vmatprep.subr.mxu0 %v1143
        %5434 = vmatpush1.msra.mxu0 %v1142
        %5435 = vmatprep.subr.mxu0 %v1151
        %5436 = vmatpush1.msra.mxu0 %v1150
        %5437 = vmatprep.subr.mxu0 %v1159
        %5438 = vmatpush1.msra.mxu0 %v1158
        %5439 = vmatprep.subr.mxu0 %v1167
        %5440 = vmatpush1.msra.mxu0 %v1166
        %5441 = vmatprep.subr.mxu0 %v1175
        %5442 = vmatpush1.msra.mxu0 %v1174
        %5443 = vmatprep.subr.mxu0 %v1183
        %5444 = vmatpush1.msra.mxu0 %v1182
        %5445 = vmatprep.subr.mxu0 %v1191
        %5446 = vmatpush1.msra.mxu0 %v1190
        %5447 = vmatprep.subr.mxu0 %v1199
        %5448 = vmatpush1.msra.mxu0 %v1198
        %5449 = vmatprep.subr.mxu0 %v1207
        %5450 = vmatpush1.msra.mxu0 %v1206
        %5451 = vmatprep.subr.mxu0 %v1215
        %5452 = vmatpush1.msra.mxu0 %v1214
        %5453 = vmatprep.subr.mxu0 %v1223
        %5454 = vmatpush1.msra.mxu0 %v1222
        %5455 = vmatprep.subr.mxu0 %v1231
        %5456 = vmatpush1.msra.mxu0 %v1230
        %5457 = vmatprep.subr.mxu0 %v1239
        %5458 = vmatpush1.msra.mxu0 %v1238
        %5459 = vmatprep.subr.mxu0 %v1247
        %5460 = vmatpush1.msra.mxu0 %v1246
        %5461 = vmatprep.subr.mxu0 %v1255
        %5462 = vmatpush1.msra.mxu0 %v1254
        %5463 = vmatprep.subr.mxu0 %v1263
        %5464 = vmatpush1.msra.mxu0 %v1262
        %5465 = vmatprep.mubr.f32.mxu0 %v5126
        %5466 = vmatmul.mubr.f32.gmra.mrb[0].mxu0 %v5102
        %v5467 = vpop.f32.mrb[0].mxu0
        %v5468 = vadd.f32 0.0, %v5467
        %v5469 = vpop.f32.mrb[0].mxu0
        %v5470 = vadd.f32 0.0, %v5469
        %5471 = vdwg.mxu0
        %5472 = vmatprep.subr.mxu0 %v1017
        %5473 = vmatpush1.msra.mxu0 %v1016
        %5474 = vmatprep.subr.mxu0 %v1025
        %5475 = vmatpush1.msra.mxu0 %v1024
        %5476 = vmatprep.subr.mxu0 %v1033
        %5477 = vmatpush1.msra.mxu0 %v1032
        %5478 = vmatprep.subr.mxu0 %v1041
        %5479 = vmatpush1.msra.mxu0 %v1040
        %5480 = vmatprep.subr.mxu0 %v1049
        %5481 = vmatpush1.msra.mxu0 %v1048
        %5482 = vmatprep.subr.mxu0 %v1057
        %5483 = vmatpush1.msra.mxu0 %v1056
        %5484 = vmatprep.subr.mxu0 %v1065
        %5485 = vmatpush1.msra.mxu0 %v1064
        %5486 = vmatprep.subr.mxu0 %v1073
        %5487 = vmatpush1.msra.mxu0 %v1072
        %5488 = vmatprep.subr.mxu0 %v1081
        %5489 = vmatpush1.msra.mxu0 %v1080
        %5490 = vmatprep.subr.mxu0 %v1089
        %5491 = vmatpush1.msra.mxu0 %v1088
        %5492 = vmatprep.subr.mxu0 %v1097
        %5493 = vmatpush1.msra.mxu0 %v1096
        %5494 = vmatprep.subr.mxu0 %v1105
        %5495 = vmatpush1.msra.mxu0 %v1104
        %5496 = vmatprep.subr.mxu0 %v1113
        %5497 = vmatpush1.msra.mxu0 %v1112
        %5498 = vmatprep.subr.mxu0 %v1121
        %5499 = vmatpush1.msra.mxu0 %v1120
        %5500 = vmatprep.subr.mxu0 %v1129
        %5501 = vmatpush1.msra.mxu0 %v1128
        %5502 = vmatprep.subr.mxu0 %v1137
        %5503 = vmatpush1.msra.mxu0 %v1136
        %5504 = vmatprep.subr.mxu0 %v1145
        %5505 = vmatpush1.msra.mxu0 %v1144
        %5506 = vmatprep.subr.mxu0 %v1153
        %5507 = vmatpush1.msra.mxu0 %v1152
        %5508 = vmatprep.subr.mxu0 %v1161
        %5509 = vmatpush1.msra.mxu0 %v1160
        %5510 = vmatprep.subr.mxu0 %v1169
        %5511 = vmatpush1.msra.mxu0 %v1168
        %5512 = vmatprep.subr.mxu0 %v1177
        %5513 = vmatpush1.msra.mxu0 %v1176
        %5514 = vmatprep.subr.mxu0 %v1185
        %5515 = vmatpush1.msra.mxu0 %v1184
        %5516 = vmatprep.subr.mxu0 %v1193
        %5517 = vmatpush1.msra.mxu0 %v1192
        %5518 = vmatprep.subr.mxu0 %v1201
        %5519 = vmatpush1.msra.mxu0 %v1200
        %5520 = vmatprep.subr.mxu0 %v1209
        %5521 = vmatpush1.msra.mxu0 %v1208
        %5522 = vmatprep.subr.mxu0 %v1217
        %5523 = vmatpush1.msra.mxu0 %v1216
        %5524 = vmatprep.subr.mxu0 %v1225
        %5525 = vmatpush1.msra.mxu0 %v1224
        %5526 = vmatprep.subr.mxu0 %v1233
        %5527 = vmatpush1.msra.mxu0 %v1232
        %5528 = vmatprep.subr.mxu0 %v1241
        %5529 = vmatpush1.msra.mxu0 %v1240
        %5530 = vmatprep.subr.mxu0 %v1249
        %5531 = vmatpush1.msra.mxu0 %v1248
        %5532 = vmatprep.subr.mxu0 %v1257
        %5533 = vmatpush1.msra.mxu0 %v1256
        %5534 = vmatprep.subr.mxu0 %v1265
        %5535 = vmatpush1.msra.mxu0 %v1264
        %5536 = vmatprep.mubr.f32.mxu0 %v5126
        %5537 = vmatmul.mubr.f32.gmra.mrb[0].mxu0 %v5102
        %v5538 = vpop.f32.mrb[0].mxu0
        %v5539 = vadd.f32 0.0, %v5538
        %v5540 = vpop.f32.mrb[0].mxu0
        %v5541 = vadd.f32 0.0, %v5540
        %5542 = vdwg.mxu0
        %s5543 = scalar_lea.vmem [#allocation2], 6
        %v5544 = vld [vmem:[%s5543] ss:$8 sm:$0xf]
        %s5545 = scalar_lea.vmem [#allocation2], 70
        %v5546 = vld [vmem:[%s5545] ss:$8 sm:$0xf]
        %s5547 = scalar_lea.vmem [#allocation2], 134
        %v5548 = vld [vmem:[%s5547] ss:$8 sm:$0xf]
        %s5549 = scalar_lea.vmem [#allocation2], 198
        %v5550 = vld [vmem:[%s5549] ss:$8 sm:$0xf]
        %s5551 = scalar_lea.vmem [#allocation2], 262
        %v5552 = vld [vmem:[%s5551] ss:$8 sm:$0xf]
        %s5553 = scalar_lea.vmem [#allocation2], 326
        %v5554 = vld [vmem:[%s5553] ss:$8 sm:$0xf]
        %s5555 = scalar_lea.vmem [#allocation2], 390
        %v5556 = vld [vmem:[%s5555] ss:$8 sm:$0xf]
        %s5557 = scalar_lea.vmem [#allocation2], 454
        %v5558 = vld [vmem:[%s5557] ss:$8 sm:$0xf]
        %v5567 = vcombine.low %v5544, %v5546
        %v5568 = vcombine.low %v5548, %v5550
        %v5569 = vcombine.low %v5552, %v5554
        %v5570 = vcombine.low %v5556, %v5558
        %v5572 = vunpack.c.l.s4 1966171168
        %v5573 = vunpack.c.0.s8 %v5572
        %v5574 = vlaneseq
        %v5575 = vshrl.u32 %v5574, 7
        %v5576 = vsub.s32 %v5573, %v5575
        %v5577 = vrot.slane %v5567, %v5576
        %v5579 = vunpack.c.l.s4 1966171168
        %v5580 = vunpack.c.0.s8 %v5579
        %v5581 = vlaneseq
        %v5582 = vshrl.u32 %v5581, 7
        %v5583 = vsub.s32 %v5580, %v5582
        %v5584 = vrot.slane %v5568, %v5583
        %v5586 = vunpack.c.l.s4 1966171168
        %v5587 = vunpack.c.0.s8 %v5586
        %v5588 = vlaneseq
        %v5589 = vshrl.u32 %v5588, 7
        %v5590 = vsub.s32 %v5587, %v5589
        %v5591 = vrot.slane %v5569, %v5590
        %v5593 = vunpack.c.l.s4 1966171168
        %v5594 = vunpack.c.0.s8 %v5593
        %v5595 = vlaneseq
        %v5596 = vshrl.u32 %v5595, 7
        %v5597 = vsub.s32 %v5594, %v5596
        %v5598 = vrot.slane %v5570, %v5597
        %v5599 = vcombine.low %v5577, %v5584
        %v5600 = vcombine.high %v5577, %v5584
        %v5601 = vcombine.low %v5591, %v5598
        %v5602 = vcombine.high %v5591, %v5598
        %v5604 = vunpack.c.l.s4 1966171168
        %v5605 = vunpack.c.0.s8 %v5604
        %v5606 = vlaneseq
        %v5607 = vshrl.u32 %v5606, 7
        %v5608 = vsub.s32 %v5605, %v5607
        %v5609 = vrot.slane %v5599, %v5608
        %v5611 = vunpack.c.l.s4 1966171168
        %v5612 = vunpack.c.0.s8 %v5611
        %v5613 = vlaneseq
        %v5614 = vshrl.u32 %v5613, 7
        %v5615 = vsub.s32 %v5612, %v5614
        %v5616 = vrot.slane %v5600, %v5615
        %v5618 = vunpack.c.l.s4 1966171168
        %v5619 = vunpack.c.0.s8 %v5618
        %v5620 = vlaneseq
        %v5621 = vshrl.u32 %v5620, 7
        %v5622 = vsub.s32 %v5619, %v5621
        %v5623 = vrot.slane %v5601, %v5622
        %v5625 = vunpack.c.l.s4 1966171168
        %v5626 = vunpack.c.0.s8 %v5625
        %v5627 = vlaneseq
        %v5628 = vshrl.u32 %v5627, 7
        %v5629 = vsub.s32 %v5626, %v5628
        %v5630 = vrot.slane %v5602, %v5629
        %v5631 = vcombine.low %v5609, %v5623
        %v5632 = vcombine.high %v5609, %v5623
        %v5633 = vcombine.low %v5616, %v5630
        %v5634 = vcombine.high %v5616, %v5630
        %v5639 = vadd.f32 %v5326, %v5631
        %v5640 = vadd.f32 %v5328, %v5633
        %v5641 = vadd.f32 %v5397, %v5632
        %v5642 = vadd.f32 %v5399, %v5634
        %s5643 = scalar_lea.vmem [#allocation2], 33
        %v5644 = vld [vmem:[%s5643] ss:$8 sm:$0xf]
        %s5645 = scalar_lea.vmem [#allocation2], 97
        %v5646 = vld [vmem:[%s5645] ss:$8 sm:$0xf]
        %s5647 = scalar_lea.vmem [#allocation2], 161
        %v5648 = vld [vmem:[%s5647] ss:$8 sm:$0xf]
        %s5649 = scalar_lea.vmem [#allocation2], 225
        %v5650 = vld [vmem:[%s5649] ss:$8 sm:$0xf]
        %s5651 = scalar_lea.vmem [#allocation2], 289
        %v5652 = vld [vmem:[%s5651] ss:$8 sm:$0xf]
        %s5653 = scalar_lea.vmem [#allocation2], 353
        %v5654 = vld [vmem:[%s5653] ss:$8 sm:$0xf]
        %s5655 = scalar_lea.vmem [#allocation2], 417
        %v5656 = vld [vmem:[%s5655] ss:$8 sm:$0xf]
        %s5657 = scalar_lea.vmem [#allocation2], 481
        %v5658 = vld [vmem:[%s5657] ss:$8 sm:$0xf]
        %v5667 = vcombine.low %v5644, %v5646
        %v5668 = vcombine.low %v5648, %v5650
        %v5669 = vcombine.low %v5652, %v5654
        %v5670 = vcombine.low %v5656, %v5658
        %v5672 = vunpack.c.l.s4 1966171168
        %v5673 = vunpack.c.0.s8 %v5672
        %v5674 = vlaneseq
        %v5675 = vshrl.u32 %v5674, 7
        %v5676 = vsub.s32 %v5673, %v5675
        %v5677 = vrot.slane %v5667, %v5676
        %v5679 = vunpack.c.l.s4 1966171168
        %v5680 = vunpack.c.0.s8 %v5679
        %v5681 = vlaneseq
        %v5682 = vshrl.u32 %v5681, 7
        %v5683 = vsub.s32 %v5680, %v5682
        %v5684 = vrot.slane %v5668, %v5683
        %v5686 = vunpack.c.l.s4 1966171168
        %v5687 = vunpack.c.0.s8 %v5686
        %v5688 = vlaneseq
        %v5689 = vshrl.u32 %v5688, 7
        %v5690 = vsub.s32 %v5687, %v5689
        %v5691 = vrot.slane %v5669, %v5690
        %v5693 = vunpack.c.l.s4 1966171168
        %v5694 = vunpack.c.0.s8 %v5693
        %v5695 = vlaneseq
        %v5696 = vshrl.u32 %v5695, 7
        %v5697 = vsub.s32 %v5694, %v5696
        %v5698 = vrot.slane %v5670, %v5697
        %v5699 = vcombine.low %v5677, %v5684
        %v5700 = vcombine.high %v5677, %v5684
        %v5701 = vcombine.low %v5691, %v5698
        %v5702 = vcombine.high %v5691, %v5698
        %v5704 = vunpack.c.l.s4 1966171168
        %v5705 = vunpack.c.0.s8 %v5704
        %v5706 = vlaneseq
        %v5707 = vshrl.u32 %v5706, 7
        %v5708 = vsub.s32 %v5705, %v5707
        %v5709 = vrot.slane %v5699, %v5708
        %v5711 = vunpack.c.l.s4 1966171168
        %v5712 = vunpack.c.0.s8 %v5711
        %v5713 = vlaneseq
        %v5714 = vshrl.u32 %v5713, 7
        %v5715 = vsub.s32 %v5712, %v5714
        %v5716 = vrot.slane %v5700, %v5715
        %v5718 = vunpack.c.l.s4 1966171168
        %v5719 = vunpack.c.0.s8 %v5718
        %v5720 = vlaneseq
        %v5721 = vshrl.u32 %v5720, 7
        %v5722 = vsub.s32 %v5719, %v5721
        %v5723 = vrot.slane %v5701, %v5722
        %v5725 = vunpack.c.l.s4 1966171168
        %v5726 = vunpack.c.0.s8 %v5725
        %v5727 = vlaneseq
        %v5728 = vshrl.u32 %v5727, 7
        %v5729 = vsub.s32 %v5726, %v5728
        %v5730 = vrot.slane %v5702, %v5729
        %v5731 = vcombine.low %v5709, %v5723
        %v5732 = vcombine.high %v5709, %v5723
        %v5733 = vcombine.low %v5716, %v5730
        %v5734 = vcombine.high %v5716, %v5730
        %v5739 = vadd.f32 %v5468, %v5731
        %v5740 = vadd.f32 %v5470, %v5733
        %v5741 = vadd.f32 %v5539, %v5732
        %v5742 = vadd.f32 %v5541, %v5734
        %v5743 = vxor.u32 %v5639, 2147483648
        %v5744 = vmul.f32 %v5743, 1.442695
        %v5745 = vpow.pop %v5744
        %v5746 = vadd.f32 %v5745, 1.0
        %v5747 = vrcp.pop %v5746
        %v5748 = vmul.f32 1.0, %v5747
        %v5749 = vxor.u32 %v5640, 2147483648
        %v5750 = vmul.f32 %v5749, 1.442695
        %v5751 = vpow.pop %v5750
        %v5752 = vadd.f32 %v5751, 1.0
        %v5753 = vrcp.pop %v5752
        %v5754 = vmul.f32 1.0, %v5753
        %v5755 = vtanh.pop %v5641
        %v5756 = vxor.u32 %v5642, 2147483648
        %v5757 = vmul.f32 %v5756, 1.442695
        %v5758 = vpow.pop %v5757
        %v5759 = vadd.f32 %v5758, 1.0
        %v5760 = vrcp.pop %v5759
        %v5761 = vmul.f32 1.0, %v5760
        %v5762 = vmul.f32 %v5754, %v5100
        %v5763 = vmul.f32 %v5748, %v5755
        %v5764 = vadd.f32 %v5762, %v5763
        %v5765 = vtanh.pop %v5764
        %v5766 = vmul.f32 %v5761, %v5765
        %v5767 = vxor.u32 %v5739, 2147483648
        %v5768 = vmul.f32 %v5767, 1.442695
        %v5769 = vpow.pop %v5768
        %v5770 = vadd.f32 %v5769, 1.0
        %v5771 = vrcp.pop %v5770
        %v5772 = vmul.f32 1.0, %v5771
        %v5773 = vxor.u32 %v5740, 2147483648
        %v5774 = vmul.f32 %v5773, 1.442695
        %v5775 = vpow.pop %v5774
        %v5776 = vadd.f32 %v5775, 1.0
        %v5777 = vrcp.pop %v5776
        %v5778 = vmul.f32 1.0, %v5777
        %v5779 = vtanh.pop %v5741
        %v5780 = vxor.u32 %v5742, 2147483648
        %v5781 = vmul.f32 %v5780, 1.442695
        %v5782 = vpow.pop %v5781
        %v5783 = vadd.f32 %v5782, 1.0
        %v5784 = vrcp.pop %v5783
        %v5785 = vmul.f32 1.0, %v5784
        %v5786 = vmul.f32 %v5778, %v5124
        %v5787 = vmul.f32 %v5772, %v5779
        %v5788 = vadd.f32 %v5786, %v5787
        %v5789 = vtanh.pop %v5788
        %v5790 = vmul.f32 %v5785, %v5789
        %v5792 = vcombine.high %v5766, %v5766
        %v5794 = vunpack.c.l.s4 1966171168
        %v5795 = vunpack.c.0.s8 %v5794
        %v5796 = vlaneseq
        %v5797 = vshrl.u32 %v5796, 7
        %v5798 = vsub.s32 %v5795, %v5797
        %v5799 = vrot.slane %v5766, %v5798
        %v5801 = vunpack.c.l.s4 1966171168
        %v5802 = vunpack.c.0.s8 %v5801
        %v5803 = vlaneseq
        %v5804 = vshrl.u32 %v5803, 7
        %v5805 = vsub.s32 %v5802, %v5804
        %v5806 = vrot.slane %v5792, %v5805
        %v5807 = vcombine.high %v5799, %v5799
        %v5808 = vcombine.high %v5806, %v5806
        %v5810 = vunpack.c.l.s4 1966171168
        %v5811 = vunpack.c.0.s8 %v5810
        %v5812 = vlaneseq
        %v5813 = vshrl.u32 %v5812, 7
        %v5814 = vsub.s32 %v5811, %v5813
        %v5815 = vrot.slane %v5799, %v5814
        %v5817 = vunpack.c.l.s4 1966171168
        %v5818 = vunpack.c.0.s8 %v5817
        %v5819 = vlaneseq
        %v5820 = vshrl.u32 %v5819, 7
        %v5821 = vsub.s32 %v5818, %v5820
        %v5822 = vrot.slane %v5806, %v5821
        %v5824 = vunpack.c.l.s4 1966171168
        %v5825 = vunpack.c.0.s8 %v5824
        %v5826 = vlaneseq
        %v5827 = vshrl.u32 %v5826, 7
        %v5828 = vsub.s32 %v5825, %v5827
        %v5829 = vrot.slane %v5807, %v5828
        %v5831 = vunpack.c.l.s4 1966171168
        %v5832 = vunpack.c.0.s8 %v5831
        %v5833 = vlaneseq
        %v5834 = vshrl.u32 %v5833, 7
        %v5835 = vsub.s32 %v5832, %v5834
        %v5836 = vrot.slane %v5808, %v5835
        %v5837 = vcombine.high %v5815, %v5815
        %v5838 = vcombine.high %v5822, %v5822
        %v5839 = vcombine.high %v5829, %v5829
        %v5840 = vcombine.high %v5836, %v5836
        %5849 = vst [vmem:[#allocation3 + $0x6] sm:$0x1] %v5815
        %5850 = vst [vmem:[#allocation3 + $0x16] sm:$0x1] %v5829
        %5851 = vst [vmem:[#allocation3 + $0x26] sm:$0x1] %v5837
        %5852 = vst [vmem:[#allocation3 + $0x36] sm:$0x1] %v5839
        %5853 = vst [vmem:[#allocation3 + $0x46] sm:$0x1] %v5822
        %5854 = vst [vmem:[#allocation3 + $0x56] sm:$0x1] %v5836
        %5855 = vst [vmem:[#allocation3 + $0x66] sm:$0x1] %v5838
        %5856 = vst [vmem:[#allocation3 + $0x76] sm:$0x1] %v5840
        %v5858 = vcombine.high %v5790, %v5790
        %v5860 = vunpack.c.l.s4 1966171168
        %v5861 = vunpack.c.0.s8 %v5860
        %v5862 = vlaneseq
        %v5863 = vshrl.u32 %v5862, 7
        %v5864 = vsub.s32 %v5861, %v5863
        %v5865 = vrot.slane %v5790, %v5864
        %v5867 = vunpack.c.l.s4 1966171168
        %v5868 = vunpack.c.0.s8 %v5867
        %v5869 = vlaneseq
        %v5870 = vshrl.u32 %v5869, 7
        %v5871 = vsub.s32 %v5868, %v5870
        %v5872 = vrot.slane %v5858, %v5871
        %v5873 = vcombine.high %v5865, %v5865
        %v5874 = vcombine.high %v5872, %v5872
        %v5876 = vunpack.c.l.s4 1966171168
        %v5877 = vunpack.c.0.s8 %v5876
        %v5878 = vlaneseq
        %v5879 = vshrl.u32 %v5878, 7
        %v5880 = vsub.s32 %v5877, %v5879
        %v5881 = vrot.slane %v5865, %v5880
        %v5883 = vunpack.c.l.s4 1966171168
        %v5884 = vunpack.c.0.s8 %v5883
        %v5885 = vlaneseq
        %v5886 = vshrl.u32 %v5885, 7
        %v5887 = vsub.s32 %v5884, %v5886
        %v5888 = vrot.slane %v5872, %v5887
        %v5890 = vunpack.c.l.s4 1966171168
        %v5891 = vunpack.c.0.s8 %v5890
        %v5892 = vlaneseq
        %v5893 = vshrl.u32 %v5892, 7
        %v5894 = vsub.s32 %v5891, %v5893
        %v5895 = vrot.slane %v5873, %v5894
        %v5897 = vunpack.c.l.s4 1966171168
        %v5898 = vunpack.c.0.s8 %v5897
        %v5899 = vlaneseq
        %v5900 = vshrl.u32 %v5899, 7
        %v5901 = vsub.s32 %v5898, %v5900
        %v5902 = vrot.slane %v5874, %v5901
        %v5903 = vcombine.high %v5881, %v5881
        %v5904 = vcombine.high %v5888, %v5888
        %v5905 = vcombine.high %v5895, %v5895
        %v5906 = vcombine.high %v5902, %v5902
        %5915 = vst [vmem:[#allocation3 + $0x9] sm:$0x1] %v5881
        %5916 = vst [vmem:[#allocation3 + $0x19] sm:$0x1] %v5895
        %5917 = vst [vmem:[#allocation3 + $0x29] sm:$0x1] %v5903
        %5918 = vst [vmem:[#allocation3 + $0x39] sm:$0x1] %v5905
        %5919 = vst [vmem:[#allocation3 + $0x49] sm:$0x1] %v5888
        %5920 = vst [vmem:[#allocation3 + $0x59] sm:$0x1] %v5902
        %5921 = vst [vmem:[#allocation3 + $0x69] sm:$0x1] %v5904
        %5922 = vst [vmem:[#allocation3 + $0x79] sm:$0x1] %v5906
        %5923 = vmatprep.subr.mxu0 %v1011
        %5924 = vmatpush1.msra.mxu0 %v1010
        %5925 = vmatprep.subr.mxu0 %v1019
        %5926 = vmatpush1.msra.mxu0 %v1018
        %5927 = vmatprep.subr.mxu0 %v1027
        %5928 = vmatpush1.msra.mxu0 %v1026
        %5929 = vmatprep.subr.mxu0 %v1035
        %5930 = vmatpush1.msra.mxu0 %v1034
        %5931 = vmatprep.subr.mxu0 %v1043
        %5932 = vmatpush1.msra.mxu0 %v1042
        %5933 = vmatprep.subr.mxu0 %v1051
        %5934 = vmatpush1.msra.mxu0 %v1050
        %5935 = vmatprep.subr.mxu0 %v1059
        %5936 = vmatpush1.msra.mxu0 %v1058
        %5937 = vmatprep.subr.mxu0 %v1067
        %5938 = vmatpush1.msra.mxu0 %v1066
        %5939 = vmatprep.subr.mxu0 %v1075
        %5940 = vmatpush1.msra.mxu0 %v1074
        %5941 = vmatprep.subr.mxu0 %v1083
        %5942 = vmatpush1.msra.mxu0 %v1082
        %5943 = vmatprep.subr.mxu0 %v1091
        %5944 = vmatpush1.msra.mxu0 %v1090
        %5945 = vmatprep.subr.mxu0 %v1099
        %5946 = vmatpush1.msra.mxu0 %v1098
        %5947 = vmatprep.subr.mxu0 %v1107
        %5948 = vmatpush1.msra.mxu0 %v1106
        %5949 = vmatprep.subr.mxu0 %v1115
        %5950 = vmatpush1.msra.mxu0 %v1114
        %5951 = vmatprep.subr.mxu0 %v1123
        %5952 = vmatpush1.msra.mxu0 %v1122
        %5953 = vmatprep.subr.mxu0 %v1131
        %5954 = vmatpush1.msra.mxu0 %v1130
        %5955 = vmatprep.subr.mxu0 %v1139
        %5956 = vmatpush1.msra.mxu0 %v1138
        %5957 = vmatprep.subr.mxu0 %v1147
        %5958 = vmatpush1.msra.mxu0 %v1146
        %5959 = vmatprep.subr.mxu0 %v1155
        %5960 = vmatpush1.msra.mxu0 %v1154
        %5961 = vmatprep.subr.mxu0 %v1163
        %5962 = vmatpush1.msra.mxu0 %v1162
        %5963 = vmatprep.subr.mxu0 %v1171
        %5964 = vmatpush1.msra.mxu0 %v1170
        %5965 = vmatprep.subr.mxu0 %v1179
        %5966 = vmatpush1.msra.mxu0 %v1178
        %5967 = vmatprep.subr.mxu0 %v1187
        %5968 = vmatpush1.msra.mxu0 %v1186
        %5969 = vmatprep.subr.mxu0 %v1195
        %5970 = vmatpush1.msra.mxu0 %v1194
        %5971 = vmatprep.subr.mxu0 %v1203
        %5972 = vmatpush1.msra.mxu0 %v1202
        %5973 = vmatprep.subr.mxu0 %v1211
        %5974 = vmatpush1.msra.mxu0 %v1210
        %5975 = vmatprep.subr.mxu0 %v1219
        %5976 = vmatpush1.msra.mxu0 %v1218
        %5977 = vmatprep.subr.mxu0 %v1227
        %5978 = vmatpush1.msra.mxu0 %v1226
        %5979 = vmatprep.subr.mxu0 %v1235
        %5980 = vmatpush1.msra.mxu0 %v1234
        %5981 = vmatprep.subr.mxu0 %v1243
        %5982 = vmatpush1.msra.mxu0 %v1242
        %5983 = vmatprep.subr.mxu0 %v1251
        %5984 = vmatpush1.msra.mxu0 %v1250
        %5985 = vmatprep.subr.mxu0 %v1259
        %5986 = vmatpush1.msra.mxu0 %v1258
        %5987 = vmatprep.mubr.f32.mxu0 %v5790
        %5988 = vmatmul.mubr.f32.gmra.mrb[0].mxu0 %v5766
        %v5989 = vpop.f32.mrb[0].mxu0
        %v5990 = vadd.f32 0.0, %v5989
        %v5991 = vpop.f32.mrb[0].mxu0
        %v5992 = vadd.f32 0.0, %v5991
        %5993 = vdwg.mxu0
        %5994 = vmatprep.subr.mxu0 %v1013
        %5995 = vmatpush1.msra.mxu0 %v1012
        %5996 = vmatprep.subr.mxu0 %v1021
        %5997 = vmatpush1.msra.mxu0 %v1020
        %5998 = vmatprep.subr.mxu0 %v1029
        %5999 = vmatpush1.msra.mxu0 %v1028
        %6000 = vmatprep.subr.mxu0 %v1037
        %6001 = vmatpush1.msra.mxu0 %v1036
        %6002 = vmatprep.subr.mxu0 %v1045
        %6003 = vmatpush1.msra.mxu0 %v1044
        %6004 = vmatprep.subr.mxu0 %v1053
        %6005 = vmatpush1.msra.mxu0 %v1052
        %6006 = vmatprep.subr.mxu0 %v1061
        %6007 = vmatpush1.msra.mxu0 %v1060
        %6008 = vmatprep.subr.mxu0 %v1069
        %6009 = vmatpush1.msra.mxu0 %v1068
        %6010 = vmatprep.subr.mxu0 %v1077
        %6011 = vmatpush1.msra.mxu0 %v1076
        %6012 = vmatprep.subr.mxu0 %v1085
        %6013 = vmatpush1.msra.mxu0 %v1084
        %6014 = vmatprep.subr.mxu0 %v1093
        %6015 = vmatpush1.msra.mxu0 %v1092
        %6016 = vmatprep.subr.mxu0 %v1101
        %6017 = vmatpush1.msra.mxu0 %v1100
        %6018 = vmatprep.subr.mxu0 %v1109
        %6019 = vmatpush1.msra.mxu0 %v1108
        %6020 = vmatprep.subr.mxu0 %v1117
        %6021 = vmatpush1.msra.mxu0 %v1116
        %6022 = vmatprep.subr.mxu0 %v1125
        %6023 = vmatpush1.msra.mxu0 %v1124
        %6024 = vmatprep.subr.mxu0 %v1133
        %6025 = vmatpush1.msra.mxu0 %v1132
        %6026 = vmatprep.subr.mxu0 %v1141
        %6027 = vmatpush1.msra.mxu0 %v1140
        %6028 = vmatprep.subr.mxu0 %v1149
        %6029 = vmatpush1.msra.mxu0 %v1148
        %6030 = vmatprep.subr.mxu0 %v1157
        %6031 = vmatpush1.msra.mxu0 %v1156
        %6032 = vmatprep.subr.mxu0 %v1165
        %6033 = vmatpush1.msra.mxu0 %v1164
        %6034 = vmatprep.subr.mxu0 %v1173
        %6035 = vmatpush1.msra.mxu0 %v1172
        %6036 = vmatprep.subr.mxu0 %v1181
        %6037 = vmatpush1.msra.mxu0 %v1180
        %6038 = vmatprep.subr.mxu0 %v1189
        %6039 = vmatpush1.msra.mxu0 %v1188
        %6040 = vmatprep.subr.mxu0 %v1197
        %6041 = vmatpush1.msra.mxu0 %v1196
        %6042 = vmatprep.subr.mxu0 %v1205
        %6043 = vmatpush1.msra.mxu0 %v1204
        %6044 = vmatprep.subr.mxu0 %v1213
        %6045 = vmatpush1.msra.mxu0 %v1212
        %6046 = vmatprep.subr.mxu0 %v1221
        %6047 = vmatpush1.msra.mxu0 %v1220
        %6048 = vmatprep.subr.mxu0 %v1229
        %6049 = vmatpush1.msra.mxu0 %v1228
        %6050 = vmatprep.subr.mxu0 %v1237
        %6051 = vmatpush1.msra.mxu0 %v1236
        %6052 = vmatprep.subr.mxu0 %v1245
        %6053 = vmatpush1.msra.mxu0 %v1244
        %6054 = vmatprep.subr.mxu0 %v1253
        %6055 = vmatpush1.msra.mxu0 %v1252
        %6056 = vmatprep.subr.mxu0 %v1261
        %6057 = vmatpush1.msra.mxu0 %v1260
        %6058 = vmatprep.mubr.f32.mxu0 %v5790
        %6059 = vmatmul.mubr.f32.gmra.mrb[0].mxu0 %v5766
        %v6060 = vpop.f32.mrb[0].mxu0
        %v6061 = vadd.f32 0.0, %v6060
        %v6062 = vpop.f32.mrb[0].mxu0
        %v6063 = vadd.f32 0.0, %v6062
        %6064 = vdwg.mxu0
        %6065 = vmatprep.subr.mxu0 %v1015
        %6066 = vmatpush1.msra.mxu0 %v1014
        %6067 = vmatprep.subr.mxu0 %v1023
        %6068 = vmatpush1.msra.mxu0 %v1022
        %6069 = vmatprep.subr.mxu0 %v1031
        %6070 = vmatpush1.msra.mxu0 %v1030
        %6071 = vmatprep.subr.mxu0 %v1039
        %6072 = vmatpush1.msra.mxu0 %v1038
        %6073 = vmatprep.subr.mxu0 %v1047
        %6074 = vmatpush1.msra.mxu0 %v1046
        %6075 = vmatprep.subr.mxu0 %v1055
        %6076 = vmatpush1.msra.mxu0 %v1054
        %6077 = vmatprep.subr.mxu0 %v1063
        %6078 = vmatpush1.msra.mxu0 %v1062
        %6079 = vmatprep.subr.mxu0 %v1071
        %6080 = vmatpush1.msra.mxu0 %v1070
        %6081 = vmatprep.subr.mxu0 %v1079
        %6082 = vmatpush1.msra.mxu0 %v1078
        %6083 = vmatprep.subr.mxu0 %v1087
        %6084 = vmatpush1.msra.mxu0 %v1086
        %6085 = vmatprep.subr.mxu0 %v1095
        %6086 = vmatpush1.msra.mxu0 %v1094
        %6087 = vmatprep.subr.mxu0 %v1103
        %6088 = vmatpush1.msra.mxu0 %v1102
        %6089 = vmatprep.subr.mxu0 %v1111
        %6090 = vmatpush1.msra.mxu0 %v1110
        %6091 = vmatprep.subr.mxu0 %v1119
        %6092 = vmatpush1.msra.mxu0 %v1118
        %6093 = vmatprep.subr.mxu0 %v1127
        %6094 = vmatpush1.msra.mxu0 %v1126
        %6095 = vmatprep.subr.mxu0 %v1135
        %6096 = vmatpush1.msra.mxu0 %v1134
        %6097 = vmatprep.subr.mxu0 %v1143
        %6098 = vmatpush1.msra.mxu0 %v1142
        %6099 = vmatprep.subr.mxu0 %v1151
        %6100 = vmatpush1.msra.mxu0 %v1150
        %6101 = vmatprep.subr.mxu0 %v1159
        %6102 = vmatpush1.msra.mxu0 %v1158
        %6103 = vmatprep.subr.mxu0 %v1167
        %6104 = vmatpush1.msra.mxu0 %v1166
        %6105 = vmatprep.subr.mxu0 %v1175
        %6106 = vmatpush1.msra.mxu0 %v1174
        %6107 = vmatprep.subr.mxu0 %v1183
        %6108 = vmatpush1.msra.mxu0 %v1182
        %6109 = vmatprep.subr.mxu0 %v1191
        %6110 = vmatpush1.msra.mxu0 %v1190
        %6111 = vmatprep.subr.mxu0 %v1199
        %6112 = vmatpush1.msra.mxu0 %v1198
        %6113 = vmatprep.subr.mxu0 %v1207
        %6114 = vmatpush1.msra.mxu0 %v1206
        %6115 = vmatprep.subr.mxu0 %v1215
        %6116 = vmatpush1.msra.mxu0 %v1214
        %6117 = vmatprep.subr.mxu0 %v1223
        %6118 = vmatpush1.msra.mxu0 %v1222
        %6119 = vmatprep.subr.mxu0 %v1231
        %6120 = vmatpush1.msra.mxu0 %v1230
        %6121 = vmatprep.subr.mxu0 %v1239
        %6122 = vmatpush1.msra.mxu0 %v1238
        %6123 = vmatprep.subr.mxu0 %v1247
        %6124 = vmatpush1.msra.mxu0 %v1246
        %6125 = vmatprep.subr.mxu0 %v1255
        %6126 = vmatpush1.msra.mxu0 %v1254
        %6127 = vmatprep.subr.mxu0 %v1263
        %6128 = vmatpush1.msra.mxu0 %v1262
        %6129 = vmatprep.mubr.f32.mxu0 %v5790
        %6130 = vmatmul.mubr.f32.gmra.mrb[0].mxu0 %v5766
        %v6131 = vpop.f32.mrb[0].mxu0
        %v6132 = vadd.f32 0.0, %v6131
        %v6133 = vpop.f32.mrb[0].mxu0
        %v6134 = vadd.f32 0.0, %v6133
        %6135 = vdwg.mxu0
        %6136 = vmatprep.subr.mxu0 %v1017
        %6137 = vmatpush1.msra.mxu0 %v1016
        %6138 = vmatprep.subr.mxu0 %v1025
        %6139 = vmatpush1.msra.mxu0 %v1024
        %6140 = vmatprep.subr.mxu0 %v1033
        %6141 = vmatpush1.msra.mxu0 %v1032
        %6142 = vmatprep.subr.mxu0 %v1041
        %6143 = vmatpush1.msra.mxu0 %v1040
        %6144 = vmatprep.subr.mxu0 %v1049
        %6145 = vmatpush1.msra.mxu0 %v1048
        %6146 = vmatprep.subr.mxu0 %v1057
        %6147 = vmatpush1.msra.mxu0 %v1056
        %6148 = vmatprep.subr.mxu0 %v1065
        %6149 = vmatpush1.msra.mxu0 %v1064
        %6150 = vmatprep.subr.mxu0 %v1073
        %6151 = vmatpush1.msra.mxu0 %v1072
        %6152 = vmatprep.subr.mxu0 %v1081
        %6153 = vmatpush1.msra.mxu0 %v1080
        %6154 = vmatprep.subr.mxu0 %v1089
        %6155 = vmatpush1.msra.mxu0 %v1088
        %6156 = vmatprep.subr.mxu0 %v1097
        %6157 = vmatpush1.msra.mxu0 %v1096
        %6158 = vmatprep.subr.mxu0 %v1105
        %6159 = vmatpush1.msra.mxu0 %v1104
        %6160 = vmatprep.subr.mxu0 %v1113
        %6161 = vmatpush1.msra.mxu0 %v1112
        %6162 = vmatprep.subr.mxu0 %v1121
        %6163 = vmatpush1.msra.mxu0 %v1120
        %6164 = vmatprep.subr.mxu0 %v1129
        %6165 = vmatpush1.msra.mxu0 %v1128
        %6166 = vmatprep.subr.mxu0 %v1137
        %6167 = vmatpush1.msra.mxu0 %v1136
        %6168 = vmatprep.subr.mxu0 %v1145
        %6169 = vmatpush1.msra.mxu0 %v1144
        %6170 = vmatprep.subr.mxu0 %v1153
        %6171 = vmatpush1.msra.mxu0 %v1152
        %6172 = vmatprep.subr.mxu0 %v1161
        %6173 = vmatpush1.msra.mxu0 %v1160
        %6174 = vmatprep.subr.mxu0 %v1169
        %6175 = vmatpush1.msra.mxu0 %v1168
        %6176 = vmatprep.subr.mxu0 %v1177
        %6177 = vmatpush1.msra.mxu0 %v1176
        %6178 = vmatprep.subr.mxu0 %v1185
        %6179 = vmatpush1.msra.mxu0 %v1184
        %6180 = vmatprep.subr.mxu0 %v1193
        %6181 = vmatpush1.msra.mxu0 %v1192
        %6182 = vmatprep.subr.mxu0 %v1201
        %6183 = vmatpush1.msra.mxu0 %v1200
        %6184 = vmatprep.subr.mxu0 %v1209
        %6185 = vmatpush1.msra.mxu0 %v1208
        %6186 = vmatprep.subr.mxu0 %v1217
        %6187 = vmatpush1.msra.mxu0 %v1216
        %6188 = vmatprep.subr.mxu0 %v1225
        %6189 = vmatpush1.msra.mxu0 %v1224
        %6190 = vmatprep.subr.mxu0 %v1233
        %6191 = vmatpush1.msra.mxu0 %v1232
        %6192 = vmatprep.subr.mxu0 %v1241
        %6193 = vmatpush1.msra.mxu0 %v1240
        %6194 = vmatprep.subr.mxu0 %v1249
        %6195 = vmatpush1.msra.mxu0 %v1248
        %6196 = vmatprep.subr.mxu0 %v1257
        %6197 = vmatpush1.msra.mxu0 %v1256
        %6198 = vmatprep.subr.mxu0 %v1265
        %6199 = vmatpush1.msra.mxu0 %v1264
        %6200 = vmatprep.mubr.f32.mxu0 %v5790
        %6201 = vmatmul.mubr.f32.gmra.mrb[0].mxu0 %v5766
        %v6202 = vpop.f32.mrb[0].mxu0
        %v6203 = vadd.f32 0.0, %v6202
        %v6204 = vpop.f32.mrb[0].mxu0
        %v6205 = vadd.f32 0.0, %v6204
        %6206 = vdwg.mxu0
        %s6207 = scalar_lea.vmem [#allocation2], 7
        %v6208 = vld [vmem:[%s6207] ss:$8 sm:$0xf]
        %s6209 = scalar_lea.vmem [#allocation2], 71
        %v6210 = vld [vmem:[%s6209] ss:$8 sm:$0xf]
        %s6211 = scalar_lea.vmem [#allocation2], 135
        %v6212 = vld [vmem:[%s6211] ss:$8 sm:$0xf]
        %s6213 = scalar_lea.vmem [#allocation2], 199
        %v6214 = vld [vmem:[%s6213] ss:$8 sm:$0xf]
        %s6215 = scalar_lea.vmem [#allocation2], 263
        %v6216 = vld [vmem:[%s6215] ss:$8 sm:$0xf]
        %s6217 = scalar_lea.vmem [#allocation2], 327
        %v6218 = vld [vmem:[%s6217] ss:$8 sm:$0xf]
        %s6219 = scalar_lea.vmem [#allocation2], 391
        %v6220 = vld [vmem:[%s6219] ss:$8 sm:$0xf]
        %s6221 = scalar_lea.vmem [#allocation2], 455
        %v6222 = vld [vmem:[%s6221] ss:$8 sm:$0xf]
        %v6231 = vcombine.low %v6208, %v6210
        %v6232 = vcombine.low %v6212, %v6214
        %v6233 = vcombine.low %v6216, %v6218
        %v6234 = vcombine.low %v6220, %v6222
        %v6236 = vunpack.c.l.s4 1966171168
        %v6237 = vunpack.c.0.s8 %v6236
        %v6238 = vlaneseq
        %v6239 = vshrl.u32 %v6238, 7
        %v6240 = vsub.s32 %v6237, %v6239
        %v6241 = vrot.slane %v6231, %v6240
        %v6243 = vunpack.c.l.s4 1966171168
        %v6244 = vunpack.c.0.s8 %v6243
        %v6245 = vlaneseq
        %v6246 = vshrl.u32 %v6245, 7
        %v6247 = vsub.s32 %v6244, %v6246
        %v6248 = vrot.slane %v6232, %v6247
        %v6250 = vunpack.c.l.s4 1966171168
        %v6251 = vunpack.c.0.s8 %v6250
        %v6252 = vlaneseq
        %v6253 = vshrl.u32 %v6252, 7
        %v6254 = vsub.s32 %v6251, %v6253
        %v6255 = vrot.slane %v6233, %v6254
        %v6257 = vunpack.c.l.s4 1966171168
        %v6258 = vunpack.c.0.s8 %v6257
        %v6259 = vlaneseq
        %v6260 = vshrl.u32 %v6259, 7
        %v6261 = vsub.s32 %v6258, %v6260
        %v6262 = vrot.slane %v6234, %v6261
        %v6263 = vcombine.low %v6241, %v6248
        %v6264 = vcombine.high %v6241, %v6248
        %v6265 = vcombine.low %v6255, %v6262
        %v6266 = vcombine.high %v6255, %v6262
        %v6268 = vunpack.c.l.s4 1966171168
        %v6269 = vunpack.c.0.s8 %v6268
        %v6270 = vlaneseq
        %v6271 = vshrl.u32 %v6270, 7
        %v6272 = vsub.s32 %v6269, %v6271
        %v6273 = vrot.slane %v6263, %v6272
        %v6275 = vunpack.c.l.s4 1966171168
        %v6276 = vunpack.c.0.s8 %v6275
        %v6277 = vlaneseq
        %v6278 = vshrl.u32 %v6277, 7
        %v6279 = vsub.s32 %v6276, %v6278
        %v6280 = vrot.slane %v6264, %v6279
        %v6282 = vunpack.c.l.s4 1966171168
        %v6283 = vunpack.c.0.s8 %v6282
        %v6284 = vlaneseq
        %v6285 = vshrl.u32 %v6284, 7
        %v6286 = vsub.s32 %v6283, %v6285
        %v6287 = vrot.slane %v6265, %v6286
        %v6289 = vunpack.c.l.s4 1966171168
        %v6290 = vunpack.c.0.s8 %v6289
        %v6291 = vlaneseq
        %v6292 = vshrl.u32 %v6291, 7
        %v6293 = vsub.s32 %v6290, %v6292
        %v6294 = vrot.slane %v6266, %v6293
        %v6295 = vcombine.low %v6273, %v6287
        %v6296 = vcombine.high %v6273, %v6287
        %v6297 = vcombine.low %v6280, %v6294
        %v6298 = vcombine.high %v6280, %v6294
        %v6303 = vadd.f32 %v5990, %v6295
        %v6304 = vadd.f32 %v5992, %v6297
        %v6305 = vadd.f32 %v6061, %v6296
        %v6306 = vadd.f32 %v6063, %v6298
        %s6307 = scalar_lea.vmem [#allocation2], 32
        %v6308 = vld [vmem:[%s6307] ss:$8 sm:$0xf]
        %s6309 = scalar_lea.vmem [#allocation2], 96
        %v6310 = vld [vmem:[%s6309] ss:$8 sm:$0xf]
        %s6311 = scalar_lea.vmem [#allocation2], 160
        %v6312 = vld [vmem:[%s6311] ss:$8 sm:$0xf]
        %s6313 = scalar_lea.vmem [#allocation2], 224
        %v6314 = vld [vmem:[%s6313] ss:$8 sm:$0xf]
        %s6315 = scalar_lea.vmem [#allocation2], 288
        %v6316 = vld [vmem:[%s6315] ss:$8 sm:$0xf]
        %s6317 = scalar_lea.vmem [#allocation2], 352
        %v6318 = vld [vmem:[%s6317] ss:$8 sm:$0xf]
        %s6319 = scalar_lea.vmem [#allocation2], 416
        %v6320 = vld [vmem:[%s6319] ss:$8 sm:$0xf]
        %s6321 = scalar_lea.vmem [#allocation2], 480
        %v6322 = vld [vmem:[%s6321] ss:$8 sm:$0xf]
        %v6331 = vcombine.low %v6308, %v6310
        %v6332 = vcombine.low %v6312, %v6314
        %v6333 = vcombine.low %v6316, %v6318
        %v6334 = vcombine.low %v6320, %v6322
        %v6336 = vunpack.c.l.s4 1966171168
        %v6337 = vunpack.c.0.s8 %v6336
        %v6338 = vlaneseq
        %v6339 = vshrl.u32 %v6338, 7
        %v6340 = vsub.s32 %v6337, %v6339
        %v6341 = vrot.slane %v6331, %v6340
        %v6343 = vunpack.c.l.s4 1966171168
        %v6344 = vunpack.c.0.s8 %v6343
        %v6345 = vlaneseq
        %v6346 = vshrl.u32 %v6345, 7
        %v6347 = vsub.s32 %v6344, %v6346
        %v6348 = vrot.slane %v6332, %v6347
        %v6350 = vunpack.c.l.s4 1966171168
        %v6351 = vunpack.c.0.s8 %v6350
        %v6352 = vlaneseq
        %v6353 = vshrl.u32 %v6352, 7
        %v6354 = vsub.s32 %v6351, %v6353
        %v6355 = vrot.slane %v6333, %v6354
        %v6357 = vunpack.c.l.s4 1966171168
        %v6358 = vunpack.c.0.s8 %v6357
        %v6359 = vlaneseq
        %v6360 = vshrl.u32 %v6359, 7
        %v6361 = vsub.s32 %v6358, %v6360
        %v6362 = vrot.slane %v6334, %v6361
        %v6363 = vcombine.low %v6341, %v6348
        %v6364 = vcombine.high %v6341, %v6348
        %v6365 = vcombine.low %v6355, %v6362
        %v6366 = vcombine.high %v6355, %v6362
        %v6368 = vunpack.c.l.s4 1966171168
        %v6369 = vunpack.c.0.s8 %v6368
        %v6370 = vlaneseq
        %v6371 = vshrl.u32 %v6370, 7
        %v6372 = vsub.s32 %v6369, %v6371
        %v6373 = vrot.slane %v6363, %v6372
        %v6375 = vunpack.c.l.s4 1966171168
        %v6376 = vunpack.c.0.s8 %v6375
        %v6377 = vlaneseq
        %v6378 = vshrl.u32 %v6377, 7
        %v6379 = vsub.s32 %v6376, %v6378
        %v6380 = vrot.slane %v6364, %v6379
        %v6382 = vunpack.c.l.s4 1966171168
        %v6383 = vunpack.c.0.s8 %v6382
        %v6384 = vlaneseq
        %v6385 = vshrl.u32 %v6384, 7
        %v6386 = vsub.s32 %v6383, %v6385
        %v6387 = vrot.slane %v6365, %v6386
        %v6389 = vunpack.c.l.s4 1966171168
        %v6390 = vunpack.c.0.s8 %v6389
        %v6391 = vlaneseq
        %v6392 = vshrl.u32 %v6391, 7
        %v6393 = vsub.s32 %v6390, %v6392
        %v6394 = vrot.slane %v6366, %v6393
        %v6395 = vcombine.low %v6373, %v6387
        %v6396 = vcombine.high %v6373, %v6387
        %v6397 = vcombine.low %v6380, %v6394
        %v6398 = vcombine.high %v6380, %v6394
        %v6403 = vadd.f32 %v6132, %v6395
        %v6404 = vadd.f32 %v6134, %v6397
        %v6405 = vadd.f32 %v6203, %v6396
        %v6406 = vadd.f32 %v6205, %v6398
        %v6407 = vxor.u32 %v6303, 2147483648
        %v6408 = vmul.f32 %v6407, 1.442695
        %v6409 = vpow.pop %v6408
        %v6410 = vadd.f32 %v6409, 1.0
        %v6411 = vrcp.pop %v6410
        %v6412 = vmul.f32 1.0, %v6411
        %v6413 = vxor.u32 %v6304, 2147483648
        %v6414 = vmul.f32 %v6413, 1.442695
        %v6415 = vpow.pop %v6414
        %v6416 = vadd.f32 %v6415, 1.0
        %v6417 = vrcp.pop %v6416
        %v6418 = vmul.f32 1.0, %v6417
        %v6419 = vtanh.pop %v6305
        %v6420 = vxor.u32 %v6306, 2147483648
        %v6421 = vmul.f32 %v6420, 1.442695
        %v6422 = vpow.pop %v6421
        %v6423 = vadd.f32 %v6422, 1.0
        %v6424 = vrcp.pop %v6423
        %v6425 = vmul.f32 1.0, %v6424
        %v6426 = vmul.f32 %v6418, %v5764
        %v6427 = vmul.f32 %v6412, %v6419
        %v6428 = vadd.f32 %v6426, %v6427
        %v6429 = vtanh.pop %v6428
        %v6430 = vmul.f32 %v6425, %v6429
        %v6431 = vxor.u32 %v6403, 2147483648
        %v6432 = vmul.f32 %v6431, 1.442695
        %v6433 = vpow.pop %v6432
        %v6434 = vadd.f32 %v6433, 1.0
        %v6435 = vrcp.pop %v6434
        %v6436 = vmul.f32 1.0, %v6435
        %v6437 = vxor.u32 %v6404, 2147483648
        %v6438 = vmul.f32 %v6437, 1.442695
        %v6439 = vpow.pop %v6438
        %v6440 = vadd.f32 %v6439, 1.0
        %v6441 = vrcp.pop %v6440
        %v6442 = vmul.f32 1.0, %v6441
        %v6443 = vtanh.pop %v6405
        %v6444 = vxor.u32 %v6406, 2147483648
        %v6445 = vmul.f32 %v6444, 1.442695
        %v6446 = vpow.pop %v6445
        %v6447 = vadd.f32 %v6446, 1.0
        %v6448 = vrcp.pop %v6447
        %v6449 = vmul.f32 1.0, %v6448
        %v6450 = vmul.f32 %v6442, %v5788
        %v6451 = vmul.f32 %v6436, %v6443
        %v6452 = vadd.f32 %v6450, %v6451
        %v6453 = vtanh.pop %v6452
        %v6454 = vmul.f32 %v6449, %v6453
        %v6456 = vcombine.high %v6430, %v6430
        %v6458 = vunpack.c.l.s4 1966171168
        %v6459 = vunpack.c.0.s8 %v6458
        %v6460 = vlaneseq
        %v6461 = vshrl.u32 %v6460, 7
        %v6462 = vsub.s32 %v6459, %v6461
        %v6463 = vrot.slane %v6430, %v6462
        %v6465 = vunpack.c.l.s4 1966171168
        %v6466 = vunpack.c.0.s8 %v6465
        %v6467 = vlaneseq
        %v6468 = vshrl.u32 %v6467, 7
        %v6469 = vsub.s32 %v6466, %v6468
        %v6470 = vrot.slane %v6456, %v6469
        %v6471 = vcombine.high %v6463, %v6463
        %v6472 = vcombine.high %v6470, %v6470
        %v6474 = vunpack.c.l.s4 1966171168
        %v6475 = vunpack.c.0.s8 %v6474
        %v6476 = vlaneseq
        %v6477 = vshrl.u32 %v6476, 7
        %v6478 = vsub.s32 %v6475, %v6477
        %v6479 = vrot.slane %v6463, %v6478
        %v6481 = vunpack.c.l.s4 1966171168
        %v6482 = vunpack.c.0.s8 %v6481
        %v6483 = vlaneseq
        %v6484 = vshrl.u32 %v6483, 7
        %v6485 = vsub.s32 %v6482, %v6484
        %v6486 = vrot.slane %v6470, %v6485
        %v6488 = vunpack.c.l.s4 1966171168
        %v6489 = vunpack.c.0.s8 %v6488
        %v6490 = vlaneseq
        %v6491 = vshrl.u32 %v6490, 7
        %v6492 = vsub.s32 %v6489, %v6491
        %v6493 = vrot.slane %v6471, %v6492
        %v6495 = vunpack.c.l.s4 1966171168
        %v6496 = vunpack.c.0.s8 %v6495
        %v6497 = vlaneseq
        %v6498 = vshrl.u32 %v6497, 7
        %v6499 = vsub.s32 %v6496, %v6498
        %v6500 = vrot.slane %v6472, %v6499
        %v6501 = vcombine.high %v6479, %v6479
        %v6502 = vcombine.high %v6486, %v6486
        %v6503 = vcombine.high %v6493, %v6493
        %v6504 = vcombine.high %v6500, %v6500
        %6513 = vst [vmem:[#allocation3 + $0x7] sm:$0x1] %v6479
        %6514 = vst [vmem:[#allocation3 + $0x17] sm:$0x1] %v6493
        %6515 = vst [vmem:[#allocation3 + $0x27] sm:$0x1] %v6501
        %6516 = vst [vmem:[#allocation3 + $0x37] sm:$0x1] %v6503
        %6517 = vst [vmem:[#allocation3 + $0x47] sm:$0x1] %v6486
        %6518 = vst [vmem:[#allocation3 + $0x57] sm:$0x1] %v6500
        %6519 = vst [vmem:[#allocation3 + $0x67] sm:$0x1] %v6502
        %6520 = vst [vmem:[#allocation3 + $0x77] sm:$0x1] %v6504
        %v6522 = vcombine.high %v6454, %v6454
        %v6524 = vunpack.c.l.s4 1966171168
        %v6525 = vunpack.c.0.s8 %v6524
        %v6526 = vlaneseq
        %v6527 = vshrl.u32 %v6526, 7
        %v6528 = vsub.s32 %v6525, %v6527
        %v6529 = vrot.slane %v6454, %v6528
        %v6531 = vunpack.c.l.s4 1966171168
        %v6532 = vunpack.c.0.s8 %v6531
        %v6533 = vlaneseq
        %v6534 = vshrl.u32 %v6533, 7
        %v6535 = vsub.s32 %v6532, %v6534
        %v6536 = vrot.slane %v6522, %v6535
        %v6537 = vcombine.high %v6529, %v6529
        %v6538 = vcombine.high %v6536, %v6536
        %v6540 = vunpack.c.l.s4 1966171168
        %v6541 = vunpack.c.0.s8 %v6540
        %v6542 = vlaneseq
        %v6543 = vshrl.u32 %v6542, 7
        %v6544 = vsub.s32 %v6541, %v6543
        %v6545 = vrot.slane %v6529, %v6544
        %v6547 = vunpack.c.l.s4 1966171168
        %v6548 = vunpack.c.0.s8 %v6547
        %v6549 = vlaneseq
        %v6550 = vshrl.u32 %v6549, 7
        %v6551 = vsub.s32 %v6548, %v6550
        %v6552 = vrot.slane %v6536, %v6551
        %v6554 = vunpack.c.l.s4 1966171168
        %v6555 = vunpack.c.0.s8 %v6554
        %v6556 = vlaneseq
        %v6557 = vshrl.u32 %v6556, 7
        %v6558 = vsub.s32 %v6555, %v6557
        %v6559 = vrot.slane %v6537, %v6558
        %v6561 = vunpack.c.l.s4 1966171168
        %v6562 = vunpack.c.0.s8 %v6561
        %v6563 = vlaneseq
        %v6564 = vshrl.u32 %v6563, 7
        %v6565 = vsub.s32 %v6562, %v6564
        %v6566 = vrot.slane %v6538, %v6565
        %v6567 = vcombine.high %v6545, %v6545
        %v6568 = vcombine.high %v6552, %v6552
        %v6569 = vcombine.high %v6559, %v6559
        %v6570 = vcombine.high %v6566, %v6566
        %6579 = vst [vmem:[#allocation3 + $0x8] sm:$0x1] %v6545
        %6580 = vst [vmem:[#allocation3 + $0x18] sm:$0x1] %v6559
        %6581 = vst [vmem:[#allocation3 + $0x28] sm:$0x1] %v6567
        %6582 = vst [vmem:[#allocation3 + $0x38] sm:$0x1] %v6569
        %6583 = vst [vmem:[#allocation3 + $0x48] sm:$0x1] %v6552
        %6584 = vst [vmem:[#allocation3 + $0x58] sm:$0x1] %v6566
        %6585 = vst [vmem:[#allocation3 + $0x68] sm:$0x1] %v6568
        %6586 = vst [vmem:[#allocation3 + $0x78] sm:$0x1] %v6570
        %v6587 = vld [vmem:[#allocation3] sm:$0xff]
        %v6588 = vld [vmem:[#allocation3 + $0x8] sm:$0xff]
        %v6589 = vld [vmem:[#allocation3 + $0x10] sm:$0xff]
        %v6590 = vld [vmem:[#allocation3 + $0x18] sm:$0xff]
        %v6591 = vld [vmem:[#allocation3 + $0x20] sm:$0xff]
        %v6592 = vld [vmem:[#allocation3 + $0x28] sm:$0xff]
        %v6593 = vld [vmem:[#allocation3 + $0x30] sm:$0xff]
        %v6594 = vld [vmem:[#allocation3 + $0x38] sm:$0xff]
        %v6595 = vld [vmem:[#allocation3 + $0x40] sm:$0xff]
        %v6596 = vld [vmem:[#allocation3 + $0x48] sm:$0xff]
        %v6597 = vld [vmem:[#allocation3 + $0x50] sm:$0xff]
        %v6598 = vld [vmem:[#allocation3 + $0x58] sm:$0xff]
        %v6599 = vld [vmem:[#allocation3 + $0x60] sm:$0xff]
        %v6600 = vld [vmem:[#allocation3 + $0x68] sm:$0xff]
        %v6601 = vld [vmem:[#allocation3 + $0x70] sm:$0xff]
        %v6602 = vld [vmem:[#allocation3 + $0x78] sm:$0xff]
        %v6603 = vld [vmem:[#allocation10] sm:$0xff]
        %v6604 = vld [vmem:[#allocation10 + $0x8] sm:$0xff]
        %v6605 = vld [vmem:[#allocation10 + $0x10] sm:$0xff]
        %v6606 = vld [vmem:[#allocation10 + $0x18] sm:$0xff]
        %v6607 = vld [vmem:[#allocation10 + $0x20] sm:$0xff]
        %v6608 = vld [vmem:[#allocation10 + $0x28] sm:$0xff]
        %v6609 = vld [vmem:[#allocation10 + $0x30] sm:$0xff]
        %v6610 = vld [vmem:[#allocation10 + $0x38] sm:$0xff]
        %v6611 = vld [vmem:[#allocation10 + $0x40] sm:$0xff]
        %v6612 = vld [vmem:[#allocation10 + $0x48] sm:$0xff]
        %v6613 = vld [vmem:[#allocation10 + $0x50] sm:$0xff]
        %v6614 = vld [vmem:[#allocation10 + $0x58] sm:$0xff]
        %v6615 = vld [vmem:[#allocation10 + $0x60] sm:$0xff]
        %v6616 = vld [vmem:[#allocation10 + $0x68] sm:$0xff]
        %v6617 = vld [vmem:[#allocation10 + $0x70] sm:$0xff]
        %v6618 = vld [vmem:[#allocation10 + $0x78] sm:$0xff]
        %v6619 = vld [vmem:[#allocation10 + $0x80] sm:$0xff]
        %v6620 = vld [vmem:[#allocation10 + $0x88] sm:$0xff]
        %v6621 = vld [vmem:[#allocation10 + $0x90] sm:$0xff]
        %v6622 = vld [vmem:[#allocation10 + $0x98] sm:$0xff]
        %v6623 = vld [vmem:[#allocation10 + $0xa0] sm:$0xff]
        %v6624 = vld [vmem:[#allocation10 + $0xa8] sm:$0xff]
        %v6625 = vld [vmem:[#allocation10 + $0xb0] sm:$0xff]
        %v6626 = vld [vmem:[#allocation10 + $0xb8] sm:$0xff]
        %v6627 = vld [vmem:[#allocation10 + $0xc0] sm:$0xff]
        %v6628 = vld [vmem:[#allocation10 + $0xc8] sm:$0xff]
        %v6629 = vld [vmem:[#allocation10 + $0xd0] sm:$0xff]
        %v6630 = vld [vmem:[#allocation10 + $0xd8] sm:$0xff]
        %v6631 = vld [vmem:[#allocation10 + $0xe0] sm:$0xff]
        %v6632 = vld [vmem:[#allocation10 + $0xe8] sm:$0xff]
        %v6633 = vld [vmem:[#allocation10 + $0xf0] sm:$0xff]
        %v6634 = vld [vmem:[#allocation10 + $0xf8] sm:$0xff]
        %6635 = vmatprep.subr.mxu0 0.0
        %6636 = vmatpush1.msra.mxu0 %v6603
        %6637 = vmatprep.subr.mxu0 0.0
        %6638 = vmatpush1.msra.mxu0 %v6604
        %6639 = vmatprep.subr.mxu0 0.0
        %6640 = vmatpush1.msra.mxu0 %v6605
        %6641 = vmatprep.subr.mxu0 0.0
        %6642 = vmatpush1.msra.mxu0 %v6606
        %6643 = vmatprep.subr.mxu0 0.0
        %6644 = vmatpush1.msra.mxu0 %v6607
        %6645 = vmatprep.subr.mxu0 0.0
        %6646 = vmatpush1.msra.mxu0 %v6608
        %6647 = vmatprep.subr.mxu0 0.0
        %6648 = vmatpush1.msra.mxu0 %v6609
        %6649 = vmatprep.subr.mxu0 0.0
        %6650 = vmatpush1.msra.mxu0 %v6610
        %6651 = vmatprep.subr.mxu0 0.0
        %6652 = vmatpush1.msra.mxu0 %v6611
        %6653 = vmatprep.subr.mxu0 0.0
        %6654 = vmatpush1.msra.mxu0 %v6612
        %6655 = vmatprep.subr.mxu0 0.0
        %6656 = vmatpush1.msra.mxu0 %v6613
        %6657 = vmatprep.subr.mxu0 0.0
        %6658 = vmatpush1.msra.mxu0 %v6614
        %6659 = vmatprep.subr.mxu0 0.0
        %6660 = vmatpush1.msra.mxu0 %v6615
        %6661 = vmatprep.subr.mxu0 0.0
        %6662 = vmatpush1.msra.mxu0 %v6616
        %6663 = vmatprep.subr.mxu0 0.0
        %6664 = vmatpush1.msra.mxu0 %v6617
        %6665 = vmatprep.subr.mxu0 0.0
        %6666 = vmatpush1.msra.mxu0 %v6618
        %6667 = vmatprep.subr.mxu0 0.0
        %6668 = vmatpush1.msra.mxu0 %v6619
        %6669 = vmatprep.subr.mxu0 0.0
        %6670 = vmatpush1.msra.mxu0 %v6620
        %6671 = vmatprep.subr.mxu0 0.0
        %6672 = vmatpush1.msra.mxu0 %v6621
        %6673 = vmatprep.subr.mxu0 0.0
        %6674 = vmatpush1.msra.mxu0 %v6622
        %6675 = vmatprep.subr.mxu0 0.0
        %6676 = vmatpush1.msra.mxu0 %v6623
        %6677 = vmatprep.subr.mxu0 0.0
        %6678 = vmatpush1.msra.mxu0 %v6624
        %6679 = vmatprep.subr.mxu0 0.0
        %6680 = vmatpush1.msra.mxu0 %v6625
        %6681 = vmatprep.subr.mxu0 0.0
        %6682 = vmatpush1.msra.mxu0 %v6626
        %6683 = vmatprep.subr.mxu0 0.0
        %6684 = vmatpush1.msra.mxu0 %v6627
        %6685 = vmatprep.subr.mxu0 0.0
        %6686 = vmatpush1.msra.mxu0 %v6628
        %6687 = vmatprep.subr.mxu0 0.0
        %6688 = vmatpush1.msra.mxu0 %v6629
        %6689 = vmatprep.subr.mxu0 0.0
        %6690 = vmatpush1.msra.mxu0 %v6630
        %6691 = vmatprep.subr.mxu0 0.0
        %6692 = vmatpush1.msra.mxu0 %v6631
        %6693 = vmatprep.subr.mxu0 0.0
        %6694 = vmatpush1.msra.mxu0 %v6632
        %6695 = vmatprep.subr.mxu0 0.0
        %6696 = vmatpush1.msra.mxu0 %v6633
        %6697 = vmatprep.subr.mxu0 0.0
        %6698 = vmatpush1.msra.mxu0 %v6634
        %6699 = vmatprep.mubr.f32.mxu0 %v6588
        %6700 = vmatmul.mubr.f32.gmra.mrb[0].mxu0 %v6587
        %v6701 = vpop.f32.mrb[0].mxu0
        %v6702 = vadd.f32 0.0, %v6701
        %v6703 = vpop.f32.mrb[0].mxu0
        %6704 = vmatprep.mubr.f32.mxu0 %v6590
        %6705 = vmatmul.mubr.f32.gmra.mrb[0].mxu0 %v6589
        %v6706 = vpop.f32.mrb[0].mxu0
        %v6707 = vadd.f32 0.0, %v6706
        %v6708 = vpop.f32.mrb[0].mxu0
        %6709 = vmatprep.mubr.f32.mxu0 %v6592
        %6710 = vmatmul.mubr.f32.gmra.mrb[0].mxu0 %v6591
        %v6711 = vpop.f32.mrb[0].mxu0
        %v6712 = vadd.f32 0.0, %v6711
        %v6713 = vpop.f32.mrb[0].mxu0
        %6714 = vmatprep.mubr.f32.mxu0 %v6594
        %6715 = vmatmul.mubr.f32.gmra.mrb[0].mxu0 %v6593
        %v6716 = vpop.f32.mrb[0].mxu0
        %v6717 = vadd.f32 0.0, %v6716
        %v6718 = vpop.f32.mrb[0].mxu0
        %6719 = vmatprep.mubr.f32.mxu0 %v6596
        %6720 = vmatmul.mubr.f32.gmra.mrb[0].mxu0 %v6595
        %v6721 = vpop.f32.mrb[0].mxu0
        %v6722 = vadd.f32 0.0, %v6721
        %v6723 = vpop.f32.mrb[0].mxu0
        %6724 = vmatprep.mubr.f32.mxu0 %v6598
        %6725 = vmatmul.mubr.f32.gmra.mrb[0].mxu0 %v6597
        %v6726 = vpop.f32.mrb[0].mxu0
        %v6727 = vadd.f32 0.0, %v6726
        %v6728 = vpop.f32.mrb[0].mxu0
        %6729 = vmatprep.mubr.f32.mxu0 %v6600
        %6730 = vmatmul.mubr.f32.gmra.mrb[0].mxu0 %v6599
        %v6731 = vpop.f32.mrb[0].mxu0
        %v6732 = vadd.f32 0.0, %v6731
        %v6733 = vpop.f32.mrb[0].mxu0
        %6734 = vmatprep.mubr.f32.mxu0 %v6602
        %6735 = vmatmul.mubr.f32.gmra.mrb[0].mxu0 %v6601
        %v6736 = vpop.f32.mrb[0].mxu0
        %v6737 = vadd.f32 0.0, %v6736
        %v6738 = vpop.f32.mrb[0].mxu0
        %6739 = vdwg.mxu0
        %6740 = vst [vmem:[%s313] sm:$0xff] %v6702
        %6741 = vst [vmem:[%s313 + $0x8] sm:$0xff] %v6707
        %6742 = vst [vmem:[%s313 + $0x10] sm:$0xff] %v6712
        %6743 = vst [vmem:[%s313 + $0x18] sm:$0xff] %v6717
        %6744 = vst [vmem:[%s313 + $0x20] sm:$0xff] %v6722
        %6745 = vst [vmem:[%s313 + $0x28] sm:$0xff] %v6727
        %6746 = vst [vmem:[%s313 + $0x30] sm:$0xff] %v6732
        %6747 = vst [vmem:[%s313 + $0x38] sm:$0xff] %v6737
        %s6748 = sand.u32 %s164, 1
        %s6749 = scalar_lea.sflag [#allocation6], %s6748
        %s6750 = sand.u32 %s164, 1
        %s6751 = smul.addr %s6750, 64
        %s6752 = scalar_lea.vmem [#allocation12], %s6751
        // Predicated region
        $region61: #{tpu_custom_call.1} parent=43 // pred_check
          %p6753 = pneg %p174
        $region62: #{tpu_custom_call.1} parent=43 // pred_check_branch
          %6755 = sbr.rel (%p6753) target = $region64
        $region63: #{tpu_custom_call.1} parent=43 // pred_region
          %s6756 = smul.u32 8, %s25
          %s6758 = ssub.s32 1024, 1024
          %6759 = vsyncadd %s6749, %s6758
          %s6760 = smul.addr %s6756, 128
          %s6761 = scalar_lea.hbm %s6, %s6760
          %s6762 = sshll.u32 %s6752, 4
          %s6763 = int_to_ptr.vmem [resolvable:$true] %s6762
          %6768 = dma.vmem_to_hbm [thread:$0]  %s6763, 1024, %s6761, %s6749, 128, 128, 8
        $region64: #{tpu_custom_call.1} parent=43 // pred_fallthru
          _
      $region44: #{tpu_custom_call.1} parent=5 // pred_fallthru
        _
      %p6769 = scmp.le.s32.totalorder 2, %s20
      // Predicated region
      $region65: #{tpu_custom_call.1} parent=5 // pred_check
        %p6770 = pneg %p6769
      $region66: #{tpu_custom_call.1} parent=5 // pred_check_branch
        %6772 = sbr.rel (%p6770) target = $region68
      $region67: #{tpu_custom_call.1} parent=5 // pred_region
        %s6773 = ssub.s32 %s20, 2
        // Predicated region
        $region69: #{tpu_custom_call.1} parent=67 // pred_check
          %p6774 = pneg %p180
        $region70: #{tpu_custom_call.1} parent=67 // pred_check_branch
          %6776 = sbr.rel (%p6774) target = $region72
        $region71: #{tpu_custom_call.1} parent=67 // pred_region
          %s6777 = sand.u32 %s165, 1
          %s6778 = scalar_lea.sflag [#allocation6], %s6777
          %s6779 = sand.u32 %s165, 1
          %s6780 = smul.addr %s6779, 64
          %s6781 = scalar_lea.vmem [#allocation12], %s6780
          %6782 = dma.done %s6778, 1024
        $region72: #{tpu_custom_call.1} parent=67 // pred_fallthru
          _
      $region68: #{tpu_custom_call.1} parent=5 // pred_fallthru
        _
    $region6: #{tpu_custom_call.1} parent=1 // loop_footer
      %s24 = sadd.s32 1, %s20
    $region7: #{tpu_custom_call.1} parent=1 // loop_footer_branch
      %19 = sbr.rel target = $region3
    $region8: #{tpu_custom_call.1} parent=1 // loop_exit
      _
    %6783 = vsyncpa [#allocation5], 1
    %s6784 = scalar_lea.sflag [#allocation5], 1
    %6785 = vsyncpa %s6784, 1
    %6786 = vsyncpa [#allocation8], 1
    %6787 = vsyncpa [#allocation11], 1
    %6788 = vsyncpa [#allocation6], 1
    %s6789 = scalar_lea.sflag [#allocation6], 1
    %6790 = vsyncpa %s6789, 1

</llo_original>
